<compile_context>
chip_gen: v6e
topology: v6e:2x2x1
jax: 0.10.0
libtpu: 0.0.40
codegen_flags: <defaults>
</compile_context>

<pallas_src>
import functools
import math

import jax
import jax.numpy as jnp
from jax.experimental import pallas as pl
from jax.experimental.pallas import tpu as pltpu


def bertsum_kernel(x_ref, num_ref, *refs, fuse_qkv):
    out_ref = refs[-1]
    if fuse_qkv:
        (wr_ref, br_ref, wqkv_ref, bqkv_ref, wo_ref, bo_ref,
         g1_ref, be1_ref, w1_ref, b1_ref, w2_ref, b2_ref,
         g2_ref, be2_ref, wc_ref, bc_ref) = refs[:-1]
    else:
        (wr_ref, br_ref, wq_ref, bq_ref, wk_ref, bk_ref, wv_ref, bv_ref,
         wo_ref, bo_ref, g1_ref, be1_ref, w1_ref, b1_ref, w2_ref, b2_ref,
         g2_ref, be2_ref, wc_ref, bc_ref) = refs[:-1]

    TB, S, D_in = x_ref.shape
    M = TB * S
    D = wr_ref.shape[1]
    bf16 = jnp.bfloat16
    f32 = jnp.float32
    eps = 1e-5   # nn.TransformerEncoderLayer default layer_norm_eps

    # ---- reducer: Linear(D_in -> D) on the flattened [M, D_in] view ----
    x = x_ref[...].reshape(M, D_in)                         # bf16 (cast on host)
    h = jnp.dot(x, wr_ref[...], preferred_element_type=f32) + br_ref[...]
    hb = h.astype(bf16)

    # ---- Q/K/V projections (1/sqrt(D) pre-folded into wq/bq on the host) ----
    if fuse_qkv:                                            # D % 128 == 0: slices are views
        qkv = jnp.dot(hb, wqkv_ref[...], preferred_element_type=f32) + bqkv_ref[...]
        q, k, v = qkv[:, :D], qkv[:, D:2 * D], qkv[:, 2 * D:]
    else:
        q = jnp.dot(hb, wq_ref[...], preferred_element_type=f32) + bq_ref[...]
        k = jnp.dot(hb, wk_ref[...], preferred_element_type=f32) + bk_ref[...]
        v = jnp.dot(hb, wv_ref[...], preferred_element_type=f32) + bv_ref[...]

    # ---- per-item masked single-head self-attention on [TB, S, S] tiles ----
    q3 = q.reshape(TB, S, D).astype(bf16)
    k3 = k.reshape(TB, S, D).astype(bf16)
    v3 = v.reshape(TB, S, D).astype(bf16)

    scores = jnp.einsum("bqd,bkd->bqk", q3, k3,
                        preferred_element_type=f32)         # [TB, S, S]
    key_pos = jax.lax.broadcasted_iota(jnp.int32, (TB, 1, S), 2)
    valid_key = key_pos < num_ref[...]                      # [TB, 1, S] cls_mask
    scores = jnp.where(valid_key, scores, jnp.float32(-1e9))

    s_max = jnp.max(scores, axis=-1, keepdims=True)
    p = jnp.exp(scores - s_max)                             # unnormalized probs
    p_sum = jnp.sum(p, axis=-1, keepdims=True)
    ctx = jnp.einsum("bqk,bkd->bqd", p.astype(bf16), v3,
                     preferred_element_type=f32)
    ctx = ctx * pl.reciprocal(p_sum, approx=True)           # normalize post-matmul (EUP)
    ctx = ctx.reshape(M, D)

    attn_out = jnp.dot(ctx.astype(bf16), wo_ref[...],
                       preferred_element_type=f32) + bo_ref[...]

    # ---- residual + LayerNorm 1 (f32, one-pass statistics) ----
    r1 = h + attn_out
    mu1 = jnp.mean(r1, axis=-1, keepdims=True)
    ex1 = jnp.mean(r1 * r1, axis=-1, keepdims=True)
    n1 = (r1 - mu1) * jax.lax.rsqrt(ex1 - mu1 * mu1 + eps) * g1_ref[...] + be1_ref[...]

    # ---- FFN (ReLU) ----
    f = jnp.dot(n1.astype(bf16), w1_ref[...], preferred_element_type=f32) + b1_ref[...]
    f = jnp.maximum(f, 0.0)
    f = jnp.dot(f.astype(bf16), w2_ref[...], preferred_element_type=f32) + b2_ref[...]

    # ---- residual + LayerNorm 2 ----
    r2 = n1 + f
    mu2 = jnp.mean(r2, axis=-1, keepdims=True)
    ex2 = jnp.mean(r2 * r2, axis=-1, keepdims=True)
    n2 = (r2 - mu2) * jax.lax.rsqrt(ex2 - mu2 * mu2 + eps) * g2_ref[...] + be2_ref[...]

    # ---- classifier: (1,D) x (M,D)^T -> lane-dense (1, M); sigmoid; unmasked store ----
    logits = jax.lax.dot_general(
        wc_ref[...], n2,
        dimension_numbers=(((1,), (1,)), ((), ())),
        preferred_element_type=f32) + bc_ref[...]
    out_ref[...] = jax.nn.sigmoid(logits)


def _tpu_vmem_and_multi_tc():
    """(per-core VMEM bytes, has-2-tensorcores) with safe fallbacks."""
    try:
        cap = int(pltpu.get_tpu_info().vmem_capacity_bytes)
        return cap, cap <= (64 << 20)       # 64 MiB/TC parts (v7x-style) have 2 TCs
    except Exception:
        return 64 << 20, False              # conservative cap, no step padding


def bert_summarizer(x, num, params, *, tb=None):
    """x: [B, S, D_in] f32; num: [B] valid-sentence counts; returns [B, S] scores."""
    B, S, D_in = x.shape
    D = params["wr"].shape[1]
    D_ff = params["w1"].shape[1]
    bf16 = jnp.bfloat16

    # tb items per grid step: the SMALLEST tb with (tb*S) % 128 == 0 so dense matmuls
    # see M = tb*S >= 128 rows and the output slab is lane-dense, without growing M
    # further (per-item attention keeps the exp cost at M*S rather than M^2).
    if tb is None:
        tb = 128 // math.gcd(128, S)
    M = tb * S
    assert M % 128 == 0, "tb*S must be a multiple of 128 (pass tb accordingly)"

    vmem_cap, multi_tc = _tpu_vmem_and_multi_tc()
    steps = pl.cdiv(B, tb)
    if multi_tc and steps % 2:
        steps += 1                           # feed both TensorCores only on 2-TC parts
    Bp = steps * tb

    # Pad batch; padded items get num=0 (fully masked within their own item, discarded).
    x_p = jnp.zeros((Bp, S, D_in), bf16).at[:B].set(x.astype(bf16))
    num_p = jnp.zeros((Bp, 1, 1), jnp.int32).at[:B, 0, 0].set(num.astype(jnp.int32))

    # Weights: fold 1/sqrt(D) into Q; matmul weights bf16 (f32 accumulation); biases /
    # LN / classifier stay f32.  Fuse Q|K|V only when slices of the result are
    # lane-tile aligned (D % 128 == 0); otherwise keep three separate matmuls.
    scale = 1.0 / math.sqrt(D)
    wq_s = params["wq"] * scale
    bq_s = params["bq"] * scale
    fuse_qkv = (D % 128 == 0)
    if fuse_qkv:
        weights = [
            params["wr"].astype(bf16), params["br"],
            jnp.concatenate([wq_s, params["wk"], params["wv"]], 1).astype(bf16),
            jnp.concatenate([bq_s, params["bk"], params["bv"]], 1),
            params["wo"].astype(bf16), params["bo"],
            params["g1"], params["be1"],
            params["w1"].astype(bf16), params["b1"],
            params["w2"].astype(bf16), params["b2"],
            params["g2"], params["be2"],
            params["wc"].reshape(1, D), params["bc"],
        ]
    else:
        weights = [
            params["wr"].astype(bf16), params["br"],
            wq_s.astype(bf16), bq_s,
            params["wk"].astype(bf16), params["bk"],
            params["wv"].astype(bf16), params["bv"],
            params["wo"].astype(bf16), params["bo"],
            params["g1"], params["be1"],
            params["w1"].astype(bf16), params["b1"],
            params["w2"].astype(bf16), params["b2"],
            params["g2"], params["be2"],
            params["wc"].reshape(1, D), params["bc"],
        ]

    nbytes = lambda a: a.size * a.dtype.itemsize
    w_bytes = sum(nbytes(w) for w in weights)

    in_var_specs = [
        pl.BlockSpec((tb, S, D_in), lambda g: (g, 0, 0)),    # x block (bf16)
        pl.BlockSpec((tb, 1, 1), lambda g: (g, 0, 0)),       # per-item num (mask source)
    ]
    out_spec = pl.BlockSpec((1, M), lambda g: (0, g))        # lane-dense output slab

    flops_step = (2 * M * D_in * D + 2 * M * D * 3 * D + 4 * tb * S * S * D
                  + 2 * M * D * D + 4 * M * D * D_ff + 2 * M * D)
    cost = pl.CostEstimate(
        flops=int(steps * flops_step),
        transcendentals=int(steps * (tb * S * S + 4 * M)),
        bytes_accessed=int(nbytes(x_p) + nbytes(num_p) + w_bytes + Bp * S * 4),
    )

    def run(single_buffer_weights):
        if single_buffer_weights:
            # Grid-invariant weights: one whole-array VMEM resident, no per-step DMA,
            # no double buffer.
            w_specs = [pl.BlockSpec(memory_space=pltpu.MemorySpace.VMEM)
                       for _ in weights]
            w_mult = 1
        else:
            w_specs = [pl.BlockSpec(w.shape, lambda g, _nd=w.ndim: (0,) * _nd)
                       for w in weights]
            w_mult = 2                        # default double-buffering

        # VMEM budget: double-buffered varying blocks + weights + live intermediates
        # + headroom, clamped to 80% of this generation's per-core capacity.
        blk2 = 2 * (tb * S * D_in * 2 + tb * 4096 + M * 4)
        inter = (10 * M * D * 4 + 5 * M * D * 2
                 + tb * S * S * 10 + M * D_ff * 6
                 + (M * 3 * D * 6 if fuse_qkv else 0))
        cap = max(int(vmem_cap * 0.8), 32 << 20)
        vmem_limit = int(min(cap, max(blk2 + w_mult * w_bytes + inter + (4 << 20),
                                      32 << 20)))

        return pl.pallas_call(
            functools.partial(bertsum_kernel, fuse_qkv=fuse_qkv),
            out_shape=jax.ShapeDtypeStruct((1, Bp * S), jnp.float32),
            grid_spec=pltpu.PrefetchScalarGridSpec(
                num_scalar_prefetch=0,
                grid=(steps,),
                in_specs=in_var_specs + w_specs,
                out_specs=out_spec,
            ),
            compiler_params=pltpu.CompilerParams(
                dimension_semantics=("parallel",),
                vmem_limit_bytes=vmem_limit,
            ),
            cost_estimate=cost,
        )(x_p, num_p, *weights)

    try:
        out = run(True)
    except Exception:
        out = run(False)       # fallback: blocked (double-buffered) weight specs

    return out.reshape(Bp, S)[:B]              # [B, S] per-sentence scores


def make_params(key, d_in, d, d_ff):
    ks = jax.random.split(key, 12)
    init = lambda k, shp, scale: (scale * jax.random.normal(k, shp)).astype(jnp.float32)
    return {
        "wr": init(ks[0], (d_in, d), 0.05), "br": jnp.zeros((1, d), jnp.float32),
        "wq": init(ks[1], (d, d), 0.05),    "bq": jnp.zeros((1, d), jnp.float32),
        "wk": init(ks[2], (d, d), 0.05),    "bk": jnp.zeros((1, d), jnp.float32),
        "wv": init(ks[3], (d, d), 0.05),    "bv": jnp.zeros((1, d), jnp.float32),
        "wo": init(ks[4], (d, d), 0.05),    "bo": jnp.zeros((1, d), jnp.float32),
        "g1": jnp.ones((1, d), jnp.float32),  "be1": jnp.zeros((1, d), jnp.float32),
        "w1": init(ks[5], (d, d_ff), 0.05), "b1": jnp.zeros((1, d_ff), jnp.float32),
        "w2": init(ks[6], (d_ff, d), 0.05), "b2": jnp.zeros((1, d), jnp.float32),
        "g2": jnp.ones((1, d), jnp.float32),  "be2": jnp.zeros((1, d), jnp.float32),
        "wc": init(ks[7], (d, 1), 0.05),    "bc": jnp.zeros((1, 1), jnp.float32),
    }


def reference(x, num, p):
    """Pure-JAX f32 reference of the same forward (correctness check)."""
    B, S, _ = x.shape
    h = x @ p["wr"] + p["br"]
    D = h.shape[-1]
    mask = (jnp.arange(S)[None, :] < num[:, None])[:, None, :]          # [B,1,S]
    q = h @ p["wq"] + p["bq"]
    k = h @ p["wk"] + p["bk"]
    v = h @ p["wv"] + p["bv"]
    sc = jnp.einsum("bsd,btd->bst", q, k) / jnp.sqrt(jnp.float32(D))
    sc = jnp.where(mask, sc, -1e9)
    a = jax.nn.softmax(sc, axis=-1)
    ctx = jnp.einsum("bst,btd->bsd", a, v)
    ao = ctx @ p["wo"] + p["bo"]
    r1 = h + ao
    n1 = (r1 - r1.mean(-1, keepdims=True)) * jax.lax.rsqrt(r1.var(-1, keepdims=True) + 1e-5)
    n1 = n1 * p["g1"] + p["be1"]
    f = jnp.maximum(n1 @ p["w1"] + p["b1"], 0.0) @ p["w2"] + p["b2"]
    r2 = n1 + f
    n2 = (r2 - r2.mean(-1, keepdims=True)) * jax.lax.rsqrt(r2.var(-1, keepdims=True) + 1e-5)
    n2 = n2 * p["g2"] + p["be2"]
    return jax.nn.sigmoid(n2 @ p["wc"] + p["bc"])[..., 0]


if __name__ == "__main__":
    B, S, D_IN, D, D_FF = 2, 8, 64, 32, 64
    key = jax.random.PRNGKey(0)
    kx, kp = jax.random.split(key)

    x = jax.random.normal(kx, (B, S, D_IN), dtype=jnp.float32)
    num = jnp.array([5, 8], dtype=jnp.int32)          # valid sentences per batch item
    params = make_params(kp, D_IN, D, D_FF)

    out = jax.block_until_ready(bert_summarizer(x, num, params))
    ref = reference(x, num, params)

    assert out.shape == (B, S)
    max_err = float(jnp.max(jnp.abs(out - ref)))
    # bf16 matmul operands + approx reciprocal -> loosened tolerance vs f32 reference.
    assert jnp.allclose(out, ref, rtol=5e-2, atol=2.5e-2), (
        f"mismatch vs reference (max |err| = {max_err})")

    # TODO(synk): attention is single-head (matches an nhead=1 second_encoder); a
    # multi-head encoder would need per-head split/scale added to the kernel.
    print("KERNEL_OK")
</pallas_src>

<mosaic_0001>
module attributes {stable_mosaic.version = 11 : i64} {
  func.func @bertsum_kernel(%arg0: i32, %arg1: memref<16x8x64xbf16, #tpu.memory_space<vmem>>, %arg2: memref<16x1x1xi32, #tpu.memory_space<vmem>>, %arg3: memref<64x32xbf16, #tpu.memory_space<vmem>>, %arg4: memref<1x32xf32, #tpu.memory_space<vmem>>, %arg5: memref<32x32xbf16, #tpu.memory_space<vmem>>, %arg6: memref<1x32xf32, #tpu.memory_space<vmem>>, %arg7: memref<32x32xbf16, #tpu.memory_space<vmem>>, %arg8: memref<1x32xf32, #tpu.memory_space<vmem>>, %arg9: memref<32x32xbf16, #tpu.memory_space<vmem>>, %arg10: memref<1x32xf32, #tpu.memory_space<vmem>>, %arg11: memref<32x32xbf16, #tpu.memory_space<vmem>>, %arg12: memref<1x32xf32, #tpu.memory_space<vmem>>, %arg13: memref<1x32xf32, #tpu.memory_space<vmem>>, %arg14: memref<1x32xf32, #tpu.memory_space<vmem>>, %arg15: memref<32x64xbf16, #tpu.memory_space<vmem>>, %arg16: memref<1x64xf32, #tpu.memory_space<vmem>>, %arg17: memref<64x32xbf16, #tpu.memory_space<vmem>>, %arg18: memref<1x32xf32, #tpu.memory_space<vmem>>, %arg19: memref<1x32xf32, #tpu.memory_space<vmem>>, %arg20: memref<1x32xf32, #tpu.memory_space<vmem>>, %arg21: memref<1x32xf32, #tpu.memory_space<vmem>>, %arg22: memref<1x1xf32, #tpu.memory_space<vmem>>, %arg23: memref<1x128xf32, #tpu.memory_space<vmem>>) attributes {dimension_semantics = [#tpu.dimension_semantics<parallel>], iteration_bounds = array<i64: 1>, scalar_prefetch = 0 : i64, scratch_operands = 0 : i64, tpu.core_type = #tpu.core_type<tc>, window_params = [{transform_indices = @transform_0, window_bounds = array<i64: 16, 8, 64>}, {transform_indices = @transform_1, window_bounds = array<i64: 16, 1, 1>}, {pipeline_mode = #tpu.pipeline_mode<synchronous>, transform_indices = @transform_2, window_bounds = array<i64: 64, 32>}, {pipeline_mode = #tpu.pipeline_mode<synchronous>, transform_indices = @transform_3, window_bounds = array<i64: 1, 32>}, {pipeline_mode = #tpu.pipeline_mode<synchronous>, transform_indices = @transform_4, window_bounds = array<i64: 32, 32>}, {pipeline_mode = #tpu.pipeline_mode<synchronous>, transform_indices = @transform_5, window_bounds = array<i64: 1, 32>}, {pipeline_mode = #tpu.pipeline_mode<synchronous>, transform_indices = @transform_6, window_bounds = array<i64: 32, 32>}, {pipeline_mode = #tpu.pipeline_mode<synchronous>, transform_indices = @transform_7, window_bounds = array<i64: 1, 32>}, {pipeline_mode = #tpu.pipeline_mode<synchronous>, transform_indices = @transform_8, window_bounds = array<i64: 32, 32>}, {pipeline_mode = #tpu.pipeline_mode<synchronous>, transform_indices = @transform_9, window_bounds = array<i64: 1, 32>}, {pipeline_mode = #tpu.pipeline_mode<synchronous>, transform_indices = @transform_10, window_bounds = array<i64: 32, 32>}, {pipeline_mode = #tpu.pipeline_mode<synchronous>, transform_indices = @transform_11, window_bounds = array<i64: 1, 32>}, {pipeline_mode = #tpu.pipeline_mode<synchronous>, transform_indices = @transform_12, window_bounds = array<i64: 1, 32>}, {pipeline_mode = #tpu.pipeline_mode<synchronous>, transform_indices = @transform_13, window_bounds = array<i64: 1, 32>}, {pipeline_mode = #tpu.pipeline_mode<synchronous>, transform_indices = @transform_14, window_bounds = array<i64: 32, 64>}, {pipeline_mode = #tpu.pipeline_mode<synchronous>, transform_indices = @transform_15, window_bounds = array<i64: 1, 64>}, {pipeline_mode = #tpu.pipeline_mode<synchronous>, transform_indices = @transform_16, window_bounds = array<i64: 64, 32>}, {pipeline_mode = #tpu.pipeline_mode<synchronous>, transform_indices = @transform_17, window_bounds = array<i64: 1, 32>}, {pipeline_mode = #tpu.pipeline_mode<synchronous>, transform_indices = @transform_18, window_bounds = array<i64: 1, 32>}, {pipeline_mode = #tpu.pipeline_mode<synchronous>, transform_indices = @transform_19, window_bounds = array<i64: 1, 32>}, {pipeline_mode = #tpu.pipeline_mode<synchronous>, transform_indices = @transform_20, window_bounds = array<i64: 1, 32>}, {pipeline_mode = #tpu.pipeline_mode<synchronous>, transform_indices = @transform_21, window_bounds = array<i64: 1, 1>}, {transform_indices = @transform_22, window_bounds = array<i64: 1, 128>}]} {
    %c0 = arith.constant 0 : index
    %c0_0 = arith.constant 0 : index
    %c0_1 = arith.constant 0 : index
    %0 = vector.load %arg1[%c0, %c0_0, %c0_1] : memref<16x8x64xbf16, #tpu.memory_space<vmem>>, vector<16x8x64xbf16>
    %1 = vector.shape_cast %0 : vector<16x8x64xbf16> to vector<128x64xbf16>
    %c0_2 = arith.constant 0 : index
    %c0_3 = arith.constant 0 : index
    %2 = vector.load %arg3[%c0_2, %c0_3] : memref<64x32xbf16, #tpu.memory_space<vmem>>, vector<64x32xbf16>
    %cst = arith.constant dense<0.000000e+00> : vector<128x32xf32>
    %3 = tpu.matmul %1, %2, %cst {dimension_numbers = #tpu.dot_dimension_numbers<[1], [0], [0], [1], [0, 0, 1, 1], [], []>} : vector<128x64xbf16>, vector<64x32xbf16>, vector<128x32xf32> -> vector<128x32xf32>
    %c0_4 = arith.constant 0 : index
    %c0_5 = arith.constant 0 : index
    %4 = vector.load %arg4[%c0_4, %c0_5] : memref<1x32xf32, #tpu.memory_space<vmem>>, vector<1x32xf32>
    %5 = vector.broadcast %4 : vector<1x32xf32> to vector<128x32xf32>
    %6 = arith.addf %3, %5 : vector<128x32xf32>
    %7 = arith.truncf %6 : vector<128x32xf32> to vector<128x32xbf16>
    %c0_6 = arith.constant 0 : index
    %c0_7 = arith.constant 0 : index
    %8 = vector.load %arg5[%c0_6, %c0_7] : memref<32x32xbf16, #tpu.memory_space<vmem>>, vector<32x32xbf16>
    %cst_8 = arith.constant dense<0.000000e+00> : vector<128x32xf32>
    %9 = tpu.matmul %7, %8, %cst_8 {dimension_numbers = #tpu.dot_dimension_numbers<[1], [0], [0], [1], [0, 0, 1, 1], [], []>} : vector<128x32xbf16>, vector<32x32xbf16>, vector<128x32xf32> -> vector<128x32xf32>
    %c0_9 = arith.constant 0 : index
    %c0_10 = arith.constant 0 : index
    %10 = vector.load %arg6[%c0_9, %c0_10] : memref<1x32xf32, #tpu.memory_space<vmem>>, vector<1x32xf32>
    %11 = vector.broadcast %10 : vector<1x32xf32> to vector<128x32xf32>
    %12 = arith.addf %9, %11 : vector<128x32xf32>
    %c0_11 = arith.constant 0 : index
    %c0_12 = arith.constant 0 : index
    %13 = vector.load %arg7[%c0_11, %c0_12] : memref<32x32xbf16, #tpu.memory_space<vmem>>, vector<32x32xbf16>
    %cst_13 = arith.constant dense<0.000000e+00> : vector<128x32xf32>
    %14 = tpu.matmul %7, %13, %cst_13 {dimension_numbers = #tpu.dot_dimension_numbers<[1], [0], [0], [1], [0, 0, 1, 1], [], []>} : vector<128x32xbf16>, vector<32x32xbf16>, vector<128x32xf32> -> vector<128x32xf32>
    %c0_14 = arith.constant 0 : index
    %c0_15 = arith.constant 0 : index
    %15 = vector.load %arg8[%c0_14, %c0_15] : memref<1x32xf32, #tpu.memory_space<vmem>>, vector<1x32xf32>
    %16 = vector.broadcast %15 : vector<1x32xf32> to vector<128x32xf32>
    %17 = arith.addf %14, %16 : vector<128x32xf32>
    %c0_16 = arith.constant 0 : index
    %c0_17 = arith.constant 0 : index
    %18 = vector.load %arg9[%c0_16, %c0_17] : memref<32x32xbf16, #tpu.memory_space<vmem>>, vector<32x32xbf16>
    %cst_18 = arith.constant dense<0.000000e+00> : vector<128x32xf32>
    %19 = tpu.matmul %7, %18, %cst_18 {dimension_numbers = #tpu.dot_dimension_numbers<[1], [0], [0], [1], [0, 0, 1, 1], [], []>} : vector<128x32xbf16>, vector<32x32xbf16>, vector<128x32xf32> -> vector<128x32xf32>
    %c0_19 = arith.constant 0 : index
    %c0_20 = arith.constant 0 : index
    %20 = vector.load %arg10[%c0_19, %c0_20] : memref<1x32xf32, #tpu.memory_space<vmem>>, vector<1x32xf32>
    %21 = vector.broadcast %20 : vector<1x32xf32> to vector<128x32xf32>
    %22 = arith.addf %19, %21 : vector<128x32xf32>
    %23 = vector.shape_cast %12 : vector<128x32xf32> to vector<16x8x32xf32>
    %24 = arith.truncf %23 : vector<16x8x32xf32> to vector<16x8x32xbf16>
    %25 = vector.shape_cast %17 : vector<128x32xf32> to vector<16x8x32xf32>
    %26 = arith.truncf %25 : vector<16x8x32xf32> to vector<16x8x32xbf16>
    %27 = vector.shape_cast %22 : vector<128x32xf32> to vector<16x8x32xf32>
    %28 = arith.truncf %27 : vector<16x8x32xf32> to vector<16x8x32xbf16>
    "tpu.trace_start"() <{level = 10 : i32, message = "bqd,bkd->bqk"}> : () -> ()
    %cst_21 = arith.constant dense<0.000000e+00> : vector<16x8x8xf32>
    %29 = tpu.matmul %24, %26, %cst_21 {dimension_numbers = #tpu.dot_dimension_numbers<[2], [2], [1], [1], [0, 0, 0, 1, 1, 1], [0], [0]>} : vector<16x8x32xbf16>, vector<16x8x32xbf16>, vector<16x8x8xf32> -> vector<16x8x8xf32>
    "tpu.trace_stop"() : () -> ()
    %30 = tpu.iota {dimensions = array<i32: 2>} : vector<16x1x8xi32>
    %c0_22 = arith.constant 0 : index
    %c0_23 = arith.constant 0 : index
    %c0_24 = arith.constant 0 : index
    %31 = vector.load %arg2[%c0_22, %c0_23, %c0_24] : memref<16x1x1xi32, #tpu.memory_space<vmem>>, vector<16x1x1xi32>
    %32 = vector.broadcast %31 : vector<16x1x1xi32> to vector<16x1x8xi32>
    %33 = arith.cmpi slt, %30, %32 : vector<16x1x8xi32>
    %cst_25 = arith.constant -1.000000e+09 : f32
    %34 = vector.shape_cast %33 : vector<16x1x8xi1> to vector<16x1x8xi1>
    %35 = vector.broadcast %34 : vector<16x1x8xi1> to vector<16x8x8xi1>
    %36 = vector.broadcast %cst_25 : f32 to vector<16x8x8xf32>
    %37 = arith.select %35, %29, %36 : vector<16x8x8xi1>, vector<16x8x8xf32>
    %cst_26 = arith.constant dense<0xFF800000> : vector<16x8xf32>
    %38 = vector.multi_reduction <maximumf>, %37, %cst_26 [2] : vector<16x8x8xf32> to vector<16x8xf32>
    %39 = vector.shape_cast %38 : vector<16x8xf32> to vector<16x8x1xf32>
    %40 = vector.broadcast %39 : vector<16x8x1xf32> to vector<16x8x8xf32>
    %41 = arith.subf %37, %40 : vector<16x8x8xf32>
    %42 = math.exp %41 : vector<16x8x8xf32>
    %cst_27 = arith.constant dense<0.000000e+00> : vector<16x8xf32>
    %43 = vector.multi_reduction <add>, %42, %cst_27 [2] : vector<16x8x8xf32> to vector<16x8xf32>
    %44 = vector.shape_cast %43 : vector<16x8xf32> to vector<16x8x1xf32>
    %45 = arith.truncf %42 : vector<16x8x8xf32> to vector<16x8x8xbf16>
    "tpu.trace_start"() <{level = 10 : i32, message = "bqk,bkd->bqd"}> : () -> ()
    %cst_28 = arith.constant dense<0.000000e+00> : vector<16x8x32xf32>
    %46 = tpu.matmul %45, %28, %cst_28 {dimension_numbers = #tpu.dot_dimension_numbers<[2], [1], [1], [2], [0, 0, 0, 1, 1, 2], [0], [0]>} : vector<16x8x8xbf16>, vector<16x8x32xbf16>, vector<16x8x32xf32> -> vector<16x8x32xf32>
    "tpu.trace_stop"() : () -> ()
    %47 = tpu.reciprocal %44 {approx = true} : vector<16x8x1xf32> -> vector<16x8x1xf32>
    %48 = vector.broadcast %47 : vector<16x8x1xf32> to vector<16x8x32xf32>
    %49 = arith.mulf %46, %48 : vector<16x8x32xf32>
    %50 = vector.shape_cast %49 : vector<16x8x32xf32> to vector<128x32xf32>
    %51 = arith.truncf %50 : vector<128x32xf32> to vector<128x32xbf16>
    %c0_29 = arith.constant 0 : index
    %c0_30 = arith.constant 0 : index
    %52 = vector.load %arg11[%c0_29, %c0_30] : memref<32x32xbf16, #tpu.memory_space<vmem>>, vector<32x32xbf16>
    %cst_31 = arith.constant dense<0.000000e+00> : vector<128x32xf32>
    %53 = tpu.matmul %51, %52, %cst_31 {dimension_numbers = #tpu.dot_dimension_numbers<[1], [0], [0], [1], [0, 0, 1, 1], [], []>} : vector<128x32xbf16>, vector<32x32xbf16>, vector<128x32xf32> -> vector<128x32xf32>
    %c0_32 = arith.constant 0 : index
    %c0_33 = arith.constant 0 : index
    %54 = vector.load %arg12[%c0_32, %c0_33] : memref<1x32xf32, #tpu.memory_space<vmem>>, vector<1x32xf32>
    %55 = vector.broadcast %54 : vector<1x32xf32> to vector<128x32xf32>
    %56 = arith.addf %53, %55 : vector<128x32xf32>
    %57 = arith.addf %6, %56 : vector<128x32xf32>
    %cst_34 = arith.constant dense<0.000000e+00> : vector<128xf32>
    %58 = vector.multi_reduction <add>, %57, %cst_34 [1] : vector<128x32xf32> to vector<128xf32>
    %59 = vector.shape_cast %58 : vector<128xf32> to vector<128x1xf32>
    %cst_35 = arith.constant 3.200000e+01 : f32
    %60 = vector.broadcast %cst_35 : f32 to vector<128x1xf32>
    %61 = arith.divf %59, %60 : vector<128x1xf32>
    %62 = arith.mulf %57, %57 : vector<128x32xf32>
    %cst_36 = arith.constant dense<0.000000e+00> : vector<128xf32>
    %63 = vector.multi_reduction <add>, %62, %cst_36 [1] : vector<128x32xf32> to vector<128xf32>
    %64 = vector.shape_cast %63 : vector<128xf32> to vector<128x1xf32>
    %cst_37 = arith.constant 3.200000e+01 : f32
    %65 = vector.broadcast %cst_37 : f32 to vector<128x1xf32>
    %66 = arith.divf %64, %65 : vector<128x1xf32>
    %67 = vector.broadcast %61 : vector<128x1xf32> to vector<128x32xf32>
    %68 = arith.subf %57, %67 : vector<128x32xf32>
    %69 = arith.mulf %61, %61 : vector<128x1xf32>
    %70 = arith.subf %66, %69 : vector<128x1xf32>
    %cst_38 = arith.constant 9.99999974E-6 : f32
    %71 = vector.broadcast %cst_38 : f32 to vector<128x1xf32>
    %72 = arith.addf %70, %71 : vector<128x1xf32>
    %73 = math.rsqrt %72 : vector<128x1xf32>
    %74 = vector.broadcast %73 : vector<128x1xf32> to vector<128x32xf32>
    %75 = arith.mulf %68, %74 : vector<128x32xf32>
    %c0_39 = arith.constant 0 : index
    %c0_40 = arith.constant 0 : index
    %76 = vector.load %arg13[%c0_39, %c0_40] : memref<1x32xf32, #tpu.memory_space<vmem>>, vector<1x32xf32>
    %77 = vector.broadcast %76 : vector<1x32xf32> to vector<128x32xf32>
    %78 = arith.mulf %75, %77 : vector<128x32xf32>
    %c0_41 = arith.constant 0 : index
    %c0_42 = arith.constant 0 : index
    %79 = vector.load %arg14[%c0_41, %c0_42] : memref<1x32xf32, #tpu.memory_space<vmem>>, vector<1x32xf32>
    %80 = vector.broadcast %79 : vector<1x32xf32> to vector<128x32xf32>
    %81 = arith.addf %78, %80 : vector<128x32xf32>
    %82 = arith.truncf %81 : vector<128x32xf32> to vector<128x32xbf16>
    %c0_43 = arith.constant 0 : index
    %c0_44 = arith.constant 0 : index
    %83 = vector.load %arg15[%c0_43, %c0_44] : memref<32x64xbf16, #tpu.memory_space<vmem>>, vector<32x64xbf16>
    %cst_45 = arith.constant dense<0.000000e+00> : vector<128x64xf32>
    %84 = tpu.matmul %82, %83, %cst_45 {dimension_numbers = #tpu.dot_dimension_numbers<[1], [0], [0], [1], [0, 0, 1, 1], [], []>} : vector<128x32xbf16>, vector<32x64xbf16>, vector<128x64xf32> -> vector<128x64xf32>
    %c0_46 = arith.constant 0 : index
    %c0_47 = arith.constant 0 : index
    %85 = vector.load %arg16[%c0_46, %c0_47] : memref<1x64xf32, #tpu.memory_space<vmem>>, vector<1x64xf32>
    %86 = vector.broadcast %85 : vector<1x64xf32> to vector<128x64xf32>
    %87 = arith.addf %84, %86 : vector<128x64xf32>
    %cst_48 = arith.constant 0.000000e+00 : f32
    %88 = vector.broadcast %cst_48 : f32 to vector<128x64xf32>
    %89 = arith.maximumf %87, %88 : vector<128x64xf32>
    %90 = arith.truncf %89 : vector<128x64xf32> to vector<128x64xbf16>
    %c0_49 = arith.constant 0 : index
    %c0_50 = arith.constant 0 : index
    %91 = vector.load %arg17[%c0_49, %c0_50] : memref<64x32xbf16, #tpu.memory_space<vmem>>, vector<64x32xbf16>
    %cst_51 = arith.constant dense<0.000000e+00> : vector<128x32xf32>
    %92 = tpu.matmul %90, %91, %cst_51 {dimension_numbers = #tpu.dot_dimension_numbers<[1], [0], [0], [1], [0, 0, 1, 1], [], []>} : vector<128x64xbf16>, vector<64x32xbf16>, vector<128x32xf32> -> vector<128x32xf32>
    %c0_52 = arith.constant 0 : index
    %c0_53 = arith.constant 0 : index
    %93 = vector.load %arg18[%c0_52, %c0_53] : memref<1x32xf32, #tpu.memory_space<vmem>>, vector<1x32xf32>
    %94 = vector.broadcast %93 : vector<1x32xf32> to vector<128x32xf32>
    %95 = arith.addf %92, %94 : vector<128x32xf32>
    %96 = arith.addf %81, %95 : vector<128x32xf32>
    %cst_54 = arith.constant dense<0.000000e+00> : vector<128xf32>
    %97 = vector.multi_reduction <add>, %96, %cst_54 [1] : vector<128x32xf32> to vector<128xf32>
    %98 = vector.shape_cast %97 : vector<128xf32> to vector<128x1xf32>
    %cst_55 = arith.constant 3.200000e+01 : f32
    %99 = vector.broadcast %cst_55 : f32 to vector<128x1xf32>
    %100 = arith.divf %98, %99 : vector<128x1xf32>
    %101 = arith.mulf %96, %96 : vector<128x32xf32>
    %cst_56 = arith.constant dense<0.000000e+00> : vector<128xf32>
    %102 = vector.multi_reduction <add>, %101, %cst_56 [1] : vector<128x32xf32> to vector<128xf32>
    %103 = vector.shape_cast %102 : vector<128xf32> to vector<128x1xf32>
    %cst_57 = arith.constant 3.200000e+01 : f32
    %104 = vector.broadcast %cst_57 : f32 to vector<128x1xf32>
    %105 = arith.divf %103, %104 : vector<128x1xf32>
    %106 = vector.broadcast %100 : vector<128x1xf32> to vector<128x32xf32>
    %107 = arith.subf %96, %106 : vector<128x32xf32>
    %108 = arith.mulf %100, %100 : vector<128x1xf32>
    %109 = arith.subf %105, %108 : vector<128x1xf32>
    %cst_58 = arith.constant 9.99999974E-6 : f32
    %110 = vector.broadcast %cst_58 : f32 to vector<128x1xf32>
    %111 = arith.addf %109, %110 : vector<128x1xf32>
    %112 = math.rsqrt %111 : vector<128x1xf32>
    %113 = vector.broadcast %112 : vector<128x1xf32> to vector<128x32xf32>
    %114 = arith.mulf %107, %113 : vector<128x32xf32>
    %c0_59 = arith.constant 0 : index
    %c0_60 = arith.constant 0 : index
    %115 = vector.load %arg19[%c0_59, %c0_60] : memref<1x32xf32, #tpu.memory_space<vmem>>, vector<1x32xf32>
    %116 = vector.broadcast %115 : vector<1x32xf32> to vector<128x32xf32>
    %117 = arith.mulf %114, %116 : vector<128x32xf32>
    %c0_61 = arith.constant 0 : index
    %c0_62 = arith.constant 0 : index
    %118 = vector.load %arg20[%c0_61, %c0_62] : memref<1x32xf32, #tpu.memory_space<vmem>>, vector<1x32xf32>
    %119 = vector.broadcast %118 : vector<1x32xf32> to vector<128x32xf32>
    %120 = arith.addf %117, %119 : vector<128x32xf32>
    %c0_63 = arith.constant 0 : index
    %c0_64 = arith.constant 0 : index
    %121 = vector.load %arg21[%c0_63, %c0_64] : memref<1x32xf32, #tpu.memory_space<vmem>>, vector<1x32xf32>
    %cst_65 = arith.constant dense<0.000000e+00> : vector<1x128xf32>
    %122 = tpu.matmul %121, %120, %cst_65 {dimension_numbers = #tpu.dot_dimension_numbers<[1], [1], [0], [0], [0, 0, 1, 0], [], []>} : vector<1x32xf32>, vector<128x32xf32>, vector<1x128xf32> -> vector<1x128xf32>
    %c0_66 = arith.constant 0 : index
    %c0_67 = arith.constant 0 : index
    %123 = vector.load %arg22[%c0_66, %c0_67] : memref<1x1xf32, #tpu.memory_space<vmem>>, vector<1x1xf32>
    %124 = vector.broadcast %123 : vector<1x1xf32> to vector<1x128xf32>
    %125 = arith.addf %122, %124 : vector<1x128xf32>
    %126 = arith.negf %125 : vector<1x128xf32>
    %127 = math.exp %126 : vector<1x128xf32>
    %cst_68 = arith.constant 1.000000e+00 : f32
    %128 = vector.broadcast %cst_68 : f32 to vector<1x128xf32>
    %129 = arith.addf %128, %127 : vector<1x128xf32>
    %130 = arith.divf %128, %129 : vector<1x128xf32>
    %c0_69 = arith.constant 0 : index
    %c0_70 = arith.constant 0 : index
    %131 = vector.load %arg23[%c0_69, %c0_70] : memref<1x128xf32, #tpu.memory_space<vmem>>, vector<1x128xf32>
    tpu.vector_store %arg23[%c0_69, %c0_70], %130 {strides = array<i32>} : memref<1x128xf32, #tpu.memory_space<vmem>>, vector<1x128xf32>,
    return
  }
  func.func @transform_0(%arg0: i32) -> (i32, i32, i32) {
    %c0_i32 = arith.constant 0 : i32
    %c0_i32_0 = arith.constant 0 : i32
    %c0_i32_1 = arith.constant 0 : i32
    return %arg0, %c0_i32, %c0_i32_0 : i32, i32, i32
  }
  func.func @transform_1(%arg0: i32) -> (i32, i32, i32) {
    %c0_i32 = arith.constant 0 : i32
    %c0_i32_0 = arith.constant 0 : i32
    %c0_i32_1 = arith.constant 0 : i32
    return %arg0, %c0_i32, %c0_i32_0 : i32, i32, i32
  }
  func.func @transform_2(%arg0: i32) -> (i32, i32) {
    %c0_i32 = arith.constant 0 : i32
    %c0_i32_0 = arith.constant 0 : i32
    %c0_i32_1 = arith.constant 0 : i32
    return %c0_i32, %c0_i32_0 : i32, i32
  }
  func.func @transform_3(%arg0: i32) -> (i32, i32) {
    %c0_i32 = arith.constant 0 : i32
    %c0_i32_0 = arith.constant 0 : i32
    %c0_i32_1 = arith.constant 0 : i32
    return %c0_i32, %c0_i32_0 : i32, i32
  }
  func.func @transform_4(%arg0: i32) -> (i32, i32) {
    %c0_i32 = arith.constant 0 : i32
    %c0_i32_0 = arith.constant 0 : i32
    %c0_i32_1 = arith.constant 0 : i32
    return %c0_i32, %c0_i32_0 : i32, i32
  }
  func.func @transform_5(%arg0: i32) -> (i32, i32) {
    %c0_i32 = arith.constant 0 : i32
    %c0_i32_0 = arith.constant 0 : i32
    %c0_i32_1 = arith.constant 0 : i32
    return %c0_i32, %c0_i32_0 : i32, i32
  }
  func.func @transform_6(%arg0: i32) -> (i32, i32) {
    %c0_i32 = arith.constant 0 : i32
    %c0_i32_0 = arith.constant 0 : i32
    %c0_i32_1 = arith.constant 0 : i32
    return %c0_i32, %c0_i32_0 : i32, i32
  }
  func.func @transform_7(%arg0: i32) -> (i32, i32) {
    %c0_i32 = arith.constant 0 : i32
    %c0_i32_0 = arith.constant 0 : i32
    %c0_i32_1 = arith.constant 0 : i32
    return %c0_i32, %c0_i32_0 : i32, i32
  }
  func.func @transform_8(%arg0: i32) -> (i32, i32) {
    %c0_i32 = arith.constant 0 : i32
    %c0_i32_0 = arith.constant 0 : i32
    %c0_i32_1 = arith.constant 0 : i32
    return %c0_i32, %c0_i32_0 : i32, i32
  }
  func.func @transform_9(%arg0: i32) -> (i32, i32) {
    %c0_i32 = arith.constant 0 : i32
    %c0_i32_0 = arith.constant 0 : i32
    %c0_i32_1 = arith.constant 0 : i32
    return %c0_i32, %c0_i32_0 : i32, i32
  }
  func.func @transform_10(%arg0: i32) -> (i32, i32) {
    %c0_i32 = arith.constant 0 : i32
    %c0_i32_0 = arith.constant 0 : i32
    %c0_i32_1 = arith.constant 0 : i32
    return %c0_i32, %c0_i32_0 : i32, i32
  }
  func.func @transform_11(%arg0: i32) -> (i32, i32) {
    %c0_i32 = arith.constant 0 : i32
    %c0_i32_0 = arith.constant 0 : i32
    %c0_i32_1 = arith.constant 0 : i32
    return %c0_i32, %c0_i32_0 : i32, i32
  }
  func.func @transform_12(%arg0: i32) -> (i32, i32) {
    %c0_i32 = arith.constant 0 : i32
    %c0_i32_0 = arith.constant 0 : i32
    %c0_i32_1 = arith.constant 0 : i32
    return %c0_i32, %c0_i32_0 : i32, i32
  }
  func.func @transform_13(%arg0: i32) -> (i32, i32) {
    %c0_i32 = arith.constant 0 : i32
    %c0_i32_0 = arith.constant 0 : i32
    %c0_i32_1 = arith.constant 0 : i32
    return %c0_i32, %c0_i32_0 : i32, i32
  }
  func.func @transform_14(%arg0: i32) -> (i32, i32) {
    %c0_i32 = arith.constant 0 : i32
    %c0_i32_0 = arith.constant 0 : i32
    %c0_i32_1 = arith.constant 0 : i32
    return %c0_i32, %c0_i32_0 : i32, i32
  }
  func.func @transform_15(%arg0: i32) -> (i32, i32) {
    %c0_i32 = arith.constant 0 : i32
    %c0_i32_0 = arith.constant 0 : i32
    %c0_i32_1 = arith.constant 0 : i32
    return %c0_i32, %c0_i32_0 : i32, i32
  }
  func.func @transform_16(%arg0: i32) -> (i32, i32) {
    %c0_i32 = arith.constant 0 : i32
    %c0_i32_0 = arith.constant 0 : i32
    %c0_i32_1 = arith.constant 0 : i32
    return %c0_i32, %c0_i32_0 : i32, i32
  }
  func.func @transform_17(%arg0: i32) -> (i32, i32) {
    %c0_i32 = arith.constant 0 : i32
    %c0_i32_0 = arith.constant 0 : i32
    %c0_i32_1 = arith.constant 0 : i32
    return %c0_i32, %c0_i32_0 : i32, i32
  }
  func.func @transform_18(%arg0: i32) -> (i32, i32) {
    %c0_i32 = arith.constant 0 : i32
    %c0_i32_0 = arith.constant 0 : i32
    %c0_i32_1 = arith.constant 0 : i32
    return %c0_i32, %c0_i32_0 : i32, i32
  }
  func.func @transform_19(%arg0: i32) -> (i32, i32) {
    %c0_i32 = arith.constant 0 : i32
    %c0_i32_0 = arith.constant 0 : i32
    %c0_i32_1 = arith.constant 0 : i32
    return %c0_i32, %c0_i32_0 : i32, i32
  }
  func.func @transform_20(%arg0: i32) -> (i32, i32) {
    %c0_i32 = arith.constant 0 : i32
    %c0_i32_0 = arith.constant 0 : i32
    %c0_i32_1 = arith.constant 0 : i32
    return %c0_i32, %c0_i32_0 : i32, i32
  }
  func.func @transform_21(%arg0: i32) -> (i32, i32) {
    %c0_i32 = arith.constant 0 : i32
    %c0_i32_0 = arith.constant 0 : i32
    %c0_i32_1 = arith.constant 0 : i32
    return %c0_i32, %c0_i32_0 : i32, i32
  }
  func.func @transform_22(%arg0: i32) -> (i32, i32) {
    %c0_i32 = arith.constant 0 : i32
    %c0_i32_0 = arith.constant 0 : i32
    return %c0_i32, %arg0 : i32, i32
  }
}

module attributes {stable_mosaic.version = 11 : i64} {
  func.func @bertsum_kernel(%arg0: i32, %arg1: memref<16x8x64xbf16, #tpu.memory_space<vmem>>, %arg2: memref<16x1x1xi32, #tpu.memory_space<vmem>>, %arg3: memref<64x32xbf16, #tpu.memory_space<vmem>>, %arg4: memref<1x32xf32, #tpu.memory_space<vmem>>, %arg5: memref<32x32xbf16, #tpu.memory_space<vmem>>, %arg6: memref<1x32xf32, #tpu.memory_space<vmem>>, %arg7: memref<32x32xbf16, #tpu.memory_space<vmem>>, %arg8: memref<1x32xf32, #tpu.memory_space<vmem>>, %arg9: memref<32x32xbf16, #tpu.memory_space<vmem>>, %arg10: memref<1x32xf32, #tpu.memory_space<vmem>>, %arg11: memref<32x32xbf16, #tpu.memory_space<vmem>>, %arg12: memref<1x32xf32, #tpu.memory_space<vmem>>, %arg13: memref<1x32xf32, #tpu.memory_space<vmem>>, %arg14: memref<1x32xf32, #tpu.memory_space<vmem>>, %arg15: memref<32x64xbf16, #tpu.memory_space<vmem>>, %arg16: memref<1x64xf32, #tpu.memory_space<vmem>>, %arg17: memref<64x32xbf16, #tpu.memory_space<vmem>>, %arg18: memref<1x32xf32, #tpu.memory_space<vmem>>, %arg19: memref<1x32xf32, #tpu.memory_space<vmem>>, %arg20: memref<1x32xf32, #tpu.memory_space<vmem>>, %arg21: memref<1x32xf32, #tpu.memory_space<vmem>>, %arg22: memref<1x1xf32, #tpu.memory_space<vmem>>, %arg23: memref<1x128xf32, #tpu.memory_space<vmem>>) attributes {dimension_semantics = [#tpu.dimension_semantics<parallel>], iteration_bounds = array<i64: 1>, scalar_prefetch = 0 : i64, scratch_operands = 0 : i64, tpu.core_type = #tpu.core_type<tc>, window_params = [{transform_indices = @transform_0, window_bounds = array<i64: 16, 8, 64>}, {transform_indices = @transform_1, window_bounds = array<i64: 16, 1, 1>}, {pipeline_mode = #tpu.pipeline_mode<synchronous>, transform_indices = @transform_2, window_bounds = array<i64: 64, 32>}, {pipeline_mode = #tpu.pipeline_mode<synchronous>, transform_indices = @transform_3, window_bounds = array<i64: 1, 32>}, {pipeline_mode = #tpu.pipeline_mode<synchronous>, transform_indices = @transform_4, window_bounds = array<i64: 32, 32>}, {pipeline_mode = #tpu.pipeline_mode<synchronous>, transform_indices = @transform_5, window_bounds = array<i64: 1, 32>}, {pipeline_mode = #tpu.pipeline_mode<synchronous>, transform_indices = @transform_6, window_bounds = array<i64: 32, 32>}, {pipeline_mode = #tpu.pipeline_mode<synchronous>, transform_indices = @transform_7, window_bounds = array<i64: 1, 32>}, {pipeline_mode = #tpu.pipeline_mode<synchronous>, transform_indices = @transform_8, window_bounds = array<i64: 32, 32>}, {pipeline_mode = #tpu.pipeline_mode<synchronous>, transform_indices = @transform_9, window_bounds = array<i64: 1, 32>}, {pipeline_mode = #tpu.pipeline_mode<synchronous>, transform_indices = @transform_10, window_bounds = array<i64: 32, 32>}, {pipeline_mode = #tpu.pipeline_mode<synchronous>, transform_indices = @transform_11, window_bounds = array<i64: 1, 32>}, {pipeline_mode = #tpu.pipeline_mode<synchronous>, transform_indices = @transform_12, window_bounds = array<i64: 1, 32>}, {pipeline_mode = #tpu.pipeline_mode<synchronous>, transform_indices = @transform_13, window_bounds = array<i64: 1, 32>}, {pipeline_mode = #tpu.pipeline_mode<synchronous>, transform_indices = @transform_14, window_bounds = array<i64: 32, 64>}, {pipeline_mode = #tpu.pipeline_mode<synchronous>, transform_indices = @transform_15, window_bounds = array<i64: 1, 64>}, {pipeline_mode = #tpu.pipeline_mode<synchronous>, transform_indices = @transform_16, window_bounds = array<i64: 64, 32>}, {pipeline_mode = #tpu.pipeline_mode<synchronous>, transform_indices = @transform_17, window_bounds = array<i64: 1, 32>}, {pipeline_mode = #tpu.pipeline_mode<synchronous>, transform_indices = @transform_18, window_bounds = array<i64: 1, 32>}, {pipeline_mode = #tpu.pipeline_mode<synchronous>, transform_indices = @transform_19, window_bounds = array<i64: 1, 32>}, {pipeline_mode = #tpu.pipeline_mode<synchronous>, transform_indices = @transform_20, window_bounds = array<i64: 1, 32>}, {pipeline_mode = #tpu.pipeline_mode<synchronous>, transform_indices = @transform_21, window_bounds = array<i64: 1, 1>}, {transform_indices = @transform_22, window_bounds = array<i64: 1, 128>}]} {
    %c0 = arith.constant 0 : index
    %c0_0 = arith.constant 0 : index
    %c0_1 = arith.constant 0 : index
    %0 = vector.load %arg1[%c0, %c0_0, %c0_1] : memref<16x8x64xbf16, #tpu.memory_space<vmem>>, vector<16x8x64xbf16>
    %1 = vector.shape_cast %0 : vector<16x8x64xbf16> to vector<128x64xbf16>
    %c0_2 = arith.constant 0 : index
    %c0_3 = arith.constant 0 : index
    %2 = vector.load %arg3[%c0_2, %c0_3] : memref<64x32xbf16, #tpu.memory_space<vmem>>, vector<64x32xbf16>
    %cst = arith.constant dense<0.000000e+00> : vector<128x32xf32>
    %3 = tpu.matmul %1, %2, %cst {dimension_numbers = #tpu.dot_dimension_numbers<[1], [0], [0], [1], [0, 0, 1, 1], [], []>} : vector<128x64xbf16>, vector<64x32xbf16>, vector<128x32xf32> -> vector<128x32xf32>
    %c0_4 = arith.constant 0 : index
    %c0_5 = arith.constant 0 : index
    %4 = vector.load %arg4[%c0_4, %c0_5] : memref<1x32xf32, #tpu.memory_space<vmem>>, vector<1x32xf32>
    %5 = vector.broadcast %4 : vector<1x32xf32> to vector<128x32xf32>
    %6 = arith.addf %3, %5 : vector<128x32xf32>
    %7 = arith.truncf %6 : vector<128x32xf32> to vector<128x32xbf16>
    %c0_6 = arith.constant 0 : index
    %c0_7 = arith.constant 0 : index
    %8 = vector.load %arg5[%c0_6, %c0_7] : memref<32x32xbf16, #tpu.memory_space<vmem>>, vector<32x32xbf16>
    %cst_8 = arith.constant dense<0.000000e+00> : vector<128x32xf32>
    %9 = tpu.matmul %7, %8, %cst_8 {dimension_numbers = #tpu.dot_dimension_numbers<[1], [0], [0], [1], [0, 0, 1, 1], [], []>} : vector<128x32xbf16>, vector<32x32xbf16>, vector<128x32xf32> -> vector<128x32xf32>
    %c0_9 = arith.constant 0 : index
    %c0_10 = arith.constant 0 : index
    %10 = vector.load %arg6[%c0_9, %c0_10] : memref<1x32xf32, #tpu.memory_space<vmem>>, vector<1x32xf32>
    %11 = vector.broadcast %10 : vector<1x32xf32> to vector<128x32xf32>
    %12 = arith.addf %9, %11 : vector<128x32xf32>
    %c0_11 = arith.constant 0 : index
    %c0_12 = arith.constant 0 : index
    %13 = vector.load %arg7[%c0_11, %c0_12] : memref<32x32xbf16, #tpu.memory_space<vmem>>, vector<32x32xbf16>
    %cst_13 = arith.constant dense<0.000000e+00> : vector<128x32xf32>
    %14 = tpu.matmul %7, %13, %cst_13 {dimension_numbers = #tpu.dot_dimension_numbers<[1], [0], [0], [1], [0, 0, 1, 1], [], []>} : vector<128x32xbf16>, vector<32x32xbf16>, vector<128x32xf32> -> vector<128x32xf32>
    %c0_14 = arith.constant 0 : index
    %c0_15 = arith.constant 0 : index
    %15 = vector.load %arg8[%c0_14, %c0_15] : memref<1x32xf32, #tpu.memory_space<vmem>>, vector<1x32xf32>
    %16 = vector.broadcast %15 : vector<1x32xf32> to vector<128x32xf32>
    %17 = arith.addf %14, %16 : vector<128x32xf32>
    %c0_16 = arith.constant 0 : index
    %c0_17 = arith.constant 0 : index
    %18 = vector.load %arg9[%c0_16, %c0_17] : memref<32x32xbf16, #tpu.memory_space<vmem>>, vector<32x32xbf16>
    %cst_18 = arith.constant dense<0.000000e+00> : vector<128x32xf32>
    %19 = tpu.matmul %7, %18, %cst_18 {dimension_numbers = #tpu.dot_dimension_numbers<[1], [0], [0], [1], [0, 0, 1, 1], [], []>} : vector<128x32xbf16>, vector<32x32xbf16>, vector<128x32xf32> -> vector<128x32xf32>
    %c0_19 = arith.constant 0 : index
    %c0_20 = arith.constant 0 : index
    %20 = vector.load %arg10[%c0_19, %c0_20] : memref<1x32xf32, #tpu.memory_space<vmem>>, vector<1x32xf32>
    %21 = vector.broadcast %20 : vector<1x32xf32> to vector<128x32xf32>
    %22 = arith.addf %19, %21 : vector<128x32xf32>
    %23 = vector.shape_cast %12 : vector<128x32xf32> to vector<16x8x32xf32>
    %24 = arith.truncf %23 : vector<16x8x32xf32> to vector<16x8x32xbf16>
    %25 = vector.shape_cast %17 : vector<128x32xf32> to vector<16x8x32xf32>
    %26 = arith.truncf %25 : vector<16x8x32xf32> to vector<16x8x32xbf16>
    %27 = vector.shape_cast %22 : vector<128x32xf32> to vector<16x8x32xf32>
    %28 = arith.truncf %27 : vector<16x8x32xf32> to vector<16x8x32xbf16>
    "tpu.trace_start"() <{level = 10 : i32, message = "bqd,bkd->bqk"}> : () -> ()
    %cst_21 = arith.constant dense<0.000000e+00> : vector<16x8x8xf32>
    %29 = tpu.matmul %24, %26, %cst_21 {dimension_numbers = #tpu.dot_dimension_numbers<[2], [2], [1], [1], [0, 0, 0, 1, 1, 1], [0], [0]>} : vector<16x8x32xbf16>, vector<16x8x32xbf16>, vector<16x8x8xf32> -> vector<16x8x8xf32>
    "tpu.trace_stop"() : () -> ()
    %30 = tpu.iota {dimensions = array<i32: 2>} : vector<16x1x8xi32>
    %c0_22 = arith.constant 0 : index
    %c0_23 = arith.constant 0 : index
    %c0_24 = arith.constant 0 : index
    %31 = vector.load %arg2[%c0_22, %c0_23, %c0_24] : memref<16x1x1xi32, #tpu.memory_space<vmem>>, vector<16x1x1xi32>
    %32 = vector.broadcast %31 : vector<16x1x1xi32> to vector<16x1x8xi32>
    %33 = arith.cmpi slt, %30, %32 : vector<16x1x8xi32>
    %cst_25 = arith.constant -1.000000e+09 : f32
    %34 = vector.shape_cast %33 : vector<16x1x8xi1> to vector<16x1x8xi1>
    %35 = vector.broadcast %34 : vector<16x1x8xi1> to vector<16x8x8xi1>
    %36 = vector.broadcast %cst_25 : f32 to vector<16x8x8xf32>
    %37 = arith.select %35, %29, %36 : vector<16x8x8xi1>, vector<16x8x8xf32>
    %cst_26 = arith.constant dense<0xFF800000> : vector<16x8xf32>
    %38 = vector.multi_reduction <maximumf>, %37, %cst_26 [2] : vector<16x8x8xf32> to vector<16x8xf32>
    %39 = vector.shape_cast %38 : vector<16x8xf32> to vector<16x8x1xf32>
    %40 = vector.broadcast %39 : vector<16x8x1xf32> to vector<16x8x8xf32>
    %41 = arith.subf %37, %40 : vector<16x8x8xf32>
    %42 = math.exp %41 : vector<16x8x8xf32>
    %cst_27 = arith.constant dense<0.000000e+00> : vector<16x8xf32>
    %43 = vector.multi_reduction <add>, %42, %cst_27 [2] : vector<16x8x8xf32> to vector<16x8xf32>
    %44 = vector.shape_cast %43 : vector<16x8xf32> to vector<16x8x1xf32>
    %45 = arith.truncf %42 : vector<16x8x8xf32> to vector<16x8x8xbf16>
    "tpu.trace_start"() <{level = 10 : i32, message = "bqk,bkd->bqd"}> : () -> ()
    %cst_28 = arith.constant dense<0.000000e+00> : vector<16x8x32xf32>
    %46 = tpu.matmul %45, %28, %cst_28 {dimension_numbers = #tpu.dot_dimension_numbers<[2], [1], [1], [2], [0, 0, 0, 1, 1, 2], [0], [0]>} : vector<16x8x8xbf16>, vector<16x8x32xbf16>, vector<16x8x32xf32> -> vector<16x8x32xf32>
    "tpu.trace_stop"() : () -> ()
    %47 = tpu.reciprocal %44 {approx = true} : vector<16x8x1xf32> -> vector<16x8x1xf32>
    %48 = vector.broadcast %47 : vector<16x8x1xf32> to vector<16x8x32xf32>
    %49 = arith.mulf %46, %48 : vector<16x8x32xf32>
    %50 = vector.shape_cast %49 : vector<16x8x32xf32> to vector<128x32xf32>
    %51 = arith.truncf %50 : vector<128x32xf32> to vector<128x32xbf16>
    %c0_29 = arith.constant 0 : index
    %c0_30 = arith.constant 0 : index
    %52 = vector.load %arg11[%c0_29, %c0_30] : memref<32x32xbf16, #tpu.memory_space<vmem>>, vector<32x32xbf16>
    %cst_31 = arith.constant dense<0.000000e+00> : vector<128x32xf32>
    %53 = tpu.matmul %51, %52, %cst_31 {dimension_numbers = #tpu.dot_dimension_numbers<[1], [0], [0], [1], [0, 0, 1, 1], [], []>} : vector<128x32xbf16>, vector<32x32xbf16>, vector<128x32xf32> -> vector<128x32xf32>
    %c0_32 = arith.constant 0 : index
    %c0_33 = arith.constant 0 : index
    %54 = vector.load %arg12[%c0_32, %c0_33] : memref<1x32xf32, #tpu.memory_space<vmem>>, vector<1x32xf32>
    %55 = vector.broadcast %54 : vector<1x32xf32> to vector<128x32xf32>
    %56 = arith.addf %53, %55 : vector<128x32xf32>
    %57 = arith.addf %6, %56 : vector<128x32xf32>
    %cst_34 = arith.constant dense<0.000000e+00> : vector<128xf32>
    %58 = vector.multi_reduction <add>, %57, %cst_34 [1] : vector<128x32xf32> to vector<128xf32>
    %59 = vector.shape_cast %58 : vector<128xf32> to vector<128x1xf32>
    %cst_35 = arith.constant 3.200000e+01 : f32
    %60 = vector.broadcast %cst_35 : f32 to vector<128x1xf32>
    %61 = arith.divf %59, %60 : vector<128x1xf32>
    %62 = arith.mulf %57, %57 : vector<128x32xf32>
    %cst_36 = arith.constant dense<0.000000e+00> : vector<128xf32>
    %63 = vector.multi_reduction <add>, %62, %cst_36 [1] : vector<128x32xf32> to vector<128xf32>
    %64 = vector.shape_cast %63 : vector<128xf32> to vector<128x1xf32>
    %cst_37 = arith.constant 3.200000e+01 : f32
    %65 = vector.broadcast %cst_37 : f32 to vector<128x1xf32>
    %66 = arith.divf %64, %65 : vector<128x1xf32>
    %67 = vector.broadcast %61 : vector<128x1xf32> to vector<128x32xf32>
    %68 = arith.subf %57, %67 : vector<128x32xf32>
    %69 = arith.mulf %61, %61 : vector<128x1xf32>
    %70 = arith.subf %66, %69 : vector<128x1xf32>
    %cst_38 = arith.constant 9.99999974E-6 : f32
    %71 = vector.broadcast %cst_38 : f32 to vector<128x1xf32>
    %72 = arith.addf %70, %71 : vector<128x1xf32>
    %73 = math.rsqrt %72 : vector<128x1xf32>
    %74 = vector.broadcast %73 : vector<128x1xf32> to vector<128x32xf32>
    %75 = arith.mulf %68, %74 : vector<128x32xf32>
    %c0_39 = arith.constant 0 : index
    %c0_40 = arith.constant 0 : index
    %76 = vector.load %arg13[%c0_39, %c0_40] : memref<1x32xf32, #tpu.memory_space<vmem>>, vector<1x32xf32>
    %77 = vector.broadcast %76 : vector<1x32xf32> to vector<128x32xf32>
    %78 = arith.mulf %75, %77 : vector<128x32xf32>
    %c0_41 = arith.constant 0 : index
    %c0_42 = arith.constant 0 : index
    %79 = vector.load %arg14[%c0_41, %c0_42] : memref<1x32xf32, #tpu.memory_space<vmem>>, vector<1x32xf32>
    %80 = vector.broadcast %79 : vector<1x32xf32> to vector<128x32xf32>
    %81 = arith.addf %78, %80 : vector<128x32xf32>
    %82 = arith.truncf %81 : vector<128x32xf32> to vector<128x32xbf16>
    %c0_43 = arith.constant 0 : index
    %c0_44 = arith.constant 0 : index
    %83 = vector.load %arg15[%c0_43, %c0_44] : memref<32x64xbf16, #tpu.memory_space<vmem>>, vector<32x64xbf16>
    %cst_45 = arith.constant dense<0.000000e+00> : vector<128x64xf32>
    %84 = tpu.matmul %82, %83, %cst_45 {dimension_numbers = #tpu.dot_dimension_numbers<[1], [0], [0], [1], [0, 0, 1, 1], [], []>} : vector<128x32xbf16>, vector<32x64xbf16>, vector<128x64xf32> -> vector<128x64xf32>
    %c0_46 = arith.constant 0 : index
    %c0_47 = arith.constant 0 : index
    %85 = vector.load %arg16[%c0_46, %c0_47] : memref<1x64xf32, #tpu.memory_space<vmem>>, vector<1x64xf32>
    %86 = vector.broadcast %85 : vector<1x64xf32> to vector<128x64xf32>
    %87 = arith.addf %84, %86 : vector<128x64xf32>
    %cst_48 = arith.constant 0.000000e+00 : f32
    %88 = vector.broadcast %cst_48 : f32 to vector<128x64xf32>
    %89 = arith.maximumf %87, %88 : vector<128x64xf32>
    %90 = arith.truncf %89 : vector<128x64xf32> to vector<128x64xbf16>
    %c0_49 = arith.constant 0 : index
    %c0_50 = arith.constant 0 : index
    %91 = vector.load %arg17[%c0_49, %c0_50] : memref<64x32xbf16, #tpu.memory_space<vmem>>, vector<64x32xbf16>
    %cst_51 = arith.constant dense<0.000000e+00> : vector<128x32xf32>
    %92 = tpu.matmul %90, %91, %cst_51 {dimension_numbers = #tpu.dot_dimension_numbers<[1], [0], [0], [1], [0, 0, 1, 1], [], []>} : vector<128x64xbf16>, vector<64x32xbf16>, vector<128x32xf32> -> vector<128x32xf32>
    %c0_52 = arith.constant 0 : index
    %c0_53 = arith.constant 0 : index
    %93 = vector.load %arg18[%c0_52, %c0_53] : memref<1x32xf32, #tpu.memory_space<vmem>>, vector<1x32xf32>
    %94 = vector.broadcast %93 : vector<1x32xf32> to vector<128x32xf32>
    %95 = arith.addf %92, %94 : vector<128x32xf32>
    %96 = arith.addf %81, %95 : vector<128x32xf32>
    %cst_54 = arith.constant dense<0.000000e+00> : vector<128xf32>
    %97 = vector.multi_reduction <add>, %96, %cst_54 [1] : vector<128x32xf32> to vector<128xf32>
    %98 = vector.shape_cast %97 : vector<128xf32> to vector<128x1xf32>
    %cst_55 = arith.constant 3.200000e+01 : f32
    %99 = vector.broadcast %cst_55 : f32 to vector<128x1xf32>
    %100 = arith.divf %98, %99 : vector<128x1xf32>
    %101 = arith.mulf %96, %96 : vector<128x32xf32>
    %cst_56 = arith.constant dense<0.000000e+00> : vector<128xf32>
    %102 = vector.multi_reduction <add>, %101, %cst_56 [1] : vector<128x32xf32> to vector<128xf32>
    %103 = vector.shape_cast %102 : vector<128xf32> to vector<128x1xf32>
    %cst_57 = arith.constant 3.200000e+01 : f32
    %104 = vector.broadcast %cst_57 : f32 to vector<128x1xf32>
    %105 = arith.divf %103, %104 : vector<128x1xf32>
    %106 = vector.broadcast %100 : vector<128x1xf32> to vector<128x32xf32>
    %107 = arith.subf %96, %106 : vector<128x32xf32>
    %108 = arith.mulf %100, %100 : vector<128x1xf32>
    %109 = arith.subf %105, %108 : vector<128x1xf32>
    %cst_58 = arith.constant 9.99999974E-6 : f32
    %110 = vector.broadcast %cst_58 : f32 to vector<128x1xf32>
    %111 = arith.addf %109, %110 : vector<128x1xf32>
    %112 = math.rsqrt %111 : vector<128x1xf32>
    %113 = vector.broadcast %112 : vector<128x1xf32> to vector<128x32xf32>
    %114 = arith.mulf %107, %113 : vector<128x32xf32>
    %c0_59 = arith.constant 0 : index
    %c0_60 = arith.constant 0 : index
    %115 = vector.load %arg19[%c0_59, %c0_60] : memref<1x32xf32, #tpu.memory_space<vmem>>, vector<1x32xf32>
    %116 = vector.broadcast %115 : vector<1x32xf32> to vector<128x32xf32>
    %117 = arith.mulf %114, %116 : vector<128x32xf32>
    %c0_61 = arith.constant 0 : index
    %c0_62 = arith.constant 0 : index
    %118 = vector.load %arg20[%c0_61, %c0_62] : memref<1x32xf32, #tpu.memory_space<vmem>>, vector<1x32xf32>
    %119 = vector.broadcast %118 : vector<1x32xf32> to vector<128x32xf32>
    %120 = arith.addf %117, %119 : vector<128x32xf32>
    %c0_63 = arith.constant 0 : index
    %c0_64 = arith.constant 0 : index
    %121 = vector.load %arg21[%c0_63, %c0_64] : memref<1x32xf32, #tpu.memory_space<vmem>>, vector<1x32xf32>
    %cst_65 = arith.constant dense<0.000000e+00> : vector<1x128xf32>
    %122 = tpu.matmul %121, %120, %cst_65 {dimension_numbers = #tpu.dot_dimension_numbers<[1], [1], [0], [0], [0, 0, 1, 0], [], []>} : vector<1x32xf32>, vector<128x32xf32>, vector<1x128xf32> -> vector<1x128xf32>
    %c0_66 = arith.constant 0 : index
    %c0_67 = arith.constant 0 : index
    %123 = vector.load %arg22[%c0_66, %c0_67] : memref<1x1xf32, #tpu.memory_space<vmem>>, vector<1x1xf32>
    %124 = vector.broadcast %123 : vector<1x1xf32> to vector<1x128xf32>
    %125 = arith.addf %122, %124 : vector<1x128xf32>
    %126 = arith.negf %125 : vector<1x128xf32>
    %127 = math.exp %126 : vector<1x128xf32>
    %cst_68 = arith.constant 1.000000e+00 : f32
    %128 = vector.broadcast %cst_68 : f32 to vector<1x128xf32>
    %129 = arith.addf %128, %127 : vector<1x128xf32>
    %130 = arith.divf %128, %129 : vector<1x128xf32>
    %c0_69 = arith.constant 0 : index
    %c0_70 = arith.constant 0 : index
    %131 = vector.load %arg23[%c0_69, %c0_70] : memref<1x128xf32, #tpu.memory_space<vmem>>, vector<1x128xf32>
    tpu.vector_store %arg23[%c0_69, %c0_70], %130 {strides = array<i32>} : memref<1x128xf32, #tpu.memory_space<vmem>>, vector<1x128xf32>,
    return
  }
  func.func @transform_0(%arg0: i32) -> (i32, i32, i32) {
    %c0_i32 = arith.constant 0 : i32
    %c0_i32_0 = arith.constant 0 : i32
    %c0_i32_1 = arith.constant 0 : i32
    return %arg0, %c0_i32, %c0_i32_0 : i32, i32, i32
  }
  func.func @transform_1(%arg0: i32) -> (i32, i32, i32) {
    %c0_i32 = arith.constant 0 : i32
    %c0_i32_0 = arith.constant 0 : i32
    %c0_i32_1 = arith.constant 0 : i32
    return %arg0, %c0_i32, %c0_i32_0 : i32, i32, i32
  }
  func.func @transform_2(%arg0: i32) -> (i32, i32) {
    %c0_i32 = arith.constant 0 : i32
    %c0_i32_0 = arith.constant 0 : i32
    %c0_i32_1 = arith.constant 0 : i32
    return %c0_i32, %c0_i32_0 : i32, i32
  }
  func.func @transform_3(%arg0: i32) -> (i32, i32) {
    %c0_i32 = arith.constant 0 : i32
    %c0_i32_0 = arith.constant 0 : i32
    %c0_i32_1 = arith.constant 0 : i32
    return %c0_i32, %c0_i32_0 : i32, i32
  }
  func.func @transform_4(%arg0: i32) -> (i32, i32) {
    %c0_i32 = arith.constant 0 : i32
    %c0_i32_0 = arith.constant 0 : i32
    %c0_i32_1 = arith.constant 0 : i32
    return %c0_i32, %c0_i32_0 : i32, i32
  }
  func.func @transform_5(%arg0: i32) -> (i32, i32) {
    %c0_i32 = arith.constant 0 : i32
    %c0_i32_0 = arith.constant 0 : i32
    %c0_i32_1 = arith.constant 0 : i32
    return %c0_i32, %c0_i32_0 : i32, i32
  }
  func.func @transform_6(%arg0: i32) -> (i32, i32) {
    %c0_i32 = arith.constant 0 : i32
    %c0_i32_0 = arith.constant 0 : i32
    %c0_i32_1 = arith.constant 0 : i32
    return %c0_i32, %c0_i32_0 : i32, i32
  }
  func.func @transform_7(%arg0: i32) -> (i32, i32) {
    %c0_i32 = arith.constant 0 : i32
    %c0_i32_0 = arith.constant 0 : i32
    %c0_i32_1 = arith.constant 0 : i32
    return %c0_i32, %c0_i32_0 : i32, i32
  }
  func.func @transform_8(%arg0: i32) -> (i32, i32) {
    %c0_i32 = arith.constant 0 : i32
    %c0_i32_0 = arith.constant 0 : i32
    %c0_i32_1 = arith.constant 0 : i32
    return %c0_i32, %c0_i32_0 : i32, i32
  }
  func.func @transform_9(%arg0: i32) -> (i32, i32) {
    %c0_i32 = arith.constant 0 : i32
    %c0_i32_0 = arith.constant 0 : i32
    %c0_i32_1 = arith.constant 0 : i32
    return %c0_i32, %c0_i32_0 : i32, i32
  }
  func.func @transform_10(%arg0: i32) -> (i32, i32) {
    %c0_i32 = arith.constant 0 : i32
    %c0_i32_0 = arith.constant 0 : i32
    %c0_i32_1 = arith.constant 0 : i32
    return %c0_i32, %c0_i32_0 : i32, i32
  }
  func.func @transform_11(%arg0: i32) -> (i32, i32) {
    %c0_i32 = arith.constant 0 : i32
    %c0_i32_0 = arith.constant 0 : i32
    %c0_i32_1 = arith.constant 0 : i32
    return %c0_i32, %c0_i32_0 : i32, i32
  }
  func.func @transform_12(%arg0: i32) -> (i32, i32) {
    %c0_i32 = arith.constant 0 : i32
    %c0_i32_0 = arith.constant 0 : i32
    %c0_i32_1 = arith.constant 0 : i32
    return %c0_i32, %c0_i32_0 : i32, i32
  }
  func.func @transform_13(%arg0: i32) -> (i32, i32) {
    %c0_i32 = arith.constant 0 : i32
    %c0_i32_0 = arith.constant 0 : i32
    %c0_i32_1 = arith.constant 0 : i32
    return %c0_i32, %c0_i32_0 : i32, i32
  }
  func.func @transform_14(%arg0: i32) -> (i32, i32) {
    %c0_i32 = arith.constant 0 : i32
    %c0_i32_0 = arith.constant 0 : i32
    %c0_i32_1 = arith.constant 0 : i32
    return %c0_i32, %c0_i32_0 : i32, i32
  }
  func.func @transform_15(%arg0: i32) -> (i32, i32) {
    %c0_i32 = arith.constant 0 : i32
    %c0_i32_0 = arith.constant 0 : i32
    %c0_i32_1 = arith.constant 0 : i32
    return %c0_i32, %c0_i32_0 : i32, i32
  }
  func.func @transform_16(%arg0: i32) -> (i32, i32) {
    %c0_i32 = arith.constant 0 : i32
    %c0_i32_0 = arith.constant 0 : i32
    %c0_i32_1 = arith.constant 0 : i32
    return %c0_i32, %c0_i32_0 : i32, i32
  }
  func.func @transform_17(%arg0: i32) -> (i32, i32) {
    %c0_i32 = arith.constant 0 : i32
    %c0_i32_0 = arith.constant 0 : i32
    %c0_i32_1 = arith.constant 0 : i32
    return %c0_i32, %c0_i32_0 : i32, i32
  }
  func.func @transform_18(%arg0: i32) -> (i32, i32) {
    %c0_i32 = arith.constant 0 : i32
    %c0_i32_0 = arith.constant 0 : i32
    %c0_i32_1 = arith.constant 0 : i32
    return %c0_i32, %c0_i32_0 : i32, i32
  }
  func.func @transform_19(%arg0: i32) -> (i32, i32) {
    %c0_i32 = arith.constant 0 : i32
    %c0_i32_0 = arith.constant 0 : i32
    %c0_i32_1 = arith.constant 0 : i32
    return %c0_i32, %c0_i32_0 : i32, i32
  }
  func.func @transform_20(%arg0: i32) -> (i32, i32) {
    %c0_i32 = arith.constant 0 : i32
    %c0_i32_0 = arith.constant 0 : i32
    %c0_i32_1 = arith.constant 0 : i32
    return %c0_i32, %c0_i32_0 : i32, i32
  }
  func.func @transform_21(%arg0: i32) -> (i32, i32) {
    %c0_i32 = arith.constant 0 : i32
    %c0_i32_0 = arith.constant 0 : i32
    %c0_i32_1 = arith.constant 0 : i32
    return %c0_i32, %c0_i32_0 : i32, i32
  }
  func.func @transform_22(%arg0: i32) -> (i32, i32) {
    %c0_i32 = arith.constant 0 : i32
    %c0_i32_0 = arith.constant 0 : i32
    return %c0_i32, %arg0 : i32, i32
  }
}

</mosaic_0001>

<llo_original>
// kernel: tpu_custom_call.1
$region0: #{tpu_custom_call.1}
  #allocation0 [shape = 'u32[]', space=smem, size = 0x4, offset = 0x4, fixed_abs, tag = 'smem constant byte address 0x4 - core index']
  #allocation1 [shape = 'u32[144,128]{1,0:T(1,128)}', space=vmem, size = 0x12000, scoped, tag = 'internal scratch']
  #allocation2 [shape = 'f32[1,1]{1,0:T(1,128)S(1)}', space=vmem, size = 0x200, scoped, tag = 'scoped memory for tpu_custom_call.1']
  %s0 = inlined_call_operand.vmem [shape: bf16[16,8,64], index: 0, kind: input, shape index: {}]
  %s1 = inlined_call_operand.vmem [shape: s32[16,1,1], index: 1, kind: input, shape index: {}]
  %s2 = inlined_call_operand.vmem [shape: bf16[64,32], index: 2, kind: input, shape index: {}]
  %s3 = inlined_call_operand.vmem [shape: f32[1,32], index: 3, kind: input, shape index: {}]
  %s4 = inlined_call_operand.vmem [shape: bf16[32,32], index: 4, kind: input, shape index: {}]
  %s5 = inlined_call_operand.hbm [shape: f32[1,32], index: 5, kind: input, shape index: {}]
  %s6 = inlined_call_operand.hbm [shape: bf16[32,32], index: 6, kind: input, shape index: {}]
  %s7 = inlined_call_operand.hbm [shape: f32[1,32], index: 7, kind: input, shape index: {}]
  %s8 = inlined_call_operand.vmem [shape: bf16[32,32], index: 8, kind: input, shape index: {}]
  %s9 = inlined_call_operand.vmem [shape: f32[1,32], index: 9, kind: input, shape index: {}]
  %s10 = inlined_call_operand.hbm [shape: bf16[32,32], index: 10, kind: input, shape index: {}]
  %s11 = inlined_call_operand.vmem [shape: f32[1,32], index: 11, kind: input, shape index: {}]
  %s12 = inlined_call_operand.vmem [shape: f32[1,32], index: 12, kind: input, shape index: {}]
  %s13 = inlined_call_operand.vmem [shape: f32[1,32], index: 13, kind: input, shape index: {}]
  %s14 = inlined_call_operand.hbm [shape: bf16[32,64], index: 14, kind: input, shape index: {}]
  %s15 = inlined_call_operand.vmem [shape: f32[1,64], index: 15, kind: input, shape index: {}]
  %s16 = inlined_call_operand.vmem [shape: bf16[64,32], index: 16, kind: input, shape index: {}]
  %s17 = inlined_call_operand.vmem [shape: f32[1,32], index: 17, kind: input, shape index: {}]
  %s18 = inlined_call_operand.vmem [shape: f32[1,32], index: 18, kind: input, shape index: {}]
  %s19 = inlined_call_operand.vmem [shape: f32[1,32], index: 19, kind: input, shape index: {}]
  %s20 = inlined_call_operand.vmem [shape: f32[1,32], index: 20, kind: input, shape index: {}]
  %s21 = inlined_call_operand.<no memory space> [shape: f32[1,1], index: 21, kind: input, shape index: {}]
  %s22 = inlined_call_operand.hbm [shape: f32[1,128], index: 22, kind: output, shape index: {}]
  %s23 = sld [smem:[#allocation0]]
  $region118: #{tpu_custom_call.1} parent=0
    _
  %s25 = ssub.s32 1, %s23
  %s26 = scalar_select 0, %s25, %s23
  %v27 = vstv %s21
  %28 = vst [vmem:[#allocation2] sm:$0x1] %v27
  $region1: #{tpu_custom_call.1} parent=0
    #allocation3 [shape = 'u8[512]{0}', space=vmem, size = 0x400, scoped, tag = 'input window, operand 5, single buffered']
    #allocation4 [shape = 's32[1]{0}', space=sflag, size = 0x4, scoped, tag = 'scoped memory for tpu_custom_call.1']
    #allocation5 [shape = 's32[1]{0}', space=sflag, size = 0x4, scoped, tag = 'scoped memory for tpu_custom_call.1']
    #allocation6 [shape = 'u8[8192]{0}', space=vmem, size = 0x2000, scoped, tag = 'input window, operand 6, single buffered']
    #allocation7 [shape = 's32[1]{0}', space=sflag, size = 0x4, scoped, tag = 'scoped memory for tpu_custom_call.1']
    #allocation8 [shape = 'u8[512]{0}', space=vmem, size = 0x400, scoped, tag = 'input window, operand 7, single buffered']
    #allocation9 [shape = 'u8[8192]{0}', space=vmem, size = 0x2000, scoped, tag = 'input window, operand 10, single buffered']
    #allocation10 [shape = 's32[1]{0}', space=sflag, size = 0x4, scoped, tag = 'scoped memory for tpu_custom_call.1']
    #allocation11 [shape = 'u8[8192]{0}', space=vmem, size = 0x2000, scoped, tag = 'input window, operand 14, single buffered']
    #allocation12 [shape = 'u8[512]{0}', space=vmem, size = 0x400, scoped, tag = 'output window, operand 0, single buffered']
    %29 = vsyncpa [#allocation4], 0
    %30 = vsyncpa [#allocation7], 0
    %31 = vsyncpa [#allocation10], 0
    %32 = vsyncpa [#allocation5], 0
    // Predicated region
    $region2: #{tpu_custom_call.1} parent=1 // pred_check
      _
    $region3: #{tpu_custom_call.1} parent=1 // pred_check_branch
      %34 = sbr.rel (0) target = $region5
    $region4: #{tpu_custom_call.1} parent=1 // pred_region
      _
    $region5: #{tpu_custom_call.1} parent=1 // pred_fallthru
      _
    // Predicated region
    $region6: #{tpu_custom_call.1} parent=1 // pred_check
      _
    $region7: #{tpu_custom_call.1} parent=1 // pred_check_branch
      %36 = sbr.rel (0) target = $region9
    $region8: #{tpu_custom_call.1} parent=1 // pred_region
      _
    $region9: #{tpu_custom_call.1} parent=1 // pred_fallthru
      _
    // Predicated region
    $region10: #{tpu_custom_call.1} parent=1 // pred_check
      _
    $region11: #{tpu_custom_call.1} parent=1 // pred_check_branch
      %38 = sbr.rel (0) target = $region13
    $region12: #{tpu_custom_call.1} parent=1 // pred_region
      _
    $region13: #{tpu_custom_call.1} parent=1 // pred_fallthru
      _
    // Predicated region
    $region14: #{tpu_custom_call.1} parent=1 // pred_check
      _
    $region15: #{tpu_custom_call.1} parent=1 // pred_check_branch
      %40 = sbr.rel (0) target = $region17
    $region16: #{tpu_custom_call.1} parent=1 // pred_region
      _
    $region17: #{tpu_custom_call.1} parent=1 // pred_fallthru
      _
    // Predicated region
    $region18: #{tpu_custom_call.1} parent=1 // pred_check
      _
    $region19: #{tpu_custom_call.1} parent=1 // pred_check_branch
      %42 = sbr.rel (0) target = $region21
    $region20: #{tpu_custom_call.1} parent=1 // pred_region
      _
    $region21: #{tpu_custom_call.1} parent=1 // pred_fallthru
      _
    // Predicated region
    $region22: #{tpu_custom_call.1} parent=1 // pred_check
      _
    $region23: #{tpu_custom_call.1} parent=1 // pred_check_branch
      %44 = sbr.rel (0) target = $region25
    $region24: #{tpu_custom_call.1} parent=1 // pred_region
      %s46 = ssub.s32 16, 16
      %47 = vsyncadd [#allocation4], %s46
      %s49 = sshll.u32 [#allocation3], 4
      %s50 = int_to_ptr.vmem [resolvable:$true] %s49
      %52 = dma.hbm_to_vmem [thread:$0]  %s5, 16, %s50, [#allocation4]
    $region25: #{tpu_custom_call.1} parent=1 // pred_fallthru
      _
    // Predicated region
    $region26: #{tpu_custom_call.1} parent=1 // pred_check
      _
    $region27: #{tpu_custom_call.1} parent=1 // pred_check_branch
      %54 = sbr.rel (0) target = $region29
    $region28: #{tpu_custom_call.1} parent=1 // pred_region
      %s56 = ssub.s32 256, 256
      %57 = vsyncadd [#allocation7], %s56
      %s58 = sshll.u32 [#allocation6], 4
      %s59 = int_to_ptr.vmem [resolvable:$true] %s58
      %64 = dma.hbm_to_vmem [thread:$0]  %s6, 256, %s59, [#allocation7], 64, 64, 4
    $region29: #{tpu_custom_call.1} parent=1 // pred_fallthru
      _
    // Predicated region
    $region30: #{tpu_custom_call.1} parent=1 // pred_check
      _
    $region31: #{tpu_custom_call.1} parent=1 // pred_check_branch
      %66 = sbr.rel (0) target = $region33
    $region32: #{tpu_custom_call.1} parent=1 // pred_region
      %s68 = ssub.s32 16, 16
      %69 = vsyncadd [#allocation7], %s68
      %s71 = sshll.u32 [#allocation8], 4
      %s72 = int_to_ptr.vmem [resolvable:$true] %s71
      %74 = dma.hbm_to_vmem [thread:$0]  %s7, 16, %s72, [#allocation7]
    $region33: #{tpu_custom_call.1} parent=1 // pred_fallthru
      _
    // Predicated region
    $region34: #{tpu_custom_call.1} parent=1 // pred_check
      _
    $region35: #{tpu_custom_call.1} parent=1 // pred_check_branch
      %76 = sbr.rel (0) target = $region37
    $region36: #{tpu_custom_call.1} parent=1 // pred_region
      _
    $region37: #{tpu_custom_call.1} parent=1 // pred_fallthru
      _
    // Predicated region
    $region38: #{tpu_custom_call.1} parent=1 // pred_check
      _
    $region39: #{tpu_custom_call.1} parent=1 // pred_check_branch
      %78 = sbr.rel (0) target = $region41
    $region40: #{tpu_custom_call.1} parent=1 // pred_region
      _
    $region41: #{tpu_custom_call.1} parent=1 // pred_fallthru
      _
    // Predicated region
    $region42: #{tpu_custom_call.1} parent=1 // pred_check
      _
    $region43: #{tpu_custom_call.1} parent=1 // pred_check_branch
      %80 = sbr.rel (0) target = $region45
    $region44: #{tpu_custom_call.1} parent=1 // pred_region
      %s82 = ssub.s32 256, 256
      %83 = vsyncadd [#allocation10], %s82
      %s84 = sshll.u32 [#allocation9], 4
      %s85 = int_to_ptr.vmem [resolvable:$true] %s84
      %90 = dma.hbm_to_vmem [thread:$0]  %s10, 256, %s85, [#allocation10], 64, 64, 4
    $region45: #{tpu_custom_call.1} parent=1 // pred_fallthru
      _
    // Predicated region
    $region46: #{tpu_custom_call.1} parent=1 // pred_check
      _
    $region47: #{tpu_custom_call.1} parent=1 // pred_check_branch
      %92 = sbr.rel (0) target = $region49
    $region48: #{tpu_custom_call.1} parent=1 // pred_region
      _
    $region49: #{tpu_custom_call.1} parent=1 // pred_fallthru
      _
    // Predicated region
    $region50: #{tpu_custom_call.1} parent=1 // pred_check
      _
    $region51: #{tpu_custom_call.1} parent=1 // pred_check_branch
      %94 = sbr.rel (0) target = $region53
    $region52: #{tpu_custom_call.1} parent=1 // pred_region
      _
    $region53: #{tpu_custom_call.1} parent=1 // pred_fallthru
      _
    // Predicated region
    $region54: #{tpu_custom_call.1} parent=1 // pred_check
      _
    $region55: #{tpu_custom_call.1} parent=1 // pred_check_branch
      %96 = sbr.rel (0) target = $region57
    $region56: #{tpu_custom_call.1} parent=1 // pred_region
      _
    $region57: #{tpu_custom_call.1} parent=1 // pred_fallthru
      _
    // Predicated region
    $region58: #{tpu_custom_call.1} parent=1 // pred_check
      _
    $region59: #{tpu_custom_call.1} parent=1 // pred_check_branch
      %98 = sbr.rel (0) target = $region61
    $region60: #{tpu_custom_call.1} parent=1 // pred_region
      %s100 = ssub.s32 256, 256
      %101 = vsyncadd [#allocation10], %s100
      %s102 = sshll.u32 [#allocation11], 4
      %s103 = int_to_ptr.vmem [resolvable:$true] %s102
      %108 = dma.hbm_to_vmem [thread:$0]  %s14, 256, %s103, [#allocation10], 64, 64, 4
    $region61: #{tpu_custom_call.1} parent=1 // pred_fallthru
      _
    // Predicated region
    $region62: #{tpu_custom_call.1} parent=1 // pred_check
      _
    $region63: #{tpu_custom_call.1} parent=1 // pred_check_branch
      %110 = sbr.rel (0) target = $region65
    $region64: #{tpu_custom_call.1} parent=1 // pred_region
      _
    $region65: #{tpu_custom_call.1} parent=1 // pred_fallthru
      _
    // Predicated region
    $region66: #{tpu_custom_call.1} parent=1 // pred_check
      _
    $region67: #{tpu_custom_call.1} parent=1 // pred_check_branch
      %112 = sbr.rel (0) target = $region69
    $region68: #{tpu_custom_call.1} parent=1 // pred_region
      _
    $region69: #{tpu_custom_call.1} parent=1 // pred_fallthru
      _
    // Predicated region
    $region70: #{tpu_custom_call.1} parent=1 // pred_check
      _
    $region71: #{tpu_custom_call.1} parent=1 // pred_check_branch
      %114 = sbr.rel (0) target = $region73
    $region72: #{tpu_custom_call.1} parent=1 // pred_region
      _
    $region73: #{tpu_custom_call.1} parent=1 // pred_fallthru
      _
    // Predicated region
    $region74: #{tpu_custom_call.1} parent=1 // pred_check
      _
    $region75: #{tpu_custom_call.1} parent=1 // pred_check_branch
      %116 = sbr.rel (0) target = $region77
    $region76: #{tpu_custom_call.1} parent=1 // pred_region
      _
    $region77: #{tpu_custom_call.1} parent=1 // pred_fallthru
      _
    // Predicated region
    $region78: #{tpu_custom_call.1} parent=1 // pred_check
      _
    $region79: #{tpu_custom_call.1} parent=1 // pred_check_branch
      %118 = sbr.rel (0) target = $region81
    $region80: #{tpu_custom_call.1} parent=1 // pred_region
      _
    $region81: #{tpu_custom_call.1} parent=1 // pred_fallthru
      _
    // Predicated region
    $region82: #{tpu_custom_call.1} parent=1 // pred_check
      _
    $region83: #{tpu_custom_call.1} parent=1 // pred_check_branch
      %120 = sbr.rel (0) target = $region85
    $region84: #{tpu_custom_call.1} parent=1 // pred_region
      _
    $region85: #{tpu_custom_call.1} parent=1 // pred_fallthru
      _
    // Predicated region
    $region86: #{tpu_custom_call.1} parent=1 // pred_check
      _
    $region87: #{tpu_custom_call.1} parent=1 // pred_check_branch
      %122 = sbr.rel (0) target = $region89
    $region88: #{tpu_custom_call.1} parent=1 // pred_region
      _
    $region89: #{tpu_custom_call.1} parent=1 // pred_fallthru
      _
    // Predicated region
    $region90: #{tpu_custom_call.1} parent=1 // pred_check
      _
    $region91: #{tpu_custom_call.1} parent=1 // pred_check_branch
      %124 = sbr.rel (0) target = $region93
    $region92: #{tpu_custom_call.1} parent=1 // pred_region
      %125 = dma.done [#allocation4], 16
    $region93: #{tpu_custom_call.1} parent=1 // pred_fallthru
      _
    // Predicated region
    $region94: #{tpu_custom_call.1} parent=1 // pred_check
      _
    $region95: #{tpu_custom_call.1} parent=1 // pred_check_branch
      %127 = sbr.rel (0) target = $region97
    $region96: #{tpu_custom_call.1} parent=1 // pred_region
      %128 = dma.done [#allocation7], 256
    $region97: #{tpu_custom_call.1} parent=1 // pred_fallthru
      _
    // Predicated region
    $region98: #{tpu_custom_call.1} parent=1 // pred_check
      _
    $region99: #{tpu_custom_call.1} parent=1 // pred_check_branch
      %130 = sbr.rel (0) target = $region101
    $region100: #{tpu_custom_call.1} parent=1 // pred_region
      %131 = dma.done [#allocation7], 16
    $region101: #{tpu_custom_call.1} parent=1 // pred_fallthru
      _
    // Predicated region
    $region102: #{tpu_custom_call.1} parent=1 // pred_check
      _
    $region103: #{tpu_custom_call.1} parent=1 // pred_check_branch
      %133 = sbr.rel (0) target = $region105
    $region104: #{tpu_custom_call.1} parent=1 // pred_region
      %134 = dma.done [#allocation10], 256
    $region105: #{tpu_custom_call.1} parent=1 // pred_fallthru
      _
    // Predicated region
    $region106: #{tpu_custom_call.1} parent=1 // pred_check
      _
    $region107: #{tpu_custom_call.1} parent=1 // pred_check_branch
      %136 = sbr.rel (0) target = $region109
    $region108: #{tpu_custom_call.1} parent=1 // pred_region
      %137 = dma.done [#allocation10], 256
    $region109: #{tpu_custom_call.1} parent=1 // pred_fallthru
      _
    %v139 = vld [vmem:[%s0] sm:$0xf]
    %v140 = vld [vmem:[%s0 + $0x4] sm:$0xf]
    %v141 = vld [vmem:[%s0 + $0x8] sm:$0xf]
    %v142 = vld [vmem:[%s0 + $0xc] sm:$0xf]
    %v143 = vld [vmem:[%s0 + $0x10] sm:$0xf]
    %v144 = vld [vmem:[%s0 + $0x14] sm:$0xf]
    %v145 = vld [vmem:[%s0 + $0x18] sm:$0xf]
    %v146 = vld [vmem:[%s0 + $0x1c] sm:$0xf]
    %v147 = vld [vmem:[%s0 + $0x20] sm:$0xf]
    %v148 = vld [vmem:[%s0 + $0x24] sm:$0xf]
    %v149 = vld [vmem:[%s0 + $0x28] sm:$0xf]
    %v150 = vld [vmem:[%s0 + $0x2c] sm:$0xf]
    %v151 = vld [vmem:[%s0 + $0x30] sm:$0xf]
    %v152 = vld [vmem:[%s0 + $0x34] sm:$0xf]
    %v153 = vld [vmem:[%s0 + $0x38] sm:$0xf]
    %v154 = vld [vmem:[%s0 + $0x3c] sm:$0xf]
    %v155 = vld [vmem:[%s2] sm:$0xf]
    %v156 = vld [vmem:[%s2 + $0x4] sm:$0xf]
    %v157 = vld [vmem:[%s2 + $0x8] sm:$0xf]
    %v158 = vld [vmem:[%s2 + $0xc] sm:$0xf]
    %v159 = vld [vmem:[%s2 + $0x10] sm:$0xf]
    %v160 = vld [vmem:[%s2 + $0x14] sm:$0xf]
    %v161 = vld [vmem:[%s2 + $0x18] sm:$0xf]
    %v162 = vld [vmem:[%s2 + $0x1c] sm:$0xf]
    %v163 = vld [vmem:[%s3] sm:$0x1]
    %v165 = vlaneseq
    %v166 = vshrl.u32 %v165, 7
    %v167 = vsub.s32 0, %v166
    %v168 = vrot.slane %v163, %v167
    %v186 = vunpack.c.l.b16 %v139
    %v187 = vunpack.c.l.b16 %v140
    %v188 = vunpack.c.l.b16 %v141
    %v189 = vunpack.c.l.b16 %v142
    %v190 = vunpack.c.l.b16 %v143
    %v191 = vunpack.c.l.b16 %v144
    %v192 = vunpack.c.l.b16 %v145
    %v193 = vunpack.c.l.b16 %v146
    %v194 = vunpack.c.l.b16 %v147
    %v195 = vunpack.c.l.b16 %v148
    %v196 = vunpack.c.l.b16 %v149
    %v197 = vunpack.c.l.b16 %v150
    %v198 = vunpack.c.l.b16 %v151
    %v199 = vunpack.c.l.b16 %v152
    %v200 = vunpack.c.l.b16 %v153
    %v201 = vunpack.c.l.b16 %v154
    %v202 = vpack.c.b16 %v187, %v186
    %v203 = vpack.c.b16 %v189, %v188
    %v204 = vpack.c.b16 %v191, %v190
    %v205 = vpack.c.b16 %v193, %v192
    %v206 = vpack.c.b16 %v195, %v194
    %v207 = vpack.c.b16 %v197, %v196
    %v208 = vpack.c.b16 %v199, %v198
    %v209 = vpack.c.b16 %v201, %v200
    %v218 = vunpack.c.l.b16 %v155
    %v219 = vunpack.c.l.b16 %v156
    %v220 = vunpack.c.l.b16 %v157
    %v221 = vunpack.c.l.b16 %v158
    %v222 = vunpack.c.l.b16 %v159
    %v223 = vunpack.c.l.b16 %v160
    %v224 = vunpack.c.l.b16 %v161
    %v225 = vunpack.c.l.b16 %v162
    %v226 = vpack.c.b16 %v219, %v218
    %v227 = vpack.c.b16 %v221, %v220
    %v228 = vpack.c.b16 %v223, %v222
    %v229 = vpack.c.b16 %v225, %v224
    %vm234 = vcmask 523264
    %v236 = vsel %vm234, %v202, 0
    %v239 = vsel %vm234, %v203, 0
    %v242 = vsel %vm234, %v204, 0
    %v245 = vsel %vm234, %v205, 0
    %v248 = vsel %vm234, %v206, 0
    %v251 = vsel %vm234, %v207, 0
    %v254 = vsel %vm234, %v208, 0
    %v257 = vsel %vm234, %v209, 0
    %259 = vmatprep.subr.bf16.mxu0 0
    %260 = vmatpush1.bf16.msra.mxu0 0
    %261 = vmatprep.subr.bf16.mxu0 0
    %262 = vmatpush1.bf16.msra.mxu0 0
    %263 = vmatprep.subr.bf16.mxu0 0
    %264 = vmatpush1.bf16.msra.mxu0 0
    %265 = vmatprep.subr.bf16.mxu0 0
    %266 = vmatpush1.bf16.msra.mxu0 0
    %267 = vmatprep.subr.bf16.mxu0 0
    %268 = vmatpush1.bf16.msra.mxu0 %v229
    %269 = vmatprep.subr.bf16.mxu0 0
    %270 = vmatpush1.bf16.msra.mxu0 %v228
    %271 = vmatprep.subr.bf16.mxu0 0
    %272 = vmatpush1.bf16.msra.mxu0 %v227
    %273 = vmatprep.subr.bf16.mxu0 0
    %274 = vmatpush1.bf16.msra.mxu0 %v226
    %275 = vmatprep.subr.bf16.mxu0 0
    %276 = vmatpush2.bf16.msra.mxu0 0
    %277 = vmatprep.subr.bf16.mxu0 0
    %278 = vmatpush2.bf16.msra.mxu0 0
    %279 = vmatprep.subr.bf16.mxu0 0
    %280 = vmatpush2.bf16.msra.mxu0 0
    %281 = vmatprep.subr.bf16.mxu0 0
    %282 = vmatpush2.bf16.msra.mxu0 0
    %283 = vmatprep.subr.bf16.mxu0 0
    %284 = vmatpush2.bf16.msra.mxu0 0
    %285 = vmatprep.subr.bf16.mxu0 0
    %286 = vmatpush2.bf16.msra.mxu0 0
    %287 = vmatprep.subr.bf16.mxu0 0
    %288 = vmatpush2.bf16.msra.mxu0 0
    %289 = vmatprep.subr.bf16.mxu0 0
    %290 = vmatpush2.bf16.msra.mxu0 0
    %291 = vmatprep.mubr.bf16.mxu0 0
    %292 = vmatmul.mubr.bf16.gmra.mxu0 %v236
    %v293 = vpop.f32.mrf.mxu0
    %v294 = vadd.f32 %v168, %v293
    %v295 = vpop.f32.mrf.mxu0
    %v296 = vpop.f32.mrf.mxu0
    %v297 = vadd.f32 %v168, %v296
    %v298 = vpop.f32.mrf.mxu0
    %299 = vmatprep.mubr.bf16.mxu0 0
    %300 = vmatmul.mubr.bf16.gmra.mxu0 %v239
    %v301 = vpop.f32.mrf.mxu0
    %v302 = vadd.f32 %v168, %v301
    %v303 = vpop.f32.mrf.mxu0
    %v304 = vpop.f32.mrf.mxu0
    %v305 = vadd.f32 %v168, %v304
    %v306 = vpop.f32.mrf.mxu0
    %307 = vmatprep.mubr.bf16.mxu0 0
    %308 = vmatmul.mubr.bf16.gmra.mxu0 %v242
    %v309 = vpop.f32.mrf.mxu0
    %v310 = vadd.f32 %v168, %v309
    %v311 = vpop.f32.mrf.mxu0
    %v312 = vpop.f32.mrf.mxu0
    %v313 = vadd.f32 %v168, %v312
    %v314 = vpop.f32.mrf.mxu0
    %315 = vmatprep.mubr.bf16.mxu0 0
    %316 = vmatmul.mubr.bf16.gmra.mxu0 %v245
    %v317 = vpop.f32.mrf.mxu0
    %v318 = vadd.f32 %v168, %v317
    %v319 = vpop.f32.mrf.mxu0
    %v320 = vpop.f32.mrf.mxu0
    %v321 = vadd.f32 %v168, %v320
    %v322 = vpop.f32.mrf.mxu0
    %323 = vmatprep.mubr.bf16.mxu0 0
    %324 = vmatmul.mubr.bf16.gmra.mxu0 %v248
    %v325 = vpop.f32.mrf.mxu0
    %v326 = vadd.f32 %v168, %v325
    %v327 = vpop.f32.mrf.mxu0
    %v328 = vpop.f32.mrf.mxu0
    %v329 = vadd.f32 %v168, %v328
    %v330 = vpop.f32.mrf.mxu0
    %331 = vmatprep.mubr.bf16.mxu0 0
    %332 = vmatmul.mubr.bf16.gmra.mxu0 %v251
    %v333 = vpop.f32.mrf.mxu0
    %v334 = vadd.f32 %v168, %v333
    %v335 = vpop.f32.mrf.mxu0
    %v336 = vpop.f32.mrf.mxu0
    %v337 = vadd.f32 %v168, %v336
    %v338 = vpop.f32.mrf.mxu0
    %339 = vmatprep.mubr.bf16.mxu0 0
    %340 = vmatmul.mubr.bf16.gmra.mxu0 %v254
    %v341 = vpop.f32.mrf.mxu0
    %v342 = vadd.f32 %v168, %v341
    %v343 = vpop.f32.mrf.mxu0
    %v344 = vpop.f32.mrf.mxu0
    %v345 = vadd.f32 %v168, %v344
    %v346 = vpop.f32.mrf.mxu0
    %347 = vmatprep.mubr.bf16.mxu0 0
    %348 = vmatmul.mubr.bf16.gmra.mxu0 %v257
    %v349 = vpop.f32.mrf.mxu0
    %v350 = vadd.f32 %v168, %v349
    %v351 = vpop.f32.mrf.mxu0
    %v352 = vpop.f32.mrf.mxu0
    %v353 = vadd.f32 %v168, %v352
    %v354 = vpop.f32.mrf.mxu0
    %355 = vdwg.mxu0
    %v356 = vpack.c.bf16 %v297, %v294
    %v357 = vpack.c.bf16 %v305, %v302
    %v358 = vpack.c.bf16 %v313, %v310
    %v359 = vpack.c.bf16 %v321, %v318
    %v360 = vpack.c.bf16 %v329, %v326
    %v361 = vpack.c.bf16 %v337, %v334
    %v362 = vpack.c.bf16 %v345, %v342
    %v363 = vpack.c.bf16 %v353, %v350
    %v364 = vld [vmem:[%s4] sm:$0xf]
    %v365 = vld [vmem:[%s4 + $0x4] sm:$0xf]
    %v366 = vld [vmem:[%s4 + $0x8] sm:$0xf]
    %v367 = vld [vmem:[%s4 + $0xc] sm:$0xf]
    %v368 = vld [vmem:[#allocation3] sm:$0x1]
    %v370 = vlaneseq
    %v371 = vshrl.u32 %v370, 7
    %v372 = vsub.s32 0, %v371
    %v373 = vrot.slane %v368, %v372
    %v379 = vunpack.c.l.b16 %v364
    %v380 = vunpack.c.l.b16 %v365
    %v381 = vunpack.c.l.b16 %v366
    %v382 = vunpack.c.l.b16 %v367
    %v383 = vpack.c.b16 %v380, %v379
    %v384 = vpack.c.b16 %v382, %v381
    %vm387 = vcmask 261120
    %v389 = vsel %vm387, %v356, 0
    %v392 = vsel %vm387, %v357, 0
    %v395 = vsel %vm387, %v358, 0
    %v398 = vsel %vm387, %v359, 0
    %v401 = vsel %vm387, %v360, 0
    %v404 = vsel %vm387, %v361, 0
    %v407 = vsel %vm387, %v362, 0
    %v410 = vsel %vm387, %v363, 0
    %412 = vmatprep.subr.bf16.mxu0 0
    %413 = vmatpush1.bf16.msra.mxu0 0
    %414 = vmatprep.subr.bf16.mxu0 0
    %415 = vmatpush1.bf16.msra.mxu0 0
    %416 = vmatprep.subr.bf16.mxu0 0
    %417 = vmatpush1.bf16.msra.mxu0 0
    %418 = vmatprep.subr.bf16.mxu0 0
    %419 = vmatpush1.bf16.msra.mxu0 0
    %420 = vmatprep.subr.bf16.mxu0 0
    %421 = vmatpush1.bf16.msra.mxu0 0
    %422 = vmatprep.subr.bf16.mxu0 0
    %423 = vmatpush1.bf16.msra.mxu0 0
    %424 = vmatprep.subr.bf16.mxu0 0
    %425 = vmatpush1.bf16.msra.mxu0 %v384
    %426 = vmatprep.subr.bf16.mxu0 0
    %427 = vmatpush1.bf16.msra.mxu0 %v383
    %428 = vmatprep.subr.bf16.mxu0 0
    %429 = vmatpush2.bf16.msra.mxu0 0
    %430 = vmatprep.subr.bf16.mxu0 0
    %431 = vmatpush2.bf16.msra.mxu0 0
    %432 = vmatprep.subr.bf16.mxu0 0
    %433 = vmatpush2.bf16.msra.mxu0 0
    %434 = vmatprep.subr.bf16.mxu0 0
    %435 = vmatpush2.bf16.msra.mxu0 0
    %436 = vmatprep.subr.bf16.mxu0 0
    %437 = vmatpush2.bf16.msra.mxu0 0
    %438 = vmatprep.subr.bf16.mxu0 0
    %439 = vmatpush2.bf16.msra.mxu0 0
    %440 = vmatprep.subr.bf16.mxu0 0
    %441 = vmatpush2.bf16.msra.mxu0 0
    %442 = vmatprep.subr.bf16.mxu0 0
    %443 = vmatpush2.bf16.msra.mxu0 0
    %444 = vmatprep.mubr.bf16.mxu0 0
    %445 = vmatmul.mubr.bf16.gmra.mxu0 %v389
    %v446 = vpop.f32.mrf.mxu0
    %v447 = vadd.f32 %v373, %v446
    %v448 = vpop.f32.mrf.mxu0
    %v449 = vpop.f32.mrf.mxu0
    %v450 = vadd.f32 %v373, %v449
    %v451 = vpop.f32.mrf.mxu0
    %452 = vmatprep.mubr.bf16.mxu0 0
    %453 = vmatmul.mubr.bf16.gmra.mxu0 %v392
    %v454 = vpop.f32.mrf.mxu0
    %v455 = vadd.f32 %v373, %v454
    %v456 = vpop.f32.mrf.mxu0
    %v457 = vpop.f32.mrf.mxu0
    %v458 = vadd.f32 %v373, %v457
    %v459 = vpop.f32.mrf.mxu0
    %460 = vmatprep.mubr.bf16.mxu0 0
    %461 = vmatmul.mubr.bf16.gmra.mxu0 %v395
    %v462 = vpop.f32.mrf.mxu0
    %v463 = vadd.f32 %v373, %v462
    %v464 = vpop.f32.mrf.mxu0
    %v465 = vpop.f32.mrf.mxu0
    %v466 = vadd.f32 %v373, %v465
    %v467 = vpop.f32.mrf.mxu0
    %468 = vmatprep.mubr.bf16.mxu0 0
    %469 = vmatmul.mubr.bf16.gmra.mxu0 %v398
    %v470 = vpop.f32.mrf.mxu0
    %v471 = vadd.f32 %v373, %v470
    %v472 = vpop.f32.mrf.mxu0
    %v473 = vpop.f32.mrf.mxu0
    %v474 = vadd.f32 %v373, %v473
    %v475 = vpop.f32.mrf.mxu0
    %476 = vmatprep.mubr.bf16.mxu0 0
    %477 = vmatmul.mubr.bf16.gmra.mxu0 %v401
    %v478 = vpop.f32.mrf.mxu0
    %v479 = vadd.f32 %v373, %v478
    %v480 = vpop.f32.mrf.mxu0
    %v481 = vpop.f32.mrf.mxu0
    %v482 = vadd.f32 %v373, %v481
    %v483 = vpop.f32.mrf.mxu0
    %484 = vmatprep.mubr.bf16.mxu0 0
    %485 = vmatmul.mubr.bf16.gmra.mxu0 %v404
    %v486 = vpop.f32.mrf.mxu0
    %v487 = vadd.f32 %v373, %v486
    %v488 = vpop.f32.mrf.mxu0
    %v489 = vpop.f32.mrf.mxu0
    %v490 = vadd.f32 %v373, %v489
    %v491 = vpop.f32.mrf.mxu0
    %492 = vmatprep.mubr.bf16.mxu0 0
    %493 = vmatmul.mubr.bf16.gmra.mxu0 %v407
    %v494 = vpop.f32.mrf.mxu0
    %v495 = vadd.f32 %v373, %v494
    %v496 = vpop.f32.mrf.mxu0
    %v497 = vpop.f32.mrf.mxu0
    %v498 = vadd.f32 %v373, %v497
    %v499 = vpop.f32.mrf.mxu0
    %500 = vmatprep.mubr.bf16.mxu0 0
    %501 = vmatmul.mubr.bf16.gmra.mxu0 %v410
    %v502 = vpop.f32.mrf.mxu0
    %v503 = vadd.f32 %v373, %v502
    %v504 = vpop.f32.mrf.mxu0
    %v505 = vpop.f32.mrf.mxu0
    %v506 = vadd.f32 %v373, %v505
    %v507 = vpop.f32.mrf.mxu0
    %508 = vdwg.mxu0
    %v509 = vld [vmem:[#allocation6] sm:$0xf]
    %v510 = vld [vmem:[#allocation6 + $0x4] sm:$0xf]
    %v511 = vld [vmem:[#allocation6 + $0x8] sm:$0xf]
    %v512 = vld [vmem:[#allocation6 + $0xc] sm:$0xf]
    %v513 = vld [vmem:[#allocation8] sm:$0x1]
    %v515 = vlaneseq
    %v516 = vshrl.u32 %v515, 7
    %v517 = vsub.s32 0, %v516
    %v518 = vrot.slane %v513, %v517
    %v524 = vunpack.c.l.b16 %v509
    %v525 = vunpack.c.l.b16 %v510
    %v526 = vunpack.c.l.b16 %v511
    %v527 = vunpack.c.l.b16 %v512
    %v528 = vpack.c.b16 %v525, %v524
    %v529 = vpack.c.b16 %v527, %v526
    %532 = vmatprep.subr.bf16.mxu0 0
    %533 = vmatpush1.bf16.msra.mxu0 0
    %534 = vmatprep.subr.bf16.mxu0 0
    %535 = vmatpush1.bf16.msra.mxu0 0
    %536 = vmatprep.subr.bf16.mxu0 0
    %537 = vmatpush1.bf16.msra.mxu0 0
    %538 = vmatprep.subr.bf16.mxu0 0
    %539 = vmatpush1.bf16.msra.mxu0 0
    %540 = vmatprep.subr.bf16.mxu0 0
    %541 = vmatpush1.bf16.msra.mxu0 0
    %542 = vmatprep.subr.bf16.mxu0 0
    %543 = vmatpush1.bf16.msra.mxu0 0
    %544 = vmatprep.subr.bf16.mxu0 0
    %545 = vmatpush1.bf16.msra.mxu0 %v529
    %546 = vmatprep.subr.bf16.mxu0 0
    %547 = vmatpush1.bf16.msra.mxu0 %v528
    %548 = vmatprep.subr.bf16.mxu0 0
    %549 = vmatpush2.bf16.msra.mxu0 0
    %550 = vmatprep.subr.bf16.mxu0 0
    %551 = vmatpush2.bf16.msra.mxu0 0
    %552 = vmatprep.subr.bf16.mxu0 0
    %553 = vmatpush2.bf16.msra.mxu0 0
    %554 = vmatprep.subr.bf16.mxu0 0
    %555 = vmatpush2.bf16.msra.mxu0 0
    %556 = vmatprep.subr.bf16.mxu0 0
    %557 = vmatpush2.bf16.msra.mxu0 0
    %558 = vmatprep.subr.bf16.mxu0 0
    %559 = vmatpush2.bf16.msra.mxu0 0
    %560 = vmatprep.subr.bf16.mxu0 0
    %561 = vmatpush2.bf16.msra.mxu0 0
    %562 = vmatprep.subr.bf16.mxu0 0
    %563 = vmatpush2.bf16.msra.mxu0 0
    %564 = vmatprep.mubr.bf16.mxu0 0
    %565 = vmatmul.mubr.bf16.gmra.mxu0 %v389
    %v566 = vpop.f32.mrf.mxu0
    %v567 = vadd.f32 %v518, %v566
    %v568 = vpop.f32.mrf.mxu0
    %v569 = vpop.f32.mrf.mxu0
    %v570 = vadd.f32 %v518, %v569
    %v571 = vpop.f32.mrf.mxu0
    %572 = vmatprep.mubr.bf16.mxu0 0
    %573 = vmatmul.mubr.bf16.gmra.mxu0 %v392
    %v574 = vpop.f32.mrf.mxu0
    %v575 = vadd.f32 %v518, %v574
    %v576 = vpop.f32.mrf.mxu0
    %v577 = vpop.f32.mrf.mxu0
    %v578 = vadd.f32 %v518, %v577
    %v579 = vpop.f32.mrf.mxu0
    %580 = vmatprep.mubr.bf16.mxu0 0
    %581 = vmatmul.mubr.bf16.gmra.mxu0 %v395
    %v582 = vpop.f32.mrf.mxu0
    %v583 = vadd.f32 %v518, %v582
    %v584 = vpop.f32.mrf.mxu0
    %v585 = vpop.f32.mrf.mxu0
    %v586 = vadd.f32 %v518, %v585
    %v587 = vpop.f32.mrf.mxu0
    %588 = vmatprep.mubr.bf16.mxu0 0
    %589 = vmatmul.mubr.bf16.gmra.mxu0 %v398
    %v590 = vpop.f32.mrf.mxu0
    %v591 = vadd.f32 %v518, %v590
    %v592 = vpop.f32.mrf.mxu0
    %v593 = vpop.f32.mrf.mxu0
    %v594 = vadd.f32 %v518, %v593
    %v595 = vpop.f32.mrf.mxu0
    %596 = vmatprep.mubr.bf16.mxu0 0
    %597 = vmatmul.mubr.bf16.gmra.mxu0 %v401
    %v598 = vpop.f32.mrf.mxu0
    %v599 = vadd.f32 %v518, %v598
    %v600 = vpop.f32.mrf.mxu0
    %v601 = vpop.f32.mrf.mxu0
    %v602 = vadd.f32 %v518, %v601
    %v603 = vpop.f32.mrf.mxu0
    %604 = vmatprep.mubr.bf16.mxu0 0
    %605 = vmatmul.mubr.bf16.gmra.mxu0 %v404
    %v606 = vpop.f32.mrf.mxu0
    %v607 = vadd.f32 %v518, %v606
    %v608 = vpop.f32.mrf.mxu0
    %v609 = vpop.f32.mrf.mxu0
    %v610 = vadd.f32 %v518, %v609
    %v611 = vpop.f32.mrf.mxu0
    %612 = vmatprep.mubr.bf16.mxu0 0
    %613 = vmatmul.mubr.bf16.gmra.mxu0 %v407
    %v614 = vpop.f32.mrf.mxu0
    %v615 = vadd.f32 %v518, %v614
    %v616 = vpop.f32.mrf.mxu0
    %v617 = vpop.f32.mrf.mxu0
    %v618 = vadd.f32 %v518, %v617
    %v619 = vpop.f32.mrf.mxu0
    %620 = vmatprep.mubr.bf16.mxu0 0
    %621 = vmatmul.mubr.bf16.gmra.mxu0 %v410
    %v622 = vpop.f32.mrf.mxu0
    %v623 = vadd.f32 %v518, %v622
    %v624 = vpop.f32.mrf.mxu0
    %v625 = vpop.f32.mrf.mxu0
    %v626 = vadd.f32 %v518, %v625
    %v627 = vpop.f32.mrf.mxu0
    %628 = vdwg.mxu0
    %v629 = vld [vmem:[%s8] sm:$0xf]
    %v630 = vld [vmem:[%s8 + $0x4] sm:$0xf]
    %v631 = vld [vmem:[%s8 + $0x8] sm:$0xf]
    %v632 = vld [vmem:[%s8 + $0xc] sm:$0xf]
    %v633 = vld [vmem:[%s9] sm:$0x1]
    %v635 = vlaneseq
    %v636 = vshrl.u32 %v635, 7
    %v637 = vsub.s32 0, %v636
    %v638 = vrot.slane %v633, %v637
    %v644 = vunpack.c.l.b16 %v629
    %v645 = vunpack.c.l.b16 %v630
    %v646 = vunpack.c.l.b16 %v631
    %v647 = vunpack.c.l.b16 %v632
    %v648 = vpack.c.b16 %v645, %v644
    %v649 = vpack.c.b16 %v647, %v646
    %652 = vmatprep.subr.bf16.mxu0 0
    %653 = vmatpush1.bf16.msra.mxu0 0
    %654 = vmatprep.subr.bf16.mxu0 0
    %655 = vmatpush1.bf16.msra.mxu0 0
    %656 = vmatprep.subr.bf16.mxu0 0
    %657 = vmatpush1.bf16.msra.mxu0 0
    %658 = vmatprep.subr.bf16.mxu0 0
    %659 = vmatpush1.bf16.msra.mxu0 0
    %660 = vmatprep.subr.bf16.mxu0 0
    %661 = vmatpush1.bf16.msra.mxu0 0
    %662 = vmatprep.subr.bf16.mxu0 0
    %663 = vmatpush1.bf16.msra.mxu0 0
    %664 = vmatprep.subr.bf16.mxu0 0
    %665 = vmatpush1.bf16.msra.mxu0 %v649
    %666 = vmatprep.subr.bf16.mxu0 0
    %667 = vmatpush1.bf16.msra.mxu0 %v648
    %668 = vmatprep.subr.bf16.mxu0 0
    %669 = vmatpush2.bf16.msra.mxu0 0
    %670 = vmatprep.subr.bf16.mxu0 0
    %671 = vmatpush2.bf16.msra.mxu0 0
    %672 = vmatprep.subr.bf16.mxu0 0
    %673 = vmatpush2.bf16.msra.mxu0 0
    %674 = vmatprep.subr.bf16.mxu0 0
    %675 = vmatpush2.bf16.msra.mxu0 0
    %676 = vmatprep.subr.bf16.mxu0 0
    %677 = vmatpush2.bf16.msra.mxu0 0
    %678 = vmatprep.subr.bf16.mxu0 0
    %679 = vmatpush2.bf16.msra.mxu0 0
    %680 = vmatprep.subr.bf16.mxu0 0
    %681 = vmatpush2.bf16.msra.mxu0 0
    %682 = vmatprep.subr.bf16.mxu0 0
    %683 = vmatpush2.bf16.msra.mxu0 0
    %684 = vmatprep.mubr.bf16.mxu0 0
    %685 = vmatmul.mubr.bf16.gmra.mxu0 %v389
    %v686 = vpop.f32.mrf.mxu0
    %v687 = vadd.f32 %v638, %v686
    %v688 = vpop.f32.mrf.mxu0
    %v689 = vpop.f32.mrf.mxu0
    %v690 = vadd.f32 %v638, %v689
    %v691 = vpop.f32.mrf.mxu0
    %692 = vmatprep.mubr.bf16.mxu0 0
    %693 = vmatmul.mubr.bf16.gmra.mxu0 %v392
    %v694 = vpop.f32.mrf.mxu0
    %v695 = vadd.f32 %v638, %v694
    %v696 = vpop.f32.mrf.mxu0
    %v697 = vpop.f32.mrf.mxu0
    %v698 = vadd.f32 %v638, %v697
    %v699 = vpop.f32.mrf.mxu0
    %700 = vmatprep.mubr.bf16.mxu0 0
    %701 = vmatmul.mubr.bf16.gmra.mxu0 %v395
    %v702 = vpop.f32.mrf.mxu0
    %v703 = vadd.f32 %v638, %v702
    %v704 = vpop.f32.mrf.mxu0
    %v705 = vpop.f32.mrf.mxu0
    %v706 = vadd.f32 %v638, %v705
    %v707 = vpop.f32.mrf.mxu0
    %708 = vmatprep.mubr.bf16.mxu0 0
    %709 = vmatmul.mubr.bf16.gmra.mxu0 %v398
    %v710 = vpop.f32.mrf.mxu0
    %v711 = vadd.f32 %v638, %v710
    %v712 = vpop.f32.mrf.mxu0
    %v713 = vpop.f32.mrf.mxu0
    %v714 = vadd.f32 %v638, %v713
    %v715 = vpop.f32.mrf.mxu0
    %716 = vmatprep.mubr.bf16.mxu0 0
    %717 = vmatmul.mubr.bf16.gmra.mxu0 %v401
    %v718 = vpop.f32.mrf.mxu0
    %v719 = vadd.f32 %v638, %v718
    %v720 = vpop.f32.mrf.mxu0
    %v721 = vpop.f32.mrf.mxu0
    %v722 = vadd.f32 %v638, %v721
    %v723 = vpop.f32.mrf.mxu0
    %724 = vmatprep.mubr.bf16.mxu0 0
    %725 = vmatmul.mubr.bf16.gmra.mxu0 %v404
    %v726 = vpop.f32.mrf.mxu0
    %v727 = vadd.f32 %v638, %v726
    %v728 = vpop.f32.mrf.mxu0
    %v729 = vpop.f32.mrf.mxu0
    %v730 = vadd.f32 %v638, %v729
    %v731 = vpop.f32.mrf.mxu0
    %732 = vmatprep.mubr.bf16.mxu0 0
    %733 = vmatmul.mubr.bf16.gmra.mxu0 %v407
    %v734 = vpop.f32.mrf.mxu0
    %v735 = vadd.f32 %v638, %v734
    %v736 = vpop.f32.mrf.mxu0
    %v737 = vpop.f32.mrf.mxu0
    %v738 = vadd.f32 %v638, %v737
    %v739 = vpop.f32.mrf.mxu0
    %740 = vmatprep.mubr.bf16.mxu0 0
    %741 = vmatmul.mubr.bf16.gmra.mxu0 %v410
    %v742 = vpop.f32.mrf.mxu0
    %v743 = vadd.f32 %v638, %v742
    %v744 = vpop.f32.mrf.mxu0
    %v745 = vpop.f32.mrf.mxu0
    %v746 = vadd.f32 %v638, %v745
    %v747 = vpop.f32.mrf.mxu0
    %748 = vdwg.mxu0
    %v749 = vpack.c.bf16 %v447, %v447
    %v750 = vpack.c.bf16 %v450, %v450
    %v751 = vpack.c.bf16 %v455, %v455
    %v752 = vpack.c.bf16 %v458, %v458
    %v753 = vpack.c.bf16 %v463, %v463
    %v754 = vpack.c.bf16 %v466, %v466
    %v755 = vpack.c.bf16 %v471, %v471
    %v756 = vpack.c.bf16 %v474, %v474
    %v757 = vpack.c.bf16 %v479, %v479
    %v758 = vpack.c.bf16 %v482, %v482
    %v759 = vpack.c.bf16 %v487, %v487
    %v760 = vpack.c.bf16 %v490, %v490
    %v761 = vpack.c.bf16 %v495, %v495
    %v762 = vpack.c.bf16 %v498, %v498
    %v763 = vpack.c.bf16 %v503, %v503
    %v764 = vpack.c.bf16 %v506, %v506
    %v765 = vpack.c.bf16 %v567, %v567
    %v766 = vpack.c.bf16 %v570, %v570
    %v767 = vpack.c.bf16 %v575, %v575
    %v768 = vpack.c.bf16 %v578, %v578
    %v769 = vpack.c.bf16 %v583, %v583
    %v770 = vpack.c.bf16 %v586, %v586
    %v771 = vpack.c.bf16 %v591, %v591
    %v772 = vpack.c.bf16 %v594, %v594
    %v773 = vpack.c.bf16 %v599, %v599
    %v774 = vpack.c.bf16 %v602, %v602
    %v775 = vpack.c.bf16 %v607, %v607
    %v776 = vpack.c.bf16 %v610, %v610
    %v777 = vpack.c.bf16 %v615, %v615
    %v778 = vpack.c.bf16 %v618, %v618
    %v779 = vpack.c.bf16 %v623, %v623
    %v780 = vpack.c.bf16 %v626, %v626
    %v781 = vpack.c.bf16 %v687, %v687
    %v782 = vpack.c.bf16 %v690, %v690
    %v783 = vpack.c.bf16 %v695, %v695
    %v784 = vpack.c.bf16 %v698, %v698
    %v785 = vpack.c.bf16 %v703, %v703
    %v786 = vpack.c.bf16 %v706, %v706
    %v787 = vpack.c.bf16 %v711, %v711
    %v788 = vpack.c.bf16 %v714, %v714
    %v789 = vpack.c.bf16 %v719, %v719
    %v790 = vpack.c.bf16 %v722, %v722
    %v791 = vpack.c.bf16 %v727, %v727
    %v792 = vpack.c.bf16 %v730, %v730
    %v793 = vpack.c.bf16 %v735, %v735
    %v794 = vpack.c.bf16 %v738, %v738
    %v795 = vpack.c.bf16 %v743, %v743
    %v796 = vpack.c.bf16 %v746, %v746
    %v798 = vsel %vm387, %v749, 0
    %v801 = vsel %vm387, %v765, 0
    %803 = vmatprep.subr.bf16.mxu0 0
    %804 = vmatpush1.bf16.xpose.msra.mxu0 0
    %805 = vmatprep.subr.bf16.mxu0 0
    %806 = vmatpush1.bf16.xpose.msra.mxu0 0
    %807 = vmatprep.subr.bf16.mxu0 0
    %808 = vmatpush1.bf16.xpose.msra.mxu0 0
    %809 = vmatprep.subr.bf16.mxu0 0
    %810 = vmatpush1.bf16.xpose.msra.mxu0 0
    %811 = vmatprep.subr.bf16.mxu0 0
    %812 = vmatpush1.bf16.xpose.msra.mxu0 0
    %813 = vmatprep.subr.bf16.mxu0 0
    %814 = vmatpush1.bf16.xpose.msra.mxu0 0
    %815 = vmatprep.subr.bf16.mxu0 0
    %816 = vmatpush1.bf16.xpose.msra.mxu0 0
    %817 = vmatprep.subr.bf16.mxu0 0
    %818 = vmatpush1.bf16.xpose.msra.mxu0 %v801
    %819 = vmatprep.subr.bf16.mxu0 0
    %820 = vmatpush2.bf16.xpose.msra.mxu0 0
    %821 = vmatprep.subr.bf16.mxu0 0
    %822 = vmatpush2.bf16.xpose.msra.mxu0 0
    %823 = vmatprep.subr.bf16.mxu0 0
    %824 = vmatpush2.bf16.xpose.msra.mxu0 0
    %825 = vmatprep.subr.bf16.mxu0 0
    %826 = vmatpush2.bf16.xpose.msra.mxu0 0
    %827 = vmatprep.subr.bf16.mxu0 0
    %828 = vmatpush2.bf16.xpose.msra.mxu0 0
    %829 = vmatprep.subr.bf16.mxu0 0
    %830 = vmatpush2.bf16.xpose.msra.mxu0 0
    %831 = vmatprep.subr.bf16.mxu0 0
    %832 = vmatpush2.bf16.xpose.msra.mxu0 0
    %833 = vmatprep.subr.bf16.mxu0 0
    %834 = vmatpush2.bf16.xpose.msra.mxu0 0
    %835 = vmatprep.mubr.bf16.mxu0 0
    %836 = vmatmul.mubr.bf16.gmra.mxu0 %v798
    %v837 = vpop.f32.mrf.mxu0
    %v838 = vadd.f32 0.0, %v837
    %v839 = vpop.f32.mrf.mxu0
    %v840 = vpop.f32.mrf.mxu0
    %v841 = vpop.f32.mrf.mxu0
    %842 = vdwg.mxu0
    %v844 = vsel %vm387, %v750, 0
    %v847 = vsel %vm387, %v766, 0
    %849 = vmatprep.subr.bf16.mxu0 0
    %850 = vmatpush1.bf16.xpose.msra.mxu0 0
    %851 = vmatprep.subr.bf16.mxu0 0
    %852 = vmatpush1.bf16.xpose.msra.mxu0 0
    %853 = vmatprep.subr.bf16.mxu0 0
    %854 = vmatpush1.bf16.xpose.msra.mxu0 0
    %855 = vmatprep.subr.bf16.mxu0 0
    %856 = vmatpush1.bf16.xpose.msra.mxu0 0
    %857 = vmatprep.subr.bf16.mxu0 0
    %858 = vmatpush1.bf16.xpose.msra.mxu0 0
    %859 = vmatprep.subr.bf16.mxu0 0
    %860 = vmatpush1.bf16.xpose.msra.mxu0 0
    %861 = vmatprep.subr.bf16.mxu0 0
    %862 = vmatpush1.bf16.xpose.msra.mxu0 0
    %863 = vmatprep.subr.bf16.mxu0 0
    %864 = vmatpush1.bf16.xpose.msra.mxu0 %v847
    %865 = vmatprep.subr.bf16.mxu0 0
    %866 = vmatpush2.bf16.xpose.msra.mxu0 0
    %867 = vmatprep.subr.bf16.mxu0 0
    %868 = vmatpush2.bf16.xpose.msra.mxu0 0
    %869 = vmatprep.subr.bf16.mxu0 0
    %870 = vmatpush2.bf16.xpose.msra.mxu0 0
    %871 = vmatprep.subr.bf16.mxu0 0
    %872 = vmatpush2.bf16.xpose.msra.mxu0 0
    %873 = vmatprep.subr.bf16.mxu0 0
    %874 = vmatpush2.bf16.xpose.msra.mxu0 0
    %875 = vmatprep.subr.bf16.mxu0 0
    %876 = vmatpush2.bf16.xpose.msra.mxu0 0
    %877 = vmatprep.subr.bf16.mxu0 0
    %878 = vmatpush2.bf16.xpose.msra.mxu0 0
    %879 = vmatprep.subr.bf16.mxu0 0
    %880 = vmatpush2.bf16.xpose.msra.mxu0 0
    %881 = vmatprep.mubr.bf16.mxu0 0
    %882 = vmatmul.mubr.bf16.gmra.mxu0 %v844
    %v883 = vpop.f32.mrf.mxu0
    %v884 = vadd.f32 0.0, %v883
    %v885 = vpop.f32.mrf.mxu0
    %v886 = vpop.f32.mrf.mxu0
    %v887 = vpop.f32.mrf.mxu0
    %888 = vdwg.mxu0
    %v890 = vsel %vm387, %v751, 0
    %v893 = vsel %vm387, %v767, 0
    %895 = vmatprep.subr.bf16.mxu0 0
    %896 = vmatpush1.bf16.xpose.msra.mxu0 0
    %897 = vmatprep.subr.bf16.mxu0 0
    %898 = vmatpush1.bf16.xpose.msra.mxu0 0
    %899 = vmatprep.subr.bf16.mxu0 0
    %900 = vmatpush1.bf16.xpose.msra.mxu0 0
    %901 = vmatprep.subr.bf16.mxu0 0
    %902 = vmatpush1.bf16.xpose.msra.mxu0 0
    %903 = vmatprep.subr.bf16.mxu0 0
    %904 = vmatpush1.bf16.xpose.msra.mxu0 0
    %905 = vmatprep.subr.bf16.mxu0 0
    %906 = vmatpush1.bf16.xpose.msra.mxu0 0
    %907 = vmatprep.subr.bf16.mxu0 0
    %908 = vmatpush1.bf16.xpose.msra.mxu0 0
    %909 = vmatprep.subr.bf16.mxu0 0
    %910 = vmatpush1.bf16.xpose.msra.mxu0 %v893
    %911 = vmatprep.subr.bf16.mxu0 0
    %912 = vmatpush2.bf16.xpose.msra.mxu0 0
    %913 = vmatprep.subr.bf16.mxu0 0
    %914 = vmatpush2.bf16.xpose.msra.mxu0 0
    %915 = vmatprep.subr.bf16.mxu0 0
    %916 = vmatpush2.bf16.xpose.msra.mxu0 0
    %917 = vmatprep.subr.bf16.mxu0 0
    %918 = vmatpush2.bf16.xpose.msra.mxu0 0
    %919 = vmatprep.subr.bf16.mxu0 0
    %920 = vmatpush2.bf16.xpose.msra.mxu0 0
    %921 = vmatprep.subr.bf16.mxu0 0
    %922 = vmatpush2.bf16.xpose.msra.mxu0 0
    %923 = vmatprep.subr.bf16.mxu0 0
    %924 = vmatpush2.bf16.xpose.msra.mxu0 0
    %925 = vmatprep.subr.bf16.mxu0 0
    %926 = vmatpush2.bf16.xpose.msra.mxu0 0
    %927 = vmatprep.mubr.bf16.mxu0 0
    %928 = vmatmul.mubr.bf16.gmra.mxu0 %v890
    %v929 = vpop.f32.mrf.mxu0
    %v930 = vadd.f32 0.0, %v929
    %v931 = vpop.f32.mrf.mxu0
    %v932 = vpop.f32.mrf.mxu0
    %v933 = vpop.f32.mrf.mxu0
    %934 = vdwg.mxu0
    %v936 = vsel %vm387, %v752, 0
    %v939 = vsel %vm387, %v768, 0
    %941 = vmatprep.subr.bf16.mxu0 0
    %942 = vmatpush1.bf16.xpose.msra.mxu0 0
    %943 = vmatprep.subr.bf16.mxu0 0
    %944 = vmatpush1.bf16.xpose.msra.mxu0 0
    %945 = vmatprep.subr.bf16.mxu0 0
    %946 = vmatpush1.bf16.xpose.msra.mxu0 0
    %947 = vmatprep.subr.bf16.mxu0 0
    %948 = vmatpush1.bf16.xpose.msra.mxu0 0
    %949 = vmatprep.subr.bf16.mxu0 0
    %950 = vmatpush1.bf16.xpose.msra.mxu0 0
    %951 = vmatprep.subr.bf16.mxu0 0
    %952 = vmatpush1.bf16.xpose.msra.mxu0 0
    %953 = vmatprep.subr.bf16.mxu0 0
    %954 = vmatpush1.bf16.xpose.msra.mxu0 0
    %955 = vmatprep.subr.bf16.mxu0 0
    %956 = vmatpush1.bf16.xpose.msra.mxu0 %v939
    %957 = vmatprep.subr.bf16.mxu0 0
    %958 = vmatpush2.bf16.xpose.msra.mxu0 0
    %959 = vmatprep.subr.bf16.mxu0 0
    %960 = vmatpush2.bf16.xpose.msra.mxu0 0
    %961 = vmatprep.subr.bf16.mxu0 0
    %962 = vmatpush2.bf16.xpose.msra.mxu0 0
    %963 = vmatprep.subr.bf16.mxu0 0
    %964 = vmatpush2.bf16.xpose.msra.mxu0 0
    %965 = vmatprep.subr.bf16.mxu0 0
    %966 = vmatpush2.bf16.xpose.msra.mxu0 0
    %967 = vmatprep.subr.bf16.mxu0 0
    %968 = vmatpush2.bf16.xpose.msra.mxu0 0
    %969 = vmatprep.subr.bf16.mxu0 0
    %970 = vmatpush2.bf16.xpose.msra.mxu0 0
    %971 = vmatprep.subr.bf16.mxu0 0
    %972 = vmatpush2.bf16.xpose.msra.mxu0 0
    %973 = vmatprep.mubr.bf16.mxu0 0
    %974 = vmatmul.mubr.bf16.gmra.mxu0 %v936
    %v975 = vpop.f32.mrf.mxu0
    %v976 = vadd.f32 0.0, %v975
    %v977 = vpop.f32.mrf.mxu0
    %v978 = vpop.f32.mrf.mxu0
    %v979 = vpop.f32.mrf.mxu0
    %980 = vdwg.mxu0
    %v982 = vsel %vm387, %v753, 0
    %v985 = vsel %vm387, %v769, 0
    %987 = vmatprep.subr.bf16.mxu0 0
    %988 = vmatpush1.bf16.xpose.msra.mxu0 0
    %989 = vmatprep.subr.bf16.mxu0 0
    %990 = vmatpush1.bf16.xpose.msra.mxu0 0
    %991 = vmatprep.subr.bf16.mxu0 0
    %992 = vmatpush1.bf16.xpose.msra.mxu0 0
    %993 = vmatprep.subr.bf16.mxu0 0
    %994 = vmatpush1.bf16.xpose.msra.mxu0 0
    %995 = vmatprep.subr.bf16.mxu0 0
    %996 = vmatpush1.bf16.xpose.msra.mxu0 0
    %997 = vmatprep.subr.bf16.mxu0 0
    %998 = vmatpush1.bf16.xpose.msra.mxu0 0
    %999 = vmatprep.subr.bf16.mxu0 0
    %1000 = vmatpush1.bf16.xpose.msra.mxu0 0
    %1001 = vmatprep.subr.bf16.mxu0 0
    %1002 = vmatpush1.bf16.xpose.msra.mxu0 %v985
    %1003 = vmatprep.subr.bf16.mxu0 0
    %1004 = vmatpush2.bf16.xpose.msra.mxu0 0
    %1005 = vmatprep.subr.bf16.mxu0 0
    %1006 = vmatpush2.bf16.xpose.msra.mxu0 0
    %1007 = vmatprep.subr.bf16.mxu0 0
    %1008 = vmatpush2.bf16.xpose.msra.mxu0 0
    %1009 = vmatprep.subr.bf16.mxu0 0
    %1010 = vmatpush2.bf16.xpose.msra.mxu0 0
    %1011 = vmatprep.subr.bf16.mxu0 0
    %1012 = vmatpush2.bf16.xpose.msra.mxu0 0
    %1013 = vmatprep.subr.bf16.mxu0 0
    %1014 = vmatpush2.bf16.xpose.msra.mxu0 0
    %1015 = vmatprep.subr.bf16.mxu0 0
    %1016 = vmatpush2.bf16.xpose.msra.mxu0 0
    %1017 = vmatprep.subr.bf16.mxu0 0
    %1018 = vmatpush2.bf16.xpose.msra.mxu0 0
    %1019 = vmatprep.mubr.bf16.mxu0 0
    %1020 = vmatmul.mubr.bf16.gmra.mxu0 %v982
    %v1021 = vpop.f32.mrf.mxu0
    %v1022 = vadd.f32 0.0, %v1021
    %v1023 = vpop.f32.mrf.mxu0
    %v1024 = vpop.f32.mrf.mxu0
    %v1025 = vpop.f32.mrf.mxu0
    %1026 = vdwg.mxu0
    %v1028 = vsel %vm387, %v754, 0
    %v1031 = vsel %vm387, %v770, 0
    %1033 = vmatprep.subr.bf16.mxu0 0
    %1034 = vmatpush1.bf16.xpose.msra.mxu0 0
    %1035 = vmatprep.subr.bf16.mxu0 0
    %1036 = vmatpush1.bf16.xpose.msra.mxu0 0
    %1037 = vmatprep.subr.bf16.mxu0 0
    %1038 = vmatpush1.bf16.xpose.msra.mxu0 0
    %1039 = vmatprep.subr.bf16.mxu0 0
    %1040 = vmatpush1.bf16.xpose.msra.mxu0 0
    %1041 = vmatprep.subr.bf16.mxu0 0
    %1042 = vmatpush1.bf16.xpose.msra.mxu0 0
    %1043 = vmatprep.subr.bf16.mxu0 0
    %1044 = vmatpush1.bf16.xpose.msra.mxu0 0
    %1045 = vmatprep.subr.bf16.mxu0 0
    %1046 = vmatpush1.bf16.xpose.msra.mxu0 0
    %1047 = vmatprep.subr.bf16.mxu0 0
    %1048 = vmatpush1.bf16.xpose.msra.mxu0 %v1031
    %1049 = vmatprep.subr.bf16.mxu0 0
    %1050 = vmatpush2.bf16.xpose.msra.mxu0 0
    %1051 = vmatprep.subr.bf16.mxu0 0
    %1052 = vmatpush2.bf16.xpose.msra.mxu0 0
    %1053 = vmatprep.subr.bf16.mxu0 0
    %1054 = vmatpush2.bf16.xpose.msra.mxu0 0
    %1055 = vmatprep.subr.bf16.mxu0 0
    %1056 = vmatpush2.bf16.xpose.msra.mxu0 0
    %1057 = vmatprep.subr.bf16.mxu0 0
    %1058 = vmatpush2.bf16.xpose.msra.mxu0 0
    %1059 = vmatprep.subr.bf16.mxu0 0
    %1060 = vmatpush2.bf16.xpose.msra.mxu0 0
    %1061 = vmatprep.subr.bf16.mxu0 0
    %1062 = vmatpush2.bf16.xpose.msra.mxu0 0
    %1063 = vmatprep.subr.bf16.mxu0 0
    %1064 = vmatpush2.bf16.xpose.msra.mxu0 0
    %1065 = vmatprep.mubr.bf16.mxu0 0
    %1066 = vmatmul.mubr.bf16.gmra.mxu0 %v1028
    %v1067 = vpop.f32.mrf.mxu0
    %v1068 = vadd.f32 0.0, %v1067
    %v1069 = vpop.f32.mrf.mxu0
    %v1070 = vpop.f32.mrf.mxu0
    %v1071 = vpop.f32.mrf.mxu0
    %1072 = vdwg.mxu0
    %v1074 = vsel %vm387, %v755, 0
    %v1077 = vsel %vm387, %v771, 0
    %1079 = vmatprep.subr.bf16.mxu0 0
    %1080 = vmatpush1.bf16.xpose.msra.mxu0 0
    %1081 = vmatprep.subr.bf16.mxu0 0
    %1082 = vmatpush1.bf16.xpose.msra.mxu0 0
    %1083 = vmatprep.subr.bf16.mxu0 0
    %1084 = vmatpush1.bf16.xpose.msra.mxu0 0
    %1085 = vmatprep.subr.bf16.mxu0 0
    %1086 = vmatpush1.bf16.xpose.msra.mxu0 0
    %1087 = vmatprep.subr.bf16.mxu0 0
    %1088 = vmatpush1.bf16.xpose.msra.mxu0 0
    %1089 = vmatprep.subr.bf16.mxu0 0
    %1090 = vmatpush1.bf16.xpose.msra.mxu0 0
    %1091 = vmatprep.subr.bf16.mxu0 0
    %1092 = vmatpush1.bf16.xpose.msra.mxu0 0
    %1093 = vmatprep.subr.bf16.mxu0 0
    %1094 = vmatpush1.bf16.xpose.msra.mxu0 %v1077
    %1095 = vmatprep.subr.bf16.mxu0 0
    %1096 = vmatpush2.bf16.xpose.msra.mxu0 0
    %1097 = vmatprep.subr.bf16.mxu0 0
    %1098 = vmatpush2.bf16.xpose.msra.mxu0 0
    %1099 = vmatprep.subr.bf16.mxu0 0
    %1100 = vmatpush2.bf16.xpose.msra.mxu0 0
    %1101 = vmatprep.subr.bf16.mxu0 0
    %1102 = vmatpush2.bf16.xpose.msra.mxu0 0
    %1103 = vmatprep.subr.bf16.mxu0 0
    %1104 = vmatpush2.bf16.xpose.msra.mxu0 0
    %1105 = vmatprep.subr.bf16.mxu0 0
    %1106 = vmatpush2.bf16.xpose.msra.mxu0 0
    %1107 = vmatprep.subr.bf16.mxu0 0
    %1108 = vmatpush2.bf16.xpose.msra.mxu0 0
    %1109 = vmatprep.subr.bf16.mxu0 0
    %1110 = vmatpush2.bf16.xpose.msra.mxu0 0
    %1111 = vmatprep.mubr.bf16.mxu0 0
    %1112 = vmatmul.mubr.bf16.gmra.mxu0 %v1074
    %v1113 = vpop.f32.mrf.mxu0
    %v1114 = vadd.f32 0.0, %v1113
    %v1115 = vpop.f32.mrf.mxu0
    %v1116 = vpop.f32.mrf.mxu0
    %v1117 = vpop.f32.mrf.mxu0
    %1118 = vdwg.mxu0
    %v1120 = vsel %vm387, %v756, 0
    %v1123 = vsel %vm387, %v772, 0
    %1125 = vmatprep.subr.bf16.mxu0 0
    %1126 = vmatpush1.bf16.xpose.msra.mxu0 0
    %1127 = vmatprep.subr.bf16.mxu0 0
    %1128 = vmatpush1.bf16.xpose.msra.mxu0 0
    %1129 = vmatprep.subr.bf16.mxu0 0
    %1130 = vmatpush1.bf16.xpose.msra.mxu0 0
    %1131 = vmatprep.subr.bf16.mxu0 0
    %1132 = vmatpush1.bf16.xpose.msra.mxu0 0
    %1133 = vmatprep.subr.bf16.mxu0 0
    %1134 = vmatpush1.bf16.xpose.msra.mxu0 0
    %1135 = vmatprep.subr.bf16.mxu0 0
    %1136 = vmatpush1.bf16.xpose.msra.mxu0 0
    %1137 = vmatprep.subr.bf16.mxu0 0
    %1138 = vmatpush1.bf16.xpose.msra.mxu0 0
    %1139 = vmatprep.subr.bf16.mxu0 0
    %1140 = vmatpush1.bf16.xpose.msra.mxu0 %v1123
    %1141 = vmatprep.subr.bf16.mxu0 0
    %1142 = vmatpush2.bf16.xpose.msra.mxu0 0
    %1143 = vmatprep.subr.bf16.mxu0 0
    %1144 = vmatpush2.bf16.xpose.msra.mxu0 0
    %1145 = vmatprep.subr.bf16.mxu0 0
    %1146 = vmatpush2.bf16.xpose.msra.mxu0 0
    %1147 = vmatprep.subr.bf16.mxu0 0
    %1148 = vmatpush2.bf16.xpose.msra.mxu0 0
    %1149 = vmatprep.subr.bf16.mxu0 0
    %1150 = vmatpush2.bf16.xpose.msra.mxu0 0
    %1151 = vmatprep.subr.bf16.mxu0 0
    %1152 = vmatpush2.bf16.xpose.msra.mxu0 0
    %1153 = vmatprep.subr.bf16.mxu0 0
    %1154 = vmatpush2.bf16.xpose.msra.mxu0 0
    %1155 = vmatprep.subr.bf16.mxu0 0
    %1156 = vmatpush2.bf16.xpose.msra.mxu0 0
    %1157 = vmatprep.mubr.bf16.mxu0 0
    %1158 = vmatmul.mubr.bf16.gmra.mxu0 %v1120
    %v1159 = vpop.f32.mrf.mxu0
    %v1160 = vadd.f32 0.0, %v1159
    %v1161 = vpop.f32.mrf.mxu0
    %v1162 = vpop.f32.mrf.mxu0
    %v1163 = vpop.f32.mrf.mxu0
    %1164 = vdwg.mxu0
    %v1166 = vsel %vm387, %v757, 0
    %v1169 = vsel %vm387, %v773, 0
    %1171 = vmatprep.subr.bf16.mxu0 0
    %1172 = vmatpush1.bf16.xpose.msra.mxu0 0
    %1173 = vmatprep.subr.bf16.mxu0 0
    %1174 = vmatpush1.bf16.xpose.msra.mxu0 0
    %1175 = vmatprep.subr.bf16.mxu0 0
    %1176 = vmatpush1.bf16.xpose.msra.mxu0 0
    %1177 = vmatprep.subr.bf16.mxu0 0
    %1178 = vmatpush1.bf16.xpose.msra.mxu0 0
    %1179 = vmatprep.subr.bf16.mxu0 0
    %1180 = vmatpush1.bf16.xpose.msra.mxu0 0
    %1181 = vmatprep.subr.bf16.mxu0 0
    %1182 = vmatpush1.bf16.xpose.msra.mxu0 0
    %1183 = vmatprep.subr.bf16.mxu0 0
    %1184 = vmatpush1.bf16.xpose.msra.mxu0 0
    %1185 = vmatprep.subr.bf16.mxu0 0
    %1186 = vmatpush1.bf16.xpose.msra.mxu0 %v1169
    %1187 = vmatprep.subr.bf16.mxu0 0
    %1188 = vmatpush2.bf16.xpose.msra.mxu0 0
    %1189 = vmatprep.subr.bf16.mxu0 0
    %1190 = vmatpush2.bf16.xpose.msra.mxu0 0
    %1191 = vmatprep.subr.bf16.mxu0 0
    %1192 = vmatpush2.bf16.xpose.msra.mxu0 0
    %1193 = vmatprep.subr.bf16.mxu0 0
    %1194 = vmatpush2.bf16.xpose.msra.mxu0 0
    %1195 = vmatprep.subr.bf16.mxu0 0
    %1196 = vmatpush2.bf16.xpose.msra.mxu0 0
    %1197 = vmatprep.subr.bf16.mxu0 0
    %1198 = vmatpush2.bf16.xpose.msra.mxu0 0
    %1199 = vmatprep.subr.bf16.mxu0 0
    %1200 = vmatpush2.bf16.xpose.msra.mxu0 0
    %1201 = vmatprep.subr.bf16.mxu0 0
    %1202 = vmatpush2.bf16.xpose.msra.mxu0 0
    %1203 = vmatprep.mubr.bf16.mxu0 0
    %1204 = vmatmul.mubr.bf16.gmra.mxu0 %v1166
    %v1205 = vpop.f32.mrf.mxu0
    %v1206 = vadd.f32 0.0, %v1205
    %v1207 = vpop.f32.mrf.mxu0
    %v1208 = vpop.f32.mrf.mxu0
    %v1209 = vpop.f32.mrf.mxu0
    %1210 = vdwg.mxu0
    %v1212 = vsel %vm387, %v758, 0
    %v1215 = vsel %vm387, %v774, 0
    %1217 = vmatprep.subr.bf16.mxu0 0
    %1218 = vmatpush1.bf16.xpose.msra.mxu0 0
    %1219 = vmatprep.subr.bf16.mxu0 0
    %1220 = vmatpush1.bf16.xpose.msra.mxu0 0
    %1221 = vmatprep.subr.bf16.mxu0 0
    %1222 = vmatpush1.bf16.xpose.msra.mxu0 0
    %1223 = vmatprep.subr.bf16.mxu0 0
    %1224 = vmatpush1.bf16.xpose.msra.mxu0 0
    %1225 = vmatprep.subr.bf16.mxu0 0
    %1226 = vmatpush1.bf16.xpose.msra.mxu0 0
    %1227 = vmatprep.subr.bf16.mxu0 0
    %1228 = vmatpush1.bf16.xpose.msra.mxu0 0
    %1229 = vmatprep.subr.bf16.mxu0 0
    %1230 = vmatpush1.bf16.xpose.msra.mxu0 0
    %1231 = vmatprep.subr.bf16.mxu0 0
    %1232 = vmatpush1.bf16.xpose.msra.mxu0 %v1215
    %1233 = vmatprep.subr.bf16.mxu0 0
    %1234 = vmatpush2.bf16.xpose.msra.mxu0 0
    %1235 = vmatprep.subr.bf16.mxu0 0
    %1236 = vmatpush2.bf16.xpose.msra.mxu0 0
    %1237 = vmatprep.subr.bf16.mxu0 0
    %1238 = vmatpush2.bf16.xpose.msra.mxu0 0
    %1239 = vmatprep.subr.bf16.mxu0 0
    %1240 = vmatpush2.bf16.xpose.msra.mxu0 0
    %1241 = vmatprep.subr.bf16.mxu0 0
    %1242 = vmatpush2.bf16.xpose.msra.mxu0 0
    %1243 = vmatprep.subr.bf16.mxu0 0
    %1244 = vmatpush2.bf16.xpose.msra.mxu0 0
    %1245 = vmatprep.subr.bf16.mxu0 0
    %1246 = vmatpush2.bf16.xpose.msra.mxu0 0
    %1247 = vmatprep.subr.bf16.mxu0 0
    %1248 = vmatpush2.bf16.xpose.msra.mxu0 0
    %1249 = vmatprep.mubr.bf16.mxu0 0
    %1250 = vmatmul.mubr.bf16.gmra.mxu0 %v1212
    %v1251 = vpop.f32.mrf.mxu0
    %v1252 = vadd.f32 0.0, %v1251
    %v1253 = vpop.f32.mrf.mxu0
    %v1254 = vpop.f32.mrf.mxu0
    %v1255 = vpop.f32.mrf.mxu0
    %1256 = vdwg.mxu0
    %v1258 = vsel %vm387, %v759, 0
    %v1261 = vsel %vm387, %v775, 0
    %1263 = vmatprep.subr.bf16.mxu0 0
    %1264 = vmatpush1.bf16.xpose.msra.mxu0 0
    %1265 = vmatprep.subr.bf16.mxu0 0
    %1266 = vmatpush1.bf16.xpose.msra.mxu0 0
    %1267 = vmatprep.subr.bf16.mxu0 0
    %1268 = vmatpush1.bf16.xpose.msra.mxu0 0
    %1269 = vmatprep.subr.bf16.mxu0 0
    %1270 = vmatpush1.bf16.xpose.msra.mxu0 0
    %1271 = vmatprep.subr.bf16.mxu0 0
    %1272 = vmatpush1.bf16.xpose.msra.mxu0 0
    %1273 = vmatprep.subr.bf16.mxu0 0
    %1274 = vmatpush1.bf16.xpose.msra.mxu0 0
    %1275 = vmatprep.subr.bf16.mxu0 0
    %1276 = vmatpush1.bf16.xpose.msra.mxu0 0
    %1277 = vmatprep.subr.bf16.mxu0 0
    %1278 = vmatpush1.bf16.xpose.msra.mxu0 %v1261
    %1279 = vmatprep.subr.bf16.mxu0 0
    %1280 = vmatpush2.bf16.xpose.msra.mxu0 0
    %1281 = vmatprep.subr.bf16.mxu0 0
    %1282 = vmatpush2.bf16.xpose.msra.mxu0 0
    %1283 = vmatprep.subr.bf16.mxu0 0
    %1284 = vmatpush2.bf16.xpose.msra.mxu0 0
    %1285 = vmatprep.subr.bf16.mxu0 0
    %1286 = vmatpush2.bf16.xpose.msra.mxu0 0
    %1287 = vmatprep.subr.bf16.mxu0 0
    %1288 = vmatpush2.bf16.xpose.msra.mxu0 0
    %1289 = vmatprep.subr.bf16.mxu0 0
    %1290 = vmatpush2.bf16.xpose.msra.mxu0 0
    %1291 = vmatprep.subr.bf16.mxu0 0
    %1292 = vmatpush2.bf16.xpose.msra.mxu0 0
    %1293 = vmatprep.subr.bf16.mxu0 0
    %1294 = vmatpush2.bf16.xpose.msra.mxu0 0
    %1295 = vmatprep.mubr.bf16.mxu0 0
    %1296 = vmatmul.mubr.bf16.gmra.mxu0 %v1258
    %v1297 = vpop.f32.mrf.mxu0
    %v1298 = vadd.f32 0.0, %v1297
    %v1299 = vpop.f32.mrf.mxu0
    %v1300 = vpop.f32.mrf.mxu0
    %v1301 = vpop.f32.mrf.mxu0
    %1302 = vdwg.mxu0
    %v1304 = vsel %vm387, %v760, 0
    %v1307 = vsel %vm387, %v776, 0
    %1309 = vmatprep.subr.bf16.mxu0 0
    %1310 = vmatpush1.bf16.xpose.msra.mxu0 0
    %1311 = vmatprep.subr.bf16.mxu0 0
    %1312 = vmatpush1.bf16.xpose.msra.mxu0 0
    %1313 = vmatprep.subr.bf16.mxu0 0
    %1314 = vmatpush1.bf16.xpose.msra.mxu0 0
    %1315 = vmatprep.subr.bf16.mxu0 0
    %1316 = vmatpush1.bf16.xpose.msra.mxu0 0
    %1317 = vmatprep.subr.bf16.mxu0 0
    %1318 = vmatpush1.bf16.xpose.msra.mxu0 0
    %1319 = vmatprep.subr.bf16.mxu0 0
    %1320 = vmatpush1.bf16.xpose.msra.mxu0 0
    %1321 = vmatprep.subr.bf16.mxu0 0
    %1322 = vmatpush1.bf16.xpose.msra.mxu0 0
    %1323 = vmatprep.subr.bf16.mxu0 0
    %1324 = vmatpush1.bf16.xpose.msra.mxu0 %v1307
    %1325 = vmatprep.subr.bf16.mxu0 0
    %1326 = vmatpush2.bf16.xpose.msra.mxu0 0
    %1327 = vmatprep.subr.bf16.mxu0 0
    %1328 = vmatpush2.bf16.xpose.msra.mxu0 0
    %1329 = vmatprep.subr.bf16.mxu0 0
    %1330 = vmatpush2.bf16.xpose.msra.mxu0 0
    %1331 = vmatprep.subr.bf16.mxu0 0
    %1332 = vmatpush2.bf16.xpose.msra.mxu0 0
    %1333 = vmatprep.subr.bf16.mxu0 0
    %1334 = vmatpush2.bf16.xpose.msra.mxu0 0
    %1335 = vmatprep.subr.bf16.mxu0 0
    %1336 = vmatpush2.bf16.xpose.msra.mxu0 0
    %1337 = vmatprep.subr.bf16.mxu0 0
    %1338 = vmatpush2.bf16.xpose.msra.mxu0 0
    %1339 = vmatprep.subr.bf16.mxu0 0
    %1340 = vmatpush2.bf16.xpose.msra.mxu0 0
    %1341 = vmatprep.mubr.bf16.mxu0 0
    %1342 = vmatmul.mubr.bf16.gmra.mxu0 %v1304
    %v1343 = vpop.f32.mrf.mxu0
    %v1344 = vadd.f32 0.0, %v1343
    %v1345 = vpop.f32.mrf.mxu0
    %v1346 = vpop.f32.mrf.mxu0
    %v1347 = vpop.f32.mrf.mxu0
    %1348 = vdwg.mxu0
    %v1350 = vsel %vm387, %v761, 0
    %v1353 = vsel %vm387, %v777, 0
    %1355 = vmatprep.subr.bf16.mxu0 0
    %1356 = vmatpush1.bf16.xpose.msra.mxu0 0
    %1357 = vmatprep.subr.bf16.mxu0 0
    %1358 = vmatpush1.bf16.xpose.msra.mxu0 0
    %1359 = vmatprep.subr.bf16.mxu0 0
    %1360 = vmatpush1.bf16.xpose.msra.mxu0 0
    %1361 = vmatprep.subr.bf16.mxu0 0
    %1362 = vmatpush1.bf16.xpose.msra.mxu0 0
    %1363 = vmatprep.subr.bf16.mxu0 0
    %1364 = vmatpush1.bf16.xpose.msra.mxu0 0
    %1365 = vmatprep.subr.bf16.mxu0 0
    %1366 = vmatpush1.bf16.xpose.msra.mxu0 0
    %1367 = vmatprep.subr.bf16.mxu0 0
    %1368 = vmatpush1.bf16.xpose.msra.mxu0 0
    %1369 = vmatprep.subr.bf16.mxu0 0
    %1370 = vmatpush1.bf16.xpose.msra.mxu0 %v1353
    %1371 = vmatprep.subr.bf16.mxu0 0
    %1372 = vmatpush2.bf16.xpose.msra.mxu0 0
    %1373 = vmatprep.subr.bf16.mxu0 0
    %1374 = vmatpush2.bf16.xpose.msra.mxu0 0
    %1375 = vmatprep.subr.bf16.mxu0 0
    %1376 = vmatpush2.bf16.xpose.msra.mxu0 0
    %1377 = vmatprep.subr.bf16.mxu0 0
    %1378 = vmatpush2.bf16.xpose.msra.mxu0 0
    %1379 = vmatprep.subr.bf16.mxu0 0
    %1380 = vmatpush2.bf16.xpose.msra.mxu0 0
    %1381 = vmatprep.subr.bf16.mxu0 0
    %1382 = vmatpush2.bf16.xpose.msra.mxu0 0
    %1383 = vmatprep.subr.bf16.mxu0 0
    %1384 = vmatpush2.bf16.xpose.msra.mxu0 0
    %1385 = vmatprep.subr.bf16.mxu0 0
    %1386 = vmatpush2.bf16.xpose.msra.mxu0 0
    %1387 = vmatprep.mubr.bf16.mxu0 0
    %1388 = vmatmul.mubr.bf16.gmra.mxu0 %v1350
    %v1389 = vpop.f32.mrf.mxu0
    %v1390 = vadd.f32 0.0, %v1389
    %v1391 = vpop.f32.mrf.mxu0
    %v1392 = vpop.f32.mrf.mxu0
    %v1393 = vpop.f32.mrf.mxu0
    %1394 = vdwg.mxu0
    %v1396 = vsel %vm387, %v762, 0
    %v1399 = vsel %vm387, %v778, 0
    %1401 = vmatprep.subr.bf16.mxu0 0
    %1402 = vmatpush1.bf16.xpose.msra.mxu0 0
    %1403 = vmatprep.subr.bf16.mxu0 0
    %1404 = vmatpush1.bf16.xpose.msra.mxu0 0
    %1405 = vmatprep.subr.bf16.mxu0 0
    %1406 = vmatpush1.bf16.xpose.msra.mxu0 0
    %1407 = vmatprep.subr.bf16.mxu0 0
    %1408 = vmatpush1.bf16.xpose.msra.mxu0 0
    %1409 = vmatprep.subr.bf16.mxu0 0
    %1410 = vmatpush1.bf16.xpose.msra.mxu0 0
    %1411 = vmatprep.subr.bf16.mxu0 0
    %1412 = vmatpush1.bf16.xpose.msra.mxu0 0
    %1413 = vmatprep.subr.bf16.mxu0 0
    %1414 = vmatpush1.bf16.xpose.msra.mxu0 0
    %1415 = vmatprep.subr.bf16.mxu0 0
    %1416 = vmatpush1.bf16.xpose.msra.mxu0 %v1399
    %1417 = vmatprep.subr.bf16.mxu0 0
    %1418 = vmatpush2.bf16.xpose.msra.mxu0 0
    %1419 = vmatprep.subr.bf16.mxu0 0
    %1420 = vmatpush2.bf16.xpose.msra.mxu0 0
    %1421 = vmatprep.subr.bf16.mxu0 0
    %1422 = vmatpush2.bf16.xpose.msra.mxu0 0
    %1423 = vmatprep.subr.bf16.mxu0 0
    %1424 = vmatpush2.bf16.xpose.msra.mxu0 0
    %1425 = vmatprep.subr.bf16.mxu0 0
    %1426 = vmatpush2.bf16.xpose.msra.mxu0 0
    %1427 = vmatprep.subr.bf16.mxu0 0
    %1428 = vmatpush2.bf16.xpose.msra.mxu0 0
    %1429 = vmatprep.subr.bf16.mxu0 0
    %1430 = vmatpush2.bf16.xpose.msra.mxu0 0
    %1431 = vmatprep.subr.bf16.mxu0 0
    %1432 = vmatpush2.bf16.xpose.msra.mxu0 0
    %1433 = vmatprep.mubr.bf16.mxu0 0
    %1434 = vmatmul.mubr.bf16.gmra.mxu0 %v1396
    %v1435 = vpop.f32.mrf.mxu0
    %v1436 = vadd.f32 0.0, %v1435
    %v1437 = vpop.f32.mrf.mxu0
    %v1438 = vpop.f32.mrf.mxu0
    %v1439 = vpop.f32.mrf.mxu0
    %1440 = vdwg.mxu0
    %v1442 = vsel %vm387, %v763, 0
    %v1445 = vsel %vm387, %v779, 0
    %1447 = vmatprep.subr.bf16.mxu0 0
    %1448 = vmatpush1.bf16.xpose.msra.mxu0 0
    %1449 = vmatprep.subr.bf16.mxu0 0
    %1450 = vmatpush1.bf16.xpose.msra.mxu0 0
    %1451 = vmatprep.subr.bf16.mxu0 0
    %1452 = vmatpush1.bf16.xpose.msra.mxu0 0
    %1453 = vmatprep.subr.bf16.mxu0 0
    %1454 = vmatpush1.bf16.xpose.msra.mxu0 0
    %1455 = vmatprep.subr.bf16.mxu0 0
    %1456 = vmatpush1.bf16.xpose.msra.mxu0 0
    %1457 = vmatprep.subr.bf16.mxu0 0
    %1458 = vmatpush1.bf16.xpose.msra.mxu0 0
    %1459 = vmatprep.subr.bf16.mxu0 0
    %1460 = vmatpush1.bf16.xpose.msra.mxu0 0
    %1461 = vmatprep.subr.bf16.mxu0 0
    %1462 = vmatpush1.bf16.xpose.msra.mxu0 %v1445
    %1463 = vmatprep.subr.bf16.mxu0 0
    %1464 = vmatpush2.bf16.xpose.msra.mxu0 0
    %1465 = vmatprep.subr.bf16.mxu0 0
    %1466 = vmatpush2.bf16.xpose.msra.mxu0 0
    %1467 = vmatprep.subr.bf16.mxu0 0
    %1468 = vmatpush2.bf16.xpose.msra.mxu0 0
    %1469 = vmatprep.subr.bf16.mxu0 0
    %1470 = vmatpush2.bf16.xpose.msra.mxu0 0
    %1471 = vmatprep.subr.bf16.mxu0 0
    %1472 = vmatpush2.bf16.xpose.msra.mxu0 0
    %1473 = vmatprep.subr.bf16.mxu0 0
    %1474 = vmatpush2.bf16.xpose.msra.mxu0 0
    %1475 = vmatprep.subr.bf16.mxu0 0
    %1476 = vmatpush2.bf16.xpose.msra.mxu0 0
    %1477 = vmatprep.subr.bf16.mxu0 0
    %1478 = vmatpush2.bf16.xpose.msra.mxu0 0
    %1479 = vmatprep.mubr.bf16.mxu0 0
    %1480 = vmatmul.mubr.bf16.gmra.mxu0 %v1442
    %v1481 = vpop.f32.mrf.mxu0
    %v1482 = vadd.f32 0.0, %v1481
    %v1483 = vpop.f32.mrf.mxu0
    %v1484 = vpop.f32.mrf.mxu0
    %v1485 = vpop.f32.mrf.mxu0
    %1486 = vdwg.mxu0
    %v1488 = vsel %vm387, %v764, 0
    %v1491 = vsel %vm387, %v780, 0
    %1493 = vmatprep.subr.bf16.mxu0 0
    %1494 = vmatpush1.bf16.xpose.msra.mxu0 0
    %1495 = vmatprep.subr.bf16.mxu0 0
    %1496 = vmatpush1.bf16.xpose.msra.mxu0 0
    %1497 = vmatprep.subr.bf16.mxu0 0
    %1498 = vmatpush1.bf16.xpose.msra.mxu0 0
    %1499 = vmatprep.subr.bf16.mxu0 0
    %1500 = vmatpush1.bf16.xpose.msra.mxu0 0
    %1501 = vmatprep.subr.bf16.mxu0 0
    %1502 = vmatpush1.bf16.xpose.msra.mxu0 0
    %1503 = vmatprep.subr.bf16.mxu0 0
    %1504 = vmatpush1.bf16.xpose.msra.mxu0 0
    %1505 = vmatprep.subr.bf16.mxu0 0
    %1506 = vmatpush1.bf16.xpose.msra.mxu0 0
    %1507 = vmatprep.subr.bf16.mxu0 0
    %1508 = vmatpush1.bf16.xpose.msra.mxu0 %v1491
    %1509 = vmatprep.subr.bf16.mxu0 0
    %1510 = vmatpush2.bf16.xpose.msra.mxu0 0
    %1511 = vmatprep.subr.bf16.mxu0 0
    %1512 = vmatpush2.bf16.xpose.msra.mxu0 0
    %1513 = vmatprep.subr.bf16.mxu0 0
    %1514 = vmatpush2.bf16.xpose.msra.mxu0 0
    %1515 = vmatprep.subr.bf16.mxu0 0
    %1516 = vmatpush2.bf16.xpose.msra.mxu0 0
    %1517 = vmatprep.subr.bf16.mxu0 0
    %1518 = vmatpush2.bf16.xpose.msra.mxu0 0
    %1519 = vmatprep.subr.bf16.mxu0 0
    %1520 = vmatpush2.bf16.xpose.msra.mxu0 0
    %1521 = vmatprep.subr.bf16.mxu0 0
    %1522 = vmatpush2.bf16.xpose.msra.mxu0 0
    %1523 = vmatprep.subr.bf16.mxu0 0
    %1524 = vmatpush2.bf16.xpose.msra.mxu0 0
    %1525 = vmatprep.mubr.bf16.mxu0 0
    %1526 = vmatmul.mubr.bf16.gmra.mxu0 %v1488
    %v1527 = vpop.f32.mrf.mxu0
    %v1528 = vadd.f32 0.0, %v1527
    %v1529 = vpop.f32.mrf.mxu0
    %v1530 = vpop.f32.mrf.mxu0
    %v1531 = vpop.f32.mrf.mxu0
    %1532 = vdwg.mxu0
    %v1533 = vlaneseq
    %v1534 = vand.u32 %v1533, 127
    %v1535 = vld [vmem:[%s1] sm:$0x1]
    %v1536 = vld [vmem:[%s1 + $0x1] sm:$0x1]
    %v1537 = vld [vmem:[%s1 + $0x2] sm:$0x1]
    %v1538 = vld [vmem:[%s1 + $0x3] sm:$0x1]
    %v1539 = vld [vmem:[%s1 + $0x4] sm:$0x1]
    %v1540 = vld [vmem:[%s1 + $0x5] sm:$0x1]
    %v1541 = vld [vmem:[%s1 + $0x6] sm:$0x1]
    %v1542 = vld [vmem:[%s1 + $0x7] sm:$0x1]
    %v1543 = vld [vmem:[%s1 + $0x8] sm:$0x1]
    %v1544 = vld [vmem:[%s1 + $0x9] sm:$0x1]
    %v1545 = vld [vmem:[%s1 + $0xa] sm:$0x1]
    %v1546 = vld [vmem:[%s1 + $0xb] sm:$0x1]
    %v1547 = vld [vmem:[%s1 + $0xc] sm:$0x1]
    %v1548 = vld [vmem:[%s1 + $0xd] sm:$0x1]
    %v1549 = vld [vmem:[%s1 + $0xe] sm:$0x1]
    %v1550 = vld [vmem:[%s1 + $0xf] sm:$0x1]
    %1551 = vset.pattern.permute.xlu0 0
    %1552 = vperm.xlu0 %1551, %v1535
    %v1553 = vpop.permute.xlu0 %1552
    %v1554 = vlaneseq
    %v1555 = vshrl.u32 %v1554, 7
    %v1556 = vsub.s32 0, %v1555
    %v1557 = vrot.slane %v1553, %v1556
    %1558 = vset.pattern.permute.xlu0 0
    %1559 = vperm.xlu0 %1558, %v1536
    %v1560 = vpop.permute.xlu0 %1559
    %v1561 = vlaneseq
    %v1562 = vshrl.u32 %v1561, 7
    %v1563 = vsub.s32 0, %v1562
    %v1564 = vrot.slane %v1560, %v1563
    %1565 = vset.pattern.permute.xlu0 0
    %1566 = vperm.xlu0 %1565, %v1537
    %v1567 = vpop.permute.xlu0 %1566
    %v1568 = vlaneseq
    %v1569 = vshrl.u32 %v1568, 7
    %v1570 = vsub.s32 0, %v1569
    %v1571 = vrot.slane %v1567, %v1570
    %1572 = vset.pattern.permute.xlu0 0
    %1573 = vperm.xlu0 %1572, %v1538
    %v1574 = vpop.permute.xlu0 %1573
    %v1575 = vlaneseq
    %v1576 = vshrl.u32 %v1575, 7
    %v1577 = vsub.s32 0, %v1576
    %v1578 = vrot.slane %v1574, %v1577
    %1579 = vset.pattern.permute.xlu0 0
    %1580 = vperm.xlu0 %1579, %v1539
    %v1581 = vpop.permute.xlu0 %1580
    %v1582 = vlaneseq
    %v1583 = vshrl.u32 %v1582, 7
    %v1584 = vsub.s32 0, %v1583
    %v1585 = vrot.slane %v1581, %v1584
    %1586 = vset.pattern.permute.xlu0 0
    %1587 = vperm.xlu0 %1586, %v1540
    %v1588 = vpop.permute.xlu0 %1587
    %v1589 = vlaneseq
    %v1590 = vshrl.u32 %v1589, 7
    %v1591 = vsub.s32 0, %v1590
    %v1592 = vrot.slane %v1588, %v1591
    %1593 = vset.pattern.permute.xlu0 0
    %1594 = vperm.xlu0 %1593, %v1541
    %v1595 = vpop.permute.xlu0 %1594
    %v1596 = vlaneseq
    %v1597 = vshrl.u32 %v1596, 7
    %v1598 = vsub.s32 0, %v1597
    %v1599 = vrot.slane %v1595, %v1598
    %1600 = vset.pattern.permute.xlu0 0
    %1601 = vperm.xlu0 %1600, %v1542
    %v1602 = vpop.permute.xlu0 %1601
    %v1603 = vlaneseq
    %v1604 = vshrl.u32 %v1603, 7
    %v1605 = vsub.s32 0, %v1604
    %v1606 = vrot.slane %v1602, %v1605
    %1607 = vset.pattern.permute.xlu0 0
    %1608 = vperm.xlu0 %1607, %v1543
    %v1609 = vpop.permute.xlu0 %1608
    %v1610 = vlaneseq
    %v1611 = vshrl.u32 %v1610, 7
    %v1612 = vsub.s32 0, %v1611
    %v1613 = vrot.slane %v1609, %v1612
    %1614 = vset.pattern.permute.xlu0 0
    %1615 = vperm.xlu0 %1614, %v1544
    %v1616 = vpop.permute.xlu0 %1615
    %v1617 = vlaneseq
    %v1618 = vshrl.u32 %v1617, 7
    %v1619 = vsub.s32 0, %v1618
    %v1620 = vrot.slane %v1616, %v1619
    %1621 = vset.pattern.permute.xlu0 0
    %1622 = vperm.xlu0 %1621, %v1545
    %v1623 = vpop.permute.xlu0 %1622
    %v1624 = vlaneseq
    %v1625 = vshrl.u32 %v1624, 7
    %v1626 = vsub.s32 0, %v1625
    %v1627 = vrot.slane %v1623, %v1626
    %1628 = vset.pattern.permute.xlu0 0
    %1629 = vperm.xlu0 %1628, %v1546
    %v1630 = vpop.permute.xlu0 %1629
    %v1631 = vlaneseq
    %v1632 = vshrl.u32 %v1631, 7
    %v1633 = vsub.s32 0, %v1632
    %v1634 = vrot.slane %v1630, %v1633
    %1635 = vset.pattern.permute.xlu0 0
    %1636 = vperm.xlu0 %1635, %v1547
    %v1637 = vpop.permute.xlu0 %1636
    %v1638 = vlaneseq
    %v1639 = vshrl.u32 %v1638, 7
    %v1640 = vsub.s32 0, %v1639
    %v1641 = vrot.slane %v1637, %v1640
    %1642 = vset.pattern.permute.xlu0 0
    %1643 = vperm.xlu0 %1642, %v1548
    %v1644 = vpop.permute.xlu0 %1643
    %v1645 = vlaneseq
    %v1646 = vshrl.u32 %v1645, 7
    %v1647 = vsub.s32 0, %v1646
    %v1648 = vrot.slane %v1644, %v1647
    %1649 = vset.pattern.permute.xlu0 0
    %1650 = vperm.xlu0 %1649, %v1549
    %v1651 = vpop.permute.xlu0 %1650
    %v1652 = vlaneseq
    %v1653 = vshrl.u32 %v1652, 7
    %v1654 = vsub.s32 0, %v1653
    %v1655 = vrot.slane %v1651, %v1654
    %1656 = vset.pattern.permute.xlu0 0
    %1657 = vperm.xlu0 %1656, %v1550
    %v1658 = vpop.permute.xlu0 %1657
    %v1659 = vlaneseq
    %v1660 = vshrl.u32 %v1659, 7
    %v1661 = vsub.s32 0, %v1660
    %v1662 = vrot.slane %v1658, %v1661
    %vm1663 = vcmp.lt.s32.totalorder %v1534, %v1557
    %vm1664 = vcmp.lt.s32.totalorder %v1534, %v1564
    %vm1665 = vcmp.lt.s32.totalorder %v1534, %v1571
    %vm1666 = vcmp.lt.s32.totalorder %v1534, %v1578
    %vm1667 = vcmp.lt.s32.totalorder %v1534, %v1585
    %vm1668 = vcmp.lt.s32.totalorder %v1534, %v1592
    %vm1669 = vcmp.lt.s32.totalorder %v1534, %v1599
    %vm1670 = vcmp.lt.s32.totalorder %v1534, %v1606
    %vm1671 = vcmp.lt.s32.totalorder %v1534, %v1613
    %vm1672 = vcmp.lt.s32.totalorder %v1534, %v1620
    %vm1673 = vcmp.lt.s32.totalorder %v1534, %v1627
    %vm1674 = vcmp.lt.s32.totalorder %v1534, %v1634
    %vm1675 = vcmp.lt.s32.totalorder %v1534, %v1641
    %vm1676 = vcmp.lt.s32.totalorder %v1534, %v1648
    %vm1677 = vcmp.lt.s32.totalorder %v1534, %v1655
    %vm1678 = vcmp.lt.s32.totalorder %v1534, %v1662
    %v1679 = vsel %vm1663, 1, 0
    %v1680 = vsel %vm1664, 1, 0
    %v1681 = vsel %vm1665, 1, 0
    %v1682 = vsel %vm1666, 1, 0
    %v1683 = vsel %vm1667, 1, 0
    %v1684 = vsel %vm1668, 1, 0
    %v1685 = vsel %vm1669, 1, 0
    %v1686 = vsel %vm1670, 1, 0
    %v1687 = vsel %vm1671, 1, 0
    %v1688 = vsel %vm1672, 1, 0
    %v1689 = vsel %vm1673, 1, 0
    %v1690 = vsel %vm1674, 1, 0
    %v1691 = vsel %vm1675, 1, 0
    %v1692 = vsel %vm1676, 1, 0
    %v1693 = vsel %vm1677, 1, 0
    %v1694 = vsel %vm1678, 1, 0
    %vm1695 = vcmp.eq.s32.totalorder %v1679, 1
    %vm1696 = vcmp.eq.s32.totalorder %v1680, 1
    %vm1697 = vcmp.eq.s32.totalorder %v1681, 1
    %vm1698 = vcmp.eq.s32.totalorder %v1682, 1
    %vm1699 = vcmp.eq.s32.totalorder %v1683, 1
    %vm1700 = vcmp.eq.s32.totalorder %v1684, 1
    %vm1701 = vcmp.eq.s32.totalorder %v1685, 1
    %vm1702 = vcmp.eq.s32.totalorder %v1686, 1
    %vm1703 = vcmp.eq.s32.totalorder %v1687, 1
    %vm1704 = vcmp.eq.s32.totalorder %v1688, 1
    %vm1705 = vcmp.eq.s32.totalorder %v1689, 1
    %vm1706 = vcmp.eq.s32.totalorder %v1690, 1
    %vm1707 = vcmp.eq.s32.totalorder %v1691, 1
    %vm1708 = vcmp.eq.s32.totalorder %v1692, 1
    %vm1709 = vcmp.eq.s32.totalorder %v1693, 1
    %vm1710 = vcmp.eq.s32.totalorder %v1694, 1
    %v1711 = vsel %vm1695, %v838, -1e+09
    %v1712 = vsel %vm1696, %v884, -1e+09
    %v1713 = vsel %vm1697, %v930, -1e+09
    %v1714 = vsel %vm1698, %v976, -1e+09
    %v1715 = vsel %vm1699, %v1022, -1e+09
    %v1716 = vsel %vm1700, %v1068, -1e+09
    %v1717 = vsel %vm1701, %v1114, -1e+09
    %v1718 = vsel %vm1702, %v1160, -1e+09
    %v1719 = vsel %vm1703, %v1206, -1e+09
    %v1720 = vsel %vm1704, %v1252, -1e+09
    %v1721 = vsel %vm1705, %v1298, -1e+09
    %v1722 = vsel %vm1706, %v1344, -1e+09
    %v1723 = vsel %vm1707, %v1390, -1e+09
    %v1724 = vsel %vm1708, %v1436, -1e+09
    %v1725 = vsel %vm1709, %v1482, -1e+09
    %v1726 = vsel %vm1710, %v1528, -1e+09
    %vm1727 = vcmask 64512
    %v1728 = vsel %vm1727, %v1711, -inf
    %1729 = vmax.xlane.f32.xlu0 %v1728
    %v1730 = vpop.xlane.xlu0 %1729
    %v1731 = vsel %vm1727, %v1712, -inf
    %1732 = vmax.xlane.f32.xlu0 %v1731
    %v1733 = vpop.xlane.xlu0 %1732
    %v1734 = vsel %vm1727, %v1713, -inf
    %1735 = vmax.xlane.f32.xlu0 %v1734
    %v1736 = vpop.xlane.xlu0 %1735
    %v1737 = vsel %vm1727, %v1714, -inf
    %1738 = vmax.xlane.f32.xlu0 %v1737
    %v1739 = vpop.xlane.xlu0 %1738
    %v1740 = vsel %vm1727, %v1715, -inf
    %1741 = vmax.xlane.f32.xlu0 %v1740
    %v1742 = vpop.xlane.xlu0 %1741
    %v1743 = vsel %vm1727, %v1716, -inf
    %1744 = vmax.xlane.f32.xlu0 %v1743
    %v1745 = vpop.xlane.xlu0 %1744
    %v1746 = vsel %vm1727, %v1717, -inf
    %1747 = vmax.xlane.f32.xlu0 %v1746
    %v1748 = vpop.xlane.xlu0 %1747
    %v1749 = vsel %vm1727, %v1718, -inf
    %1750 = vmax.xlane.f32.xlu0 %v1749
    %v1751 = vpop.xlane.xlu0 %1750
    %v1752 = vsel %vm1727, %v1719, -inf
    %1753 = vmax.xlane.f32.xlu0 %v1752
    %v1754 = vpop.xlane.xlu0 %1753
    %v1755 = vsel %vm1727, %v1720, -inf
    %1756 = vmax.xlane.f32.xlu0 %v1755
    %v1757 = vpop.xlane.xlu0 %1756
    %v1758 = vsel %vm1727, %v1721, -inf
    %1759 = vmax.xlane.f32.xlu0 %v1758
    %v1760 = vpop.xlane.xlu0 %1759
    %v1761 = vsel %vm1727, %v1722, -inf
    %1762 = vmax.xlane.f32.xlu0 %v1761
    %v1763 = vpop.xlane.xlu0 %1762
    %v1764 = vsel %vm1727, %v1723, -inf
    %1765 = vmax.xlane.f32.xlu0 %v1764
    %v1766 = vpop.xlane.xlu0 %1765
    %v1767 = vsel %vm1727, %v1724, -inf
    %1768 = vmax.xlane.f32.xlu0 %v1767
    %v1769 = vpop.xlane.xlu0 %1768
    %v1770 = vsel %vm1727, %v1725, -inf
    %1771 = vmax.xlane.f32.xlu0 %v1770
    %v1772 = vpop.xlane.xlu0 %1771
    %v1773 = vsel %vm1727, %v1726, -inf
    %1774 = vmax.xlane.f32.xlu0 %v1773
    %v1775 = vpop.xlane.xlu0 %1774
    %v1776 = vsub.f32 %v1711, %v1730
    %v1777 = vsub.f32 %v1712, %v1733
    %v1778 = vsub.f32 %v1713, %v1736
    %v1779 = vsub.f32 %v1714, %v1739
    %v1780 = vsub.f32 %v1715, %v1742
    %v1781 = vsub.f32 %v1716, %v1745
    %v1782 = vsub.f32 %v1717, %v1748
    %v1783 = vsub.f32 %v1718, %v1751
    %v1784 = vsub.f32 %v1719, %v1754
    %v1785 = vsub.f32 %v1720, %v1757
    %v1786 = vsub.f32 %v1721, %v1760
    %v1787 = vsub.f32 %v1722, %v1763
    %v1788 = vsub.f32 %v1723, %v1766
    %v1789 = vsub.f32 %v1724, %v1769
    %v1790 = vsub.f32 %v1725, %v1772
    %v1791 = vsub.f32 %v1726, %v1775
    %v1792 = vmul.f32 %v1776, 1.442695
    %v1793 = vpow.pop %v1792
    %v1794 = vmul.f32 %v1777, 1.442695
    %v1795 = vpow.pop %v1794
    %v1796 = vmul.f32 %v1778, 1.442695
    %v1797 = vpow.pop %v1796
    %v1798 = vmul.f32 %v1779, 1.442695
    %v1799 = vpow.pop %v1798
    %v1800 = vmul.f32 %v1780, 1.442695
    %v1801 = vpow.pop %v1800
    %v1802 = vmul.f32 %v1781, 1.442695
    %v1803 = vpow.pop %v1802
    %v1804 = vmul.f32 %v1782, 1.442695
    %v1805 = vpow.pop %v1804
    %v1806 = vmul.f32 %v1783, 1.442695
    %v1807 = vpow.pop %v1806
    %v1808 = vmul.f32 %v1784, 1.442695
    %v1809 = vpow.pop %v1808
    %v1810 = vmul.f32 %v1785, 1.442695
    %v1811 = vpow.pop %v1810
    %v1812 = vmul.f32 %v1786, 1.442695
    %v1813 = vpow.pop %v1812
    %v1814 = vmul.f32 %v1787, 1.442695
    %v1815 = vpow.pop %v1814
    %v1816 = vmul.f32 %v1788, 1.442695
    %v1817 = vpow.pop %v1816
    %v1818 = vmul.f32 %v1789, 1.442695
    %v1819 = vpow.pop %v1818
    %v1820 = vmul.f32 %v1790, 1.442695
    %v1821 = vpow.pop %v1820
    %v1822 = vmul.f32 %v1791, 1.442695
    %v1823 = vpow.pop %v1822
    %v1824 = vsel %vm1727, %v1793, 0.0
    %1825 = vadd.xlane.f32.xlu0 %v1824
    %v1826 = vpop.xlane.xlu0 %1825
    %v1827 = vsel %vm1727, %v1795, 0.0
    %1828 = vadd.xlane.f32.xlu0 %v1827
    %v1829 = vpop.xlane.xlu0 %1828
    %v1830 = vsel %vm1727, %v1797, 0.0
    %1831 = vadd.xlane.f32.xlu0 %v1830
    %v1832 = vpop.xlane.xlu0 %1831
    %v1833 = vsel %vm1727, %v1799, 0.0
    %1834 = vadd.xlane.f32.xlu0 %v1833
    %v1835 = vpop.xlane.xlu0 %1834
    %v1836 = vsel %vm1727, %v1801, 0.0
    %1837 = vadd.xlane.f32.xlu0 %v1836
    %v1838 = vpop.xlane.xlu0 %1837
    %v1839 = vsel %vm1727, %v1803, 0.0
    %1840 = vadd.xlane.f32.xlu0 %v1839
    %v1841 = vpop.xlane.xlu0 %1840
    %v1842 = vsel %vm1727, %v1805, 0.0
    %1843 = vadd.xlane.f32.xlu0 %v1842
    %v1844 = vpop.xlane.xlu0 %1843
    %v1845 = vsel %vm1727, %v1807, 0.0
    %1846 = vadd.xlane.f32.xlu0 %v1845
    %v1847 = vpop.xlane.xlu0 %1846
    %v1848 = vsel %vm1727, %v1809, 0.0
    %1849 = vadd.xlane.f32.xlu0 %v1848
    %v1850 = vpop.xlane.xlu0 %1849
    %v1851 = vsel %vm1727, %v1811, 0.0
    %1852 = vadd.xlane.f32.xlu0 %v1851
    %v1853 = vpop.xlane.xlu0 %1852
    %v1854 = vsel %vm1727, %v1813, 0.0
    %1855 = vadd.xlane.f32.xlu0 %v1854
    %v1856 = vpop.xlane.xlu0 %1855
    %v1857 = vsel %vm1727, %v1815, 0.0
    %1858 = vadd.xlane.f32.xlu0 %v1857
    %v1859 = vpop.xlane.xlu0 %1858
    %v1860 = vsel %vm1727, %v1817, 0.0
    %1861 = vadd.xlane.f32.xlu0 %v1860
    %v1862 = vpop.xlane.xlu0 %1861
    %v1863 = vsel %vm1727, %v1819, 0.0
    %1864 = vadd.xlane.f32.xlu0 %v1863
    %v1865 = vpop.xlane.xlu0 %1864
    %v1866 = vsel %vm1727, %v1821, 0.0
    %1867 = vadd.xlane.f32.xlu0 %v1866
    %v1868 = vpop.xlane.xlu0 %1867
    %v1869 = vsel %vm1727, %v1823, 0.0
    %1870 = vadd.xlane.f32.xlu0 %v1869
    %v1871 = vpop.xlane.xlu0 %1870
    %v1872 = vpack.c.bf16 %v1793, %v1793
    %v1873 = vpack.c.bf16 %v1795, %v1795
    %v1874 = vpack.c.bf16 %v1797, %v1797
    %v1875 = vpack.c.bf16 %v1799, %v1799
    %v1876 = vpack.c.bf16 %v1801, %v1801
    %v1877 = vpack.c.bf16 %v1803, %v1803
    %v1878 = vpack.c.bf16 %v1805, %v1805
    %v1879 = vpack.c.bf16 %v1807, %v1807
    %v1880 = vpack.c.bf16 %v1809, %v1809
    %v1881 = vpack.c.bf16 %v1811, %v1811
    %v1882 = vpack.c.bf16 %v1813, %v1813
    %v1883 = vpack.c.bf16 %v1815, %v1815
    %v1884 = vpack.c.bf16 %v1817, %v1817
    %v1885 = vpack.c.bf16 %v1819, %v1819
    %v1886 = vpack.c.bf16 %v1821, %v1821
    %v1887 = vpack.c.bf16 %v1823, %v1823
    %v1889 = vsel %vm1727, %v1872, 0
    %vm1891 = vcmask 1043456
    %v1893 = vsel %vm1891, %v781, 0
    %1895 = vmatprep.subr.bf16.mxu0 0
    %1896 = vmatpush1.bf16.msra.mxu0 0
    %1897 = vmatprep.subr.bf16.mxu0 0
    %1898 = vmatpush1.bf16.msra.mxu0 0
    %1899 = vmatprep.subr.bf16.mxu0 0
    %1900 = vmatpush1.bf16.msra.mxu0 0
    %1901 = vmatprep.subr.bf16.mxu0 0
    %1902 = vmatpush1.bf16.msra.mxu0 0
    %1903 = vmatprep.subr.bf16.mxu0 0
    %1904 = vmatpush1.bf16.msra.mxu0 0
    %1905 = vmatprep.subr.bf16.mxu0 0
    %1906 = vmatpush1.bf16.msra.mxu0 0
    %1907 = vmatprep.subr.bf16.mxu0 0
    %1908 = vmatpush1.bf16.msra.mxu0 0
    %1909 = vmatprep.subr.bf16.mxu0 0
    %1910 = vmatpush1.bf16.msra.mxu0 %v1893
    %1911 = vmatprep.subr.bf16.mxu0 0
    %1912 = vmatpush2.bf16.msra.mxu0 0
    %1913 = vmatprep.subr.bf16.mxu0 0
    %1914 = vmatpush2.bf16.msra.mxu0 0
    %1915 = vmatprep.subr.bf16.mxu0 0
    %1916 = vmatpush2.bf16.msra.mxu0 0
    %1917 = vmatprep.subr.bf16.mxu0 0
    %1918 = vmatpush2.bf16.msra.mxu0 0
    %1919 = vmatprep.subr.bf16.mxu0 0
    %1920 = vmatpush2.bf16.msra.mxu0 0
    %1921 = vmatprep.subr.bf16.mxu0 0
    %1922 = vmatpush2.bf16.msra.mxu0 0
    %1923 = vmatprep.subr.bf16.mxu0 0
    %1924 = vmatpush2.bf16.msra.mxu0 0
    %1925 = vmatprep.subr.bf16.mxu0 0
    %1926 = vmatpush2.bf16.msra.mxu0 0
    %1927 = vmatprep.mubr.bf16.mxu0 0
    %1928 = vmatmul.mubr.bf16.gmra.mxu0 %v1889
    %v1929 = vpop.f32.mrf.mxu0
    %v1930 = vadd.f32 0.0, %v1929
    %v1931 = vpop.f32.mrf.mxu0
    %v1932 = vpop.f32.mrf.mxu0
    %v1933 = vpop.f32.mrf.mxu0
    %1934 = vdwg.mxu0
    %v1936 = vsel %vm1727, %v1873, 0
    %v1939 = vsel %vm1891, %v782, 0
    %1941 = vmatprep.subr.bf16.mxu0 0
    %1942 = vmatpush1.bf16.msra.mxu0 0
    %1943 = vmatprep.subr.bf16.mxu0 0
    %1944 = vmatpush1.bf16.msra.mxu0 0
    %1945 = vmatprep.subr.bf16.mxu0 0
    %1946 = vmatpush1.bf16.msra.mxu0 0
    %1947 = vmatprep.subr.bf16.mxu0 0
    %1948 = vmatpush1.bf16.msra.mxu0 0
    %1949 = vmatprep.subr.bf16.mxu0 0
    %1950 = vmatpush1.bf16.msra.mxu0 0
    %1951 = vmatprep.subr.bf16.mxu0 0
    %1952 = vmatpush1.bf16.msra.mxu0 0
    %1953 = vmatprep.subr.bf16.mxu0 0
    %1954 = vmatpush1.bf16.msra.mxu0 0
    %1955 = vmatprep.subr.bf16.mxu0 0
    %1956 = vmatpush1.bf16.msra.mxu0 %v1939
    %1957 = vmatprep.subr.bf16.mxu0 0
    %1958 = vmatpush2.bf16.msra.mxu0 0
    %1959 = vmatprep.subr.bf16.mxu0 0
    %1960 = vmatpush2.bf16.msra.mxu0 0
    %1961 = vmatprep.subr.bf16.mxu0 0
    %1962 = vmatpush2.bf16.msra.mxu0 0
    %1963 = vmatprep.subr.bf16.mxu0 0
    %1964 = vmatpush2.bf16.msra.mxu0 0
    %1965 = vmatprep.subr.bf16.mxu0 0
    %1966 = vmatpush2.bf16.msra.mxu0 0
    %1967 = vmatprep.subr.bf16.mxu0 0
    %1968 = vmatpush2.bf16.msra.mxu0 0
    %1969 = vmatprep.subr.bf16.mxu0 0
    %1970 = vmatpush2.bf16.msra.mxu0 0
    %1971 = vmatprep.subr.bf16.mxu0 0
    %1972 = vmatpush2.bf16.msra.mxu0 0
    %1973 = vmatprep.mubr.bf16.mxu0 0
    %1974 = vmatmul.mubr.bf16.gmra.mxu0 %v1936
    %v1975 = vpop.f32.mrf.mxu0
    %v1976 = vadd.f32 0.0, %v1975
    %v1977 = vpop.f32.mrf.mxu0
    %v1978 = vpop.f32.mrf.mxu0
    %v1979 = vpop.f32.mrf.mxu0
    %1980 = vdwg.mxu0
    %v1982 = vsel %vm1727, %v1874, 0
    %v1985 = vsel %vm1891, %v783, 0
    %1987 = vmatprep.subr.bf16.mxu0 0
    %1988 = vmatpush1.bf16.msra.mxu0 0
    %1989 = vmatprep.subr.bf16.mxu0 0
    %1990 = vmatpush1.bf16.msra.mxu0 0
    %1991 = vmatprep.subr.bf16.mxu0 0
    %1992 = vmatpush1.bf16.msra.mxu0 0
    %1993 = vmatprep.subr.bf16.mxu0 0
    %1994 = vmatpush1.bf16.msra.mxu0 0
    %1995 = vmatprep.subr.bf16.mxu0 0
    %1996 = vmatpush1.bf16.msra.mxu0 0
    %1997 = vmatprep.subr.bf16.mxu0 0
    %1998 = vmatpush1.bf16.msra.mxu0 0
    %1999 = vmatprep.subr.bf16.mxu0 0
    %2000 = vmatpush1.bf16.msra.mxu0 0
    %2001 = vmatprep.subr.bf16.mxu0 0
    %2002 = vmatpush1.bf16.msra.mxu0 %v1985
    %2003 = vmatprep.subr.bf16.mxu0 0
    %2004 = vmatpush2.bf16.msra.mxu0 0
    %2005 = vmatprep.subr.bf16.mxu0 0
    %2006 = vmatpush2.bf16.msra.mxu0 0
    %2007 = vmatprep.subr.bf16.mxu0 0
    %2008 = vmatpush2.bf16.msra.mxu0 0
    %2009 = vmatprep.subr.bf16.mxu0 0
    %2010 = vmatpush2.bf16.msra.mxu0 0
    %2011 = vmatprep.subr.bf16.mxu0 0
    %2012 = vmatpush2.bf16.msra.mxu0 0
    %2013 = vmatprep.subr.bf16.mxu0 0
    %2014 = vmatpush2.bf16.msra.mxu0 0
    %2015 = vmatprep.subr.bf16.mxu0 0
    %2016 = vmatpush2.bf16.msra.mxu0 0
    %2017 = vmatprep.subr.bf16.mxu0 0
    %2018 = vmatpush2.bf16.msra.mxu0 0
    %2019 = vmatprep.mubr.bf16.mxu0 0
    %2020 = vmatmul.mubr.bf16.gmra.mxu0 %v1982
    %v2021 = vpop.f32.mrf.mxu0
    %v2022 = vadd.f32 0.0, %v2021
    %v2023 = vpop.f32.mrf.mxu0
    %v2024 = vpop.f32.mrf.mxu0
    %v2025 = vpop.f32.mrf.mxu0
    %2026 = vdwg.mxu0
    %v2028 = vsel %vm1727, %v1875, 0
    %v2031 = vsel %vm1891, %v784, 0
    %2033 = vmatprep.subr.bf16.mxu0 0
    %2034 = vmatpush1.bf16.msra.mxu0 0
    %2035 = vmatprep.subr.bf16.mxu0 0
    %2036 = vmatpush1.bf16.msra.mxu0 0
    %2037 = vmatprep.subr.bf16.mxu0 0
    %2038 = vmatpush1.bf16.msra.mxu0 0
    %2039 = vmatprep.subr.bf16.mxu0 0
    %2040 = vmatpush1.bf16.msra.mxu0 0
    %2041 = vmatprep.subr.bf16.mxu0 0
    %2042 = vmatpush1.bf16.msra.mxu0 0
    %2043 = vmatprep.subr.bf16.mxu0 0
    %2044 = vmatpush1.bf16.msra.mxu0 0
    %2045 = vmatprep.subr.bf16.mxu0 0
    %2046 = vmatpush1.bf16.msra.mxu0 0
    %2047 = vmatprep.subr.bf16.mxu0 0
    %2048 = vmatpush1.bf16.msra.mxu0 %v2031
    %2049 = vmatprep.subr.bf16.mxu0 0
    %2050 = vmatpush2.bf16.msra.mxu0 0
    %2051 = vmatprep.subr.bf16.mxu0 0
    %2052 = vmatpush2.bf16.msra.mxu0 0
    %2053 = vmatprep.subr.bf16.mxu0 0
    %2054 = vmatpush2.bf16.msra.mxu0 0
    %2055 = vmatprep.subr.bf16.mxu0 0
    %2056 = vmatpush2.bf16.msra.mxu0 0
    %2057 = vmatprep.subr.bf16.mxu0 0
    %2058 = vmatpush2.bf16.msra.mxu0 0
    %2059 = vmatprep.subr.bf16.mxu0 0
    %2060 = vmatpush2.bf16.msra.mxu0 0
    %2061 = vmatprep.subr.bf16.mxu0 0
    %2062 = vmatpush2.bf16.msra.mxu0 0
    %2063 = vmatprep.subr.bf16.mxu0 0
    %2064 = vmatpush2.bf16.msra.mxu0 0
    %2065 = vmatprep.mubr.bf16.mxu0 0
    %2066 = vmatmul.mubr.bf16.gmra.mxu0 %v2028
    %v2067 = vpop.f32.mrf.mxu0
    %v2068 = vadd.f32 0.0, %v2067
    %v2069 = vpop.f32.mrf.mxu0
    %v2070 = vpop.f32.mrf.mxu0
    %v2071 = vpop.f32.mrf.mxu0
    %2072 = vdwg.mxu0
    %v2074 = vsel %vm1727, %v1876, 0
    %v2077 = vsel %vm1891, %v785, 0
    %2079 = vmatprep.subr.bf16.mxu0 0
    %2080 = vmatpush1.bf16.msra.mxu0 0
    %2081 = vmatprep.subr.bf16.mxu0 0
    %2082 = vmatpush1.bf16.msra.mxu0 0
    %2083 = vmatprep.subr.bf16.mxu0 0
    %2084 = vmatpush1.bf16.msra.mxu0 0
    %2085 = vmatprep.subr.bf16.mxu0 0
    %2086 = vmatpush1.bf16.msra.mxu0 0
    %2087 = vmatprep.subr.bf16.mxu0 0
    %2088 = vmatpush1.bf16.msra.mxu0 0
    %2089 = vmatprep.subr.bf16.mxu0 0
    %2090 = vmatpush1.bf16.msra.mxu0 0
    %2091 = vmatprep.subr.bf16.mxu0 0
    %2092 = vmatpush1.bf16.msra.mxu0 0
    %2093 = vmatprep.subr.bf16.mxu0 0
    %2094 = vmatpush1.bf16.msra.mxu0 %v2077
    %2095 = vmatprep.subr.bf16.mxu0 0
    %2096 = vmatpush2.bf16.msra.mxu0 0
    %2097 = vmatprep.subr.bf16.mxu0 0
    %2098 = vmatpush2.bf16.msra.mxu0 0
    %2099 = vmatprep.subr.bf16.mxu0 0
    %2100 = vmatpush2.bf16.msra.mxu0 0
    %2101 = vmatprep.subr.bf16.mxu0 0
    %2102 = vmatpush2.bf16.msra.mxu0 0
    %2103 = vmatprep.subr.bf16.mxu0 0
    %2104 = vmatpush2.bf16.msra.mxu0 0
    %2105 = vmatprep.subr.bf16.mxu0 0
    %2106 = vmatpush2.bf16.msra.mxu0 0
    %2107 = vmatprep.subr.bf16.mxu0 0
    %2108 = vmatpush2.bf16.msra.mxu0 0
    %2109 = vmatprep.subr.bf16.mxu0 0
    %2110 = vmatpush2.bf16.msra.mxu0 0
    %2111 = vmatprep.mubr.bf16.mxu0 0
    %2112 = vmatmul.mubr.bf16.gmra.mxu0 %v2074
    %v2113 = vpop.f32.mrf.mxu0
    %v2114 = vadd.f32 0.0, %v2113
    %v2115 = vpop.f32.mrf.mxu0
    %v2116 = vpop.f32.mrf.mxu0
    %v2117 = vpop.f32.mrf.mxu0
    %2118 = vdwg.mxu0
    %v2120 = vsel %vm1727, %v1877, 0
    %v2123 = vsel %vm1891, %v786, 0
    %2125 = vmatprep.subr.bf16.mxu0 0
    %2126 = vmatpush1.bf16.msra.mxu0 0
    %2127 = vmatprep.subr.bf16.mxu0 0
    %2128 = vmatpush1.bf16.msra.mxu0 0
    %2129 = vmatprep.subr.bf16.mxu0 0
    %2130 = vmatpush1.bf16.msra.mxu0 0
    %2131 = vmatprep.subr.bf16.mxu0 0
    %2132 = vmatpush1.bf16.msra.mxu0 0
    %2133 = vmatprep.subr.bf16.mxu0 0
    %2134 = vmatpush1.bf16.msra.mxu0 0
    %2135 = vmatprep.subr.bf16.mxu0 0
    %2136 = vmatpush1.bf16.msra.mxu0 0
    %2137 = vmatprep.subr.bf16.mxu0 0
    %2138 = vmatpush1.bf16.msra.mxu0 0
    %2139 = vmatprep.subr.bf16.mxu0 0
    %2140 = vmatpush1.bf16.msra.mxu0 %v2123
    %2141 = vmatprep.subr.bf16.mxu0 0
    %2142 = vmatpush2.bf16.msra.mxu0 0
    %2143 = vmatprep.subr.bf16.mxu0 0
    %2144 = vmatpush2.bf16.msra.mxu0 0
    %2145 = vmatprep.subr.bf16.mxu0 0
    %2146 = vmatpush2.bf16.msra.mxu0 0
    %2147 = vmatprep.subr.bf16.mxu0 0
    %2148 = vmatpush2.bf16.msra.mxu0 0
    %2149 = vmatprep.subr.bf16.mxu0 0
    %2150 = vmatpush2.bf16.msra.mxu0 0
    %2151 = vmatprep.subr.bf16.mxu0 0
    %2152 = vmatpush2.bf16.msra.mxu0 0
    %2153 = vmatprep.subr.bf16.mxu0 0
    %2154 = vmatpush2.bf16.msra.mxu0 0
    %2155 = vmatprep.subr.bf16.mxu0 0
    %2156 = vmatpush2.bf16.msra.mxu0 0
    %2157 = vmatprep.mubr.bf16.mxu0 0
    %2158 = vmatmul.mubr.bf16.gmra.mxu0 %v2120
    %v2159 = vpop.f32.mrf.mxu0
    %v2160 = vadd.f32 0.0, %v2159
    %v2161 = vpop.f32.mrf.mxu0
    %v2162 = vpop.f32.mrf.mxu0
    %v2163 = vpop.f32.mrf.mxu0
    %2164 = vdwg.mxu0
    %v2166 = vsel %vm1727, %v1878, 0
    %v2169 = vsel %vm1891, %v787, 0
    %2171 = vmatprep.subr.bf16.mxu0 0
    %2172 = vmatpush1.bf16.msra.mxu0 0
    %2173 = vmatprep.subr.bf16.mxu0 0
    %2174 = vmatpush1.bf16.msra.mxu0 0
    %2175 = vmatprep.subr.bf16.mxu0 0
    %2176 = vmatpush1.bf16.msra.mxu0 0
    %2177 = vmatprep.subr.bf16.mxu0 0
    %2178 = vmatpush1.bf16.msra.mxu0 0
    %2179 = vmatprep.subr.bf16.mxu0 0
    %2180 = vmatpush1.bf16.msra.mxu0 0
    %2181 = vmatprep.subr.bf16.mxu0 0
    %2182 = vmatpush1.bf16.msra.mxu0 0
    %2183 = vmatprep.subr.bf16.mxu0 0
    %2184 = vmatpush1.bf16.msra.mxu0 0
    %2185 = vmatprep.subr.bf16.mxu0 0
    %2186 = vmatpush1.bf16.msra.mxu0 %v2169
    %2187 = vmatprep.subr.bf16.mxu0 0
    %2188 = vmatpush2.bf16.msra.mxu0 0
    %2189 = vmatprep.subr.bf16.mxu0 0
    %2190 = vmatpush2.bf16.msra.mxu0 0
    %2191 = vmatprep.subr.bf16.mxu0 0
    %2192 = vmatpush2.bf16.msra.mxu0 0
    %2193 = vmatprep.subr.bf16.mxu0 0
    %2194 = vmatpush2.bf16.msra.mxu0 0
    %2195 = vmatprep.subr.bf16.mxu0 0
    %2196 = vmatpush2.bf16.msra.mxu0 0
    %2197 = vmatprep.subr.bf16.mxu0 0
    %2198 = vmatpush2.bf16.msra.mxu0 0
    %2199 = vmatprep.subr.bf16.mxu0 0
    %2200 = vmatpush2.bf16.msra.mxu0 0
    %2201 = vmatprep.subr.bf16.mxu0 0
    %2202 = vmatpush2.bf16.msra.mxu0 0
    %2203 = vmatprep.mubr.bf16.mxu0 0
    %2204 = vmatmul.mubr.bf16.gmra.mxu0 %v2166
    %v2205 = vpop.f32.mrf.mxu0
    %v2206 = vadd.f32 0.0, %v2205
    %v2207 = vpop.f32.mrf.mxu0
    %v2208 = vpop.f32.mrf.mxu0
    %v2209 = vpop.f32.mrf.mxu0
    %2210 = vdwg.mxu0
    %v2212 = vsel %vm1727, %v1879, 0
    %v2215 = vsel %vm1891, %v788, 0
    %2217 = vmatprep.subr.bf16.mxu0 0
    %2218 = vmatpush1.bf16.msra.mxu0 0
    %2219 = vmatprep.subr.bf16.mxu0 0
    %2220 = vmatpush1.bf16.msra.mxu0 0
    %2221 = vmatprep.subr.bf16.mxu0 0
    %2222 = vmatpush1.bf16.msra.mxu0 0
    %2223 = vmatprep.subr.bf16.mxu0 0
    %2224 = vmatpush1.bf16.msra.mxu0 0
    %2225 = vmatprep.subr.bf16.mxu0 0
    %2226 = vmatpush1.bf16.msra.mxu0 0
    %2227 = vmatprep.subr.bf16.mxu0 0
    %2228 = vmatpush1.bf16.msra.mxu0 0
    %2229 = vmatprep.subr.bf16.mxu0 0
    %2230 = vmatpush1.bf16.msra.mxu0 0
    %2231 = vmatprep.subr.bf16.mxu0 0
    %2232 = vmatpush1.bf16.msra.mxu0 %v2215
    %2233 = vmatprep.subr.bf16.mxu0 0
    %2234 = vmatpush2.bf16.msra.mxu0 0
    %2235 = vmatprep.subr.bf16.mxu0 0
    %2236 = vmatpush2.bf16.msra.mxu0 0
    %2237 = vmatprep.subr.bf16.mxu0 0
    %2238 = vmatpush2.bf16.msra.mxu0 0
    %2239 = vmatprep.subr.bf16.mxu0 0
    %2240 = vmatpush2.bf16.msra.mxu0 0
    %2241 = vmatprep.subr.bf16.mxu0 0
    %2242 = vmatpush2.bf16.msra.mxu0 0
    %2243 = vmatprep.subr.bf16.mxu0 0
    %2244 = vmatpush2.bf16.msra.mxu0 0
    %2245 = vmatprep.subr.bf16.mxu0 0
    %2246 = vmatpush2.bf16.msra.mxu0 0
    %2247 = vmatprep.subr.bf16.mxu0 0
    %2248 = vmatpush2.bf16.msra.mxu0 0
    %2249 = vmatprep.mubr.bf16.mxu0 0
    %2250 = vmatmul.mubr.bf16.gmra.mxu0 %v2212
    %v2251 = vpop.f32.mrf.mxu0
    %v2252 = vadd.f32 0.0, %v2251
    %v2253 = vpop.f32.mrf.mxu0
    %v2254 = vpop.f32.mrf.mxu0
    %v2255 = vpop.f32.mrf.mxu0
    %2256 = vdwg.mxu0
    %v2258 = vsel %vm1727, %v1880, 0
    %v2261 = vsel %vm1891, %v789, 0
    %2263 = vmatprep.subr.bf16.mxu0 0
    %2264 = vmatpush1.bf16.msra.mxu0 0
    %2265 = vmatprep.subr.bf16.mxu0 0
    %2266 = vmatpush1.bf16.msra.mxu0 0
    %2267 = vmatprep.subr.bf16.mxu0 0
    %2268 = vmatpush1.bf16.msra.mxu0 0
    %2269 = vmatprep.subr.bf16.mxu0 0
    %2270 = vmatpush1.bf16.msra.mxu0 0
    %2271 = vmatprep.subr.bf16.mxu0 0
    %2272 = vmatpush1.bf16.msra.mxu0 0
    %2273 = vmatprep.subr.bf16.mxu0 0
    %2274 = vmatpush1.bf16.msra.mxu0 0
    %2275 = vmatprep.subr.bf16.mxu0 0
    %2276 = vmatpush1.bf16.msra.mxu0 0
    %2277 = vmatprep.subr.bf16.mxu0 0
    %2278 = vmatpush1.bf16.msra.mxu0 %v2261
    %2279 = vmatprep.subr.bf16.mxu0 0
    %2280 = vmatpush2.bf16.msra.mxu0 0
    %2281 = vmatprep.subr.bf16.mxu0 0
    %2282 = vmatpush2.bf16.msra.mxu0 0
    %2283 = vmatprep.subr.bf16.mxu0 0
    %2284 = vmatpush2.bf16.msra.mxu0 0
    %2285 = vmatprep.subr.bf16.mxu0 0
    %2286 = vmatpush2.bf16.msra.mxu0 0
    %2287 = vmatprep.subr.bf16.mxu0 0
    %2288 = vmatpush2.bf16.msra.mxu0 0
    %2289 = vmatprep.subr.bf16.mxu0 0
    %2290 = vmatpush2.bf16.msra.mxu0 0
    %2291 = vmatprep.subr.bf16.mxu0 0
    %2292 = vmatpush2.bf16.msra.mxu0 0
    %2293 = vmatprep.subr.bf16.mxu0 0
    %2294 = vmatpush2.bf16.msra.mxu0 0
    %2295 = vmatprep.mubr.bf16.mxu0 0
    %2296 = vmatmul.mubr.bf16.gmra.mxu0 %v2258
    %v2297 = vpop.f32.mrf.mxu0
    %v2298 = vadd.f32 0.0, %v2297
    %v2299 = vpop.f32.mrf.mxu0
    %v2300 = vpop.f32.mrf.mxu0
    %v2301 = vpop.f32.mrf.mxu0
    %2302 = vdwg.mxu0
    %v2304 = vsel %vm1727, %v1881, 0
    %v2307 = vsel %vm1891, %v790, 0
    %2309 = vmatprep.subr.bf16.mxu0 0
    %2310 = vmatpush1.bf16.msra.mxu0 0
    %2311 = vmatprep.subr.bf16.mxu0 0
    %2312 = vmatpush1.bf16.msra.mxu0 0
    %2313 = vmatprep.subr.bf16.mxu0 0
    %2314 = vmatpush1.bf16.msra.mxu0 0
    %2315 = vmatprep.subr.bf16.mxu0 0
    %2316 = vmatpush1.bf16.msra.mxu0 0
    %2317 = vmatprep.subr.bf16.mxu0 0
    %2318 = vmatpush1.bf16.msra.mxu0 0
    %2319 = vmatprep.subr.bf16.mxu0 0
    %2320 = vmatpush1.bf16.msra.mxu0 0
    %2321 = vmatprep.subr.bf16.mxu0 0
    %2322 = vmatpush1.bf16.msra.mxu0 0
    %2323 = vmatprep.subr.bf16.mxu0 0
    %2324 = vmatpush1.bf16.msra.mxu0 %v2307
    %2325 = vmatprep.subr.bf16.mxu0 0
    %2326 = vmatpush2.bf16.msra.mxu0 0
    %2327 = vmatprep.subr.bf16.mxu0 0
    %2328 = vmatpush2.bf16.msra.mxu0 0
    %2329 = vmatprep.subr.bf16.mxu0 0
    %2330 = vmatpush2.bf16.msra.mxu0 0
    %2331 = vmatprep.subr.bf16.mxu0 0
    %2332 = vmatpush2.bf16.msra.mxu0 0
    %2333 = vmatprep.subr.bf16.mxu0 0
    %2334 = vmatpush2.bf16.msra.mxu0 0
    %2335 = vmatprep.subr.bf16.mxu0 0
    %2336 = vmatpush2.bf16.msra.mxu0 0
    %2337 = vmatprep.subr.bf16.mxu0 0
    %2338 = vmatpush2.bf16.msra.mxu0 0
    %2339 = vmatprep.subr.bf16.mxu0 0
    %2340 = vmatpush2.bf16.msra.mxu0 0
    %2341 = vmatprep.mubr.bf16.mxu0 0
    %2342 = vmatmul.mubr.bf16.gmra.mxu0 %v2304
    %v2343 = vpop.f32.mrf.mxu0
    %v2344 = vadd.f32 0.0, %v2343
    %v2345 = vpop.f32.mrf.mxu0
    %v2346 = vpop.f32.mrf.mxu0
    %v2347 = vpop.f32.mrf.mxu0
    %2348 = vdwg.mxu0
    %v2350 = vsel %vm1727, %v1882, 0
    %v2353 = vsel %vm1891, %v791, 0
    %2355 = vmatprep.subr.bf16.mxu0 0
    %2356 = vmatpush1.bf16.msra.mxu0 0
    %2357 = vmatprep.subr.bf16.mxu0 0
    %2358 = vmatpush1.bf16.msra.mxu0 0
    %2359 = vmatprep.subr.bf16.mxu0 0
    %2360 = vmatpush1.bf16.msra.mxu0 0
    %2361 = vmatprep.subr.bf16.mxu0 0
    %2362 = vmatpush1.bf16.msra.mxu0 0
    %2363 = vmatprep.subr.bf16.mxu0 0
    %2364 = vmatpush1.bf16.msra.mxu0 0
    %2365 = vmatprep.subr.bf16.mxu0 0
    %2366 = vmatpush1.bf16.msra.mxu0 0
    %2367 = vmatprep.subr.bf16.mxu0 0
    %2368 = vmatpush1.bf16.msra.mxu0 0
    %2369 = vmatprep.subr.bf16.mxu0 0
    %2370 = vmatpush1.bf16.msra.mxu0 %v2353
    %2371 = vmatprep.subr.bf16.mxu0 0
    %2372 = vmatpush2.bf16.msra.mxu0 0
    %2373 = vmatprep.subr.bf16.mxu0 0
    %2374 = vmatpush2.bf16.msra.mxu0 0
    %2375 = vmatprep.subr.bf16.mxu0 0
    %2376 = vmatpush2.bf16.msra.mxu0 0
    %2377 = vmatprep.subr.bf16.mxu0 0
    %2378 = vmatpush2.bf16.msra.mxu0 0
    %2379 = vmatprep.subr.bf16.mxu0 0
    %2380 = vmatpush2.bf16.msra.mxu0 0
    %2381 = vmatprep.subr.bf16.mxu0 0
    %2382 = vmatpush2.bf16.msra.mxu0 0
    %2383 = vmatprep.subr.bf16.mxu0 0
    %2384 = vmatpush2.bf16.msra.mxu0 0
    %2385 = vmatprep.subr.bf16.mxu0 0
    %2386 = vmatpush2.bf16.msra.mxu0 0
    %2387 = vmatprep.mubr.bf16.mxu0 0
    %2388 = vmatmul.mubr.bf16.gmra.mxu0 %v2350
    %v2389 = vpop.f32.mrf.mxu0
    %v2390 = vadd.f32 0.0, %v2389
    %v2391 = vpop.f32.mrf.mxu0
    %v2392 = vpop.f32.mrf.mxu0
    %v2393 = vpop.f32.mrf.mxu0
    %2394 = vdwg.mxu0
    %v2396 = vsel %vm1727, %v1883, 0
    %v2399 = vsel %vm1891, %v792, 0
    %2401 = vmatprep.subr.bf16.mxu0 0
    %2402 = vmatpush1.bf16.msra.mxu0 0
    %2403 = vmatprep.subr.bf16.mxu0 0
    %2404 = vmatpush1.bf16.msra.mxu0 0
    %2405 = vmatprep.subr.bf16.mxu0 0
    %2406 = vmatpush1.bf16.msra.mxu0 0
    %2407 = vmatprep.subr.bf16.mxu0 0
    %2408 = vmatpush1.bf16.msra.mxu0 0
    %2409 = vmatprep.subr.bf16.mxu0 0
    %2410 = vmatpush1.bf16.msra.mxu0 0
    %2411 = vmatprep.subr.bf16.mxu0 0
    %2412 = vmatpush1.bf16.msra.mxu0 0
    %2413 = vmatprep.subr.bf16.mxu0 0
    %2414 = vmatpush1.bf16.msra.mxu0 0
    %2415 = vmatprep.subr.bf16.mxu0 0
    %2416 = vmatpush1.bf16.msra.mxu0 %v2399
    %2417 = vmatprep.subr.bf16.mxu0 0
    %2418 = vmatpush2.bf16.msra.mxu0 0
    %2419 = vmatprep.subr.bf16.mxu0 0
    %2420 = vmatpush2.bf16.msra.mxu0 0
    %2421 = vmatprep.subr.bf16.mxu0 0
    %2422 = vmatpush2.bf16.msra.mxu0 0
    %2423 = vmatprep.subr.bf16.mxu0 0
    %2424 = vmatpush2.bf16.msra.mxu0 0
    %2425 = vmatprep.subr.bf16.mxu0 0
    %2426 = vmatpush2.bf16.msra.mxu0 0
    %2427 = vmatprep.subr.bf16.mxu0 0
    %2428 = vmatpush2.bf16.msra.mxu0 0
    %2429 = vmatprep.subr.bf16.mxu0 0
    %2430 = vmatpush2.bf16.msra.mxu0 0
    %2431 = vmatprep.subr.bf16.mxu0 0
    %2432 = vmatpush2.bf16.msra.mxu0 0
    %2433 = vmatprep.mubr.bf16.mxu0 0
    %2434 = vmatmul.mubr.bf16.gmra.mxu0 %v2396
    %v2435 = vpop.f32.mrf.mxu0
    %v2436 = vadd.f32 0.0, %v2435
    %v2437 = vpop.f32.mrf.mxu0
    %v2438 = vpop.f32.mrf.mxu0
    %v2439 = vpop.f32.mrf.mxu0
    %2440 = vdwg.mxu0
    %v2442 = vsel %vm1727, %v1884, 0
    %v2445 = vsel %vm1891, %v793, 0
    %2447 = vmatprep.subr.bf16.mxu0 0
    %2448 = vmatpush1.bf16.msra.mxu0 0
    %2449 = vmatprep.subr.bf16.mxu0 0
    %2450 = vmatpush1.bf16.msra.mxu0 0
    %2451 = vmatprep.subr.bf16.mxu0 0
    %2452 = vmatpush1.bf16.msra.mxu0 0
    %2453 = vmatprep.subr.bf16.mxu0 0
    %2454 = vmatpush1.bf16.msra.mxu0 0
    %2455 = vmatprep.subr.bf16.mxu0 0
    %2456 = vmatpush1.bf16.msra.mxu0 0
    %2457 = vmatprep.subr.bf16.mxu0 0
    %2458 = vmatpush1.bf16.msra.mxu0 0
    %2459 = vmatprep.subr.bf16.mxu0 0
    %2460 = vmatpush1.bf16.msra.mxu0 0
    %2461 = vmatprep.subr.bf16.mxu0 0
    %2462 = vmatpush1.bf16.msra.mxu0 %v2445
    %2463 = vmatprep.subr.bf16.mxu0 0
    %2464 = vmatpush2.bf16.msra.mxu0 0
    %2465 = vmatprep.subr.bf16.mxu0 0
    %2466 = vmatpush2.bf16.msra.mxu0 0
    %2467 = vmatprep.subr.bf16.mxu0 0
    %2468 = vmatpush2.bf16.msra.mxu0 0
    %2469 = vmatprep.subr.bf16.mxu0 0
    %2470 = vmatpush2.bf16.msra.mxu0 0
    %2471 = vmatprep.subr.bf16.mxu0 0
    %2472 = vmatpush2.bf16.msra.mxu0 0
    %2473 = vmatprep.subr.bf16.mxu0 0
    %2474 = vmatpush2.bf16.msra.mxu0 0
    %2475 = vmatprep.subr.bf16.mxu0 0
    %2476 = vmatpush2.bf16.msra.mxu0 0
    %2477 = vmatprep.subr.bf16.mxu0 0
    %2478 = vmatpush2.bf16.msra.mxu0 0
    %2479 = vmatprep.mubr.bf16.mxu0 0
    %2480 = vmatmul.mubr.bf16.gmra.mxu0 %v2442
    %v2481 = vpop.f32.mrf.mxu0
    %v2482 = vadd.f32 0.0, %v2481
    %v2483 = vpop.f32.mrf.mxu0
    %v2484 = vpop.f32.mrf.mxu0
    %v2485 = vpop.f32.mrf.mxu0
    %2486 = vdwg.mxu0
    %v2488 = vsel %vm1727, %v1885, 0
    %v2491 = vsel %vm1891, %v794, 0
    %2493 = vmatprep.subr.bf16.mxu0 0
    %2494 = vmatpush1.bf16.msra.mxu0 0
    %2495 = vmatprep.subr.bf16.mxu0 0
    %2496 = vmatpush1.bf16.msra.mxu0 0
    %2497 = vmatprep.subr.bf16.mxu0 0
    %2498 = vmatpush1.bf16.msra.mxu0 0
    %2499 = vmatprep.subr.bf16.mxu0 0
    %2500 = vmatpush1.bf16.msra.mxu0 0
    %2501 = vmatprep.subr.bf16.mxu0 0
    %2502 = vmatpush1.bf16.msra.mxu0 0
    %2503 = vmatprep.subr.bf16.mxu0 0
    %2504 = vmatpush1.bf16.msra.mxu0 0
    %2505 = vmatprep.subr.bf16.mxu0 0
    %2506 = vmatpush1.bf16.msra.mxu0 0
    %2507 = vmatprep.subr.bf16.mxu0 0
    %2508 = vmatpush1.bf16.msra.mxu0 %v2491
    %2509 = vmatprep.subr.bf16.mxu0 0
    %2510 = vmatpush2.bf16.msra.mxu0 0
    %2511 = vmatprep.subr.bf16.mxu0 0
    %2512 = vmatpush2.bf16.msra.mxu0 0
    %2513 = vmatprep.subr.bf16.mxu0 0
    %2514 = vmatpush2.bf16.msra.mxu0 0
    %2515 = vmatprep.subr.bf16.mxu0 0
    %2516 = vmatpush2.bf16.msra.mxu0 0
    %2517 = vmatprep.subr.bf16.mxu0 0
    %2518 = vmatpush2.bf16.msra.mxu0 0
    %2519 = vmatprep.subr.bf16.mxu0 0
    %2520 = vmatpush2.bf16.msra.mxu0 0
    %2521 = vmatprep.subr.bf16.mxu0 0
    %2522 = vmatpush2.bf16.msra.mxu0 0
    %2523 = vmatprep.subr.bf16.mxu0 0
    %2524 = vmatpush2.bf16.msra.mxu0 0
    %2525 = vmatprep.mubr.bf16.mxu0 0
    %2526 = vmatmul.mubr.bf16.gmra.mxu0 %v2488
    %v2527 = vpop.f32.mrf.mxu0
    %v2528 = vadd.f32 0.0, %v2527
    %v2529 = vpop.f32.mrf.mxu0
    %v2530 = vpop.f32.mrf.mxu0
    %v2531 = vpop.f32.mrf.mxu0
    %2532 = vdwg.mxu0
    %v2534 = vsel %vm1727, %v1886, 0
    %v2537 = vsel %vm1891, %v795, 0
    %2539 = vmatprep.subr.bf16.mxu0 0
    %2540 = vmatpush1.bf16.msra.mxu0 0
    %2541 = vmatprep.subr.bf16.mxu0 0
    %2542 = vmatpush1.bf16.msra.mxu0 0
    %2543 = vmatprep.subr.bf16.mxu0 0
    %2544 = vmatpush1.bf16.msra.mxu0 0
    %2545 = vmatprep.subr.bf16.mxu0 0
    %2546 = vmatpush1.bf16.msra.mxu0 0
    %2547 = vmatprep.subr.bf16.mxu0 0
    %2548 = vmatpush1.bf16.msra.mxu0 0
    %2549 = vmatprep.subr.bf16.mxu0 0
    %2550 = vmatpush1.bf16.msra.mxu0 0
    %2551 = vmatprep.subr.bf16.mxu0 0
    %2552 = vmatpush1.bf16.msra.mxu0 0
    %2553 = vmatprep.subr.bf16.mxu0 0
    %2554 = vmatpush1.bf16.msra.mxu0 %v2537
    %2555 = vmatprep.subr.bf16.mxu0 0
    %2556 = vmatpush2.bf16.msra.mxu0 0
    %2557 = vmatprep.subr.bf16.mxu0 0
    %2558 = vmatpush2.bf16.msra.mxu0 0
    %2559 = vmatprep.subr.bf16.mxu0 0
    %2560 = vmatpush2.bf16.msra.mxu0 0
    %2561 = vmatprep.subr.bf16.mxu0 0
    %2562 = vmatpush2.bf16.msra.mxu0 0
    %2563 = vmatprep.subr.bf16.mxu0 0
    %2564 = vmatpush2.bf16.msra.mxu0 0
    %2565 = vmatprep.subr.bf16.mxu0 0
    %2566 = vmatpush2.bf16.msra.mxu0 0
    %2567 = vmatprep.subr.bf16.mxu0 0
    %2568 = vmatpush2.bf16.msra.mxu0 0
    %2569 = vmatprep.subr.bf16.mxu0 0
    %2570 = vmatpush2.bf16.msra.mxu0 0
    %2571 = vmatprep.mubr.bf16.mxu0 0
    %2572 = vmatmul.mubr.bf16.gmra.mxu0 %v2534
    %v2573 = vpop.f32.mrf.mxu0
    %v2574 = vadd.f32 0.0, %v2573
    %v2575 = vpop.f32.mrf.mxu0
    %v2576 = vpop.f32.mrf.mxu0
    %v2577 = vpop.f32.mrf.mxu0
    %2578 = vdwg.mxu0
    %v2580 = vsel %vm1727, %v1887, 0
    %v2583 = vsel %vm1891, %v796, 0
    %2585 = vmatprep.subr.bf16.mxu0 0
    %2586 = vmatpush1.bf16.msra.mxu0 0
    %2587 = vmatprep.subr.bf16.mxu0 0
    %2588 = vmatpush1.bf16.msra.mxu0 0
    %2589 = vmatprep.subr.bf16.mxu0 0
    %2590 = vmatpush1.bf16.msra.mxu0 0
    %2591 = vmatprep.subr.bf16.mxu0 0
    %2592 = vmatpush1.bf16.msra.mxu0 0
    %2593 = vmatprep.subr.bf16.mxu0 0
    %2594 = vmatpush1.bf16.msra.mxu0 0
    %2595 = vmatprep.subr.bf16.mxu0 0
    %2596 = vmatpush1.bf16.msra.mxu0 0
    %2597 = vmatprep.subr.bf16.mxu0 0
    %2598 = vmatpush1.bf16.msra.mxu0 0
    %2599 = vmatprep.subr.bf16.mxu0 0
    %2600 = vmatpush1.bf16.msra.mxu0 %v2583
    %2601 = vmatprep.subr.bf16.mxu0 0
    %2602 = vmatpush2.bf16.msra.mxu0 0
    %2603 = vmatprep.subr.bf16.mxu0 0
    %2604 = vmatpush2.bf16.msra.mxu0 0
    %2605 = vmatprep.subr.bf16.mxu0 0
    %2606 = vmatpush2.bf16.msra.mxu0 0
    %2607 = vmatprep.subr.bf16.mxu0 0
    %2608 = vmatpush2.bf16.msra.mxu0 0
    %2609 = vmatprep.subr.bf16.mxu0 0
    %2610 = vmatpush2.bf16.msra.mxu0 0
    %2611 = vmatprep.subr.bf16.mxu0 0
    %2612 = vmatpush2.bf16.msra.mxu0 0
    %2613 = vmatprep.subr.bf16.mxu0 0
    %2614 = vmatpush2.bf16.msra.mxu0 0
    %2615 = vmatprep.subr.bf16.mxu0 0
    %2616 = vmatpush2.bf16.msra.mxu0 0
    %2617 = vmatprep.mubr.bf16.mxu0 0
    %2618 = vmatmul.mubr.bf16.gmra.mxu0 %v2580
    %v2619 = vpop.f32.mrf.mxu0
    %v2620 = vadd.f32 0.0, %v2619
    %v2621 = vpop.f32.mrf.mxu0
    %v2622 = vpop.f32.mrf.mxu0
    %v2623 = vpop.f32.mrf.mxu0
    %2624 = vdwg.mxu0
    %v2625 = vrcp.pop %v1826
    %v2626 = vrcp.pop %v1829
    %v2627 = vrcp.pop %v1832
    %v2628 = vrcp.pop %v1835
    %v2629 = vrcp.pop %v1838
    %v2630 = vrcp.pop %v1841
    %v2631 = vrcp.pop %v1844
    %v2632 = vrcp.pop %v1847
    %v2633 = vrcp.pop %v1850
    %v2634 = vrcp.pop %v1853
    %v2635 = vrcp.pop %v1856
    %v2636 = vrcp.pop %v1859
    %v2637 = vrcp.pop %v1862
    %v2638 = vrcp.pop %v1865
    %v2639 = vrcp.pop %v1868
    %v2640 = vrcp.pop %v1871
    %v2641 = vmul.f32 %v1930, %v2625
    %v2642 = vmul.f32 %v1976, %v2626
    %v2643 = vmul.f32 %v2022, %v2627
    %v2644 = vmul.f32 %v2068, %v2628
    %v2645 = vmul.f32 %v2114, %v2629
    %v2646 = vmul.f32 %v2160, %v2630
    %v2647 = vmul.f32 %v2206, %v2631
    %v2648 = vmul.f32 %v2252, %v2632
    %v2649 = vmul.f32 %v2298, %v2633
    %v2650 = vmul.f32 %v2344, %v2634
    %v2651 = vmul.f32 %v2390, %v2635
    %v2652 = vmul.f32 %v2436, %v2636
    %v2653 = vmul.f32 %v2482, %v2637
    %v2654 = vmul.f32 %v2528, %v2638
    %v2655 = vmul.f32 %v2574, %v2639
    %v2656 = vmul.f32 %v2620, %v2640
    %v2657 = vpack.c.bf16 %v2642, %v2641
    %v2658 = vpack.c.bf16 %v2644, %v2643
    %v2659 = vpack.c.bf16 %v2646, %v2645
    %v2660 = vpack.c.bf16 %v2648, %v2647
    %v2661 = vpack.c.bf16 %v2650, %v2649
    %v2662 = vpack.c.bf16 %v2652, %v2651
    %v2663 = vpack.c.bf16 %v2654, %v2653
    %v2664 = vpack.c.bf16 %v2656, %v2655
    %v2665 = vld [vmem:[#allocation9] sm:$0xf]
    %v2666 = vld [vmem:[#allocation9 + $0x4] sm:$0xf]
    %v2667 = vld [vmem:[#allocation9 + $0x8] sm:$0xf]
    %v2668 = vld [vmem:[#allocation9 + $0xc] sm:$0xf]
    %v2669 = vld [vmem:[%s11] sm:$0x1]
    %v2671 = vlaneseq
    %v2672 = vshrl.u32 %v2671, 7
    %v2673 = vsub.s32 0, %v2672
    %v2674 = vrot.slane %v2669, %v2673
    %v2680 = vunpack.c.l.b16 %v2665
    %v2681 = vunpack.c.l.b16 %v2666
    %v2682 = vunpack.c.l.b16 %v2667
    %v2683 = vunpack.c.l.b16 %v2668
    %v2684 = vpack.c.b16 %v2681, %v2680
    %v2685 = vpack.c.b16 %v2683, %v2682
    %v2689 = vsel %vm387, %v2657, 0
    %v2692 = vsel %vm387, %v2658, 0
    %v2695 = vsel %vm387, %v2659, 0
    %v2698 = vsel %vm387, %v2660, 0
    %v2701 = vsel %vm387, %v2661, 0
    %v2704 = vsel %vm387, %v2662, 0
    %v2707 = vsel %vm387, %v2663, 0
    %v2710 = vsel %vm387, %v2664, 0
    %2712 = vmatprep.subr.bf16.mxu0 0
    %2713 = vmatpush1.bf16.msra.mxu0 0
    %2714 = vmatprep.subr.bf16.mxu0 0
    %2715 = vmatpush1.bf16.msra.mxu0 0
    %2716 = vmatprep.subr.bf16.mxu0 0
    %2717 = vmatpush1.bf16.msra.mxu0 0
    %2718 = vmatprep.subr.bf16.mxu0 0
    %2719 = vmatpush1.bf16.msra.mxu0 0
    %2720 = vmatprep.subr.bf16.mxu0 0
    %2721 = vmatpush1.bf16.msra.mxu0 0
    %2722 = vmatprep.subr.bf16.mxu0 0
    %2723 = vmatpush1.bf16.msra.mxu0 0
    %2724 = vmatprep.subr.bf16.mxu0 0
    %2725 = vmatpush1.bf16.msra.mxu0 %v2685
    %2726 = vmatprep.subr.bf16.mxu0 0
    %2727 = vmatpush1.bf16.msra.mxu0 %v2684
    %2728 = vmatprep.subr.bf16.mxu0 0
    %2729 = vmatpush2.bf16.msra.mxu0 0
    %2730 = vmatprep.subr.bf16.mxu0 0
    %2731 = vmatpush2.bf16.msra.mxu0 0
    %2732 = vmatprep.subr.bf16.mxu0 0
    %2733 = vmatpush2.bf16.msra.mxu0 0
    %2734 = vmatprep.subr.bf16.mxu0 0
    %2735 = vmatpush2.bf16.msra.mxu0 0
    %2736 = vmatprep.subr.bf16.mxu0 0
    %2737 = vmatpush2.bf16.msra.mxu0 0
    %2738 = vmatprep.subr.bf16.mxu0 0
    %2739 = vmatpush2.bf16.msra.mxu0 0
    %2740 = vmatprep.subr.bf16.mxu0 0
    %2741 = vmatpush2.bf16.msra.mxu0 0
    %2742 = vmatprep.subr.bf16.mxu0 0
    %2743 = vmatpush2.bf16.msra.mxu0 0
    %2744 = vmatprep.mubr.bf16.mxu0 0
    %2745 = vmatmul.mubr.bf16.gmra.mxu0 %v2689
    %v2746 = vpop.f32.mrf.mxu0
    %v2747 = vadd.f32 %v2674, %v2746
    %v2748 = vpop.f32.mrf.mxu0
    %v2749 = vpop.f32.mrf.mxu0
    %v2750 = vadd.f32 %v2674, %v2749
    %v2751 = vpop.f32.mrf.mxu0
    %2752 = vmatprep.mubr.bf16.mxu0 0
    %2753 = vmatmul.mubr.bf16.gmra.mxu0 %v2692
    %v2754 = vpop.f32.mrf.mxu0
    %v2755 = vadd.f32 %v2674, %v2754
    %v2756 = vpop.f32.mrf.mxu0
    %v2757 = vpop.f32.mrf.mxu0
    %v2758 = vadd.f32 %v2674, %v2757
    %v2759 = vpop.f32.mrf.mxu0
    %2760 = vmatprep.mubr.bf16.mxu0 0
    %2761 = vmatmul.mubr.bf16.gmra.mxu0 %v2695
    %v2762 = vpop.f32.mrf.mxu0
    %v2763 = vadd.f32 %v2674, %v2762
    %v2764 = vpop.f32.mrf.mxu0
    %v2765 = vpop.f32.mrf.mxu0
    %v2766 = vadd.f32 %v2674, %v2765
    %v2767 = vpop.f32.mrf.mxu0
    %2768 = vmatprep.mubr.bf16.mxu0 0
    %2769 = vmatmul.mubr.bf16.gmra.mxu0 %v2698
    %v2770 = vpop.f32.mrf.mxu0
    %v2771 = vadd.f32 %v2674, %v2770
    %v2772 = vpop.f32.mrf.mxu0
    %v2773 = vpop.f32.mrf.mxu0
    %v2774 = vadd.f32 %v2674, %v2773
    %v2775 = vpop.f32.mrf.mxu0
    %2776 = vmatprep.mubr.bf16.mxu0 0
    %2777 = vmatmul.mubr.bf16.gmra.mxu0 %v2701
    %v2778 = vpop.f32.mrf.mxu0
    %v2779 = vadd.f32 %v2674, %v2778
    %v2780 = vpop.f32.mrf.mxu0
    %v2781 = vpop.f32.mrf.mxu0
    %v2782 = vadd.f32 %v2674, %v2781
    %v2783 = vpop.f32.mrf.mxu0
    %2784 = vmatprep.mubr.bf16.mxu0 0
    %2785 = vmatmul.mubr.bf16.gmra.mxu0 %v2704
    %v2786 = vpop.f32.mrf.mxu0
    %v2787 = vadd.f32 %v2674, %v2786
    %v2788 = vpop.f32.mrf.mxu0
    %v2789 = vpop.f32.mrf.mxu0
    %v2790 = vadd.f32 %v2674, %v2789
    %v2791 = vpop.f32.mrf.mxu0
    %2792 = vmatprep.mubr.bf16.mxu0 0
    %2793 = vmatmul.mubr.bf16.gmra.mxu0 %v2707
    %v2794 = vpop.f32.mrf.mxu0
    %v2795 = vadd.f32 %v2674, %v2794
    %v2796 = vpop.f32.mrf.mxu0
    %v2797 = vpop.f32.mrf.mxu0
    %v2798 = vadd.f32 %v2674, %v2797
    %v2799 = vpop.f32.mrf.mxu0
    %2800 = vmatprep.mubr.bf16.mxu0 0
    %2801 = vmatmul.mubr.bf16.gmra.mxu0 %v2710
    %v2802 = vpop.f32.mrf.mxu0
    %v2803 = vadd.f32 %v2674, %v2802
    %v2804 = vpop.f32.mrf.mxu0
    %v2805 = vpop.f32.mrf.mxu0
    %v2806 = vadd.f32 %v2674, %v2805
    %v2807 = vpop.f32.mrf.mxu0
    %2808 = vdwg.mxu0
    %v2809 = vadd.f32 %v294, %v2747
    %v2810 = vadd.f32 %v297, %v2750
    %v2811 = vadd.f32 %v302, %v2755
    %v2812 = vadd.f32 %v305, %v2758
    %v2813 = vadd.f32 %v310, %v2763
    %v2814 = vadd.f32 %v313, %v2766
    %v2815 = vadd.f32 %v318, %v2771
    %v2816 = vadd.f32 %v321, %v2774
    %v2817 = vadd.f32 %v326, %v2779
    %v2818 = vadd.f32 %v329, %v2782
    %v2819 = vadd.f32 %v334, %v2787
    %v2820 = vadd.f32 %v337, %v2790
    %v2821 = vadd.f32 %v342, %v2795
    %v2822 = vadd.f32 %v345, %v2798
    %v2823 = vadd.f32 %v350, %v2803
    %v2824 = vadd.f32 %v353, %v2806
    %v2825 = vsel %vm387, %v2809, 0.0
    %2826 = vadd.xlane.f32.xlu0 %v2825
    %v2827 = vpop.xlane.xlu0 %2826
    %v2828 = vsel %vm387, %v2810, 0.0
    %2829 = vadd.xlane.f32.xlu0 %v2828
    %v2830 = vpop.xlane.xlu0 %2829
    %v2831 = vsel %vm387, %v2811, 0.0
    %2832 = vadd.xlane.f32.xlu0 %v2831
    %v2833 = vpop.xlane.xlu0 %2832
    %v2834 = vsel %vm387, %v2812, 0.0
    %2835 = vadd.xlane.f32.xlu0 %v2834
    %v2836 = vpop.xlane.xlu0 %2835
    %v2837 = vsel %vm387, %v2813, 0.0
    %2838 = vadd.xlane.f32.xlu0 %v2837
    %v2839 = vpop.xlane.xlu0 %2838
    %v2840 = vsel %vm387, %v2814, 0.0
    %2841 = vadd.xlane.f32.xlu0 %v2840
    %v2842 = vpop.xlane.xlu0 %2841
    %v2843 = vsel %vm387, %v2815, 0.0
    %2844 = vadd.xlane.f32.xlu0 %v2843
    %v2845 = vpop.xlane.xlu0 %2844
    %v2846 = vsel %vm387, %v2816, 0.0
    %2847 = vadd.xlane.f32.xlu0 %v2846
    %v2848 = vpop.xlane.xlu0 %2847
    %v2849 = vsel %vm387, %v2817, 0.0
    %2850 = vadd.xlane.f32.xlu0 %v2849
    %v2851 = vpop.xlane.xlu0 %2850
    %v2852 = vsel %vm387, %v2818, 0.0
    %2853 = vadd.xlane.f32.xlu0 %v2852
    %v2854 = vpop.xlane.xlu0 %2853
    %v2855 = vsel %vm387, %v2819, 0.0
    %2856 = vadd.xlane.f32.xlu0 %v2855
    %v2857 = vpop.xlane.xlu0 %2856
    %v2858 = vsel %vm387, %v2820, 0.0
    %2859 = vadd.xlane.f32.xlu0 %v2858
    %v2860 = vpop.xlane.xlu0 %2859
    %v2861 = vsel %vm387, %v2821, 0.0
    %2862 = vadd.xlane.f32.xlu0 %v2861
    %v2863 = vpop.xlane.xlu0 %2862
    %v2864 = vsel %vm387, %v2822, 0.0
    %2865 = vadd.xlane.f32.xlu0 %v2864
    %v2866 = vpop.xlane.xlu0 %2865
    %v2867 = vsel %vm387, %v2823, 0.0
    %2868 = vadd.xlane.f32.xlu0 %v2867
    %v2869 = vpop.xlane.xlu0 %2868
    %v2870 = vsel %vm387, %v2824, 0.0
    %2871 = vadd.xlane.f32.xlu0 %v2870
    %v2872 = vpop.xlane.xlu0 %2871
    %v2873 = vrcp.pop 32.0
    %v2874 = vmul.f32 %v2827, %v2873
    %v2875 = vmul.f32 %v2830, %v2873
    %v2876 = vmul.f32 %v2833, %v2873
    %v2877 = vmul.f32 %v2836, %v2873
    %v2878 = vmul.f32 %v2839, %v2873
    %v2879 = vmul.f32 %v2842, %v2873
    %v2880 = vmul.f32 %v2845, %v2873
    %v2881 = vmul.f32 %v2848, %v2873
    %v2882 = vmul.f32 %v2851, %v2873
    %v2883 = vmul.f32 %v2854, %v2873
    %v2884 = vmul.f32 %v2857, %v2873
    %v2885 = vmul.f32 %v2860, %v2873
    %v2886 = vmul.f32 %v2863, %v2873
    %v2887 = vmul.f32 %v2866, %v2873
    %v2888 = vmul.f32 %v2869, %v2873
    %v2889 = vmul.f32 %v2872, %v2873
    %v2890 = vmul.f32 %v2809, %v2809
    %v2891 = vmul.f32 %v2810, %v2810
    %v2892 = vmul.f32 %v2811, %v2811
    %v2893 = vmul.f32 %v2812, %v2812
    %v2894 = vmul.f32 %v2813, %v2813
    %v2895 = vmul.f32 %v2814, %v2814
    %v2896 = vmul.f32 %v2815, %v2815
    %v2897 = vmul.f32 %v2816, %v2816
    %v2898 = vmul.f32 %v2817, %v2817
    %v2899 = vmul.f32 %v2818, %v2818
    %v2900 = vmul.f32 %v2819, %v2819
    %v2901 = vmul.f32 %v2820, %v2820
    %v2902 = vmul.f32 %v2821, %v2821
    %v2903 = vmul.f32 %v2822, %v2822
    %v2904 = vmul.f32 %v2823, %v2823
    %v2905 = vmul.f32 %v2824, %v2824
    %v2906 = vsel %vm387, %v2890, 0.0
    %2907 = vadd.xlane.f32.xlu0 %v2906
    %v2908 = vpop.xlane.xlu0 %2907
    %v2909 = vsel %vm387, %v2891, 0.0
    %2910 = vadd.xlane.f32.xlu0 %v2909
    %v2911 = vpop.xlane.xlu0 %2910
    %v2912 = vsel %vm387, %v2892, 0.0
    %2913 = vadd.xlane.f32.xlu0 %v2912
    %v2914 = vpop.xlane.xlu0 %2913
    %v2915 = vsel %vm387, %v2893, 0.0
    %2916 = vadd.xlane.f32.xlu0 %v2915
    %v2917 = vpop.xlane.xlu0 %2916
    %v2918 = vsel %vm387, %v2894, 0.0
    %2919 = vadd.xlane.f32.xlu0 %v2918
    %v2920 = vpop.xlane.xlu0 %2919
    %v2921 = vsel %vm387, %v2895, 0.0
    %2922 = vadd.xlane.f32.xlu0 %v2921
    %v2923 = vpop.xlane.xlu0 %2922
    %v2924 = vsel %vm387, %v2896, 0.0
    %2925 = vadd.xlane.f32.xlu0 %v2924
    %v2926 = vpop.xlane.xlu0 %2925
    %v2927 = vsel %vm387, %v2897, 0.0
    %2928 = vadd.xlane.f32.xlu0 %v2927
    %v2929 = vpop.xlane.xlu0 %2928
    %v2930 = vsel %vm387, %v2898, 0.0
    %2931 = vadd.xlane.f32.xlu0 %v2930
    %v2932 = vpop.xlane.xlu0 %2931
    %v2933 = vsel %vm387, %v2899, 0.0
    %2934 = vadd.xlane.f32.xlu0 %v2933
    %v2935 = vpop.xlane.xlu0 %2934
    %v2936 = vsel %vm387, %v2900, 0.0
    %2937 = vadd.xlane.f32.xlu0 %v2936
    %v2938 = vpop.xlane.xlu0 %2937
    %v2939 = vsel %vm387, %v2901, 0.0
    %2940 = vadd.xlane.f32.xlu0 %v2939
    %v2941 = vpop.xlane.xlu0 %2940
    %v2942 = vsel %vm387, %v2902, 0.0
    %2943 = vadd.xlane.f32.xlu0 %v2942
    %v2944 = vpop.xlane.xlu0 %2943
    %v2945 = vsel %vm387, %v2903, 0.0
    %2946 = vadd.xlane.f32.xlu0 %v2945
    %v2947 = vpop.xlane.xlu0 %2946
    %v2948 = vsel %vm387, %v2904, 0.0
    %2949 = vadd.xlane.f32.xlu0 %v2948
    %v2950 = vpop.xlane.xlu0 %2949
    %v2951 = vsel %vm387, %v2905, 0.0
    %2952 = vadd.xlane.f32.xlu0 %v2951
    %v2953 = vpop.xlane.xlu0 %2952
    %v2954 = vmul.f32 %v2908, %v2873
    %v2955 = vmul.f32 %v2911, %v2873
    %v2956 = vmul.f32 %v2914, %v2873
    %v2957 = vmul.f32 %v2917, %v2873
    %v2958 = vmul.f32 %v2920, %v2873
    %v2959 = vmul.f32 %v2923, %v2873
    %v2960 = vmul.f32 %v2926, %v2873
    %v2961 = vmul.f32 %v2929, %v2873
    %v2962 = vmul.f32 %v2932, %v2873
    %v2963 = vmul.f32 %v2935, %v2873
    %v2964 = vmul.f32 %v2938, %v2873
    %v2965 = vmul.f32 %v2941, %v2873
    %v2966 = vmul.f32 %v2944, %v2873
    %v2967 = vmul.f32 %v2947, %v2873
    %v2968 = vmul.f32 %v2950, %v2873
    %v2969 = vmul.f32 %v2953, %v2873
    %v2970 = vsub.f32 %v2809, %v2874
    %v2971 = vsub.f32 %v2810, %v2875
    %v2972 = vsub.f32 %v2811, %v2876
    %v2973 = vsub.f32 %v2812, %v2877
    %v2974 = vsub.f32 %v2813, %v2878
    %v2975 = vsub.f32 %v2814, %v2879
    %v2976 = vsub.f32 %v2815, %v2880
    %v2977 = vsub.f32 %v2816, %v2881
    %v2978 = vsub.f32 %v2817, %v2882
    %v2979 = vsub.f32 %v2818, %v2883
    %v2980 = vsub.f32 %v2819, %v2884
    %v2981 = vsub.f32 %v2820, %v2885
    %v2982 = vsub.f32 %v2821, %v2886
    %v2983 = vsub.f32 %v2822, %v2887
    %v2984 = vsub.f32 %v2823, %v2888
    %v2985 = vsub.f32 %v2824, %v2889
    %v2986 = vmul.f32 %v2874, %v2874
    %v2987 = vmul.f32 %v2875, %v2875
    %v2988 = vmul.f32 %v2876, %v2876
    %v2989 = vmul.f32 %v2877, %v2877
    %v2990 = vmul.f32 %v2878, %v2878
    %v2991 = vmul.f32 %v2879, %v2879
    %v2992 = vmul.f32 %v2880, %v2880
    %v2993 = vmul.f32 %v2881, %v2881
    %v2994 = vmul.f32 %v2882, %v2882
    %v2995 = vmul.f32 %v2883, %v2883
    %v2996 = vmul.f32 %v2884, %v2884
    %v2997 = vmul.f32 %v2885, %v2885
    %v2998 = vmul.f32 %v2886, %v2886
    %v2999 = vmul.f32 %v2887, %v2887
    %v3000 = vmul.f32 %v2888, %v2888
    %v3001 = vmul.f32 %v2889, %v2889
    %v3002 = vsub.f32 %v2954, %v2986
    %v3003 = vsub.f32 %v2955, %v2987
    %v3004 = vsub.f32 %v2956, %v2988
    %v3005 = vsub.f32 %v2957, %v2989
    %v3006 = vsub.f32 %v2958, %v2990
    %v3007 = vsub.f32 %v2959, %v2991
    %v3008 = vsub.f32 %v2960, %v2992
    %v3009 = vsub.f32 %v2961, %v2993
    %v3010 = vsub.f32 %v2962, %v2994
    %v3011 = vsub.f32 %v2963, %v2995
    %v3012 = vsub.f32 %v2964, %v2996
    %v3013 = vsub.f32 %v2965, %v2997
    %v3014 = vsub.f32 %v2966, %v2998
    %v3015 = vsub.f32 %v2967, %v2999
    %v3016 = vsub.f32 %v2968, %v3000
    %v3017 = vsub.f32 %v2969, %v3001
    %v3018 = vadd.f32 %v3002, 1e-05
    %v3019 = vadd.f32 %v3003, 1e-05
    %v3020 = vadd.f32 %v3004, 1e-05
    %v3021 = vadd.f32 %v3005, 1e-05
    %v3022 = vadd.f32 %v3006, 1e-05
    %v3023 = vadd.f32 %v3007, 1e-05
    %v3024 = vadd.f32 %v3008, 1e-05
    %v3025 = vadd.f32 %v3009, 1e-05
    %v3026 = vadd.f32 %v3010, 1e-05
    %v3027 = vadd.f32 %v3011, 1e-05
    %v3028 = vadd.f32 %v3012, 1e-05
    %v3029 = vadd.f32 %v3013, 1e-05
    %v3030 = vadd.f32 %v3014, 1e-05
    %v3031 = vadd.f32 %v3015, 1e-05
    %v3032 = vadd.f32 %v3016, 1e-05
    %v3033 = vadd.f32 %v3017, 1e-05
    %v3034 = vrsqrt.pop %v3018
    %v3035 = vrsqrt.pop %v3019
    %v3036 = vrsqrt.pop %v3020
    %v3037 = vrsqrt.pop %v3021
    %v3038 = vrsqrt.pop %v3022
    %v3039 = vrsqrt.pop %v3023
    %v3040 = vrsqrt.pop %v3024
    %v3041 = vrsqrt.pop %v3025
    %v3042 = vrsqrt.pop %v3026
    %v3043 = vrsqrt.pop %v3027
    %v3044 = vrsqrt.pop %v3028
    %v3045 = vrsqrt.pop %v3029
    %v3046 = vrsqrt.pop %v3030
    %v3047 = vrsqrt.pop %v3031
    %v3048 = vrsqrt.pop %v3032
    %v3049 = vrsqrt.pop %v3033
    %v3050 = vmul.f32 %v2970, %v3034
    %v3051 = vmul.f32 %v2971, %v3035
    %v3052 = vmul.f32 %v2972, %v3036
    %v3053 = vmul.f32 %v2973, %v3037
    %v3054 = vmul.f32 %v2974, %v3038
    %v3055 = vmul.f32 %v2975, %v3039
    %v3056 = vmul.f32 %v2976, %v3040
    %v3057 = vmul.f32 %v2977, %v3041
    %v3058 = vmul.f32 %v2978, %v3042
    %v3059 = vmul.f32 %v2979, %v3043
    %v3060 = vmul.f32 %v2980, %v3044
    %v3061 = vmul.f32 %v2981, %v3045
    %v3062 = vmul.f32 %v2982, %v3046
    %v3063 = vmul.f32 %v2983, %v3047
    %v3064 = vmul.f32 %v2984, %v3048
    %v3065 = vmul.f32 %v2985, %v3049
    %v3066 = vld [vmem:[%s12] sm:$0x1]
    %v3068 = vlaneseq
    %v3069 = vshrl.u32 %v3068, 7
    %v3070 = vsub.s32 0, %v3069
    %v3071 = vrot.slane %v3066, %v3070
    %v3073 = vmul.f32 %v3050, %v3071
    %v3074 = vmul.f32 %v3051, %v3071
    %v3075 = vmul.f32 %v3052, %v3071
    %v3076 = vmul.f32 %v3053, %v3071
    %v3077 = vmul.f32 %v3054, %v3071
    %v3078 = vmul.f32 %v3055, %v3071
    %v3079 = vmul.f32 %v3056, %v3071
    %v3080 = vmul.f32 %v3057, %v3071
    %v3081 = vmul.f32 %v3058, %v3071
    %v3082 = vmul.f32 %v3059, %v3071
    %v3083 = vmul.f32 %v3060, %v3071
    %v3084 = vmul.f32 %v3061, %v3071
    %v3085 = vmul.f32 %v3062, %v3071
    %v3086 = vmul.f32 %v3063, %v3071
    %v3087 = vmul.f32 %v3064, %v3071
    %v3088 = vmul.f32 %v3065, %v3071
    %v3089 = vld [vmem:[%s13] sm:$0x1]
    %v3091 = vlaneseq
    %v3092 = vshrl.u32 %v3091, 7
    %v3093 = vsub.s32 0, %v3092
    %v3094 = vrot.slane %v3089, %v3093
    %v3096 = vadd.f32 %v3073, %v3094
    %v3097 = vadd.f32 %v3074, %v3094
    %v3098 = vadd.f32 %v3075, %v3094
    %v3099 = vadd.f32 %v3076, %v3094
    %v3100 = vadd.f32 %v3077, %v3094
    %v3101 = vadd.f32 %v3078, %v3094
    %v3102 = vadd.f32 %v3079, %v3094
    %v3103 = vadd.f32 %v3080, %v3094
    %v3104 = vadd.f32 %v3081, %v3094
    %v3105 = vadd.f32 %v3082, %v3094
    %v3106 = vadd.f32 %v3083, %v3094
    %v3107 = vadd.f32 %v3084, %v3094
    %v3108 = vadd.f32 %v3085, %v3094
    %v3109 = vadd.f32 %v3086, %v3094
    %v3110 = vadd.f32 %v3087, %v3094
    %v3111 = vadd.f32 %v3088, %v3094
    %v3112 = vpack.c.bf16 %v3097, %v3096
    %v3113 = vpack.c.bf16 %v3099, %v3098
    %v3114 = vpack.c.bf16 %v3101, %v3100
    %v3115 = vpack.c.bf16 %v3103, %v3102
    %v3116 = vpack.c.bf16 %v3105, %v3104
    %v3117 = vpack.c.bf16 %v3107, %v3106
    %v3118 = vpack.c.bf16 %v3109, %v3108
    %v3119 = vpack.c.bf16 %v3111, %v3110
    %v3120 = vld [vmem:[#allocation11] sm:$0xf]
    %v3121 = vld [vmem:[#allocation11 + $0x4] sm:$0xf]
    %v3122 = vld [vmem:[#allocation11 + $0x8] sm:$0xf]
    %v3123 = vld [vmem:[#allocation11 + $0xc] sm:$0xf]
    %v3124 = vld [vmem:[%s15] sm:$0x1]
    %v3126 = vlaneseq
    %v3127 = vshrl.u32 %v3126, 7
    %v3128 = vsub.s32 0, %v3127
    %v3129 = vrot.slane %v3124, %v3128
    %v3135 = vunpack.c.l.b16 %v3120
    %v3136 = vunpack.c.l.b16 %v3121
    %v3137 = vunpack.c.l.b16 %v3122
    %v3138 = vunpack.c.l.b16 %v3123
    %v3139 = vpack.c.b16 %v3136, %v3135
    %v3140 = vpack.c.b16 %v3138, %v3137
    %v3144 = vsel %vm387, %v3112, 0
    %v3147 = vsel %vm387, %v3113, 0
    %v3150 = vsel %vm387, %v3114, 0
    %v3153 = vsel %vm387, %v3115, 0
    %v3156 = vsel %vm387, %v3116, 0
    %v3159 = vsel %vm387, %v3117, 0
    %v3162 = vsel %vm387, %v3118, 0
    %v3165 = vsel %vm387, %v3119, 0
    %3167 = vmatprep.subr.bf16.mxu0 0
    %3168 = vmatpush1.bf16.msra.mxu0 0
    %3169 = vmatprep.subr.bf16.mxu0 0
    %3170 = vmatpush1.bf16.msra.mxu0 0
    %3171 = vmatprep.subr.bf16.mxu0 0
    %3172 = vmatpush1.bf16.msra.mxu0 0
    %3173 = vmatprep.subr.bf16.mxu0 0
    %3174 = vmatpush1.bf16.msra.mxu0 0
    %3175 = vmatprep.subr.bf16.mxu0 0
    %3176 = vmatpush1.bf16.msra.mxu0 0
    %3177 = vmatprep.subr.bf16.mxu0 0
    %3178 = vmatpush1.bf16.msra.mxu0 0
    %3179 = vmatprep.subr.bf16.mxu0 0
    %3180 = vmatpush1.bf16.msra.mxu0 %v3140
    %3181 = vmatprep.subr.bf16.mxu0 0
    %3182 = vmatpush1.bf16.msra.mxu0 %v3139
    %3183 = vmatprep.subr.bf16.mxu0 0
    %3184 = vmatpush2.bf16.msra.mxu0 0
    %3185 = vmatprep.subr.bf16.mxu0 0
    %3186 = vmatpush2.bf16.msra.mxu0 0
    %3187 = vmatprep.subr.bf16.mxu0 0
    %3188 = vmatpush2.bf16.msra.mxu0 0
    %3189 = vmatprep.subr.bf16.mxu0 0
    %3190 = vmatpush2.bf16.msra.mxu0 0
    %3191 = vmatprep.subr.bf16.mxu0 0
    %3192 = vmatpush2.bf16.msra.mxu0 0
    %3193 = vmatprep.subr.bf16.mxu0 0
    %3194 = vmatpush2.bf16.msra.mxu0 0
    %3195 = vmatprep.subr.bf16.mxu0 0
    %3196 = vmatpush2.bf16.msra.mxu0 0
    %3197 = vmatprep.subr.bf16.mxu0 0
    %3198 = vmatpush2.bf16.msra.mxu0 0
    %3199 = vmatprep.mubr.bf16.mxu0 0
    %3200 = vmatmul.mubr.bf16.gmra.mxu0 %v3144
    %v3201 = vpop.f32.mrf.mxu0
    %v3202 = vadd.f32 %v3129, %v3201
    %v3203 = vpop.f32.mrf.mxu0
    %v3204 = vpop.f32.mrf.mxu0
    %v3205 = vadd.f32 %v3129, %v3204
    %v3206 = vpop.f32.mrf.mxu0
    %3207 = vmatprep.mubr.bf16.mxu0 0
    %3208 = vmatmul.mubr.bf16.gmra.mxu0 %v3147
    %v3209 = vpop.f32.mrf.mxu0
    %v3210 = vadd.f32 %v3129, %v3209
    %v3211 = vpop.f32.mrf.mxu0
    %v3212 = vpop.f32.mrf.mxu0
    %v3213 = vadd.f32 %v3129, %v3212
    %v3214 = vpop.f32.mrf.mxu0
    %3215 = vmatprep.mubr.bf16.mxu0 0
    %3216 = vmatmul.mubr.bf16.gmra.mxu0 %v3150
    %v3217 = vpop.f32.mrf.mxu0
    %v3218 = vadd.f32 %v3129, %v3217
    %v3219 = vpop.f32.mrf.mxu0
    %v3220 = vpop.f32.mrf.mxu0
    %v3221 = vadd.f32 %v3129, %v3220
    %v3222 = vpop.f32.mrf.mxu0
    %3223 = vmatprep.mubr.bf16.mxu0 0
    %3224 = vmatmul.mubr.bf16.gmra.mxu0 %v3153
    %v3225 = vpop.f32.mrf.mxu0
    %v3226 = vadd.f32 %v3129, %v3225
    %v3227 = vpop.f32.mrf.mxu0
    %v3228 = vpop.f32.mrf.mxu0
    %v3229 = vadd.f32 %v3129, %v3228
    %v3230 = vpop.f32.mrf.mxu0
    %3231 = vmatprep.mubr.bf16.mxu0 0
    %3232 = vmatmul.mubr.bf16.gmra.mxu0 %v3156
    %v3233 = vpop.f32.mrf.mxu0
    %v3234 = vadd.f32 %v3129, %v3233
    %v3235 = vpop.f32.mrf.mxu0
    %v3236 = vpop.f32.mrf.mxu0
    %v3237 = vadd.f32 %v3129, %v3236
    %v3238 = vpop.f32.mrf.mxu0
    %3239 = vmatprep.mubr.bf16.mxu0 0
    %3240 = vmatmul.mubr.bf16.gmra.mxu0 %v3159
    %v3241 = vpop.f32.mrf.mxu0
    %v3242 = vadd.f32 %v3129, %v3241
    %v3243 = vpop.f32.mrf.mxu0
    %v3244 = vpop.f32.mrf.mxu0
    %v3245 = vadd.f32 %v3129, %v3244
    %v3246 = vpop.f32.mrf.mxu0
    %3247 = vmatprep.mubr.bf16.mxu0 0
    %3248 = vmatmul.mubr.bf16.gmra.mxu0 %v3162
    %v3249 = vpop.f32.mrf.mxu0
    %v3250 = vadd.f32 %v3129, %v3249
    %v3251 = vpop.f32.mrf.mxu0
    %v3252 = vpop.f32.mrf.mxu0
    %v3253 = vadd.f32 %v3129, %v3252
    %v3254 = vpop.f32.mrf.mxu0
    %3255 = vmatprep.mubr.bf16.mxu0 0
    %3256 = vmatmul.mubr.bf16.gmra.mxu0 %v3165
    %v3257 = vpop.f32.mrf.mxu0
    %v3258 = vadd.f32 %v3129, %v3257
    %v3259 = vpop.f32.mrf.mxu0
    %v3260 = vpop.f32.mrf.mxu0
    %v3261 = vadd.f32 %v3129, %v3260
    %v3262 = vpop.f32.mrf.mxu0
    %3263 = vdwg.mxu0
    %v3264 = vmax.f32 %v3202, 0.0
    %v3265 = vmax.f32 %v3205, 0.0
    %v3266 = vmax.f32 %v3210, 0.0
    %v3267 = vmax.f32 %v3213, 0.0
    %v3268 = vmax.f32 %v3218, 0.0
    %v3269 = vmax.f32 %v3221, 0.0
    %v3270 = vmax.f32 %v3226, 0.0
    %v3271 = vmax.f32 %v3229, 0.0
    %v3272 = vmax.f32 %v3234, 0.0
    %v3273 = vmax.f32 %v3237, 0.0
    %v3274 = vmax.f32 %v3242, 0.0
    %v3275 = vmax.f32 %v3245, 0.0
    %v3276 = vmax.f32 %v3250, 0.0
    %v3277 = vmax.f32 %v3253, 0.0
    %v3278 = vmax.f32 %v3258, 0.0
    %v3279 = vmax.f32 %v3261, 0.0
    %v3280 = vpack.c.bf16 %v3265, %v3264
    %v3281 = vpack.c.bf16 %v3267, %v3266
    %v3282 = vpack.c.bf16 %v3269, %v3268
    %v3283 = vpack.c.bf16 %v3271, %v3270
    %v3284 = vpack.c.bf16 %v3273, %v3272
    %v3285 = vpack.c.bf16 %v3275, %v3274
    %v3286 = vpack.c.bf16 %v3277, %v3276
    %v3287 = vpack.c.bf16 %v3279, %v3278
    %v3288 = vld [vmem:[%s16] sm:$0xf]
    %v3289 = vld [vmem:[%s16 + $0x4] sm:$0xf]
    %v3290 = vld [vmem:[%s16 + $0x8] sm:$0xf]
    %v3291 = vld [vmem:[%s16 + $0xc] sm:$0xf]
    %v3292 = vld [vmem:[%s16 + $0x10] sm:$0xf]
    %v3293 = vld [vmem:[%s16 + $0x14] sm:$0xf]
    %v3294 = vld [vmem:[%s16 + $0x18] sm:$0xf]
    %v3295 = vld [vmem:[%s16 + $0x1c] sm:$0xf]
    %v3296 = vld [vmem:[%s17] sm:$0x1]
    %v3298 = vlaneseq
    %v3299 = vshrl.u32 %v3298, 7
    %v3300 = vsub.s32 0, %v3299
    %v3301 = vrot.slane %v3296, %v3300
    %v3311 = vunpack.c.l.b16 %v3288
    %v3312 = vunpack.c.l.b16 %v3289
    %v3313 = vunpack.c.l.b16 %v3290
    %v3314 = vunpack.c.l.b16 %v3291
    %v3315 = vunpack.c.l.b16 %v3292
    %v3316 = vunpack.c.l.b16 %v3293
    %v3317 = vunpack.c.l.b16 %v3294
    %v3318 = vunpack.c.l.b16 %v3295
    %v3319 = vpack.c.b16 %v3312, %v3311
    %v3320 = vpack.c.b16 %v3314, %v3313
    %v3321 = vpack.c.b16 %v3316, %v3315
    %v3322 = vpack.c.b16 %v3318, %v3317
    %v3328 = vsel %vm234, %v3280, 0
    %v3331 = vsel %vm234, %v3281, 0
    %v3334 = vsel %vm234, %v3282, 0
    %v3337 = vsel %vm234, %v3283, 0
    %v3340 = vsel %vm234, %v3284, 0
    %v3343 = vsel %vm234, %v3285, 0
    %v3346 = vsel %vm234, %v3286, 0
    %v3349 = vsel %vm234, %v3287, 0
    %3351 = vmatprep.subr.bf16.mxu0 0
    %3352 = vmatpush1.bf16.msra.mxu0 0
    %3353 = vmatprep.subr.bf16.mxu0 0
    %3354 = vmatpush1.bf16.msra.mxu0 0
    %3355 = vmatprep.subr.bf16.mxu0 0
    %3356 = vmatpush1.bf16.msra.mxu0 0
    %3357 = vmatprep.subr.bf16.mxu0 0
    %3358 = vmatpush1.bf16.msra.mxu0 0
    %3359 = vmatprep.subr.bf16.mxu0 0
    %3360 = vmatpush1.bf16.msra.mxu0 %v3322
    %3361 = vmatprep.subr.bf16.mxu0 0
    %3362 = vmatpush1.bf16.msra.mxu0 %v3321
    %3363 = vmatprep.subr.bf16.mxu0 0
    %3364 = vmatpush1.bf16.msra.mxu0 %v3320
    %3365 = vmatprep.subr.bf16.mxu0 0
    %3366 = vmatpush1.bf16.msra.mxu0 %v3319
    %3367 = vmatprep.subr.bf16.mxu0 0
    %3368 = vmatpush2.bf16.msra.mxu0 0
    %3369 = vmatprep.subr.bf16.mxu0 0
    %3370 = vmatpush2.bf16.msra.mxu0 0
    %3371 = vmatprep.subr.bf16.mxu0 0
    %3372 = vmatpush2.bf16.msra.mxu0 0
    %3373 = vmatprep.subr.bf16.mxu0 0
    %3374 = vmatpush2.bf16.msra.mxu0 0
    %3375 = vmatprep.subr.bf16.mxu0 0
    %3376 = vmatpush2.bf16.msra.mxu0 0
    %3377 = vmatprep.subr.bf16.mxu0 0
    %3378 = vmatpush2.bf16.msra.mxu0 0
    %3379 = vmatprep.subr.bf16.mxu0 0
    %3380 = vmatpush2.bf16.msra.mxu0 0
    %3381 = vmatprep.subr.bf16.mxu0 0
    %3382 = vmatpush2.bf16.msra.mxu0 0
    %3383 = vmatprep.mubr.bf16.mxu0 0
    %3384 = vmatmul.mubr.bf16.gmra.mxu0 %v3328
    %v3385 = vpop.f32.mrf.mxu0
    %v3386 = vadd.f32 %v3301, %v3385
    %v3387 = vpop.f32.mrf.mxu0
    %v3388 = vpop.f32.mrf.mxu0
    %v3389 = vadd.f32 %v3301, %v3388
    %v3390 = vpop.f32.mrf.mxu0
    %3391 = vmatprep.mubr.bf16.mxu0 0
    %3392 = vmatmul.mubr.bf16.gmra.mxu0 %v3331
    %v3393 = vpop.f32.mrf.mxu0
    %v3394 = vadd.f32 %v3301, %v3393
    %v3395 = vpop.f32.mrf.mxu0
    %v3396 = vpop.f32.mrf.mxu0
    %v3397 = vadd.f32 %v3301, %v3396
    %v3398 = vpop.f32.mrf.mxu0
    %3399 = vmatprep.mubr.bf16.mxu0 0
    %3400 = vmatmul.mubr.bf16.gmra.mxu0 %v3334
    %v3401 = vpop.f32.mrf.mxu0
    %v3402 = vadd.f32 %v3301, %v3401
    %v3403 = vpop.f32.mrf.mxu0
    %v3404 = vpop.f32.mrf.mxu0
    %v3405 = vadd.f32 %v3301, %v3404
    %v3406 = vpop.f32.mrf.mxu0
    %3407 = vmatprep.mubr.bf16.mxu0 0
    %3408 = vmatmul.mubr.bf16.gmra.mxu0 %v3337
    %v3409 = vpop.f32.mrf.mxu0
    %v3410 = vadd.f32 %v3301, %v3409
    %v3411 = vpop.f32.mrf.mxu0
    %v3412 = vpop.f32.mrf.mxu0
    %v3413 = vadd.f32 %v3301, %v3412
    %v3414 = vpop.f32.mrf.mxu0
    %3415 = vmatprep.mubr.bf16.mxu0 0
    %3416 = vmatmul.mubr.bf16.gmra.mxu0 %v3340
    %v3417 = vpop.f32.mrf.mxu0
    %v3418 = vadd.f32 %v3301, %v3417
    %v3419 = vpop.f32.mrf.mxu0
    %v3420 = vpop.f32.mrf.mxu0
    %v3421 = vadd.f32 %v3301, %v3420
    %v3422 = vpop.f32.mrf.mxu0
    %3423 = vmatprep.mubr.bf16.mxu0 0
    %3424 = vmatmul.mubr.bf16.gmra.mxu0 %v3343
    %v3425 = vpop.f32.mrf.mxu0
    %v3426 = vadd.f32 %v3301, %v3425
    %v3427 = vpop.f32.mrf.mxu0
    %v3428 = vpop.f32.mrf.mxu0
    %v3429 = vadd.f32 %v3301, %v3428
    %v3430 = vpop.f32.mrf.mxu0
    %3431 = vmatprep.mubr.bf16.mxu0 0
    %3432 = vmatmul.mubr.bf16.gmra.mxu0 %v3346
    %v3433 = vpop.f32.mrf.mxu0
    %v3434 = vadd.f32 %v3301, %v3433
    %v3435 = vpop.f32.mrf.mxu0
    %v3436 = vpop.f32.mrf.mxu0
    %v3437 = vadd.f32 %v3301, %v3436
    %v3438 = vpop.f32.mrf.mxu0
    %3439 = vmatprep.mubr.bf16.mxu0 0
    %3440 = vmatmul.mubr.bf16.gmra.mxu0 %v3349
    %v3441 = vpop.f32.mrf.mxu0
    %v3442 = vadd.f32 %v3301, %v3441
    %v3443 = vpop.f32.mrf.mxu0
    %v3444 = vpop.f32.mrf.mxu0
    %v3445 = vadd.f32 %v3301, %v3444
    %v3446 = vpop.f32.mrf.mxu0
    %3447 = vdwg.mxu0
    %v3448 = vadd.f32 %v3096, %v3386
    %v3449 = vadd.f32 %v3097, %v3389
    %v3450 = vadd.f32 %v3098, %v3394
    %v3451 = vadd.f32 %v3099, %v3397
    %v3452 = vadd.f32 %v3100, %v3402
    %v3453 = vadd.f32 %v3101, %v3405
    %v3454 = vadd.f32 %v3102, %v3410
    %v3455 = vadd.f32 %v3103, %v3413
    %v3456 = vadd.f32 %v3104, %v3418
    %v3457 = vadd.f32 %v3105, %v3421
    %v3458 = vadd.f32 %v3106, %v3426
    %v3459 = vadd.f32 %v3107, %v3429
    %v3460 = vadd.f32 %v3108, %v3434
    %v3461 = vadd.f32 %v3109, %v3437
    %v3462 = vadd.f32 %v3110, %v3442
    %v3463 = vadd.f32 %v3111, %v3445
    %v3464 = vsel %vm387, %v3448, 0.0
    %3465 = vadd.xlane.f32.xlu0 %v3464
    %v3466 = vpop.xlane.xlu0 %3465
    %v3467 = vsel %vm387, %v3449, 0.0
    %3468 = vadd.xlane.f32.xlu0 %v3467
    %v3469 = vpop.xlane.xlu0 %3468
    %v3470 = vsel %vm387, %v3450, 0.0
    %3471 = vadd.xlane.f32.xlu0 %v3470
    %v3472 = vpop.xlane.xlu0 %3471
    %v3473 = vsel %vm387, %v3451, 0.0
    %3474 = vadd.xlane.f32.xlu0 %v3473
    %v3475 = vpop.xlane.xlu0 %3474
    %v3476 = vsel %vm387, %v3452, 0.0
    %3477 = vadd.xlane.f32.xlu0 %v3476
    %v3478 = vpop.xlane.xlu0 %3477
    %v3479 = vsel %vm387, %v3453, 0.0
    %3480 = vadd.xlane.f32.xlu0 %v3479
    %v3481 = vpop.xlane.xlu0 %3480
    %v3482 = vsel %vm387, %v3454, 0.0
    %3483 = vadd.xlane.f32.xlu0 %v3482
    %v3484 = vpop.xlane.xlu0 %3483
    %v3485 = vsel %vm387, %v3455, 0.0
    %3486 = vadd.xlane.f32.xlu0 %v3485
    %v3487 = vpop.xlane.xlu0 %3486
    %v3488 = vsel %vm387, %v3456, 0.0
    %3489 = vadd.xlane.f32.xlu0 %v3488
    %v3490 = vpop.xlane.xlu0 %3489
    %v3491 = vsel %vm387, %v3457, 0.0
    %3492 = vadd.xlane.f32.xlu0 %v3491
    %v3493 = vpop.xlane.xlu0 %3492
    %v3494 = vsel %vm387, %v3458, 0.0
    %3495 = vadd.xlane.f32.xlu0 %v3494
    %v3496 = vpop.xlane.xlu0 %3495
    %v3497 = vsel %vm387, %v3459, 0.0
    %3498 = vadd.xlane.f32.xlu0 %v3497
    %v3499 = vpop.xlane.xlu0 %3498
    %v3500 = vsel %vm387, %v3460, 0.0
    %3501 = vadd.xlane.f32.xlu0 %v3500
    %v3502 = vpop.xlane.xlu0 %3501
    %v3503 = vsel %vm387, %v3461, 0.0
    %3504 = vadd.xlane.f32.xlu0 %v3503
    %v3505 = vpop.xlane.xlu0 %3504
    %v3506 = vsel %vm387, %v3462, 0.0
    %3507 = vadd.xlane.f32.xlu0 %v3506
    %v3508 = vpop.xlane.xlu0 %3507
    %v3509 = vsel %vm387, %v3463, 0.0
    %3510 = vadd.xlane.f32.xlu0 %v3509
    %v3511 = vpop.xlane.xlu0 %3510
    %v3512 = vmul.f32 %v3466, %v2873
    %v3513 = vmul.f32 %v3469, %v2873
    %v3514 = vmul.f32 %v3472, %v2873
    %v3515 = vmul.f32 %v3475, %v2873
    %v3516 = vmul.f32 %v3478, %v2873
    %v3517 = vmul.f32 %v3481, %v2873
    %v3518 = vmul.f32 %v3484, %v2873
    %v3519 = vmul.f32 %v3487, %v2873
    %v3520 = vmul.f32 %v3490, %v2873
    %v3521 = vmul.f32 %v3493, %v2873
    %v3522 = vmul.f32 %v3496, %v2873
    %v3523 = vmul.f32 %v3499, %v2873
    %v3524 = vmul.f32 %v3502, %v2873
    %v3525 = vmul.f32 %v3505, %v2873
    %v3526 = vmul.f32 %v3508, %v2873
    %v3527 = vmul.f32 %v3511, %v2873
    %v3528 = vmul.f32 %v3448, %v3448
    %v3529 = vmul.f32 %v3449, %v3449
    %v3530 = vmul.f32 %v3450, %v3450
    %v3531 = vmul.f32 %v3451, %v3451
    %v3532 = vmul.f32 %v3452, %v3452
    %v3533 = vmul.f32 %v3453, %v3453
    %v3534 = vmul.f32 %v3454, %v3454
    %v3535 = vmul.f32 %v3455, %v3455
    %v3536 = vmul.f32 %v3456, %v3456
    %v3537 = vmul.f32 %v3457, %v3457
    %v3538 = vmul.f32 %v3458, %v3458
    %v3539 = vmul.f32 %v3459, %v3459
    %v3540 = vmul.f32 %v3460, %v3460
    %v3541 = vmul.f32 %v3461, %v3461
    %v3542 = vmul.f32 %v3462, %v3462
    %v3543 = vmul.f32 %v3463, %v3463
    %v3544 = vsel %vm387, %v3528, 0.0
    %3545 = vadd.xlane.f32.xlu0 %v3544
    %v3546 = vpop.xlane.xlu0 %3545
    %v3547 = vsel %vm387, %v3529, 0.0
    %3548 = vadd.xlane.f32.xlu0 %v3547
    %v3549 = vpop.xlane.xlu0 %3548
    %v3550 = vsel %vm387, %v3530, 0.0
    %3551 = vadd.xlane.f32.xlu0 %v3550
    %v3552 = vpop.xlane.xlu0 %3551
    %v3553 = vsel %vm387, %v3531, 0.0
    %3554 = vadd.xlane.f32.xlu0 %v3553
    %v3555 = vpop.xlane.xlu0 %3554
    %v3556 = vsel %vm387, %v3532, 0.0
    %3557 = vadd.xlane.f32.xlu0 %v3556
    %v3558 = vpop.xlane.xlu0 %3557
    %v3559 = vsel %vm387, %v3533, 0.0
    %3560 = vadd.xlane.f32.xlu0 %v3559
    %v3561 = vpop.xlane.xlu0 %3560
    %v3562 = vsel %vm387, %v3534, 0.0
    %3563 = vadd.xlane.f32.xlu0 %v3562
    %v3564 = vpop.xlane.xlu0 %3563
    %v3565 = vsel %vm387, %v3535, 0.0
    %3566 = vadd.xlane.f32.xlu0 %v3565
    %v3567 = vpop.xlane.xlu0 %3566
    %v3568 = vsel %vm387, %v3536, 0.0
    %3569 = vadd.xlane.f32.xlu0 %v3568
    %v3570 = vpop.xlane.xlu0 %3569
    %v3571 = vsel %vm387, %v3537, 0.0
    %3572 = vadd.xlane.f32.xlu0 %v3571
    %v3573 = vpop.xlane.xlu0 %3572
    %v3574 = vsel %vm387, %v3538, 0.0
    %3575 = vadd.xlane.f32.xlu0 %v3574
    %v3576 = vpop.xlane.xlu0 %3575
    %v3577 = vsel %vm387, %v3539, 0.0
    %3578 = vadd.xlane.f32.xlu0 %v3577
    %v3579 = vpop.xlane.xlu0 %3578
    %v3580 = vsel %vm387, %v3540, 0.0
    %3581 = vadd.xlane.f32.xlu0 %v3580
    %v3582 = vpop.xlane.xlu0 %3581
    %v3583 = vsel %vm387, %v3541, 0.0
    %3584 = vadd.xlane.f32.xlu0 %v3583
    %v3585 = vpop.xlane.xlu0 %3584
    %v3586 = vsel %vm387, %v3542, 0.0
    %3587 = vadd.xlane.f32.xlu0 %v3586
    %v3588 = vpop.xlane.xlu0 %3587
    %v3589 = vsel %vm387, %v3543, 0.0
    %3590 = vadd.xlane.f32.xlu0 %v3589
    %v3591 = vpop.xlane.xlu0 %3590
    %v3592 = vmul.f32 %v3546, %v2873
    %v3593 = vmul.f32 %v3549, %v2873
    %v3594 = vmul.f32 %v3552, %v2873
    %v3595 = vmul.f32 %v3555, %v2873
    %v3596 = vmul.f32 %v3558, %v2873
    %v3597 = vmul.f32 %v3561, %v2873
    %v3598 = vmul.f32 %v3564, %v2873
    %v3599 = vmul.f32 %v3567, %v2873
    %v3600 = vmul.f32 %v3570, %v2873
    %v3601 = vmul.f32 %v3573, %v2873
    %v3602 = vmul.f32 %v3576, %v2873
    %v3603 = vmul.f32 %v3579, %v2873
    %v3604 = vmul.f32 %v3582, %v2873
    %v3605 = vmul.f32 %v3585, %v2873
    %v3606 = vmul.f32 %v3588, %v2873
    %v3607 = vmul.f32 %v3591, %v2873
    %v3608 = vsub.f32 %v3448, %v3512
    %v3609 = vsub.f32 %v3449, %v3513
    %v3610 = vsub.f32 %v3450, %v3514
    %v3611 = vsub.f32 %v3451, %v3515
    %v3612 = vsub.f32 %v3452, %v3516
    %v3613 = vsub.f32 %v3453, %v3517
    %v3614 = vsub.f32 %v3454, %v3518
    %v3615 = vsub.f32 %v3455, %v3519
    %v3616 = vsub.f32 %v3456, %v3520
    %v3617 = vsub.f32 %v3457, %v3521
    %v3618 = vsub.f32 %v3458, %v3522
    %v3619 = vsub.f32 %v3459, %v3523
    %v3620 = vsub.f32 %v3460, %v3524
    %v3621 = vsub.f32 %v3461, %v3525
    %v3622 = vsub.f32 %v3462, %v3526
    %v3623 = vsub.f32 %v3463, %v3527
    %v3624 = vmul.f32 %v3512, %v3512
    %v3625 = vmul.f32 %v3513, %v3513
    %v3626 = vmul.f32 %v3514, %v3514
    %v3627 = vmul.f32 %v3515, %v3515
    %v3628 = vmul.f32 %v3516, %v3516
    %v3629 = vmul.f32 %v3517, %v3517
    %v3630 = vmul.f32 %v3518, %v3518
    %v3631 = vmul.f32 %v3519, %v3519
    %v3632 = vmul.f32 %v3520, %v3520
    %v3633 = vmul.f32 %v3521, %v3521
    %v3634 = vmul.f32 %v3522, %v3522
    %v3635 = vmul.f32 %v3523, %v3523
    %v3636 = vmul.f32 %v3524, %v3524
    %v3637 = vmul.f32 %v3525, %v3525
    %v3638 = vmul.f32 %v3526, %v3526
    %v3639 = vmul.f32 %v3527, %v3527
    %v3640 = vsub.f32 %v3592, %v3624
    %v3641 = vsub.f32 %v3593, %v3625
    %v3642 = vsub.f32 %v3594, %v3626
    %v3643 = vsub.f32 %v3595, %v3627
    %v3644 = vsub.f32 %v3596, %v3628
    %v3645 = vsub.f32 %v3597, %v3629
    %v3646 = vsub.f32 %v3598, %v3630
    %v3647 = vsub.f32 %v3599, %v3631
    %v3648 = vsub.f32 %v3600, %v3632
    %v3649 = vsub.f32 %v3601, %v3633
    %v3650 = vsub.f32 %v3602, %v3634
    %v3651 = vsub.f32 %v3603, %v3635
    %v3652 = vsub.f32 %v3604, %v3636
    %v3653 = vsub.f32 %v3605, %v3637
    %v3654 = vsub.f32 %v3606, %v3638
    %v3655 = vsub.f32 %v3607, %v3639
    %v3656 = vadd.f32 %v3640, 1e-05
    %v3657 = vadd.f32 %v3641, 1e-05
    %v3658 = vadd.f32 %v3642, 1e-05
    %v3659 = vadd.f32 %v3643, 1e-05
    %v3660 = vadd.f32 %v3644, 1e-05
    %v3661 = vadd.f32 %v3645, 1e-05
    %v3662 = vadd.f32 %v3646, 1e-05
    %v3663 = vadd.f32 %v3647, 1e-05
    %v3664 = vadd.f32 %v3648, 1e-05
    %v3665 = vadd.f32 %v3649, 1e-05
    %v3666 = vadd.f32 %v3650, 1e-05
    %v3667 = vadd.f32 %v3651, 1e-05
    %v3668 = vadd.f32 %v3652, 1e-05
    %v3669 = vadd.f32 %v3653, 1e-05
    %v3670 = vadd.f32 %v3654, 1e-05
    %v3671 = vadd.f32 %v3655, 1e-05
    %v3672 = vrsqrt.pop %v3656
    %v3673 = vrsqrt.pop %v3657
    %v3674 = vrsqrt.pop %v3658
    %v3675 = vrsqrt.pop %v3659
    %v3676 = vrsqrt.pop %v3660
    %v3677 = vrsqrt.pop %v3661
    %v3678 = vrsqrt.pop %v3662
    %v3679 = vrsqrt.pop %v3663
    %v3680 = vrsqrt.pop %v3664
    %v3681 = vrsqrt.pop %v3665
    %v3682 = vrsqrt.pop %v3666
    %v3683 = vrsqrt.pop %v3667
    %v3684 = vrsqrt.pop %v3668
    %v3685 = vrsqrt.pop %v3669
    %v3686 = vrsqrt.pop %v3670
    %v3687 = vrsqrt.pop %v3671
    %v3688 = vmul.f32 %v3608, %v3672
    %v3689 = vmul.f32 %v3609, %v3673
    %v3690 = vmul.f32 %v3610, %v3674
    %v3691 = vmul.f32 %v3611, %v3675
    %v3692 = vmul.f32 %v3612, %v3676
    %v3693 = vmul.f32 %v3613, %v3677
    %v3694 = vmul.f32 %v3614, %v3678
    %v3695 = vmul.f32 %v3615, %v3679
    %v3696 = vmul.f32 %v3616, %v3680
    %v3697 = vmul.f32 %v3617, %v3681
    %v3698 = vmul.f32 %v3618, %v3682
    %v3699 = vmul.f32 %v3619, %v3683
    %v3700 = vmul.f32 %v3620, %v3684
    %v3701 = vmul.f32 %v3621, %v3685
    %v3702 = vmul.f32 %v3622, %v3686
    %v3703 = vmul.f32 %v3623, %v3687
    %v3704 = vld [vmem:[%s18] sm:$0x1]
    %v3706 = vlaneseq
    %v3707 = vshrl.u32 %v3706, 7
    %v3708 = vsub.s32 0, %v3707
    %v3709 = vrot.slane %v3704, %v3708
    %v3711 = vmul.f32 %v3688, %v3709
    %v3712 = vmul.f32 %v3689, %v3709
    %v3713 = vmul.f32 %v3690, %v3709
    %v3714 = vmul.f32 %v3691, %v3709
    %v3715 = vmul.f32 %v3692, %v3709
    %v3716 = vmul.f32 %v3693, %v3709
    %v3717 = vmul.f32 %v3694, %v3709
    %v3718 = vmul.f32 %v3695, %v3709
    %v3719 = vmul.f32 %v3696, %v3709
    %v3720 = vmul.f32 %v3697, %v3709
    %v3721 = vmul.f32 %v3698, %v3709
    %v3722 = vmul.f32 %v3699, %v3709
    %v3723 = vmul.f32 %v3700, %v3709
    %v3724 = vmul.f32 %v3701, %v3709
    %v3725 = vmul.f32 %v3702, %v3709
    %v3726 = vmul.f32 %v3703, %v3709
    %v3727 = vld [vmem:[%s19] sm:$0x1]
    %v3729 = vlaneseq
    %v3730 = vshrl.u32 %v3729, 7
    %v3731 = vsub.s32 0, %v3730
    %v3732 = vrot.slane %v3727, %v3731
    %v3734 = vadd.f32 %v3711, %v3732
    %v3735 = vadd.f32 %v3712, %v3732
    %v3736 = vadd.f32 %v3713, %v3732
    %v3737 = vadd.f32 %v3714, %v3732
    %v3738 = vadd.f32 %v3715, %v3732
    %v3739 = vadd.f32 %v3716, %v3732
    %v3740 = vadd.f32 %v3717, %v3732
    %v3741 = vadd.f32 %v3718, %v3732
    %v3742 = vadd.f32 %v3719, %v3732
    %v3743 = vadd.f32 %v3720, %v3732
    %v3744 = vadd.f32 %v3721, %v3732
    %v3745 = vadd.f32 %v3722, %v3732
    %v3746 = vadd.f32 %v3723, %v3732
    %v3747 = vadd.f32 %v3724, %v3732
    %v3748 = vadd.f32 %v3725, %v3732
    %v3749 = vadd.f32 %v3726, %v3732
    %v3750 = vld [vmem:[%s20] sm:$0x1]
    %v3751 = vld [vmem:[#allocation2] sm:$0x1]
    %3753 = vset.pattern.permute.xlu0 0
    %3754 = vperm.xlu0 %3753, %v3751
    %v3755 = vpop.permute.xlu0 %3754
    %v3757 = vlaneseq
    %v3758 = vshrl.u32 %v3757, 7
    %v3759 = vsub.s32 0, %v3758
    %v3760 = vrot.slane %v3755, %v3759
    %v3762 = vsel %vm387, %v3750, 0
    %v3765 = vsel %vm387, %v3734, 0
    %v3768 = vsel %vm387, %v3735, 0
    %v3771 = vsel %vm387, %v3736, 0
    %v3774 = vsel %vm387, %v3737, 0
    %v3777 = vsel %vm387, %v3738, 0
    %v3780 = vsel %vm387, %v3739, 0
    %v3783 = vsel %vm387, %v3740, 0
    %v3786 = vsel %vm387, %v3741, 0
    %v3789 = vsel %vm387, %v3742, 0
    %v3792 = vsel %vm387, %v3743, 0
    %v3795 = vsel %vm387, %v3744, 0
    %v3798 = vsel %vm387, %v3745, 0
    %v3801 = vsel %vm387, %v3746, 0
    %v3804 = vsel %vm387, %v3747, 0
    %v3807 = vsel %vm387, %v3748, 0
    %v3810 = vsel %vm387, %v3749, 0
    %3812 = vmatprep.subr.mxu0 0.0
    %3813 = vmatpush1.xpose.msra.mxu0 %v3810
    %3814 = vmatprep.subr.mxu0 0.0
    %3815 = vmatpush1.xpose.msra.mxu0 %v3807
    %3816 = vmatprep.subr.mxu0 0.0
    %3817 = vmatpush1.xpose.msra.mxu0 %v3804
    %3818 = vmatprep.subr.mxu0 0.0
    %3819 = vmatpush1.xpose.msra.mxu0 %v3801
    %3820 = vmatprep.subr.mxu0 0.0
    %3821 = vmatpush1.xpose.msra.mxu0 %v3798
    %3822 = vmatprep.subr.mxu0 0.0
    %3823 = vmatpush1.xpose.msra.mxu0 %v3795
    %3824 = vmatprep.subr.mxu0 0.0
    %3825 = vmatpush1.xpose.msra.mxu0 %v3792
    %3826 = vmatprep.subr.mxu0 0.0
    %3827 = vmatpush1.xpose.msra.mxu0 %v3789
    %3828 = vmatprep.subr.mxu0 0.0
    %3829 = vmatpush1.xpose.msra.mxu0 %v3786
    %3830 = vmatprep.subr.mxu0 0.0
    %3831 = vmatpush1.xpose.msra.mxu0 %v3783
    %3832 = vmatprep.subr.mxu0 0.0
    %3833 = vmatpush1.xpose.msra.mxu0 %v3780
    %3834 = vmatprep.subr.mxu0 0.0
    %3835 = vmatpush1.xpose.msra.mxu0 %v3777
    %3836 = vmatprep.subr.mxu0 0.0
    %3837 = vmatpush1.xpose.msra.mxu0 %v3774
    %3838 = vmatprep.subr.mxu0 0.0
    %3839 = vmatpush1.xpose.msra.mxu0 %v3771
    %3840 = vmatprep.subr.mxu0 0.0
    %3841 = vmatpush1.xpose.msra.mxu0 %v3768
    %3842 = vmatprep.subr.mxu0 0.0
    %3843 = vmatpush1.xpose.msra.mxu0 %v3765
    %3844 = vmatprep.subr.mxu0 0.0
    %3845 = vmatpush2.xpose.msra.mxu0 0.0
    %3846 = vmatprep.subr.mxu0 0.0
    %3847 = vmatpush2.xpose.msra.mxu0 0.0
    %3848 = vmatprep.subr.mxu0 0.0
    %3849 = vmatpush2.xpose.msra.mxu0 0.0
    %3850 = vmatprep.subr.mxu0 0.0
    %3851 = vmatpush2.xpose.msra.mxu0 0.0
    %3852 = vmatprep.subr.mxu0 0.0
    %3853 = vmatpush2.xpose.msra.mxu0 0.0
    %3854 = vmatprep.subr.mxu0 0.0
    %3855 = vmatpush2.xpose.msra.mxu0 0.0
    %3856 = vmatprep.subr.mxu0 0.0
    %3857 = vmatpush2.xpose.msra.mxu0 0.0
    %3858 = vmatprep.subr.mxu0 0.0
    %3859 = vmatpush2.xpose.msra.mxu0 0.0
    %3860 = vmatprep.subr.mxu0 0.0
    %3861 = vmatpush2.xpose.msra.mxu0 0.0
    %3862 = vmatprep.subr.mxu0 0.0
    %3863 = vmatpush2.xpose.msra.mxu0 0.0
    %3864 = vmatprep.subr.mxu0 0.0
    %3865 = vmatpush2.xpose.msra.mxu0 0.0
    %3866 = vmatprep.subr.mxu0 0.0
    %3867 = vmatpush2.xpose.msra.mxu0 0.0
    %3868 = vmatprep.subr.mxu0 0.0
    %3869 = vmatpush2.xpose.msra.mxu0 0.0
    %3870 = vmatprep.subr.mxu0 0.0
    %3871 = vmatpush2.xpose.msra.mxu0 0.0
    %3872 = vmatprep.subr.mxu0 0.0
    %3873 = vmatpush2.xpose.msra.mxu0 0.0
    %3874 = vmatprep.subr.mxu0 0.0
    %3875 = vmatpush2.xpose.msra.mxu0 0.0
    %3876 = vmatprep.mubr.f32.mxu0 0.0
    %3877 = vmatmul.mubr.f32.gmra.mxu0 %v3762
    %v3878 = vpop.f32.mrf.mxu0
    %v3879 = vadd.f32 %v3760, %v3878
    %v3880 = vpop.f32.mrf.mxu0
    %3881 = vdwg.mxu0
    %v3882 = vxor.u32 %v3879, 2147483648
    %v3883 = vmul.f32 %v3882, 1.442695
    %v3884 = vpow.pop %v3883
    %v3885 = vadd.f32 %v3884, 1.0
    %v3886 = vrcp.pop %v3885
    %v3887 = vmul.f32 1.0, %v3886
    %3888 = vst [vmem:[#allocation12] sm:$0x1] %v3887
    // Predicated region
    $region110: #{tpu_custom_call.1} parent=1 // pred_check
      _
    $region111: #{tpu_custom_call.1} parent=1 // pred_check_branch
      %3890 = sbr.rel (0) target = $region113
    $region112: #{tpu_custom_call.1} parent=1 // pred_region
      %s3892 = ssub.s32 16, 16
      %3893 = vsyncadd [#allocation5], %s3892
      %s3895 = sshll.u32 [#allocation12], 4
      %s3896 = int_to_ptr.vmem [resolvable:$true] %s3895
      %3898 = dma.vmem_to_hbm [thread:$0]  %s3896, 16, %s22, [#allocation5]
    $region113: #{tpu_custom_call.1} parent=1 // pred_fallthru
      _
    // Predicated region
    $region114: #{tpu_custom_call.1} parent=1 // pred_check
      _
    $region115: #{tpu_custom_call.1} parent=1 // pred_check_branch
      %3900 = sbr.rel (0) target = $region117
    $region116: #{tpu_custom_call.1} parent=1 // pred_region
      %3901 = dma.done [#allocation5], 16
    $region117: #{tpu_custom_call.1} parent=1 // pred_fallthru
      _
    %3902 = vsyncpa [#allocation4], 1
    %3903 = vsyncpa [#allocation7], 1
    %3904 = vsyncpa [#allocation10], 1
    %3905 = vsyncpa [#allocation5], 1

// kernel: tpu_custom_call.1
$region0: #{tpu_custom_call.1}
  #allocation0 [shape = 'u32[]', space=smem, size = 0x4, offset = 0x4, fixed_abs, tag = 'smem constant byte address 0x4 - core index']
  #allocation1 [shape = 'u32[144,128]{1,0:T(1,128)}', space=vmem, size = 0x12000, scoped, tag = 'internal scratch']
  #allocation2 [shape = 'f32[1,1]{1,0:T(1,128)S(1)}', space=vmem, size = 0x200, scoped, tag = 'scoped memory for tpu_custom_call.1']
  %s0 = inlined_call_operand.vmem [shape: bf16[16,8,64], index: 0, kind: input, shape index: {}]
  %s1 = inlined_call_operand.vmem [shape: s32[16,1,1], index: 1, kind: input, shape index: {}]
  %s2 = inlined_call_operand.vmem [shape: bf16[64,32], index: 2, kind: input, shape index: {}]
  %s3 = inlined_call_operand.vmem [shape: f32[1,32], index: 3, kind: input, shape index: {}]
  %s4 = inlined_call_operand.vmem [shape: bf16[32,32], index: 4, kind: input, shape index: {}]
  %s5 = inlined_call_operand.hbm [shape: f32[1,32], index: 5, kind: input, shape index: {}]
  %s6 = inlined_call_operand.hbm [shape: bf16[32,32], index: 6, kind: input, shape index: {}]
  %s7 = inlined_call_operand.hbm [shape: f32[1,32], index: 7, kind: input, shape index: {}]
  %s8 = inlined_call_operand.vmem [shape: bf16[32,32], index: 8, kind: input, shape index: {}]
  %s9 = inlined_call_operand.vmem [shape: f32[1,32], index: 9, kind: input, shape index: {}]
  %s10 = inlined_call_operand.hbm [shape: bf16[32,32], index: 10, kind: input, shape index: {}]
  %s11 = inlined_call_operand.vmem [shape: f32[1,32], index: 11, kind: input, shape index: {}]
  %s12 = inlined_call_operand.vmem [shape: f32[1,32], index: 12, kind: input, shape index: {}]
  %s13 = inlined_call_operand.vmem [shape: f32[1,32], index: 13, kind: input, shape index: {}]
  %s14 = inlined_call_operand.hbm [shape: bf16[32,64], index: 14, kind: input, shape index: {}]
  %s15 = inlined_call_operand.vmem [shape: f32[1,64], index: 15, kind: input, shape index: {}]
  %s16 = inlined_call_operand.vmem [shape: bf16[64,32], index: 16, kind: input, shape index: {}]
  %s17 = inlined_call_operand.vmem [shape: f32[1,32], index: 17, kind: input, shape index: {}]
  %s18 = inlined_call_operand.vmem [shape: f32[1,32], index: 18, kind: input, shape index: {}]
  %s19 = inlined_call_operand.vmem [shape: f32[1,32], index: 19, kind: input, shape index: {}]
  %s20 = inlined_call_operand.vmem [shape: f32[1,32], index: 20, kind: input, shape index: {}]
  %s21 = inlined_call_operand.<no memory space> [shape: f32[1,1], index: 21, kind: input, shape index: {}]
  %s22 = inlined_call_operand.hbm [shape: f32[1,128], index: 22, kind: output, shape index: {}]
  %s23 = sld [smem:[#allocation0]]
  $region118: #{tpu_custom_call.1} parent=0
    _
  %s25 = ssub.s32 1, %s23
  %s26 = scalar_select 0, %s25, %s23
  %v27 = vstv %s21
  %28 = vst [vmem:[#allocation2] sm:$0x1] %v27
  $region1: #{tpu_custom_call.1} parent=0
    #allocation3 [shape = 'u8[512]{0}', space=vmem, size = 0x400, scoped, tag = 'input window, operand 5, single buffered']
    #allocation4 [shape = 's32[1]{0}', space=sflag, size = 0x4, scoped, tag = 'scoped memory for tpu_custom_call.1']
    #allocation5 [shape = 's32[1]{0}', space=sflag, size = 0x4, scoped, tag = 'scoped memory for tpu_custom_call.1']
    #allocation6 [shape = 'u8[8192]{0}', space=vmem, size = 0x2000, scoped, tag = 'input window, operand 6, single buffered']
    #allocation7 [shape = 's32[1]{0}', space=sflag, size = 0x4, scoped, tag = 'scoped memory for tpu_custom_call.1']
    #allocation8 [shape = 'u8[512]{0}', space=vmem, size = 0x400, scoped, tag = 'input window, operand 7, single buffered']
    #allocation9 [shape = 'u8[8192]{0}', space=vmem, size = 0x2000, scoped, tag = 'input window, operand 10, single buffered']
    #allocation10 [shape = 's32[1]{0}', space=sflag, size = 0x4, scoped, tag = 'scoped memory for tpu_custom_call.1']
    #allocation11 [shape = 'u8[8192]{0}', space=vmem, size = 0x2000, scoped, tag = 'input window, operand 14, single buffered']
    #allocation12 [shape = 'u8[512]{0}', space=vmem, size = 0x400, scoped, tag = 'output window, operand 0, single buffered']
    %29 = vsyncpa [#allocation4], 0
    %30 = vsyncpa [#allocation7], 0
    %31 = vsyncpa [#allocation10], 0
    %32 = vsyncpa [#allocation5], 0
    // Predicated region
    $region2: #{tpu_custom_call.1} parent=1 // pred_check
      _
    $region3: #{tpu_custom_call.1} parent=1 // pred_check_branch
      %34 = sbr.rel (0) target = $region5
    $region4: #{tpu_custom_call.1} parent=1 // pred_region
      _
    $region5: #{tpu_custom_call.1} parent=1 // pred_fallthru
      _
    // Predicated region
    $region6: #{tpu_custom_call.1} parent=1 // pred_check
      _
    $region7: #{tpu_custom_call.1} parent=1 // pred_check_branch
      %36 = sbr.rel (0) target = $region9
    $region8: #{tpu_custom_call.1} parent=1 // pred_region
      _
    $region9: #{tpu_custom_call.1} parent=1 // pred_fallthru
      _
    // Predicated region
    $region10: #{tpu_custom_call.1} parent=1 // pred_check
      _
    $region11: #{tpu_custom_call.1} parent=1 // pred_check_branch
      %38 = sbr.rel (0) target = $region13
    $region12: #{tpu_custom_call.1} parent=1 // pred_region
      _
    $region13: #{tpu_custom_call.1} parent=1 // pred_fallthru
      _
    // Predicated region
    $region14: #{tpu_custom_call.1} parent=1 // pred_check
      _
    $region15: #{tpu_custom_call.1} parent=1 // pred_check_branch
      %40 = sbr.rel (0) target = $region17
    $region16: #{tpu_custom_call.1} parent=1 // pred_region
      _
    $region17: #{tpu_custom_call.1} parent=1 // pred_fallthru
      _
    // Predicated region
    $region18: #{tpu_custom_call.1} parent=1 // pred_check
      _
    $region19: #{tpu_custom_call.1} parent=1 // pred_check_branch
      %42 = sbr.rel (0) target = $region21
    $region20: #{tpu_custom_call.1} parent=1 // pred_region
      _
    $region21: #{tpu_custom_call.1} parent=1 // pred_fallthru
      _
    // Predicated region
    $region22: #{tpu_custom_call.1} parent=1 // pred_check
      _
    $region23: #{tpu_custom_call.1} parent=1 // pred_check_branch
      %44 = sbr.rel (0) target = $region25
    $region24: #{tpu_custom_call.1} parent=1 // pred_region
      %s46 = ssub.s32 16, 16
      %47 = vsyncadd [#allocation4], %s46
      %s49 = sshll.u32 [#allocation3], 4
      %s50 = int_to_ptr.vmem [resolvable:$true] %s49
      %52 = dma.hbm_to_vmem [thread:$0]  %s5, 16, %s50, [#allocation4]
    $region25: #{tpu_custom_call.1} parent=1 // pred_fallthru
      _
    // Predicated region
    $region26: #{tpu_custom_call.1} parent=1 // pred_check
      _
    $region27: #{tpu_custom_call.1} parent=1 // pred_check_branch
      %54 = sbr.rel (0) target = $region29
    $region28: #{tpu_custom_call.1} parent=1 // pred_region
      %s56 = ssub.s32 256, 256
      %57 = vsyncadd [#allocation7], %s56
      %s58 = sshll.u32 [#allocation6], 4
      %s59 = int_to_ptr.vmem [resolvable:$true] %s58
      %64 = dma.hbm_to_vmem [thread:$0]  %s6, 256, %s59, [#allocation7], 64, 64, 4
    $region29: #{tpu_custom_call.1} parent=1 // pred_fallthru
      _
    // Predicated region
    $region30: #{tpu_custom_call.1} parent=1 // pred_check
      _
    $region31: #{tpu_custom_call.1} parent=1 // pred_check_branch
      %66 = sbr.rel (0) target = $region33
    $region32: #{tpu_custom_call.1} parent=1 // pred_region
      %s68 = ssub.s32 16, 16
      %69 = vsyncadd [#allocation7], %s68
      %s71 = sshll.u32 [#allocation8], 4
      %s72 = int_to_ptr.vmem [resolvable:$true] %s71
      %74 = dma.hbm_to_vmem [thread:$0]  %s7, 16, %s72, [#allocation7]
    $region33: #{tpu_custom_call.1} parent=1 // pred_fallthru
      _
    // Predicated region
    $region34: #{tpu_custom_call.1} parent=1 // pred_check
      _
    $region35: #{tpu_custom_call.1} parent=1 // pred_check_branch
      %76 = sbr.rel (0) target = $region37
    $region36: #{tpu_custom_call.1} parent=1 // pred_region
      _
    $region37: #{tpu_custom_call.1} parent=1 // pred_fallthru
      _
    // Predicated region
    $region38: #{tpu_custom_call.1} parent=1 // pred_check
      _
    $region39: #{tpu_custom_call.1} parent=1 // pred_check_branch
      %78 = sbr.rel (0) target = $region41
    $region40: #{tpu_custom_call.1} parent=1 // pred_region
      _
    $region41: #{tpu_custom_call.1} parent=1 // pred_fallthru
      _
    // Predicated region
    $region42: #{tpu_custom_call.1} parent=1 // pred_check
      _
    $region43: #{tpu_custom_call.1} parent=1 // pred_check_branch
      %80 = sbr.rel (0) target = $region45
    $region44: #{tpu_custom_call.1} parent=1 // pred_region
      %s82 = ssub.s32 256, 256
      %83 = vsyncadd [#allocation10], %s82
      %s84 = sshll.u32 [#allocation9], 4
      %s85 = int_to_ptr.vmem [resolvable:$true] %s84
      %90 = dma.hbm_to_vmem [thread:$0]  %s10, 256, %s85, [#allocation10], 64, 64, 4
    $region45: #{tpu_custom_call.1} parent=1 // pred_fallthru
      _
    // Predicated region
    $region46: #{tpu_custom_call.1} parent=1 // pred_check
      _
    $region47: #{tpu_custom_call.1} parent=1 // pred_check_branch
      %92 = sbr.rel (0) target = $region49
    $region48: #{tpu_custom_call.1} parent=1 // pred_region
      _
    $region49: #{tpu_custom_call.1} parent=1 // pred_fallthru
      _
    // Predicated region
    $region50: #{tpu_custom_call.1} parent=1 // pred_check
      _
    $region51: #{tpu_custom_call.1} parent=1 // pred_check_branch
      %94 = sbr.rel (0) target = $region53
    $region52: #{tpu_custom_call.1} parent=1 // pred_region
      _
    $region53: #{tpu_custom_call.1} parent=1 // pred_fallthru
      _
    // Predicated region
    $region54: #{tpu_custom_call.1} parent=1 // pred_check
      _
    $region55: #{tpu_custom_call.1} parent=1 // pred_check_branch
      %96 = sbr.rel (0) target = $region57
    $region56: #{tpu_custom_call.1} parent=1 // pred_region
      _
    $region57: #{tpu_custom_call.1} parent=1 // pred_fallthru
      _
    // Predicated region
    $region58: #{tpu_custom_call.1} parent=1 // pred_check
      _
    $region59: #{tpu_custom_call.1} parent=1 // pred_check_branch
      %98 = sbr.rel (0) target = $region61
    $region60: #{tpu_custom_call.1} parent=1 // pred_region
      %s100 = ssub.s32 256, 256
      %101 = vsyncadd [#allocation10], %s100
      %s102 = sshll.u32 [#allocation11], 4
      %s103 = int_to_ptr.vmem [resolvable:$true] %s102
      %108 = dma.hbm_to_vmem [thread:$0]  %s14, 256, %s103, [#allocation10], 64, 64, 4
    $region61: #{tpu_custom_call.1} parent=1 // pred_fallthru
      _
    // Predicated region
    $region62: #{tpu_custom_call.1} parent=1 // pred_check
      _
    $region63: #{tpu_custom_call.1} parent=1 // pred_check_branch
      %110 = sbr.rel (0) target = $region65
    $region64: #{tpu_custom_call.1} parent=1 // pred_region
      _
    $region65: #{tpu_custom_call.1} parent=1 // pred_fallthru
      _
    // Predicated region
    $region66: #{tpu_custom_call.1} parent=1 // pred_check
      _
    $region67: #{tpu_custom_call.1} parent=1 // pred_check_branch
      %112 = sbr.rel (0) target = $region69
    $region68: #{tpu_custom_call.1} parent=1 // pred_region
      _
    $region69: #{tpu_custom_call.1} parent=1 // pred_fallthru
      _
    // Predicated region
    $region70: #{tpu_custom_call.1} parent=1 // pred_check
      _
    $region71: #{tpu_custom_call.1} parent=1 // pred_check_branch
      %114 = sbr.rel (0) target = $region73
    $region72: #{tpu_custom_call.1} parent=1 // pred_region
      _
    $region73: #{tpu_custom_call.1} parent=1 // pred_fallthru
      _
    // Predicated region
    $region74: #{tpu_custom_call.1} parent=1 // pred_check
      _
    $region75: #{tpu_custom_call.1} parent=1 // pred_check_branch
      %116 = sbr.rel (0) target = $region77
    $region76: #{tpu_custom_call.1} parent=1 // pred_region
      _
    $region77: #{tpu_custom_call.1} parent=1 // pred_fallthru
      _
    // Predicated region
    $region78: #{tpu_custom_call.1} parent=1 // pred_check
      _
    $region79: #{tpu_custom_call.1} parent=1 // pred_check_branch
      %118 = sbr.rel (0) target = $region81
    $region80: #{tpu_custom_call.1} parent=1 // pred_region
      _
    $region81: #{tpu_custom_call.1} parent=1 // pred_fallthru
      _
    // Predicated region
    $region82: #{tpu_custom_call.1} parent=1 // pred_check
      _
    $region83: #{tpu_custom_call.1} parent=1 // pred_check_branch
      %120 = sbr.rel (0) target = $region85
    $region84: #{tpu_custom_call.1} parent=1 // pred_region
      _
    $region85: #{tpu_custom_call.1} parent=1 // pred_fallthru
      _
    // Predicated region
    $region86: #{tpu_custom_call.1} parent=1 // pred_check
      _
    $region87: #{tpu_custom_call.1} parent=1 // pred_check_branch
      %122 = sbr.rel (0) target = $region89
    $region88: #{tpu_custom_call.1} parent=1 // pred_region
      _
    $region89: #{tpu_custom_call.1} parent=1 // pred_fallthru
      _
    // Predicated region
    $region90: #{tpu_custom_call.1} parent=1 // pred_check
      _
    $region91: #{tpu_custom_call.1} parent=1 // pred_check_branch
      %124 = sbr.rel (0) target = $region93
    $region92: #{tpu_custom_call.1} parent=1 // pred_region
      %125 = dma.done [#allocation4], 16
    $region93: #{tpu_custom_call.1} parent=1 // pred_fallthru
      _
    // Predicated region
    $region94: #{tpu_custom_call.1} parent=1 // pred_check
      _
    $region95: #{tpu_custom_call.1} parent=1 // pred_check_branch
      %127 = sbr.rel (0) target = $region97
    $region96: #{tpu_custom_call.1} parent=1 // pred_region
      %128 = dma.done [#allocation7], 256
    $region97: #{tpu_custom_call.1} parent=1 // pred_fallthru
      _
    // Predicated region
    $region98: #{tpu_custom_call.1} parent=1 // pred_check
      _
    $region99: #{tpu_custom_call.1} parent=1 // pred_check_branch
      %130 = sbr.rel (0) target = $region101
    $region100: #{tpu_custom_call.1} parent=1 // pred_region
      %131 = dma.done [#allocation7], 16
    $region101: #{tpu_custom_call.1} parent=1 // pred_fallthru
      _
    // Predicated region
    $region102: #{tpu_custom_call.1} parent=1 // pred_check
      _
    $region103: #{tpu_custom_call.1} parent=1 // pred_check_branch
      %133 = sbr.rel (0) target = $region105
    $region104: #{tpu_custom_call.1} parent=1 // pred_region
      %134 = dma.done [#allocation10], 256
    $region105: #{tpu_custom_call.1} parent=1 // pred_fallthru
      _
    // Predicated region
    $region106: #{tpu_custom_call.1} parent=1 // pred_check
      _
    $region107: #{tpu_custom_call.1} parent=1 // pred_check_branch
      %136 = sbr.rel (0) target = $region109
    $region108: #{tpu_custom_call.1} parent=1 // pred_region
      %137 = dma.done [#allocation10], 256
    $region109: #{tpu_custom_call.1} parent=1 // pred_fallthru
      _
    %v139 = vld [vmem:[%s0] sm:$0xf]
    %v140 = vld [vmem:[%s0 + $0x4] sm:$0xf]
    %v141 = vld [vmem:[%s0 + $0x8] sm:$0xf]
    %v142 = vld [vmem:[%s0 + $0xc] sm:$0xf]
    %v143 = vld [vmem:[%s0 + $0x10] sm:$0xf]
    %v144 = vld [vmem:[%s0 + $0x14] sm:$0xf]
    %v145 = vld [vmem:[%s0 + $0x18] sm:$0xf]
    %v146 = vld [vmem:[%s0 + $0x1c] sm:$0xf]
    %v147 = vld [vmem:[%s0 + $0x20] sm:$0xf]
    %v148 = vld [vmem:[%s0 + $0x24] sm:$0xf]
    %v149 = vld [vmem:[%s0 + $0x28] sm:$0xf]
    %v150 = vld [vmem:[%s0 + $0x2c] sm:$0xf]
    %v151 = vld [vmem:[%s0 + $0x30] sm:$0xf]
    %v152 = vld [vmem:[%s0 + $0x34] sm:$0xf]
    %v153 = vld [vmem:[%s0 + $0x38] sm:$0xf]
    %v154 = vld [vmem:[%s0 + $0x3c] sm:$0xf]
    %v155 = vld [vmem:[%s2] sm:$0xf]
    %v156 = vld [vmem:[%s2 + $0x4] sm:$0xf]
    %v157 = vld [vmem:[%s2 + $0x8] sm:$0xf]
    %v158 = vld [vmem:[%s2 + $0xc] sm:$0xf]
    %v159 = vld [vmem:[%s2 + $0x10] sm:$0xf]
    %v160 = vld [vmem:[%s2 + $0x14] sm:$0xf]
    %v161 = vld [vmem:[%s2 + $0x18] sm:$0xf]
    %v162 = vld [vmem:[%s2 + $0x1c] sm:$0xf]
    %v163 = vld [vmem:[%s3] sm:$0x1]
    %v165 = vlaneseq
    %v166 = vshrl.u32 %v165, 7
    %v167 = vsub.s32 0, %v166
    %v168 = vrot.slane %v163, %v167
    %v186 = vunpack.c.l.b16 %v139
    %v187 = vunpack.c.l.b16 %v140
    %v188 = vunpack.c.l.b16 %v141
    %v189 = vunpack.c.l.b16 %v142
    %v190 = vunpack.c.l.b16 %v143
    %v191 = vunpack.c.l.b16 %v144
    %v192 = vunpack.c.l.b16 %v145
    %v193 = vunpack.c.l.b16 %v146
    %v194 = vunpack.c.l.b16 %v147
    %v195 = vunpack.c.l.b16 %v148
    %v196 = vunpack.c.l.b16 %v149
    %v197 = vunpack.c.l.b16 %v150
    %v198 = vunpack.c.l.b16 %v151
    %v199 = vunpack.c.l.b16 %v152
    %v200 = vunpack.c.l.b16 %v153
    %v201 = vunpack.c.l.b16 %v154
    %v202 = vpack.c.b16 %v187, %v186
    %v203 = vpack.c.b16 %v189, %v188
    %v204 = vpack.c.b16 %v191, %v190
    %v205 = vpack.c.b16 %v193, %v192
    %v206 = vpack.c.b16 %v195, %v194
    %v207 = vpack.c.b16 %v197, %v196
    %v208 = vpack.c.b16 %v199, %v198
    %v209 = vpack.c.b16 %v201, %v200
    %v218 = vunpack.c.l.b16 %v155
    %v219 = vunpack.c.l.b16 %v156
    %v220 = vunpack.c.l.b16 %v157
    %v221 = vunpack.c.l.b16 %v158
    %v222 = vunpack.c.l.b16 %v159
    %v223 = vunpack.c.l.b16 %v160
    %v224 = vunpack.c.l.b16 %v161
    %v225 = vunpack.c.l.b16 %v162
    %v226 = vpack.c.b16 %v219, %v218
    %v227 = vpack.c.b16 %v221, %v220
    %v228 = vpack.c.b16 %v223, %v222
    %v229 = vpack.c.b16 %v225, %v224
    %vm234 = vcmask 523264
    %v236 = vsel %vm234, %v202, 0
    %v239 = vsel %vm234, %v203, 0
    %v242 = vsel %vm234, %v204, 0
    %v245 = vsel %vm234, %v205, 0
    %v248 = vsel %vm234, %v206, 0
    %v251 = vsel %vm234, %v207, 0
    %v254 = vsel %vm234, %v208, 0
    %v257 = vsel %vm234, %v209, 0
    %259 = vmatprep.subr.bf16.mxu0 0
    %260 = vmatpush1.bf16.msra.mxu0 0
    %261 = vmatprep.subr.bf16.mxu0 0
    %262 = vmatpush1.bf16.msra.mxu0 0
    %263 = vmatprep.subr.bf16.mxu0 0
    %264 = vmatpush1.bf16.msra.mxu0 0
    %265 = vmatprep.subr.bf16.mxu0 0
    %266 = vmatpush1.bf16.msra.mxu0 0
    %267 = vmatprep.subr.bf16.mxu0 0
    %268 = vmatpush1.bf16.msra.mxu0 %v229
    %269 = vmatprep.subr.bf16.mxu0 0
    %270 = vmatpush1.bf16.msra.mxu0 %v228
    %271 = vmatprep.subr.bf16.mxu0 0
    %272 = vmatpush1.bf16.msra.mxu0 %v227
    %273 = vmatprep.subr.bf16.mxu0 0
    %274 = vmatpush1.bf16.msra.mxu0 %v226
    %275 = vmatprep.subr.bf16.mxu0 0
    %276 = vmatpush2.bf16.msra.mxu0 0
    %277 = vmatprep.subr.bf16.mxu0 0
    %278 = vmatpush2.bf16.msra.mxu0 0
    %279 = vmatprep.subr.bf16.mxu0 0
    %280 = vmatpush2.bf16.msra.mxu0 0
    %281 = vmatprep.subr.bf16.mxu0 0
    %282 = vmatpush2.bf16.msra.mxu0 0
    %283 = vmatprep.subr.bf16.mxu0 0
    %284 = vmatpush2.bf16.msra.mxu0 0
    %285 = vmatprep.subr.bf16.mxu0 0
    %286 = vmatpush2.bf16.msra.mxu0 0
    %287 = vmatprep.subr.bf16.mxu0 0
    %288 = vmatpush2.bf16.msra.mxu0 0
    %289 = vmatprep.subr.bf16.mxu0 0
    %290 = vmatpush2.bf16.msra.mxu0 0
    %291 = vmatprep.mubr.bf16.mxu0 0
    %292 = vmatmul.mubr.bf16.gmra.mxu0 %v236
    %v293 = vpop.f32.mrf.mxu0
    %v294 = vadd.f32 %v168, %v293
    %v295 = vpop.f32.mrf.mxu0
    %v296 = vpop.f32.mrf.mxu0
    %v297 = vadd.f32 %v168, %v296
    %v298 = vpop.f32.mrf.mxu0
    %299 = vmatprep.mubr.bf16.mxu0 0
    %300 = vmatmul.mubr.bf16.gmra.mxu0 %v239
    %v301 = vpop.f32.mrf.mxu0
    %v302 = vadd.f32 %v168, %v301
    %v303 = vpop.f32.mrf.mxu0
    %v304 = vpop.f32.mrf.mxu0
    %v305 = vadd.f32 %v168, %v304
    %v306 = vpop.f32.mrf.mxu0
    %307 = vmatprep.mubr.bf16.mxu0 0
    %308 = vmatmul.mubr.bf16.gmra.mxu0 %v242
    %v309 = vpop.f32.mrf.mxu0
    %v310 = vadd.f32 %v168, %v309
    %v311 = vpop.f32.mrf.mxu0
    %v312 = vpop.f32.mrf.mxu0
    %v313 = vadd.f32 %v168, %v312
    %v314 = vpop.f32.mrf.mxu0
    %315 = vmatprep.mubr.bf16.mxu0 0
    %316 = vmatmul.mubr.bf16.gmra.mxu0 %v245
    %v317 = vpop.f32.mrf.mxu0
    %v318 = vadd.f32 %v168, %v317
    %v319 = vpop.f32.mrf.mxu0
    %v320 = vpop.f32.mrf.mxu0
    %v321 = vadd.f32 %v168, %v320
    %v322 = vpop.f32.mrf.mxu0
    %323 = vmatprep.mubr.bf16.mxu0 0
    %324 = vmatmul.mubr.bf16.gmra.mxu0 %v248
    %v325 = vpop.f32.mrf.mxu0
    %v326 = vadd.f32 %v168, %v325
    %v327 = vpop.f32.mrf.mxu0
    %v328 = vpop.f32.mrf.mxu0
    %v329 = vadd.f32 %v168, %v328
    %v330 = vpop.f32.mrf.mxu0
    %331 = vmatprep.mubr.bf16.mxu0 0
    %332 = vmatmul.mubr.bf16.gmra.mxu0 %v251
    %v333 = vpop.f32.mrf.mxu0
    %v334 = vadd.f32 %v168, %v333
    %v335 = vpop.f32.mrf.mxu0
    %v336 = vpop.f32.mrf.mxu0
    %v337 = vadd.f32 %v168, %v336
    %v338 = vpop.f32.mrf.mxu0
    %339 = vmatprep.mubr.bf16.mxu0 0
    %340 = vmatmul.mubr.bf16.gmra.mxu0 %v254
    %v341 = vpop.f32.mrf.mxu0
    %v342 = vadd.f32 %v168, %v341
    %v343 = vpop.f32.mrf.mxu0
    %v344 = vpop.f32.mrf.mxu0
    %v345 = vadd.f32 %v168, %v344
    %v346 = vpop.f32.mrf.mxu0
    %347 = vmatprep.mubr.bf16.mxu0 0
    %348 = vmatmul.mubr.bf16.gmra.mxu0 %v257
    %v349 = vpop.f32.mrf.mxu0
    %v350 = vadd.f32 %v168, %v349
    %v351 = vpop.f32.mrf.mxu0
    %v352 = vpop.f32.mrf.mxu0
    %v353 = vadd.f32 %v168, %v352
    %v354 = vpop.f32.mrf.mxu0
    %355 = vdwg.mxu0
    %v356 = vpack.c.bf16 %v297, %v294
    %v357 = vpack.c.bf16 %v305, %v302
    %v358 = vpack.c.bf16 %v313, %v310
    %v359 = vpack.c.bf16 %v321, %v318
    %v360 = vpack.c.bf16 %v329, %v326
    %v361 = vpack.c.bf16 %v337, %v334
    %v362 = vpack.c.bf16 %v345, %v342
    %v363 = vpack.c.bf16 %v353, %v350
    %v364 = vld [vmem:[%s4] sm:$0xf]
    %v365 = vld [vmem:[%s4 + $0x4] sm:$0xf]
    %v366 = vld [vmem:[%s4 + $0x8] sm:$0xf]
    %v367 = vld [vmem:[%s4 + $0xc] sm:$0xf]
    %v368 = vld [vmem:[#allocation3] sm:$0x1]
    %v370 = vlaneseq
    %v371 = vshrl.u32 %v370, 7
    %v372 = vsub.s32 0, %v371
    %v373 = vrot.slane %v368, %v372
    %v379 = vunpack.c.l.b16 %v364
    %v380 = vunpack.c.l.b16 %v365
    %v381 = vunpack.c.l.b16 %v366
    %v382 = vunpack.c.l.b16 %v367
    %v383 = vpack.c.b16 %v380, %v379
    %v384 = vpack.c.b16 %v382, %v381
    %vm387 = vcmask 261120
    %v389 = vsel %vm387, %v356, 0
    %v392 = vsel %vm387, %v357, 0
    %v395 = vsel %vm387, %v358, 0
    %v398 = vsel %vm387, %v359, 0
    %v401 = vsel %vm387, %v360, 0
    %v404 = vsel %vm387, %v361, 0
    %v407 = vsel %vm387, %v362, 0
    %v410 = vsel %vm387, %v363, 0
    %412 = vmatprep.subr.bf16.mxu0 0
    %413 = vmatpush1.bf16.msra.mxu0 0
    %414 = vmatprep.subr.bf16.mxu0 0
    %415 = vmatpush1.bf16.msra.mxu0 0
    %416 = vmatprep.subr.bf16.mxu0 0
    %417 = vmatpush1.bf16.msra.mxu0 0
    %418 = vmatprep.subr.bf16.mxu0 0
    %419 = vmatpush1.bf16.msra.mxu0 0
    %420 = vmatprep.subr.bf16.mxu0 0
    %421 = vmatpush1.bf16.msra.mxu0 0
    %422 = vmatprep.subr.bf16.mxu0 0
    %423 = vmatpush1.bf16.msra.mxu0 0
    %424 = vmatprep.subr.bf16.mxu0 0
    %425 = vmatpush1.bf16.msra.mxu0 %v384
    %426 = vmatprep.subr.bf16.mxu0 0
    %427 = vmatpush1.bf16.msra.mxu0 %v383
    %428 = vmatprep.subr.bf16.mxu0 0
    %429 = vmatpush2.bf16.msra.mxu0 0
    %430 = vmatprep.subr.bf16.mxu0 0
    %431 = vmatpush2.bf16.msra.mxu0 0
    %432 = vmatprep.subr.bf16.mxu0 0
    %433 = vmatpush2.bf16.msra.mxu0 0
    %434 = vmatprep.subr.bf16.mxu0 0
    %435 = vmatpush2.bf16.msra.mxu0 0
    %436 = vmatprep.subr.bf16.mxu0 0
    %437 = vmatpush2.bf16.msra.mxu0 0
    %438 = vmatprep.subr.bf16.mxu0 0
    %439 = vmatpush2.bf16.msra.mxu0 0
    %440 = vmatprep.subr.bf16.mxu0 0
    %441 = vmatpush2.bf16.msra.mxu0 0
    %442 = vmatprep.subr.bf16.mxu0 0
    %443 = vmatpush2.bf16.msra.mxu0 0
    %444 = vmatprep.mubr.bf16.mxu0 0
    %445 = vmatmul.mubr.bf16.gmra.mxu0 %v389
    %v446 = vpop.f32.mrf.mxu0
    %v447 = vadd.f32 %v373, %v446
    %v448 = vpop.f32.mrf.mxu0
    %v449 = vpop.f32.mrf.mxu0
    %v450 = vadd.f32 %v373, %v449
    %v451 = vpop.f32.mrf.mxu0
    %452 = vmatprep.mubr.bf16.mxu0 0
    %453 = vmatmul.mubr.bf16.gmra.mxu0 %v392
    %v454 = vpop.f32.mrf.mxu0
    %v455 = vadd.f32 %v373, %v454
    %v456 = vpop.f32.mrf.mxu0
    %v457 = vpop.f32.mrf.mxu0
    %v458 = vadd.f32 %v373, %v457
    %v459 = vpop.f32.mrf.mxu0
    %460 = vmatprep.mubr.bf16.mxu0 0
    %461 = vmatmul.mubr.bf16.gmra.mxu0 %v395
    %v462 = vpop.f32.mrf.mxu0
    %v463 = vadd.f32 %v373, %v462
    %v464 = vpop.f32.mrf.mxu0
    %v465 = vpop.f32.mrf.mxu0
    %v466 = vadd.f32 %v373, %v465
    %v467 = vpop.f32.mrf.mxu0
    %468 = vmatprep.mubr.bf16.mxu0 0
    %469 = vmatmul.mubr.bf16.gmra.mxu0 %v398
    %v470 = vpop.f32.mrf.mxu0
    %v471 = vadd.f32 %v373, %v470
    %v472 = vpop.f32.mrf.mxu0
    %v473 = vpop.f32.mrf.mxu0
    %v474 = vadd.f32 %v373, %v473
    %v475 = vpop.f32.mrf.mxu0
    %476 = vmatprep.mubr.bf16.mxu0 0
    %477 = vmatmul.mubr.bf16.gmra.mxu0 %v401
    %v478 = vpop.f32.mrf.mxu0
    %v479 = vadd.f32 %v373, %v478
    %v480 = vpop.f32.mrf.mxu0
    %v481 = vpop.f32.mrf.mxu0
    %v482 = vadd.f32 %v373, %v481
    %v483 = vpop.f32.mrf.mxu0
    %484 = vmatprep.mubr.bf16.mxu0 0
    %485 = vmatmul.mubr.bf16.gmra.mxu0 %v404
    %v486 = vpop.f32.mrf.mxu0
    %v487 = vadd.f32 %v373, %v486
    %v488 = vpop.f32.mrf.mxu0
    %v489 = vpop.f32.mrf.mxu0
    %v490 = vadd.f32 %v373, %v489
    %v491 = vpop.f32.mrf.mxu0
    %492 = vmatprep.mubr.bf16.mxu0 0
    %493 = vmatmul.mubr.bf16.gmra.mxu0 %v407
    %v494 = vpop.f32.mrf.mxu0
    %v495 = vadd.f32 %v373, %v494
    %v496 = vpop.f32.mrf.mxu0
    %v497 = vpop.f32.mrf.mxu0
    %v498 = vadd.f32 %v373, %v497
    %v499 = vpop.f32.mrf.mxu0
    %500 = vmatprep.mubr.bf16.mxu0 0
    %501 = vmatmul.mubr.bf16.gmra.mxu0 %v410
    %v502 = vpop.f32.mrf.mxu0
    %v503 = vadd.f32 %v373, %v502
    %v504 = vpop.f32.mrf.mxu0
    %v505 = vpop.f32.mrf.mxu0
    %v506 = vadd.f32 %v373, %v505
    %v507 = vpop.f32.mrf.mxu0
    %508 = vdwg.mxu0
    %v509 = vld [vmem:[#allocation6] sm:$0xf]
    %v510 = vld [vmem:[#allocation6 + $0x4] sm:$0xf]
    %v511 = vld [vmem:[#allocation6 + $0x8] sm:$0xf]
    %v512 = vld [vmem:[#allocation6 + $0xc] sm:$0xf]
    %v513 = vld [vmem:[#allocation8] sm:$0x1]
    %v515 = vlaneseq
    %v516 = vshrl.u32 %v515, 7
    %v517 = vsub.s32 0, %v516
    %v518 = vrot.slane %v513, %v517
    %v524 = vunpack.c.l.b16 %v509
    %v525 = vunpack.c.l.b16 %v510
    %v526 = vunpack.c.l.b16 %v511
    %v527 = vunpack.c.l.b16 %v512
    %v528 = vpack.c.b16 %v525, %v524
    %v529 = vpack.c.b16 %v527, %v526
    %532 = vmatprep.subr.bf16.mxu0 0
    %533 = vmatpush1.bf16.msra.mxu0 0
    %534 = vmatprep.subr.bf16.mxu0 0
    %535 = vmatpush1.bf16.msra.mxu0 0
    %536 = vmatprep.subr.bf16.mxu0 0
    %537 = vmatpush1.bf16.msra.mxu0 0
    %538 = vmatprep.subr.bf16.mxu0 0
    %539 = vmatpush1.bf16.msra.mxu0 0
    %540 = vmatprep.subr.bf16.mxu0 0
    %541 = vmatpush1.bf16.msra.mxu0 0
    %542 = vmatprep.subr.bf16.mxu0 0
    %543 = vmatpush1.bf16.msra.mxu0 0
    %544 = vmatprep.subr.bf16.mxu0 0
    %545 = vmatpush1.bf16.msra.mxu0 %v529
    %546 = vmatprep.subr.bf16.mxu0 0
    %547 = vmatpush1.bf16.msra.mxu0 %v528
    %548 = vmatprep.subr.bf16.mxu0 0
    %549 = vmatpush2.bf16.msra.mxu0 0
    %550 = vmatprep.subr.bf16.mxu0 0
    %551 = vmatpush2.bf16.msra.mxu0 0
    %552 = vmatprep.subr.bf16.mxu0 0
    %553 = vmatpush2.bf16.msra.mxu0 0
    %554 = vmatprep.subr.bf16.mxu0 0
    %555 = vmatpush2.bf16.msra.mxu0 0
    %556 = vmatprep.subr.bf16.mxu0 0
    %557 = vmatpush2.bf16.msra.mxu0 0
    %558 = vmatprep.subr.bf16.mxu0 0
    %559 = vmatpush2.bf16.msra.mxu0 0
    %560 = vmatprep.subr.bf16.mxu0 0
    %561 = vmatpush2.bf16.msra.mxu0 0
    %562 = vmatprep.subr.bf16.mxu0 0
    %563 = vmatpush2.bf16.msra.mxu0 0
    %564 = vmatprep.mubr.bf16.mxu0 0
    %565 = vmatmul.mubr.bf16.gmra.mxu0 %v389
    %v566 = vpop.f32.mrf.mxu0
    %v567 = vadd.f32 %v518, %v566
    %v568 = vpop.f32.mrf.mxu0
    %v569 = vpop.f32.mrf.mxu0
    %v570 = vadd.f32 %v518, %v569
    %v571 = vpop.f32.mrf.mxu0
    %572 = vmatprep.mubr.bf16.mxu0 0
    %573 = vmatmul.mubr.bf16.gmra.mxu0 %v392
    %v574 = vpop.f32.mrf.mxu0
    %v575 = vadd.f32 %v518, %v574
    %v576 = vpop.f32.mrf.mxu0
    %v577 = vpop.f32.mrf.mxu0
    %v578 = vadd.f32 %v518, %v577
    %v579 = vpop.f32.mrf.mxu0
    %580 = vmatprep.mubr.bf16.mxu0 0
    %581 = vmatmul.mubr.bf16.gmra.mxu0 %v395
    %v582 = vpop.f32.mrf.mxu0
    %v583 = vadd.f32 %v518, %v582
    %v584 = vpop.f32.mrf.mxu0
    %v585 = vpop.f32.mrf.mxu0
    %v586 = vadd.f32 %v518, %v585
    %v587 = vpop.f32.mrf.mxu0
    %588 = vmatprep.mubr.bf16.mxu0 0
    %589 = vmatmul.mubr.bf16.gmra.mxu0 %v398
    %v590 = vpop.f32.mrf.mxu0
    %v591 = vadd.f32 %v518, %v590
    %v592 = vpop.f32.mrf.mxu0
    %v593 = vpop.f32.mrf.mxu0
    %v594 = vadd.f32 %v518, %v593
    %v595 = vpop.f32.mrf.mxu0
    %596 = vmatprep.mubr.bf16.mxu0 0
    %597 = vmatmul.mubr.bf16.gmra.mxu0 %v401
    %v598 = vpop.f32.mrf.mxu0
    %v599 = vadd.f32 %v518, %v598
    %v600 = vpop.f32.mrf.mxu0
    %v601 = vpop.f32.mrf.mxu0
    %v602 = vadd.f32 %v518, %v601
    %v603 = vpop.f32.mrf.mxu0
    %604 = vmatprep.mubr.bf16.mxu0 0
    %605 = vmatmul.mubr.bf16.gmra.mxu0 %v404
    %v606 = vpop.f32.mrf.mxu0
    %v607 = vadd.f32 %v518, %v606
    %v608 = vpop.f32.mrf.mxu0
    %v609 = vpop.f32.mrf.mxu0
    %v610 = vadd.f32 %v518, %v609
    %v611 = vpop.f32.mrf.mxu0
    %612 = vmatprep.mubr.bf16.mxu0 0
    %613 = vmatmul.mubr.bf16.gmra.mxu0 %v407
    %v614 = vpop.f32.mrf.mxu0
    %v615 = vadd.f32 %v518, %v614
    %v616 = vpop.f32.mrf.mxu0
    %v617 = vpop.f32.mrf.mxu0
    %v618 = vadd.f32 %v518, %v617
    %v619 = vpop.f32.mrf.mxu0
    %620 = vmatprep.mubr.bf16.mxu0 0
    %621 = vmatmul.mubr.bf16.gmra.mxu0 %v410
    %v622 = vpop.f32.mrf.mxu0
    %v623 = vadd.f32 %v518, %v622
    %v624 = vpop.f32.mrf.mxu0
    %v625 = vpop.f32.mrf.mxu0
    %v626 = vadd.f32 %v518, %v625
    %v627 = vpop.f32.mrf.mxu0
    %628 = vdwg.mxu0
    %v629 = vld [vmem:[%s8] sm:$0xf]
    %v630 = vld [vmem:[%s8 + $0x4] sm:$0xf]
    %v631 = vld [vmem:[%s8 + $0x8] sm:$0xf]
    %v632 = vld [vmem:[%s8 + $0xc] sm:$0xf]
    %v633 = vld [vmem:[%s9] sm:$0x1]
    %v635 = vlaneseq
    %v636 = vshrl.u32 %v635, 7
    %v637 = vsub.s32 0, %v636
    %v638 = vrot.slane %v633, %v637
    %v644 = vunpack.c.l.b16 %v629
    %v645 = vunpack.c.l.b16 %v630
    %v646 = vunpack.c.l.b16 %v631
    %v647 = vunpack.c.l.b16 %v632
    %v648 = vpack.c.b16 %v645, %v644
    %v649 = vpack.c.b16 %v647, %v646
    %652 = vmatprep.subr.bf16.mxu0 0
    %653 = vmatpush1.bf16.msra.mxu0 0
    %654 = vmatprep.subr.bf16.mxu0 0
    %655 = vmatpush1.bf16.msra.mxu0 0
    %656 = vmatprep.subr.bf16.mxu0 0
    %657 = vmatpush1.bf16.msra.mxu0 0
    %658 = vmatprep.subr.bf16.mxu0 0
    %659 = vmatpush1.bf16.msra.mxu0 0
    %660 = vmatprep.subr.bf16.mxu0 0
    %661 = vmatpush1.bf16.msra.mxu0 0
    %662 = vmatprep.subr.bf16.mxu0 0
    %663 = vmatpush1.bf16.msra.mxu0 0
    %664 = vmatprep.subr.bf16.mxu0 0
    %665 = vmatpush1.bf16.msra.mxu0 %v649
    %666 = vmatprep.subr.bf16.mxu0 0
    %667 = vmatpush1.bf16.msra.mxu0 %v648
    %668 = vmatprep.subr.bf16.mxu0 0
    %669 = vmatpush2.bf16.msra.mxu0 0
    %670 = vmatprep.subr.bf16.mxu0 0
    %671 = vmatpush2.bf16.msra.mxu0 0
    %672 = vmatprep.subr.bf16.mxu0 0
    %673 = vmatpush2.bf16.msra.mxu0 0
    %674 = vmatprep.subr.bf16.mxu0 0
    %675 = vmatpush2.bf16.msra.mxu0 0
    %676 = vmatprep.subr.bf16.mxu0 0
    %677 = vmatpush2.bf16.msra.mxu0 0
    %678 = vmatprep.subr.bf16.mxu0 0
    %679 = vmatpush2.bf16.msra.mxu0 0
    %680 = vmatprep.subr.bf16.mxu0 0
    %681 = vmatpush2.bf16.msra.mxu0 0
    %682 = vmatprep.subr.bf16.mxu0 0
    %683 = vmatpush2.bf16.msra.mxu0 0
    %684 = vmatprep.mubr.bf16.mxu0 0
    %685 = vmatmul.mubr.bf16.gmra.mxu0 %v389
    %v686 = vpop.f32.mrf.mxu0
    %v687 = vadd.f32 %v638, %v686
    %v688 = vpop.f32.mrf.mxu0
    %v689 = vpop.f32.mrf.mxu0
    %v690 = vadd.f32 %v638, %v689
    %v691 = vpop.f32.mrf.mxu0
    %692 = vmatprep.mubr.bf16.mxu0 0
    %693 = vmatmul.mubr.bf16.gmra.mxu0 %v392
    %v694 = vpop.f32.mrf.mxu0
    %v695 = vadd.f32 %v638, %v694
    %v696 = vpop.f32.mrf.mxu0
    %v697 = vpop.f32.mrf.mxu0
    %v698 = vadd.f32 %v638, %v697
    %v699 = vpop.f32.mrf.mxu0
    %700 = vmatprep.mubr.bf16.mxu0 0
    %701 = vmatmul.mubr.bf16.gmra.mxu0 %v395
    %v702 = vpop.f32.mrf.mxu0
    %v703 = vadd.f32 %v638, %v702
    %v704 = vpop.f32.mrf.mxu0
    %v705 = vpop.f32.mrf.mxu0
    %v706 = vadd.f32 %v638, %v705
    %v707 = vpop.f32.mrf.mxu0
    %708 = vmatprep.mubr.bf16.mxu0 0
    %709 = vmatmul.mubr.bf16.gmra.mxu0 %v398
    %v710 = vpop.f32.mrf.mxu0
    %v711 = vadd.f32 %v638, %v710
    %v712 = vpop.f32.mrf.mxu0
    %v713 = vpop.f32.mrf.mxu0
    %v714 = vadd.f32 %v638, %v713
    %v715 = vpop.f32.mrf.mxu0
    %716 = vmatprep.mubr.bf16.mxu0 0
    %717 = vmatmul.mubr.bf16.gmra.mxu0 %v401
    %v718 = vpop.f32.mrf.mxu0
    %v719 = vadd.f32 %v638, %v718
    %v720 = vpop.f32.mrf.mxu0
    %v721 = vpop.f32.mrf.mxu0
    %v722 = vadd.f32 %v638, %v721
    %v723 = vpop.f32.mrf.mxu0
    %724 = vmatprep.mubr.bf16.mxu0 0
    %725 = vmatmul.mubr.bf16.gmra.mxu0 %v404
    %v726 = vpop.f32.mrf.mxu0
    %v727 = vadd.f32 %v638, %v726
    %v728 = vpop.f32.mrf.mxu0
    %v729 = vpop.f32.mrf.mxu0
    %v730 = vadd.f32 %v638, %v729
    %v731 = vpop.f32.mrf.mxu0
    %732 = vmatprep.mubr.bf16.mxu0 0
    %733 = vmatmul.mubr.bf16.gmra.mxu0 %v407
    %v734 = vpop.f32.mrf.mxu0
    %v735 = vadd.f32 %v638, %v734
    %v736 = vpop.f32.mrf.mxu0
    %v737 = vpop.f32.mrf.mxu0
    %v738 = vadd.f32 %v638, %v737
    %v739 = vpop.f32.mrf.mxu0
    %740 = vmatprep.mubr.bf16.mxu0 0
    %741 = vmatmul.mubr.bf16.gmra.mxu0 %v410
    %v742 = vpop.f32.mrf.mxu0
    %v743 = vadd.f32 %v638, %v742
    %v744 = vpop.f32.mrf.mxu0
    %v745 = vpop.f32.mrf.mxu0
    %v746 = vadd.f32 %v638, %v745
    %v747 = vpop.f32.mrf.mxu0
    %748 = vdwg.mxu0
    %v749 = vpack.c.bf16 %v447, %v447
    %v750 = vpack.c.bf16 %v450, %v450
    %v751 = vpack.c.bf16 %v455, %v455
    %v752 = vpack.c.bf16 %v458, %v458
    %v753 = vpack.c.bf16 %v463, %v463
    %v754 = vpack.c.bf16 %v466, %v466
    %v755 = vpack.c.bf16 %v471, %v471
    %v756 = vpack.c.bf16 %v474, %v474
    %v757 = vpack.c.bf16 %v479, %v479
    %v758 = vpack.c.bf16 %v482, %v482
    %v759 = vpack.c.bf16 %v487, %v487
    %v760 = vpack.c.bf16 %v490, %v490
    %v761 = vpack.c.bf16 %v495, %v495
    %v762 = vpack.c.bf16 %v498, %v498
    %v763 = vpack.c.bf16 %v503, %v503
    %v764 = vpack.c.bf16 %v506, %v506
    %v765 = vpack.c.bf16 %v567, %v567
    %v766 = vpack.c.bf16 %v570, %v570
    %v767 = vpack.c.bf16 %v575, %v575
    %v768 = vpack.c.bf16 %v578, %v578
    %v769 = vpack.c.bf16 %v583, %v583
    %v770 = vpack.c.bf16 %v586, %v586
    %v771 = vpack.c.bf16 %v591, %v591
    %v772 = vpack.c.bf16 %v594, %v594
    %v773 = vpack.c.bf16 %v599, %v599
    %v774 = vpack.c.bf16 %v602, %v602
    %v775 = vpack.c.bf16 %v607, %v607
    %v776 = vpack.c.bf16 %v610, %v610
    %v777 = vpack.c.bf16 %v615, %v615
    %v778 = vpack.c.bf16 %v618, %v618
    %v779 = vpack.c.bf16 %v623, %v623
    %v780 = vpack.c.bf16 %v626, %v626
    %v781 = vpack.c.bf16 %v687, %v687
    %v782 = vpack.c.bf16 %v690, %v690
    %v783 = vpack.c.bf16 %v695, %v695
    %v784 = vpack.c.bf16 %v698, %v698
    %v785 = vpack.c.bf16 %v703, %v703
    %v786 = vpack.c.bf16 %v706, %v706
    %v787 = vpack.c.bf16 %v711, %v711
    %v788 = vpack.c.bf16 %v714, %v714
    %v789 = vpack.c.bf16 %v719, %v719
    %v790 = vpack.c.bf16 %v722, %v722
    %v791 = vpack.c.bf16 %v727, %v727
    %v792 = vpack.c.bf16 %v730, %v730
    %v793 = vpack.c.bf16 %v735, %v735
    %v794 = vpack.c.bf16 %v738, %v738
    %v795 = vpack.c.bf16 %v743, %v743
    %v796 = vpack.c.bf16 %v746, %v746
    %v798 = vsel %vm387, %v749, 0
    %v801 = vsel %vm387, %v765, 0
    %803 = vmatprep.subr.bf16.mxu0 0
    %804 = vmatpush1.bf16.xpose.msra.mxu0 0
    %805 = vmatprep.subr.bf16.mxu0 0
    %806 = vmatpush1.bf16.xpose.msra.mxu0 0
    %807 = vmatprep.subr.bf16.mxu0 0
    %808 = vmatpush1.bf16.xpose.msra.mxu0 0
    %809 = vmatprep.subr.bf16.mxu0 0
    %810 = vmatpush1.bf16.xpose.msra.mxu0 0
    %811 = vmatprep.subr.bf16.mxu0 0
    %812 = vmatpush1.bf16.xpose.msra.mxu0 0
    %813 = vmatprep.subr.bf16.mxu0 0
    %814 = vmatpush1.bf16.xpose.msra.mxu0 0
    %815 = vmatprep.subr.bf16.mxu0 0
    %816 = vmatpush1.bf16.xpose.msra.mxu0 0
    %817 = vmatprep.subr.bf16.mxu0 0
    %818 = vmatpush1.bf16.xpose.msra.mxu0 %v801
    %819 = vmatprep.subr.bf16.mxu0 0
    %820 = vmatpush2.bf16.xpose.msra.mxu0 0
    %821 = vmatprep.subr.bf16.mxu0 0
    %822 = vmatpush2.bf16.xpose.msra.mxu0 0
    %823 = vmatprep.subr.bf16.mxu0 0
    %824 = vmatpush2.bf16.xpose.msra.mxu0 0
    %825 = vmatprep.subr.bf16.mxu0 0
    %826 = vmatpush2.bf16.xpose.msra.mxu0 0
    %827 = vmatprep.subr.bf16.mxu0 0
    %828 = vmatpush2.bf16.xpose.msra.mxu0 0
    %829 = vmatprep.subr.bf16.mxu0 0
    %830 = vmatpush2.bf16.xpose.msra.mxu0 0
    %831 = vmatprep.subr.bf16.mxu0 0
    %832 = vmatpush2.bf16.xpose.msra.mxu0 0
    %833 = vmatprep.subr.bf16.mxu0 0
    %834 = vmatpush2.bf16.xpose.msra.mxu0 0
    %835 = vmatprep.mubr.bf16.mxu0 0
    %836 = vmatmul.mubr.bf16.gmra.mxu0 %v798
    %v837 = vpop.f32.mrf.mxu0
    %v838 = vadd.f32 0.0, %v837
    %v839 = vpop.f32.mrf.mxu0
    %v840 = vpop.f32.mrf.mxu0
    %v841 = vpop.f32.mrf.mxu0
    %842 = vdwg.mxu0
    %v844 = vsel %vm387, %v750, 0
    %v847 = vsel %vm387, %v766, 0
    %849 = vmatprep.subr.bf16.mxu0 0
    %850 = vmatpush1.bf16.xpose.msra.mxu0 0
    %851 = vmatprep.subr.bf16.mxu0 0
    %852 = vmatpush1.bf16.xpose.msra.mxu0 0
    %853 = vmatprep.subr.bf16.mxu0 0
    %854 = vmatpush1.bf16.xpose.msra.mxu0 0
    %855 = vmatprep.subr.bf16.mxu0 0
    %856 = vmatpush1.bf16.xpose.msra.mxu0 0
    %857 = vmatprep.subr.bf16.mxu0 0
    %858 = vmatpush1.bf16.xpose.msra.mxu0 0
    %859 = vmatprep.subr.bf16.mxu0 0
    %860 = vmatpush1.bf16.xpose.msra.mxu0 0
    %861 = vmatprep.subr.bf16.mxu0 0
    %862 = vmatpush1.bf16.xpose.msra.mxu0 0
    %863 = vmatprep.subr.bf16.mxu0 0
    %864 = vmatpush1.bf16.xpose.msra.mxu0 %v847
    %865 = vmatprep.subr.bf16.mxu0 0
    %866 = vmatpush2.bf16.xpose.msra.mxu0 0
    %867 = vmatprep.subr.bf16.mxu0 0
    %868 = vmatpush2.bf16.xpose.msra.mxu0 0
    %869 = vmatprep.subr.bf16.mxu0 0
    %870 = vmatpush2.bf16.xpose.msra.mxu0 0
    %871 = vmatprep.subr.bf16.mxu0 0
    %872 = vmatpush2.bf16.xpose.msra.mxu0 0
    %873 = vmatprep.subr.bf16.mxu0 0
    %874 = vmatpush2.bf16.xpose.msra.mxu0 0
    %875 = vmatprep.subr.bf16.mxu0 0
    %876 = vmatpush2.bf16.xpose.msra.mxu0 0
    %877 = vmatprep.subr.bf16.mxu0 0
    %878 = vmatpush2.bf16.xpose.msra.mxu0 0
    %879 = vmatprep.subr.bf16.mxu0 0
    %880 = vmatpush2.bf16.xpose.msra.mxu0 0
    %881 = vmatprep.mubr.bf16.mxu0 0
    %882 = vmatmul.mubr.bf16.gmra.mxu0 %v844
    %v883 = vpop.f32.mrf.mxu0
    %v884 = vadd.f32 0.0, %v883
    %v885 = vpop.f32.mrf.mxu0
    %v886 = vpop.f32.mrf.mxu0
    %v887 = vpop.f32.mrf.mxu0
    %888 = vdwg.mxu0
    %v890 = vsel %vm387, %v751, 0
    %v893 = vsel %vm387, %v767, 0
    %895 = vmatprep.subr.bf16.mxu0 0
    %896 = vmatpush1.bf16.xpose.msra.mxu0 0
    %897 = vmatprep.subr.bf16.mxu0 0
    %898 = vmatpush1.bf16.xpose.msra.mxu0 0
    %899 = vmatprep.subr.bf16.mxu0 0
    %900 = vmatpush1.bf16.xpose.msra.mxu0 0
    %901 = vmatprep.subr.bf16.mxu0 0
    %902 = vmatpush1.bf16.xpose.msra.mxu0 0
    %903 = vmatprep.subr.bf16.mxu0 0
    %904 = vmatpush1.bf16.xpose.msra.mxu0 0
    %905 = vmatprep.subr.bf16.mxu0 0
    %906 = vmatpush1.bf16.xpose.msra.mxu0 0
    %907 = vmatprep.subr.bf16.mxu0 0
    %908 = vmatpush1.bf16.xpose.msra.mxu0 0
    %909 = vmatprep.subr.bf16.mxu0 0
    %910 = vmatpush1.bf16.xpose.msra.mxu0 %v893
    %911 = vmatprep.subr.bf16.mxu0 0
    %912 = vmatpush2.bf16.xpose.msra.mxu0 0
    %913 = vmatprep.subr.bf16.mxu0 0
    %914 = vmatpush2.bf16.xpose.msra.mxu0 0
    %915 = vmatprep.subr.bf16.mxu0 0
    %916 = vmatpush2.bf16.xpose.msra.mxu0 0
    %917 = vmatprep.subr.bf16.mxu0 0
    %918 = vmatpush2.bf16.xpose.msra.mxu0 0
    %919 = vmatprep.subr.bf16.mxu0 0
    %920 = vmatpush2.bf16.xpose.msra.mxu0 0
    %921 = vmatprep.subr.bf16.mxu0 0
    %922 = vmatpush2.bf16.xpose.msra.mxu0 0
    %923 = vmatprep.subr.bf16.mxu0 0
    %924 = vmatpush2.bf16.xpose.msra.mxu0 0
    %925 = vmatprep.subr.bf16.mxu0 0
    %926 = vmatpush2.bf16.xpose.msra.mxu0 0
    %927 = vmatprep.mubr.bf16.mxu0 0
    %928 = vmatmul.mubr.bf16.gmra.mxu0 %v890
    %v929 = vpop.f32.mrf.mxu0
    %v930 = vadd.f32 0.0, %v929
    %v931 = vpop.f32.mrf.mxu0
    %v932 = vpop.f32.mrf.mxu0
    %v933 = vpop.f32.mrf.mxu0
    %934 = vdwg.mxu0
    %v936 = vsel %vm387, %v752, 0
    %v939 = vsel %vm387, %v768, 0
    %941 = vmatprep.subr.bf16.mxu0 0
    %942 = vmatpush1.bf16.xpose.msra.mxu0 0
    %943 = vmatprep.subr.bf16.mxu0 0
    %944 = vmatpush1.bf16.xpose.msra.mxu0 0
    %945 = vmatprep.subr.bf16.mxu0 0
    %946 = vmatpush1.bf16.xpose.msra.mxu0 0
    %947 = vmatprep.subr.bf16.mxu0 0
    %948 = vmatpush1.bf16.xpose.msra.mxu0 0
    %949 = vmatprep.subr.bf16.mxu0 0
    %950 = vmatpush1.bf16.xpose.msra.mxu0 0
    %951 = vmatprep.subr.bf16.mxu0 0
    %952 = vmatpush1.bf16.xpose.msra.mxu0 0
    %953 = vmatprep.subr.bf16.mxu0 0
    %954 = vmatpush1.bf16.xpose.msra.mxu0 0
    %955 = vmatprep.subr.bf16.mxu0 0
    %956 = vmatpush1.bf16.xpose.msra.mxu0 %v939
    %957 = vmatprep.subr.bf16.mxu0 0
    %958 = vmatpush2.bf16.xpose.msra.mxu0 0
    %959 = vmatprep.subr.bf16.mxu0 0
    %960 = vmatpush2.bf16.xpose.msra.mxu0 0
    %961 = vmatprep.subr.bf16.mxu0 0
    %962 = vmatpush2.bf16.xpose.msra.mxu0 0
    %963 = vmatprep.subr.bf16.mxu0 0
    %964 = vmatpush2.bf16.xpose.msra.mxu0 0
    %965 = vmatprep.subr.bf16.mxu0 0
    %966 = vmatpush2.bf16.xpose.msra.mxu0 0
    %967 = vmatprep.subr.bf16.mxu0 0
    %968 = vmatpush2.bf16.xpose.msra.mxu0 0
    %969 = vmatprep.subr.bf16.mxu0 0
    %970 = vmatpush2.bf16.xpose.msra.mxu0 0
    %971 = vmatprep.subr.bf16.mxu0 0
    %972 = vmatpush2.bf16.xpose.msra.mxu0 0
    %973 = vmatprep.mubr.bf16.mxu0 0
    %974 = vmatmul.mubr.bf16.gmra.mxu0 %v936
    %v975 = vpop.f32.mrf.mxu0
    %v976 = vadd.f32 0.0, %v975
    %v977 = vpop.f32.mrf.mxu0
    %v978 = vpop.f32.mrf.mxu0
    %v979 = vpop.f32.mrf.mxu0
    %980 = vdwg.mxu0
    %v982 = vsel %vm387, %v753, 0
    %v985 = vsel %vm387, %v769, 0
    %987 = vmatprep.subr.bf16.mxu0 0
    %988 = vmatpush1.bf16.xpose.msra.mxu0 0
    %989 = vmatprep.subr.bf16.mxu0 0
    %990 = vmatpush1.bf16.xpose.msra.mxu0 0
    %991 = vmatprep.subr.bf16.mxu0 0
    %992 = vmatpush1.bf16.xpose.msra.mxu0 0
    %993 = vmatprep.subr.bf16.mxu0 0
    %994 = vmatpush1.bf16.xpose.msra.mxu0 0
    %995 = vmatprep.subr.bf16.mxu0 0
    %996 = vmatpush1.bf16.xpose.msra.mxu0 0
    %997 = vmatprep.subr.bf16.mxu0 0
    %998 = vmatpush1.bf16.xpose.msra.mxu0 0
    %999 = vmatprep.subr.bf16.mxu0 0
    %1000 = vmatpush1.bf16.xpose.msra.mxu0 0
    %1001 = vmatprep.subr.bf16.mxu0 0
    %1002 = vmatpush1.bf16.xpose.msra.mxu0 %v985
    %1003 = vmatprep.subr.bf16.mxu0 0
    %1004 = vmatpush2.bf16.xpose.msra.mxu0 0
    %1005 = vmatprep.subr.bf16.mxu0 0
    %1006 = vmatpush2.bf16.xpose.msra.mxu0 0
    %1007 = vmatprep.subr.bf16.mxu0 0
    %1008 = vmatpush2.bf16.xpose.msra.mxu0 0
    %1009 = vmatprep.subr.bf16.mxu0 0
    %1010 = vmatpush2.bf16.xpose.msra.mxu0 0
    %1011 = vmatprep.subr.bf16.mxu0 0
    %1012 = vmatpush2.bf16.xpose.msra.mxu0 0
    %1013 = vmatprep.subr.bf16.mxu0 0
    %1014 = vmatpush2.bf16.xpose.msra.mxu0 0
    %1015 = vmatprep.subr.bf16.mxu0 0
    %1016 = vmatpush2.bf16.xpose.msra.mxu0 0
    %1017 = vmatprep.subr.bf16.mxu0 0
    %1018 = vmatpush2.bf16.xpose.msra.mxu0 0
    %1019 = vmatprep.mubr.bf16.mxu0 0
    %1020 = vmatmul.mubr.bf16.gmra.mxu0 %v982
    %v1021 = vpop.f32.mrf.mxu0
    %v1022 = vadd.f32 0.0, %v1021
    %v1023 = vpop.f32.mrf.mxu0
    %v1024 = vpop.f32.mrf.mxu0
    %v1025 = vpop.f32.mrf.mxu0
    %1026 = vdwg.mxu0
    %v1028 = vsel %vm387, %v754, 0
    %v1031 = vsel %vm387, %v770, 0
    %1033 = vmatprep.subr.bf16.mxu0 0
    %1034 = vmatpush1.bf16.xpose.msra.mxu0 0
    %1035 = vmatprep.subr.bf16.mxu0 0
    %1036 = vmatpush1.bf16.xpose.msra.mxu0 0
    %1037 = vmatprep.subr.bf16.mxu0 0
    %1038 = vmatpush1.bf16.xpose.msra.mxu0 0
    %1039 = vmatprep.subr.bf16.mxu0 0
    %1040 = vmatpush1.bf16.xpose.msra.mxu0 0
    %1041 = vmatprep.subr.bf16.mxu0 0
    %1042 = vmatpush1.bf16.xpose.msra.mxu0 0
    %1043 = vmatprep.subr.bf16.mxu0 0
    %1044 = vmatpush1.bf16.xpose.msra.mxu0 0
    %1045 = vmatprep.subr.bf16.mxu0 0
    %1046 = vmatpush1.bf16.xpose.msra.mxu0 0
    %1047 = vmatprep.subr.bf16.mxu0 0
    %1048 = vmatpush1.bf16.xpose.msra.mxu0 %v1031
    %1049 = vmatprep.subr.bf16.mxu0 0
    %1050 = vmatpush2.bf16.xpose.msra.mxu0 0
    %1051 = vmatprep.subr.bf16.mxu0 0
    %1052 = vmatpush2.bf16.xpose.msra.mxu0 0
    %1053 = vmatprep.subr.bf16.mxu0 0
    %1054 = vmatpush2.bf16.xpose.msra.mxu0 0
    %1055 = vmatprep.subr.bf16.mxu0 0
    %1056 = vmatpush2.bf16.xpose.msra.mxu0 0
    %1057 = vmatprep.subr.bf16.mxu0 0
    %1058 = vmatpush2.bf16.xpose.msra.mxu0 0
    %1059 = vmatprep.subr.bf16.mxu0 0
    %1060 = vmatpush2.bf16.xpose.msra.mxu0 0
    %1061 = vmatprep.subr.bf16.mxu0 0
    %1062 = vmatpush2.bf16.xpose.msra.mxu0 0
    %1063 = vmatprep.subr.bf16.mxu0 0
    %1064 = vmatpush2.bf16.xpose.msra.mxu0 0
    %1065 = vmatprep.mubr.bf16.mxu0 0
    %1066 = vmatmul.mubr.bf16.gmra.mxu0 %v1028
    %v1067 = vpop.f32.mrf.mxu0
    %v1068 = vadd.f32 0.0, %v1067
    %v1069 = vpop.f32.mrf.mxu0
    %v1070 = vpop.f32.mrf.mxu0
    %v1071 = vpop.f32.mrf.mxu0
    %1072 = vdwg.mxu0
    %v1074 = vsel %vm387, %v755, 0
    %v1077 = vsel %vm387, %v771, 0
    %1079 = vmatprep.subr.bf16.mxu0 0
    %1080 = vmatpush1.bf16.xpose.msra.mxu0 0
    %1081 = vmatprep.subr.bf16.mxu0 0
    %1082 = vmatpush1.bf16.xpose.msra.mxu0 0
    %1083 = vmatprep.subr.bf16.mxu0 0
    %1084 = vmatpush1.bf16.xpose.msra.mxu0 0
    %1085 = vmatprep.subr.bf16.mxu0 0
    %1086 = vmatpush1.bf16.xpose.msra.mxu0 0
    %1087 = vmatprep.subr.bf16.mxu0 0
    %1088 = vmatpush1.bf16.xpose.msra.mxu0 0
    %1089 = vmatprep.subr.bf16.mxu0 0
    %1090 = vmatpush1.bf16.xpose.msra.mxu0 0
    %1091 = vmatprep.subr.bf16.mxu0 0
    %1092 = vmatpush1.bf16.xpose.msra.mxu0 0
    %1093 = vmatprep.subr.bf16.mxu0 0
    %1094 = vmatpush1.bf16.xpose.msra.mxu0 %v1077
    %1095 = vmatprep.subr.bf16.mxu0 0
    %1096 = vmatpush2.bf16.xpose.msra.mxu0 0
    %1097 = vmatprep.subr.bf16.mxu0 0
    %1098 = vmatpush2.bf16.xpose.msra.mxu0 0
    %1099 = vmatprep.subr.bf16.mxu0 0
    %1100 = vmatpush2.bf16.xpose.msra.mxu0 0
    %1101 = vmatprep.subr.bf16.mxu0 0
    %1102 = vmatpush2.bf16.xpose.msra.mxu0 0
    %1103 = vmatprep.subr.bf16.mxu0 0
    %1104 = vmatpush2.bf16.xpose.msra.mxu0 0
    %1105 = vmatprep.subr.bf16.mxu0 0
    %1106 = vmatpush2.bf16.xpose.msra.mxu0 0
    %1107 = vmatprep.subr.bf16.mxu0 0
    %1108 = vmatpush2.bf16.xpose.msra.mxu0 0
    %1109 = vmatprep.subr.bf16.mxu0 0
    %1110 = vmatpush2.bf16.xpose.msra.mxu0 0
    %1111 = vmatprep.mubr.bf16.mxu0 0
    %1112 = vmatmul.mubr.bf16.gmra.mxu0 %v1074
    %v1113 = vpop.f32.mrf.mxu0
    %v1114 = vadd.f32 0.0, %v1113
    %v1115 = vpop.f32.mrf.mxu0
    %v1116 = vpop.f32.mrf.mxu0
    %v1117 = vpop.f32.mrf.mxu0
    %1118 = vdwg.mxu0
    %v1120 = vsel %vm387, %v756, 0
    %v1123 = vsel %vm387, %v772, 0
    %1125 = vmatprep.subr.bf16.mxu0 0
    %1126 = vmatpush1.bf16.xpose.msra.mxu0 0
    %1127 = vmatprep.subr.bf16.mxu0 0
    %1128 = vmatpush1.bf16.xpose.msra.mxu0 0
    %1129 = vmatprep.subr.bf16.mxu0 0
    %1130 = vmatpush1.bf16.xpose.msra.mxu0 0
    %1131 = vmatprep.subr.bf16.mxu0 0
    %1132 = vmatpush1.bf16.xpose.msra.mxu0 0
    %1133 = vmatprep.subr.bf16.mxu0 0
    %1134 = vmatpush1.bf16.xpose.msra.mxu0 0
    %1135 = vmatprep.subr.bf16.mxu0 0
    %1136 = vmatpush1.bf16.xpose.msra.mxu0 0
    %1137 = vmatprep.subr.bf16.mxu0 0
    %1138 = vmatpush1.bf16.xpose.msra.mxu0 0
    %1139 = vmatprep.subr.bf16.mxu0 0
    %1140 = vmatpush1.bf16.xpose.msra.mxu0 %v1123
    %1141 = vmatprep.subr.bf16.mxu0 0
    %1142 = vmatpush2.bf16.xpose.msra.mxu0 0
    %1143 = vmatprep.subr.bf16.mxu0 0
    %1144 = vmatpush2.bf16.xpose.msra.mxu0 0
    %1145 = vmatprep.subr.bf16.mxu0 0
    %1146 = vmatpush2.bf16.xpose.msra.mxu0 0
    %1147 = vmatprep.subr.bf16.mxu0 0
    %1148 = vmatpush2.bf16.xpose.msra.mxu0 0
    %1149 = vmatprep.subr.bf16.mxu0 0
    %1150 = vmatpush2.bf16.xpose.msra.mxu0 0
    %1151 = vmatprep.subr.bf16.mxu0 0
    %1152 = vmatpush2.bf16.xpose.msra.mxu0 0
    %1153 = vmatprep.subr.bf16.mxu0 0
    %1154 = vmatpush2.bf16.xpose.msra.mxu0 0
    %1155 = vmatprep.subr.bf16.mxu0 0
    %1156 = vmatpush2.bf16.xpose.msra.mxu0 0
    %1157 = vmatprep.mubr.bf16.mxu0 0
    %1158 = vmatmul.mubr.bf16.gmra.mxu0 %v1120
    %v1159 = vpop.f32.mrf.mxu0
    %v1160 = vadd.f32 0.0, %v1159
    %v1161 = vpop.f32.mrf.mxu0
    %v1162 = vpop.f32.mrf.mxu0
    %v1163 = vpop.f32.mrf.mxu0
    %1164 = vdwg.mxu0
    %v1166 = vsel %vm387, %v757, 0
    %v1169 = vsel %vm387, %v773, 0
    %1171 = vmatprep.subr.bf16.mxu0 0
    %1172 = vmatpush1.bf16.xpose.msra.mxu0 0
    %1173 = vmatprep.subr.bf16.mxu0 0
    %1174 = vmatpush1.bf16.xpose.msra.mxu0 0
    %1175 = vmatprep.subr.bf16.mxu0 0
    %1176 = vmatpush1.bf16.xpose.msra.mxu0 0
    %1177 = vmatprep.subr.bf16.mxu0 0
    %1178 = vmatpush1.bf16.xpose.msra.mxu0 0
    %1179 = vmatprep.subr.bf16.mxu0 0
    %1180 = vmatpush1.bf16.xpose.msra.mxu0 0
    %1181 = vmatprep.subr.bf16.mxu0 0
    %1182 = vmatpush1.bf16.xpose.msra.mxu0 0
    %1183 = vmatprep.subr.bf16.mxu0 0
    %1184 = vmatpush1.bf16.xpose.msra.mxu0 0
    %1185 = vmatprep.subr.bf16.mxu0 0
    %1186 = vmatpush1.bf16.xpose.msra.mxu0 %v1169
    %1187 = vmatprep.subr.bf16.mxu0 0
    %1188 = vmatpush2.bf16.xpose.msra.mxu0 0
    %1189 = vmatprep.subr.bf16.mxu0 0
    %1190 = vmatpush2.bf16.xpose.msra.mxu0 0
    %1191 = vmatprep.subr.bf16.mxu0 0
    %1192 = vmatpush2.bf16.xpose.msra.mxu0 0
    %1193 = vmatprep.subr.bf16.mxu0 0
    %1194 = vmatpush2.bf16.xpose.msra.mxu0 0
    %1195 = vmatprep.subr.bf16.mxu0 0
    %1196 = vmatpush2.bf16.xpose.msra.mxu0 0
    %1197 = vmatprep.subr.bf16.mxu0 0
    %1198 = vmatpush2.bf16.xpose.msra.mxu0 0
    %1199 = vmatprep.subr.bf16.mxu0 0
    %1200 = vmatpush2.bf16.xpose.msra.mxu0 0
    %1201 = vmatprep.subr.bf16.mxu0 0
    %1202 = vmatpush2.bf16.xpose.msra.mxu0 0
    %1203 = vmatprep.mubr.bf16.mxu0 0
    %1204 = vmatmul.mubr.bf16.gmra.mxu0 %v1166
    %v1205 = vpop.f32.mrf.mxu0
    %v1206 = vadd.f32 0.0, %v1205
    %v1207 = vpop.f32.mrf.mxu0
    %v1208 = vpop.f32.mrf.mxu0
    %v1209 = vpop.f32.mrf.mxu0
    %1210 = vdwg.mxu0
    %v1212 = vsel %vm387, %v758, 0
    %v1215 = vsel %vm387, %v774, 0
    %1217 = vmatprep.subr.bf16.mxu0 0
    %1218 = vmatpush1.bf16.xpose.msra.mxu0 0
    %1219 = vmatprep.subr.bf16.mxu0 0
    %1220 = vmatpush1.bf16.xpose.msra.mxu0 0
    %1221 = vmatprep.subr.bf16.mxu0 0
    %1222 = vmatpush1.bf16.xpose.msra.mxu0 0
    %1223 = vmatprep.subr.bf16.mxu0 0
    %1224 = vmatpush1.bf16.xpose.msra.mxu0 0
    %1225 = vmatprep.subr.bf16.mxu0 0
    %1226 = vmatpush1.bf16.xpose.msra.mxu0 0
    %1227 = vmatprep.subr.bf16.mxu0 0
    %1228 = vmatpush1.bf16.xpose.msra.mxu0 0
    %1229 = vmatprep.subr.bf16.mxu0 0
    %1230 = vmatpush1.bf16.xpose.msra.mxu0 0
    %1231 = vmatprep.subr.bf16.mxu0 0
    %1232 = vmatpush1.bf16.xpose.msra.mxu0 %v1215
    %1233 = vmatprep.subr.bf16.mxu0 0
    %1234 = vmatpush2.bf16.xpose.msra.mxu0 0
    %1235 = vmatprep.subr.bf16.mxu0 0
    %1236 = vmatpush2.bf16.xpose.msra.mxu0 0
    %1237 = vmatprep.subr.bf16.mxu0 0
    %1238 = vmatpush2.bf16.xpose.msra.mxu0 0
    %1239 = vmatprep.subr.bf16.mxu0 0
    %1240 = vmatpush2.bf16.xpose.msra.mxu0 0
    %1241 = vmatprep.subr.bf16.mxu0 0
    %1242 = vmatpush2.bf16.xpose.msra.mxu0 0
    %1243 = vmatprep.subr.bf16.mxu0 0
    %1244 = vmatpush2.bf16.xpose.msra.mxu0 0
    %1245 = vmatprep.subr.bf16.mxu0 0
    %1246 = vmatpush2.bf16.xpose.msra.mxu0 0
    %1247 = vmatprep.subr.bf16.mxu0 0
    %1248 = vmatpush2.bf16.xpose.msra.mxu0 0
    %1249 = vmatprep.mubr.bf16.mxu0 0
    %1250 = vmatmul.mubr.bf16.gmra.mxu0 %v1212
    %v1251 = vpop.f32.mrf.mxu0
    %v1252 = vadd.f32 0.0, %v1251
    %v1253 = vpop.f32.mrf.mxu0
    %v1254 = vpop.f32.mrf.mxu0
    %v1255 = vpop.f32.mrf.mxu0
    %1256 = vdwg.mxu0
    %v1258 = vsel %vm387, %v759, 0
    %v1261 = vsel %vm387, %v775, 0
    %1263 = vmatprep.subr.bf16.mxu0 0
    %1264 = vmatpush1.bf16.xpose.msra.mxu0 0
    %1265 = vmatprep.subr.bf16.mxu0 0
    %1266 = vmatpush1.bf16.xpose.msra.mxu0 0
    %1267 = vmatprep.subr.bf16.mxu0 0
    %1268 = vmatpush1.bf16.xpose.msra.mxu0 0
    %1269 = vmatprep.subr.bf16.mxu0 0
    %1270 = vmatpush1.bf16.xpose.msra.mxu0 0
    %1271 = vmatprep.subr.bf16.mxu0 0
    %1272 = vmatpush1.bf16.xpose.msra.mxu0 0
    %1273 = vmatprep.subr.bf16.mxu0 0
    %1274 = vmatpush1.bf16.xpose.msra.mxu0 0
    %1275 = vmatprep.subr.bf16.mxu0 0
    %1276 = vmatpush1.bf16.xpose.msra.mxu0 0
    %1277 = vmatprep.subr.bf16.mxu0 0
    %1278 = vmatpush1.bf16.xpose.msra.mxu0 %v1261
    %1279 = vmatprep.subr.bf16.mxu0 0
    %1280 = vmatpush2.bf16.xpose.msra.mxu0 0
    %1281 = vmatprep.subr.bf16.mxu0 0
    %1282 = vmatpush2.bf16.xpose.msra.mxu0 0
    %1283 = vmatprep.subr.bf16.mxu0 0
    %1284 = vmatpush2.bf16.xpose.msra.mxu0 0
    %1285 = vmatprep.subr.bf16.mxu0 0
    %1286 = vmatpush2.bf16.xpose.msra.mxu0 0
    %1287 = vmatprep.subr.bf16.mxu0 0
    %1288 = vmatpush2.bf16.xpose.msra.mxu0 0
    %1289 = vmatprep.subr.bf16.mxu0 0
    %1290 = vmatpush2.bf16.xpose.msra.mxu0 0
    %1291 = vmatprep.subr.bf16.mxu0 0
    %1292 = vmatpush2.bf16.xpose.msra.mxu0 0
    %1293 = vmatprep.subr.bf16.mxu0 0
    %1294 = vmatpush2.bf16.xpose.msra.mxu0 0
    %1295 = vmatprep.mubr.bf16.mxu0 0
    %1296 = vmatmul.mubr.bf16.gmra.mxu0 %v1258
    %v1297 = vpop.f32.mrf.mxu0
    %v1298 = vadd.f32 0.0, %v1297
    %v1299 = vpop.f32.mrf.mxu0
    %v1300 = vpop.f32.mrf.mxu0
    %v1301 = vpop.f32.mrf.mxu0
    %1302 = vdwg.mxu0
    %v1304 = vsel %vm387, %v760, 0
    %v1307 = vsel %vm387, %v776, 0
    %1309 = vmatprep.subr.bf16.mxu0 0
    %1310 = vmatpush1.bf16.xpose.msra.mxu0 0
    %1311 = vmatprep.subr.bf16.mxu0 0
    %1312 = vmatpush1.bf16.xpose.msra.mxu0 0
    %1313 = vmatprep.subr.bf16.mxu0 0
    %1314 = vmatpush1.bf16.xpose.msra.mxu0 0
    %1315 = vmatprep.subr.bf16.mxu0 0
    %1316 = vmatpush1.bf16.xpose.msra.mxu0 0
    %1317 = vmatprep.subr.bf16.mxu0 0
    %1318 = vmatpush1.bf16.xpose.msra.mxu0 0
    %1319 = vmatprep.subr.bf16.mxu0 0
    %1320 = vmatpush1.bf16.xpose.msra.mxu0 0
    %1321 = vmatprep.subr.bf16.mxu0 0
    %1322 = vmatpush1.bf16.xpose.msra.mxu0 0
    %1323 = vmatprep.subr.bf16.mxu0 0
    %1324 = vmatpush1.bf16.xpose.msra.mxu0 %v1307
    %1325 = vmatprep.subr.bf16.mxu0 0
    %1326 = vmatpush2.bf16.xpose.msra.mxu0 0
    %1327 = vmatprep.subr.bf16.mxu0 0
    %1328 = vmatpush2.bf16.xpose.msra.mxu0 0
    %1329 = vmatprep.subr.bf16.mxu0 0
    %1330 = vmatpush2.bf16.xpose.msra.mxu0 0
    %1331 = vmatprep.subr.bf16.mxu0 0
    %1332 = vmatpush2.bf16.xpose.msra.mxu0 0
    %1333 = vmatprep.subr.bf16.mxu0 0
    %1334 = vmatpush2.bf16.xpose.msra.mxu0 0
    %1335 = vmatprep.subr.bf16.mxu0 0
    %1336 = vmatpush2.bf16.xpose.msra.mxu0 0
    %1337 = vmatprep.subr.bf16.mxu0 0
    %1338 = vmatpush2.bf16.xpose.msra.mxu0 0
    %1339 = vmatprep.subr.bf16.mxu0 0
    %1340 = vmatpush2.bf16.xpose.msra.mxu0 0
    %1341 = vmatprep.mubr.bf16.mxu0 0
    %1342 = vmatmul.mubr.bf16.gmra.mxu0 %v1304
    %v1343 = vpop.f32.mrf.mxu0
    %v1344 = vadd.f32 0.0, %v1343
    %v1345 = vpop.f32.mrf.mxu0
    %v1346 = vpop.f32.mrf.mxu0
    %v1347 = vpop.f32.mrf.mxu0
    %1348 = vdwg.mxu0
    %v1350 = vsel %vm387, %v761, 0
    %v1353 = vsel %vm387, %v777, 0
    %1355 = vmatprep.subr.bf16.mxu0 0
    %1356 = vmatpush1.bf16.xpose.msra.mxu0 0
    %1357 = vmatprep.subr.bf16.mxu0 0
    %1358 = vmatpush1.bf16.xpose.msra.mxu0 0
    %1359 = vmatprep.subr.bf16.mxu0 0
    %1360 = vmatpush1.bf16.xpose.msra.mxu0 0
    %1361 = vmatprep.subr.bf16.mxu0 0
    %1362 = vmatpush1.bf16.xpose.msra.mxu0 0
    %1363 = vmatprep.subr.bf16.mxu0 0
    %1364 = vmatpush1.bf16.xpose.msra.mxu0 0
    %1365 = vmatprep.subr.bf16.mxu0 0
    %1366 = vmatpush1.bf16.xpose.msra.mxu0 0
    %1367 = vmatprep.subr.bf16.mxu0 0
    %1368 = vmatpush1.bf16.xpose.msra.mxu0 0
    %1369 = vmatprep.subr.bf16.mxu0 0
    %1370 = vmatpush1.bf16.xpose.msra.mxu0 %v1353
    %1371 = vmatprep.subr.bf16.mxu0 0
    %1372 = vmatpush2.bf16.xpose.msra.mxu0 0
    %1373 = vmatprep.subr.bf16.mxu0 0
    %1374 = vmatpush2.bf16.xpose.msra.mxu0 0
    %1375 = vmatprep.subr.bf16.mxu0 0
    %1376 = vmatpush2.bf16.xpose.msra.mxu0 0
    %1377 = vmatprep.subr.bf16.mxu0 0
    %1378 = vmatpush2.bf16.xpose.msra.mxu0 0
    %1379 = vmatprep.subr.bf16.mxu0 0
    %1380 = vmatpush2.bf16.xpose.msra.mxu0 0
    %1381 = vmatprep.subr.bf16.mxu0 0
    %1382 = vmatpush2.bf16.xpose.msra.mxu0 0
    %1383 = vmatprep.subr.bf16.mxu0 0
    %1384 = vmatpush2.bf16.xpose.msra.mxu0 0
    %1385 = vmatprep.subr.bf16.mxu0 0
    %1386 = vmatpush2.bf16.xpose.msra.mxu0 0
    %1387 = vmatprep.mubr.bf16.mxu0 0
    %1388 = vmatmul.mubr.bf16.gmra.mxu0 %v1350
    %v1389 = vpop.f32.mrf.mxu0
    %v1390 = vadd.f32 0.0, %v1389
    %v1391 = vpop.f32.mrf.mxu0
    %v1392 = vpop.f32.mrf.mxu0
    %v1393 = vpop.f32.mrf.mxu0
    %1394 = vdwg.mxu0
    %v1396 = vsel %vm387, %v762, 0
    %v1399 = vsel %vm387, %v778, 0
    %1401 = vmatprep.subr.bf16.mxu0 0
    %1402 = vmatpush1.bf16.xpose.msra.mxu0 0
    %1403 = vmatprep.subr.bf16.mxu0 0
    %1404 = vmatpush1.bf16.xpose.msra.mxu0 0
    %1405 = vmatprep.subr.bf16.mxu0 0
    %1406 = vmatpush1.bf16.xpose.msra.mxu0 0
    %1407 = vmatprep.subr.bf16.mxu0 0
    %1408 = vmatpush1.bf16.xpose.msra.mxu0 0
    %1409 = vmatprep.subr.bf16.mxu0 0
    %1410 = vmatpush1.bf16.xpose.msra.mxu0 0
    %1411 = vmatprep.subr.bf16.mxu0 0
    %1412 = vmatpush1.bf16.xpose.msra.mxu0 0
    %1413 = vmatprep.subr.bf16.mxu0 0
    %1414 = vmatpush1.bf16.xpose.msra.mxu0 0
    %1415 = vmatprep.subr.bf16.mxu0 0
    %1416 = vmatpush1.bf16.xpose.msra.mxu0 %v1399
    %1417 = vmatprep.subr.bf16.mxu0 0
    %1418 = vmatpush2.bf16.xpose.msra.mxu0 0
    %1419 = vmatprep.subr.bf16.mxu0 0
    %1420 = vmatpush2.bf16.xpose.msra.mxu0 0
    %1421 = vmatprep.subr.bf16.mxu0 0
    %1422 = vmatpush2.bf16.xpose.msra.mxu0 0
    %1423 = vmatprep.subr.bf16.mxu0 0
    %1424 = vmatpush2.bf16.xpose.msra.mxu0 0
    %1425 = vmatprep.subr.bf16.mxu0 0
    %1426 = vmatpush2.bf16.xpose.msra.mxu0 0
    %1427 = vmatprep.subr.bf16.mxu0 0
    %1428 = vmatpush2.bf16.xpose.msra.mxu0 0
    %1429 = vmatprep.subr.bf16.mxu0 0
    %1430 = vmatpush2.bf16.xpose.msra.mxu0 0
    %1431 = vmatprep.subr.bf16.mxu0 0
    %1432 = vmatpush2.bf16.xpose.msra.mxu0 0
    %1433 = vmatprep.mubr.bf16.mxu0 0
    %1434 = vmatmul.mubr.bf16.gmra.mxu0 %v1396
    %v1435 = vpop.f32.mrf.mxu0
    %v1436 = vadd.f32 0.0, %v1435
    %v1437 = vpop.f32.mrf.mxu0
    %v1438 = vpop.f32.mrf.mxu0
    %v1439 = vpop.f32.mrf.mxu0
    %1440 = vdwg.mxu0
    %v1442 = vsel %vm387, %v763, 0
    %v1445 = vsel %vm387, %v779, 0
    %1447 = vmatprep.subr.bf16.mxu0 0
    %1448 = vmatpush1.bf16.xpose.msra.mxu0 0
    %1449 = vmatprep.subr.bf16.mxu0 0
    %1450 = vmatpush1.bf16.xpose.msra.mxu0 0
    %1451 = vmatprep.subr.bf16.mxu0 0
    %1452 = vmatpush1.bf16.xpose.msra.mxu0 0
    %1453 = vmatprep.subr.bf16.mxu0 0
    %1454 = vmatpush1.bf16.xpose.msra.mxu0 0
    %1455 = vmatprep.subr.bf16.mxu0 0
    %1456 = vmatpush1.bf16.xpose.msra.mxu0 0
    %1457 = vmatprep.subr.bf16.mxu0 0
    %1458 = vmatpush1.bf16.xpose.msra.mxu0 0
    %1459 = vmatprep.subr.bf16.mxu0 0
    %1460 = vmatpush1.bf16.xpose.msra.mxu0 0
    %1461 = vmatprep.subr.bf16.mxu0 0
    %1462 = vmatpush1.bf16.xpose.msra.mxu0 %v1445
    %1463 = vmatprep.subr.bf16.mxu0 0
    %1464 = vmatpush2.bf16.xpose.msra.mxu0 0
    %1465 = vmatprep.subr.bf16.mxu0 0
    %1466 = vmatpush2.bf16.xpose.msra.mxu0 0
    %1467 = vmatprep.subr.bf16.mxu0 0
    %1468 = vmatpush2.bf16.xpose.msra.mxu0 0
    %1469 = vmatprep.subr.bf16.mxu0 0
    %1470 = vmatpush2.bf16.xpose.msra.mxu0 0
    %1471 = vmatprep.subr.bf16.mxu0 0
    %1472 = vmatpush2.bf16.xpose.msra.mxu0 0
    %1473 = vmatprep.subr.bf16.mxu0 0
    %1474 = vmatpush2.bf16.xpose.msra.mxu0 0
    %1475 = vmatprep.subr.bf16.mxu0 0
    %1476 = vmatpush2.bf16.xpose.msra.mxu0 0
    %1477 = vmatprep.subr.bf16.mxu0 0
    %1478 = vmatpush2.bf16.xpose.msra.mxu0 0
    %1479 = vmatprep.mubr.bf16.mxu0 0
    %1480 = vmatmul.mubr.bf16.gmra.mxu0 %v1442
    %v1481 = vpop.f32.mrf.mxu0
    %v1482 = vadd.f32 0.0, %v1481
    %v1483 = vpop.f32.mrf.mxu0
    %v1484 = vpop.f32.mrf.mxu0
    %v1485 = vpop.f32.mrf.mxu0
    %1486 = vdwg.mxu0
    %v1488 = vsel %vm387, %v764, 0
    %v1491 = vsel %vm387, %v780, 0
    %1493 = vmatprep.subr.bf16.mxu0 0
    %1494 = vmatpush1.bf16.xpose.msra.mxu0 0
    %1495 = vmatprep.subr.bf16.mxu0 0
    %1496 = vmatpush1.bf16.xpose.msra.mxu0 0
    %1497 = vmatprep.subr.bf16.mxu0 0
    %1498 = vmatpush1.bf16.xpose.msra.mxu0 0
    %1499 = vmatprep.subr.bf16.mxu0 0
    %1500 = vmatpush1.bf16.xpose.msra.mxu0 0
    %1501 = vmatprep.subr.bf16.mxu0 0
    %1502 = vmatpush1.bf16.xpose.msra.mxu0 0
    %1503 = vmatprep.subr.bf16.mxu0 0
    %1504 = vmatpush1.bf16.xpose.msra.mxu0 0
    %1505 = vmatprep.subr.bf16.mxu0 0
    %1506 = vmatpush1.bf16.xpose.msra.mxu0 0
    %1507 = vmatprep.subr.bf16.mxu0 0
    %1508 = vmatpush1.bf16.xpose.msra.mxu0 %v1491
    %1509 = vmatprep.subr.bf16.mxu0 0
    %1510 = vmatpush2.bf16.xpose.msra.mxu0 0
    %1511 = vmatprep.subr.bf16.mxu0 0
    %1512 = vmatpush2.bf16.xpose.msra.mxu0 0
    %1513 = vmatprep.subr.bf16.mxu0 0
    %1514 = vmatpush2.bf16.xpose.msra.mxu0 0
    %1515 = vmatprep.subr.bf16.mxu0 0
    %1516 = vmatpush2.bf16.xpose.msra.mxu0 0
    %1517 = vmatprep.subr.bf16.mxu0 0
    %1518 = vmatpush2.bf16.xpose.msra.mxu0 0
    %1519 = vmatprep.subr.bf16.mxu0 0
    %1520 = vmatpush2.bf16.xpose.msra.mxu0 0
    %1521 = vmatprep.subr.bf16.mxu0 0
    %1522 = vmatpush2.bf16.xpose.msra.mxu0 0
    %1523 = vmatprep.subr.bf16.mxu0 0
    %1524 = vmatpush2.bf16.xpose.msra.mxu0 0
    %1525 = vmatprep.mubr.bf16.mxu0 0
    %1526 = vmatmul.mubr.bf16.gmra.mxu0 %v1488
    %v1527 = vpop.f32.mrf.mxu0
    %v1528 = vadd.f32 0.0, %v1527
    %v1529 = vpop.f32.mrf.mxu0
    %v1530 = vpop.f32.mrf.mxu0
    %v1531 = vpop.f32.mrf.mxu0
    %1532 = vdwg.mxu0
    %v1533 = vlaneseq
    %v1534 = vand.u32 %v1533, 127
    %v1535 = vld [vmem:[%s1] sm:$0x1]
    %v1536 = vld [vmem:[%s1 + $0x1] sm:$0x1]
    %v1537 = vld [vmem:[%s1 + $0x2] sm:$0x1]
    %v1538 = vld [vmem:[%s1 + $0x3] sm:$0x1]
    %v1539 = vld [vmem:[%s1 + $0x4] sm:$0x1]
    %v1540 = vld [vmem:[%s1 + $0x5] sm:$0x1]
    %v1541 = vld [vmem:[%s1 + $0x6] sm:$0x1]
    %v1542 = vld [vmem:[%s1 + $0x7] sm:$0x1]
    %v1543 = vld [vmem:[%s1 + $0x8] sm:$0x1]
    %v1544 = vld [vmem:[%s1 + $0x9] sm:$0x1]
    %v1545 = vld [vmem:[%s1 + $0xa] sm:$0x1]
    %v1546 = vld [vmem:[%s1 + $0xb] sm:$0x1]
    %v1547 = vld [vmem:[%s1 + $0xc] sm:$0x1]
    %v1548 = vld [vmem:[%s1 + $0xd] sm:$0x1]
    %v1549 = vld [vmem:[%s1 + $0xe] sm:$0x1]
    %v1550 = vld [vmem:[%s1 + $0xf] sm:$0x1]
    %1551 = vset.pattern.permute.xlu0 0
    %1552 = vperm.xlu0 %1551, %v1535
    %v1553 = vpop.permute.xlu0 %1552
    %v1554 = vlaneseq
    %v1555 = vshrl.u32 %v1554, 7
    %v1556 = vsub.s32 0, %v1555
    %v1557 = vrot.slane %v1553, %v1556
    %1558 = vset.pattern.permute.xlu0 0
    %1559 = vperm.xlu0 %1558, %v1536
    %v1560 = vpop.permute.xlu0 %1559
    %v1561 = vlaneseq
    %v1562 = vshrl.u32 %v1561, 7
    %v1563 = vsub.s32 0, %v1562
    %v1564 = vrot.slane %v1560, %v1563
    %1565 = vset.pattern.permute.xlu0 0
    %1566 = vperm.xlu0 %1565, %v1537
    %v1567 = vpop.permute.xlu0 %1566
    %v1568 = vlaneseq
    %v1569 = vshrl.u32 %v1568, 7
    %v1570 = vsub.s32 0, %v1569
    %v1571 = vrot.slane %v1567, %v1570
    %1572 = vset.pattern.permute.xlu0 0
    %1573 = vperm.xlu0 %1572, %v1538
    %v1574 = vpop.permute.xlu0 %1573
    %v1575 = vlaneseq
    %v1576 = vshrl.u32 %v1575, 7
    %v1577 = vsub.s32 0, %v1576
    %v1578 = vrot.slane %v1574, %v1577
    %1579 = vset.pattern.permute.xlu0 0
    %1580 = vperm.xlu0 %1579, %v1539
    %v1581 = vpop.permute.xlu0 %1580
    %v1582 = vlaneseq
    %v1583 = vshrl.u32 %v1582, 7
    %v1584 = vsub.s32 0, %v1583
    %v1585 = vrot.slane %v1581, %v1584
    %1586 = vset.pattern.permute.xlu0 0
    %1587 = vperm.xlu0 %1586, %v1540
    %v1588 = vpop.permute.xlu0 %1587
    %v1589 = vlaneseq
    %v1590 = vshrl.u32 %v1589, 7
    %v1591 = vsub.s32 0, %v1590
    %v1592 = vrot.slane %v1588, %v1591
    %1593 = vset.pattern.permute.xlu0 0
    %1594 = vperm.xlu0 %1593, %v1541
    %v1595 = vpop.permute.xlu0 %1594
    %v1596 = vlaneseq
    %v1597 = vshrl.u32 %v1596, 7
    %v1598 = vsub.s32 0, %v1597
    %v1599 = vrot.slane %v1595, %v1598
    %1600 = vset.pattern.permute.xlu0 0
    %1601 = vperm.xlu0 %1600, %v1542
    %v1602 = vpop.permute.xlu0 %1601
    %v1603 = vlaneseq
    %v1604 = vshrl.u32 %v1603, 7
    %v1605 = vsub.s32 0, %v1604
    %v1606 = vrot.slane %v1602, %v1605
    %1607 = vset.pattern.permute.xlu0 0
    %1608 = vperm.xlu0 %1607, %v1543
    %v1609 = vpop.permute.xlu0 %1608
    %v1610 = vlaneseq
    %v1611 = vshrl.u32 %v1610, 7
    %v1612 = vsub.s32 0, %v1611
    %v1613 = vrot.slane %v1609, %v1612
    %1614 = vset.pattern.permute.xlu0 0
    %1615 = vperm.xlu0 %1614, %v1544
    %v1616 = vpop.permute.xlu0 %1615
    %v1617 = vlaneseq
    %v1618 = vshrl.u32 %v1617, 7
    %v1619 = vsub.s32 0, %v1618
    %v1620 = vrot.slane %v1616, %v1619
    %1621 = vset.pattern.permute.xlu0 0
    %1622 = vperm.xlu0 %1621, %v1545
    %v1623 = vpop.permute.xlu0 %1622
    %v1624 = vlaneseq
    %v1625 = vshrl.u32 %v1624, 7
    %v1626 = vsub.s32 0, %v1625
    %v1627 = vrot.slane %v1623, %v1626
    %1628 = vset.pattern.permute.xlu0 0
    %1629 = vperm.xlu0 %1628, %v1546
    %v1630 = vpop.permute.xlu0 %1629
    %v1631 = vlaneseq
    %v1632 = vshrl.u32 %v1631, 7
    %v1633 = vsub.s32 0, %v1632
    %v1634 = vrot.slane %v1630, %v1633
    %1635 = vset.pattern.permute.xlu0 0
    %1636 = vperm.xlu0 %1635, %v1547
    %v1637 = vpop.permute.xlu0 %1636
    %v1638 = vlaneseq
    %v1639 = vshrl.u32 %v1638, 7
    %v1640 = vsub.s32 0, %v1639
    %v1641 = vrot.slane %v1637, %v1640
    %1642 = vset.pattern.permute.xlu0 0
    %1643 = vperm.xlu0 %1642, %v1548
    %v1644 = vpop.permute.xlu0 %1643
    %v1645 = vlaneseq
    %v1646 = vshrl.u32 %v1645, 7
    %v1647 = vsub.s32 0, %v1646
    %v1648 = vrot.slane %v1644, %v1647
    %1649 = vset.pattern.permute.xlu0 0
    %1650 = vperm.xlu0 %1649, %v1549
    %v1651 = vpop.permute.xlu0 %1650
    %v1652 = vlaneseq
    %v1653 = vshrl.u32 %v1652, 7
    %v1654 = vsub.s32 0, %v1653
    %v1655 = vrot.slane %v1651, %v1654
    %1656 = vset.pattern.permute.xlu0 0
    %1657 = vperm.xlu0 %1656, %v1550
    %v1658 = vpop.permute.xlu0 %1657
    %v1659 = vlaneseq
    %v1660 = vshrl.u32 %v1659, 7
    %v1661 = vsub.s32 0, %v1660
    %v1662 = vrot.slane %v1658, %v1661
    %vm1663 = vcmp.lt.s32.totalorder %v1534, %v1557
    %vm1664 = vcmp.lt.s32.totalorder %v1534, %v1564
    %vm1665 = vcmp.lt.s32.totalorder %v1534, %v1571
    %vm1666 = vcmp.lt.s32.totalorder %v1534, %v1578
    %vm1667 = vcmp.lt.s32.totalorder %v1534, %v1585
    %vm1668 = vcmp.lt.s32.totalorder %v1534, %v1592
    %vm1669 = vcmp.lt.s32.totalorder %v1534, %v1599
    %vm1670 = vcmp.lt.s32.totalorder %v1534, %v1606
    %vm1671 = vcmp.lt.s32.totalorder %v1534, %v1613
    %vm1672 = vcmp.lt.s32.totalorder %v1534, %v1620
    %vm1673 = vcmp.lt.s32.totalorder %v1534, %v1627
    %vm1674 = vcmp.lt.s32.totalorder %v1534, %v1634
    %vm1675 = vcmp.lt.s32.totalorder %v1534, %v1641
    %vm1676 = vcmp.lt.s32.totalorder %v1534, %v1648
    %vm1677 = vcmp.lt.s32.totalorder %v1534, %v1655
    %vm1678 = vcmp.lt.s32.totalorder %v1534, %v1662
    %v1679 = vsel %vm1663, 1, 0
    %v1680 = vsel %vm1664, 1, 0
    %v1681 = vsel %vm1665, 1, 0
    %v1682 = vsel %vm1666, 1, 0
    %v1683 = vsel %vm1667, 1, 0
    %v1684 = vsel %vm1668, 1, 0
    %v1685 = vsel %vm1669, 1, 0
    %v1686 = vsel %vm1670, 1, 0
    %v1687 = vsel %vm1671, 1, 0
    %v1688 = vsel %vm1672, 1, 0
    %v1689 = vsel %vm1673, 1, 0
    %v1690 = vsel %vm1674, 1, 0
    %v1691 = vsel %vm1675, 1, 0
    %v1692 = vsel %vm1676, 1, 0
    %v1693 = vsel %vm1677, 1, 0
    %v1694 = vsel %vm1678, 1, 0
    %vm1695 = vcmp.eq.s32.totalorder %v1679, 1
    %vm1696 = vcmp.eq.s32.totalorder %v1680, 1
    %vm1697 = vcmp.eq.s32.totalorder %v1681, 1
    %vm1698 = vcmp.eq.s32.totalorder %v1682, 1
    %vm1699 = vcmp.eq.s32.totalorder %v1683, 1
    %vm1700 = vcmp.eq.s32.totalorder %v1684, 1
    %vm1701 = vcmp.eq.s32.totalorder %v1685, 1
    %vm1702 = vcmp.eq.s32.totalorder %v1686, 1
    %vm1703 = vcmp.eq.s32.totalorder %v1687, 1
    %vm1704 = vcmp.eq.s32.totalorder %v1688, 1
    %vm1705 = vcmp.eq.s32.totalorder %v1689, 1
    %vm1706 = vcmp.eq.s32.totalorder %v1690, 1
    %vm1707 = vcmp.eq.s32.totalorder %v1691, 1
    %vm1708 = vcmp.eq.s32.totalorder %v1692, 1
    %vm1709 = vcmp.eq.s32.totalorder %v1693, 1
    %vm1710 = vcmp.eq.s32.totalorder %v1694, 1
    %v1711 = vsel %vm1695, %v838, -1e+09
    %v1712 = vsel %vm1696, %v884, -1e+09
    %v1713 = vsel %vm1697, %v930, -1e+09
    %v1714 = vsel %vm1698, %v976, -1e+09
    %v1715 = vsel %vm1699, %v1022, -1e+09
    %v1716 = vsel %vm1700, %v1068, -1e+09
    %v1717 = vsel %vm1701, %v1114, -1e+09
    %v1718 = vsel %vm1702, %v1160, -1e+09
    %v1719 = vsel %vm1703, %v1206, -1e+09
    %v1720 = vsel %vm1704, %v1252, -1e+09
    %v1721 = vsel %vm1705, %v1298, -1e+09
    %v1722 = vsel %vm1706, %v1344, -1e+09
    %v1723 = vsel %vm1707, %v1390, -1e+09
    %v1724 = vsel %vm1708, %v1436, -1e+09
    %v1725 = vsel %vm1709, %v1482, -1e+09
    %v1726 = vsel %vm1710, %v1528, -1e+09
    %vm1727 = vcmask 64512
    %v1728 = vsel %vm1727, %v1711, -inf
    %1729 = vmax.xlane.f32.xlu0 %v1728
    %v1730 = vpop.xlane.xlu0 %1729
    %v1731 = vsel %vm1727, %v1712, -inf
    %1732 = vmax.xlane.f32.xlu0 %v1731
    %v1733 = vpop.xlane.xlu0 %1732
    %v1734 = vsel %vm1727, %v1713, -inf
    %1735 = vmax.xlane.f32.xlu0 %v1734
    %v1736 = vpop.xlane.xlu0 %1735
    %v1737 = vsel %vm1727, %v1714, -inf
    %1738 = vmax.xlane.f32.xlu0 %v1737
    %v1739 = vpop.xlane.xlu0 %1738
    %v1740 = vsel %vm1727, %v1715, -inf
    %1741 = vmax.xlane.f32.xlu0 %v1740
    %v1742 = vpop.xlane.xlu0 %1741
    %v1743 = vsel %vm1727, %v1716, -inf
    %1744 = vmax.xlane.f32.xlu0 %v1743
    %v1745 = vpop.xlane.xlu0 %1744
    %v1746 = vsel %vm1727, %v1717, -inf
    %1747 = vmax.xlane.f32.xlu0 %v1746
    %v1748 = vpop.xlane.xlu0 %1747
    %v1749 = vsel %vm1727, %v1718, -inf
    %1750 = vmax.xlane.f32.xlu0 %v1749
    %v1751 = vpop.xlane.xlu0 %1750
    %v1752 = vsel %vm1727, %v1719, -inf
    %1753 = vmax.xlane.f32.xlu0 %v1752
    %v1754 = vpop.xlane.xlu0 %1753
    %v1755 = vsel %vm1727, %v1720, -inf
    %1756 = vmax.xlane.f32.xlu0 %v1755
    %v1757 = vpop.xlane.xlu0 %1756
    %v1758 = vsel %vm1727, %v1721, -inf
    %1759 = vmax.xlane.f32.xlu0 %v1758
    %v1760 = vpop.xlane.xlu0 %1759
    %v1761 = vsel %vm1727, %v1722, -inf
    %1762 = vmax.xlane.f32.xlu0 %v1761
    %v1763 = vpop.xlane.xlu0 %1762
    %v1764 = vsel %vm1727, %v1723, -inf
    %1765 = vmax.xlane.f32.xlu0 %v1764
    %v1766 = vpop.xlane.xlu0 %1765
    %v1767 = vsel %vm1727, %v1724, -inf
    %1768 = vmax.xlane.f32.xlu0 %v1767
    %v1769 = vpop.xlane.xlu0 %1768
    %v1770 = vsel %vm1727, %v1725, -inf
    %1771 = vmax.xlane.f32.xlu0 %v1770
    %v1772 = vpop.xlane.xlu0 %1771
    %v1773 = vsel %vm1727, %v1726, -inf
    %1774 = vmax.xlane.f32.xlu0 %v1773
    %v1775 = vpop.xlane.xlu0 %1774
    %v1776 = vsub.f32 %v1711, %v1730
    %v1777 = vsub.f32 %v1712, %v1733
    %v1778 = vsub.f32 %v1713, %v1736
    %v1779 = vsub.f32 %v1714, %v1739
    %v1780 = vsub.f32 %v1715, %v1742
    %v1781 = vsub.f32 %v1716, %v1745
    %v1782 = vsub.f32 %v1717, %v1748
    %v1783 = vsub.f32 %v1718, %v1751
    %v1784 = vsub.f32 %v1719, %v1754
    %v1785 = vsub.f32 %v1720, %v1757
    %v1786 = vsub.f32 %v1721, %v1760
    %v1787 = vsub.f32 %v1722, %v1763
    %v1788 = vsub.f32 %v1723, %v1766
    %v1789 = vsub.f32 %v1724, %v1769
    %v1790 = vsub.f32 %v1725, %v1772
    %v1791 = vsub.f32 %v1726, %v1775
    %v1792 = vmul.f32 %v1776, 1.442695
    %v1793 = vpow.pop %v1792
    %v1794 = vmul.f32 %v1777, 1.442695
    %v1795 = vpow.pop %v1794
    %v1796 = vmul.f32 %v1778, 1.442695
    %v1797 = vpow.pop %v1796
    %v1798 = vmul.f32 %v1779, 1.442695
    %v1799 = vpow.pop %v1798
    %v1800 = vmul.f32 %v1780, 1.442695
    %v1801 = vpow.pop %v1800
    %v1802 = vmul.f32 %v1781, 1.442695
    %v1803 = vpow.pop %v1802
    %v1804 = vmul.f32 %v1782, 1.442695
    %v1805 = vpow.pop %v1804
    %v1806 = vmul.f32 %v1783, 1.442695
    %v1807 = vpow.pop %v1806
    %v1808 = vmul.f32 %v1784, 1.442695
    %v1809 = vpow.pop %v1808
    %v1810 = vmul.f32 %v1785, 1.442695
    %v1811 = vpow.pop %v1810
    %v1812 = vmul.f32 %v1786, 1.442695
    %v1813 = vpow.pop %v1812
    %v1814 = vmul.f32 %v1787, 1.442695
    %v1815 = vpow.pop %v1814
    %v1816 = vmul.f32 %v1788, 1.442695
    %v1817 = vpow.pop %v1816
    %v1818 = vmul.f32 %v1789, 1.442695
    %v1819 = vpow.pop %v1818
    %v1820 = vmul.f32 %v1790, 1.442695
    %v1821 = vpow.pop %v1820
    %v1822 = vmul.f32 %v1791, 1.442695
    %v1823 = vpow.pop %v1822
    %v1824 = vsel %vm1727, %v1793, 0.0
    %1825 = vadd.xlane.f32.xlu0 %v1824
    %v1826 = vpop.xlane.xlu0 %1825
    %v1827 = vsel %vm1727, %v1795, 0.0
    %1828 = vadd.xlane.f32.xlu0 %v1827
    %v1829 = vpop.xlane.xlu0 %1828
    %v1830 = vsel %vm1727, %v1797, 0.0
    %1831 = vadd.xlane.f32.xlu0 %v1830
    %v1832 = vpop.xlane.xlu0 %1831
    %v1833 = vsel %vm1727, %v1799, 0.0
    %1834 = vadd.xlane.f32.xlu0 %v1833
    %v1835 = vpop.xlane.xlu0 %1834
    %v1836 = vsel %vm1727, %v1801, 0.0
    %1837 = vadd.xlane.f32.xlu0 %v1836
    %v1838 = vpop.xlane.xlu0 %1837
    %v1839 = vsel %vm1727, %v1803, 0.0
    %1840 = vadd.xlane.f32.xlu0 %v1839
    %v1841 = vpop.xlane.xlu0 %1840
    %v1842 = vsel %vm1727, %v1805, 0.0
    %1843 = vadd.xlane.f32.xlu0 %v1842
    %v1844 = vpop.xlane.xlu0 %1843
    %v1845 = vsel %vm1727, %v1807, 0.0
    %1846 = vadd.xlane.f32.xlu0 %v1845
    %v1847 = vpop.xlane.xlu0 %1846
    %v1848 = vsel %vm1727, %v1809, 0.0
    %1849 = vadd.xlane.f32.xlu0 %v1848
    %v1850 = vpop.xlane.xlu0 %1849
    %v1851 = vsel %vm1727, %v1811, 0.0
    %1852 = vadd.xlane.f32.xlu0 %v1851
    %v1853 = vpop.xlane.xlu0 %1852
    %v1854 = vsel %vm1727, %v1813, 0.0
    %1855 = vadd.xlane.f32.xlu0 %v1854
    %v1856 = vpop.xlane.xlu0 %1855
    %v1857 = vsel %vm1727, %v1815, 0.0
    %1858 = vadd.xlane.f32.xlu0 %v1857
    %v1859 = vpop.xlane.xlu0 %1858
    %v1860 = vsel %vm1727, %v1817, 0.0
    %1861 = vadd.xlane.f32.xlu0 %v1860
    %v1862 = vpop.xlane.xlu0 %1861
    %v1863 = vsel %vm1727, %v1819, 0.0
    %1864 = vadd.xlane.f32.xlu0 %v1863
    %v1865 = vpop.xlane.xlu0 %1864
    %v1866 = vsel %vm1727, %v1821, 0.0
    %1867 = vadd.xlane.f32.xlu0 %v1866
    %v1868 = vpop.xlane.xlu0 %1867
    %v1869 = vsel %vm1727, %v1823, 0.0
    %1870 = vadd.xlane.f32.xlu0 %v1869
    %v1871 = vpop.xlane.xlu0 %1870
    %v1872 = vpack.c.bf16 %v1793, %v1793
    %v1873 = vpack.c.bf16 %v1795, %v1795
    %v1874 = vpack.c.bf16 %v1797, %v1797
    %v1875 = vpack.c.bf16 %v1799, %v1799
    %v1876 = vpack.c.bf16 %v1801, %v1801
    %v1877 = vpack.c.bf16 %v1803, %v1803
    %v1878 = vpack.c.bf16 %v1805, %v1805
    %v1879 = vpack.c.bf16 %v1807, %v1807
    %v1880 = vpack.c.bf16 %v1809, %v1809
    %v1881 = vpack.c.bf16 %v1811, %v1811
    %v1882 = vpack.c.bf16 %v1813, %v1813
    %v1883 = vpack.c.bf16 %v1815, %v1815
    %v1884 = vpack.c.bf16 %v1817, %v1817
    %v1885 = vpack.c.bf16 %v1819, %v1819
    %v1886 = vpack.c.bf16 %v1821, %v1821
    %v1887 = vpack.c.bf16 %v1823, %v1823
    %v1889 = vsel %vm1727, %v1872, 0
    %vm1891 = vcmask 1043456
    %v1893 = vsel %vm1891, %v781, 0
    %1895 = vmatprep.subr.bf16.mxu0 0
    %1896 = vmatpush1.bf16.msra.mxu0 0
    %1897 = vmatprep.subr.bf16.mxu0 0
    %1898 = vmatpush1.bf16.msra.mxu0 0
    %1899 = vmatprep.subr.bf16.mxu0 0
    %1900 = vmatpush1.bf16.msra.mxu0 0
    %1901 = vmatprep.subr.bf16.mxu0 0
    %1902 = vmatpush1.bf16.msra.mxu0 0
    %1903 = vmatprep.subr.bf16.mxu0 0
    %1904 = vmatpush1.bf16.msra.mxu0 0
    %1905 = vmatprep.subr.bf16.mxu0 0
    %1906 = vmatpush1.bf16.msra.mxu0 0
    %1907 = vmatprep.subr.bf16.mxu0 0
    %1908 = vmatpush1.bf16.msra.mxu0 0
    %1909 = vmatprep.subr.bf16.mxu0 0
    %1910 = vmatpush1.bf16.msra.mxu0 %v1893
    %1911 = vmatprep.subr.bf16.mxu0 0
    %1912 = vmatpush2.bf16.msra.mxu0 0
    %1913 = vmatprep.subr.bf16.mxu0 0
    %1914 = vmatpush2.bf16.msra.mxu0 0
    %1915 = vmatprep.subr.bf16.mxu0 0
    %1916 = vmatpush2.bf16.msra.mxu0 0
    %1917 = vmatprep.subr.bf16.mxu0 0
    %1918 = vmatpush2.bf16.msra.mxu0 0
    %1919 = vmatprep.subr.bf16.mxu0 0
    %1920 = vmatpush2.bf16.msra.mxu0 0
    %1921 = vmatprep.subr.bf16.mxu0 0
    %1922 = vmatpush2.bf16.msra.mxu0 0
    %1923 = vmatprep.subr.bf16.mxu0 0
    %1924 = vmatpush2.bf16.msra.mxu0 0
    %1925 = vmatprep.subr.bf16.mxu0 0
    %1926 = vmatpush2.bf16.msra.mxu0 0
    %1927 = vmatprep.mubr.bf16.mxu0 0
    %1928 = vmatmul.mubr.bf16.gmra.mxu0 %v1889
    %v1929 = vpop.f32.mrf.mxu0
    %v1930 = vadd.f32 0.0, %v1929
    %v1931 = vpop.f32.mrf.mxu0
    %v1932 = vpop.f32.mrf.mxu0
    %v1933 = vpop.f32.mrf.mxu0
    %1934 = vdwg.mxu0
    %v1936 = vsel %vm1727, %v1873, 0
    %v1939 = vsel %vm1891, %v782, 0
    %1941 = vmatprep.subr.bf16.mxu0 0
    %1942 = vmatpush1.bf16.msra.mxu0 0
    %1943 = vmatprep.subr.bf16.mxu0 0
    %1944 = vmatpush1.bf16.msra.mxu0 0
    %1945 = vmatprep.subr.bf16.mxu0 0
    %1946 = vmatpush1.bf16.msra.mxu0 0
    %1947 = vmatprep.subr.bf16.mxu0 0
    %1948 = vmatpush1.bf16.msra.mxu0 0
    %1949 = vmatprep.subr.bf16.mxu0 0
    %1950 = vmatpush1.bf16.msra.mxu0 0
    %1951 = vmatprep.subr.bf16.mxu0 0
    %1952 = vmatpush1.bf16.msra.mxu0 0
    %1953 = vmatprep.subr.bf16.mxu0 0
    %1954 = vmatpush1.bf16.msra.mxu0 0
    %1955 = vmatprep.subr.bf16.mxu0 0
    %1956 = vmatpush1.bf16.msra.mxu0 %v1939
    %1957 = vmatprep.subr.bf16.mxu0 0
    %1958 = vmatpush2.bf16.msra.mxu0 0
    %1959 = vmatprep.subr.bf16.mxu0 0
    %1960 = vmatpush2.bf16.msra.mxu0 0
    %1961 = vmatprep.subr.bf16.mxu0 0
    %1962 = vmatpush2.bf16.msra.mxu0 0
    %1963 = vmatprep.subr.bf16.mxu0 0
    %1964 = vmatpush2.bf16.msra.mxu0 0
    %1965 = vmatprep.subr.bf16.mxu0 0
    %1966 = vmatpush2.bf16.msra.mxu0 0
    %1967 = vmatprep.subr.bf16.mxu0 0
    %1968 = vmatpush2.bf16.msra.mxu0 0
    %1969 = vmatprep.subr.bf16.mxu0 0
    %1970 = vmatpush2.bf16.msra.mxu0 0
    %1971 = vmatprep.subr.bf16.mxu0 0
    %1972 = vmatpush2.bf16.msra.mxu0 0
    %1973 = vmatprep.mubr.bf16.mxu0 0
    %1974 = vmatmul.mubr.bf16.gmra.mxu0 %v1936
    %v1975 = vpop.f32.mrf.mxu0
    %v1976 = vadd.f32 0.0, %v1975
    %v1977 = vpop.f32.mrf.mxu0
    %v1978 = vpop.f32.mrf.mxu0
    %v1979 = vpop.f32.mrf.mxu0
    %1980 = vdwg.mxu0
    %v1982 = vsel %vm1727, %v1874, 0
    %v1985 = vsel %vm1891, %v783, 0
    %1987 = vmatprep.subr.bf16.mxu0 0
    %1988 = vmatpush1.bf16.msra.mxu0 0
    %1989 = vmatprep.subr.bf16.mxu0 0
    %1990 = vmatpush1.bf16.msra.mxu0 0
    %1991 = vmatprep.subr.bf16.mxu0 0
    %1992 = vmatpush1.bf16.msra.mxu0 0
    %1993 = vmatprep.subr.bf16.mxu0 0
    %1994 = vmatpush1.bf16.msra.mxu0 0
    %1995 = vmatprep.subr.bf16.mxu0 0
    %1996 = vmatpush1.bf16.msra.mxu0 0
    %1997 = vmatprep.subr.bf16.mxu0 0
    %1998 = vmatpush1.bf16.msra.mxu0 0
    %1999 = vmatprep.subr.bf16.mxu0 0
    %2000 = vmatpush1.bf16.msra.mxu0 0
    %2001 = vmatprep.subr.bf16.mxu0 0
    %2002 = vmatpush1.bf16.msra.mxu0 %v1985
    %2003 = vmatprep.subr.bf16.mxu0 0
    %2004 = vmatpush2.bf16.msra.mxu0 0
    %2005 = vmatprep.subr.bf16.mxu0 0
    %2006 = vmatpush2.bf16.msra.mxu0 0
    %2007 = vmatprep.subr.bf16.mxu0 0
    %2008 = vmatpush2.bf16.msra.mxu0 0
    %2009 = vmatprep.subr.bf16.mxu0 0
    %2010 = vmatpush2.bf16.msra.mxu0 0
    %2011 = vmatprep.subr.bf16.mxu0 0
    %2012 = vmatpush2.bf16.msra.mxu0 0
    %2013 = vmatprep.subr.bf16.mxu0 0
    %2014 = vmatpush2.bf16.msra.mxu0 0
    %2015 = vmatprep.subr.bf16.mxu0 0
    %2016 = vmatpush2.bf16.msra.mxu0 0
    %2017 = vmatprep.subr.bf16.mxu0 0
    %2018 = vmatpush2.bf16.msra.mxu0 0
    %2019 = vmatprep.mubr.bf16.mxu0 0
    %2020 = vmatmul.mubr.bf16.gmra.mxu0 %v1982
    %v2021 = vpop.f32.mrf.mxu0
    %v2022 = vadd.f32 0.0, %v2021
    %v2023 = vpop.f32.mrf.mxu0
    %v2024 = vpop.f32.mrf.mxu0
    %v2025 = vpop.f32.mrf.mxu0
    %2026 = vdwg.mxu0
    %v2028 = vsel %vm1727, %v1875, 0
    %v2031 = vsel %vm1891, %v784, 0
    %2033 = vmatprep.subr.bf16.mxu0 0
    %2034 = vmatpush1.bf16.msra.mxu0 0
    %2035 = vmatprep.subr.bf16.mxu0 0
    %2036 = vmatpush1.bf16.msra.mxu0 0
    %2037 = vmatprep.subr.bf16.mxu0 0
    %2038 = vmatpush1.bf16.msra.mxu0 0
    %2039 = vmatprep.subr.bf16.mxu0 0
    %2040 = vmatpush1.bf16.msra.mxu0 0
    %2041 = vmatprep.subr.bf16.mxu0 0
    %2042 = vmatpush1.bf16.msra.mxu0 0
    %2043 = vmatprep.subr.bf16.mxu0 0
    %2044 = vmatpush1.bf16.msra.mxu0 0
    %2045 = vmatprep.subr.bf16.mxu0 0
    %2046 = vmatpush1.bf16.msra.mxu0 0
    %2047 = vmatprep.subr.bf16.mxu0 0
    %2048 = vmatpush1.bf16.msra.mxu0 %v2031
    %2049 = vmatprep.subr.bf16.mxu0 0
    %2050 = vmatpush2.bf16.msra.mxu0 0
    %2051 = vmatprep.subr.bf16.mxu0 0
    %2052 = vmatpush2.bf16.msra.mxu0 0
    %2053 = vmatprep.subr.bf16.mxu0 0
    %2054 = vmatpush2.bf16.msra.mxu0 0
    %2055 = vmatprep.subr.bf16.mxu0 0
    %2056 = vmatpush2.bf16.msra.mxu0 0
    %2057 = vmatprep.subr.bf16.mxu0 0
    %2058 = vmatpush2.bf16.msra.mxu0 0
    %2059 = vmatprep.subr.bf16.mxu0 0
    %2060 = vmatpush2.bf16.msra.mxu0 0
    %2061 = vmatprep.subr.bf16.mxu0 0
    %2062 = vmatpush2.bf16.msra.mxu0 0
    %2063 = vmatprep.subr.bf16.mxu0 0
    %2064 = vmatpush2.bf16.msra.mxu0 0
    %2065 = vmatprep.mubr.bf16.mxu0 0
    %2066 = vmatmul.mubr.bf16.gmra.mxu0 %v2028
    %v2067 = vpop.f32.mrf.mxu0
    %v2068 = vadd.f32 0.0, %v2067
    %v2069 = vpop.f32.mrf.mxu0
    %v2070 = vpop.f32.mrf.mxu0
    %v2071 = vpop.f32.mrf.mxu0
    %2072 = vdwg.mxu0
    %v2074 = vsel %vm1727, %v1876, 0
    %v2077 = vsel %vm1891, %v785, 0
    %2079 = vmatprep.subr.bf16.mxu0 0
    %2080 = vmatpush1.bf16.msra.mxu0 0
    %2081 = vmatprep.subr.bf16.mxu0 0
    %2082 = vmatpush1.bf16.msra.mxu0 0
    %2083 = vmatprep.subr.bf16.mxu0 0
    %2084 = vmatpush1.bf16.msra.mxu0 0
    %2085 = vmatprep.subr.bf16.mxu0 0
    %2086 = vmatpush1.bf16.msra.mxu0 0
    %2087 = vmatprep.subr.bf16.mxu0 0
    %2088 = vmatpush1.bf16.msra.mxu0 0
    %2089 = vmatprep.subr.bf16.mxu0 0
    %2090 = vmatpush1.bf16.msra.mxu0 0
    %2091 = vmatprep.subr.bf16.mxu0 0
    %2092 = vmatpush1.bf16.msra.mxu0 0
    %2093 = vmatprep.subr.bf16.mxu0 0
    %2094 = vmatpush1.bf16.msra.mxu0 %v2077
    %2095 = vmatprep.subr.bf16.mxu0 0
    %2096 = vmatpush2.bf16.msra.mxu0 0
    %2097 = vmatprep.subr.bf16.mxu0 0
    %2098 = vmatpush2.bf16.msra.mxu0 0
    %2099 = vmatprep.subr.bf16.mxu0 0
    %2100 = vmatpush2.bf16.msra.mxu0 0
    %2101 = vmatprep.subr.bf16.mxu0 0
    %2102 = vmatpush2.bf16.msra.mxu0 0
    %2103 = vmatprep.subr.bf16.mxu0 0
    %2104 = vmatpush2.bf16.msra.mxu0 0
    %2105 = vmatprep.subr.bf16.mxu0 0
    %2106 = vmatpush2.bf16.msra.mxu0 0
    %2107 = vmatprep.subr.bf16.mxu0 0
    %2108 = vmatpush2.bf16.msra.mxu0 0
    %2109 = vmatprep.subr.bf16.mxu0 0
    %2110 = vmatpush2.bf16.msra.mxu0 0
    %2111 = vmatprep.mubr.bf16.mxu0 0
    %2112 = vmatmul.mubr.bf16.gmra.mxu0 %v2074
    %v2113 = vpop.f32.mrf.mxu0
    %v2114 = vadd.f32 0.0, %v2113
    %v2115 = vpop.f32.mrf.mxu0
    %v2116 = vpop.f32.mrf.mxu0
    %v2117 = vpop.f32.mrf.mxu0
    %2118 = vdwg.mxu0
    %v2120 = vsel %vm1727, %v1877, 0
    %v2123 = vsel %vm1891, %v786, 0
    %2125 = vmatprep.subr.bf16.mxu0 0
    %2126 = vmatpush1.bf16.msra.mxu0 0
    %2127 = vmatprep.subr.bf16.mxu0 0
    %2128 = vmatpush1.bf16.msra.mxu0 0
    %2129 = vmatprep.subr.bf16.mxu0 0
    %2130 = vmatpush1.bf16.msra.mxu0 0
    %2131 = vmatprep.subr.bf16.mxu0 0
    %2132 = vmatpush1.bf16.msra.mxu0 0
    %2133 = vmatprep.subr.bf16.mxu0 0
    %2134 = vmatpush1.bf16.msra.mxu0 0
    %2135 = vmatprep.subr.bf16.mxu0 0
    %2136 = vmatpush1.bf16.msra.mxu0 0
    %2137 = vmatprep.subr.bf16.mxu0 0
    %2138 = vmatpush1.bf16.msra.mxu0 0
    %2139 = vmatprep.subr.bf16.mxu0 0
    %2140 = vmatpush1.bf16.msra.mxu0 %v2123
    %2141 = vmatprep.subr.bf16.mxu0 0
    %2142 = vmatpush2.bf16.msra.mxu0 0
    %2143 = vmatprep.subr.bf16.mxu0 0
    %2144 = vmatpush2.bf16.msra.mxu0 0
    %2145 = vmatprep.subr.bf16.mxu0 0
    %2146 = vmatpush2.bf16.msra.mxu0 0
    %2147 = vmatprep.subr.bf16.mxu0 0
    %2148 = vmatpush2.bf16.msra.mxu0 0
    %2149 = vmatprep.subr.bf16.mxu0 0
    %2150 = vmatpush2.bf16.msra.mxu0 0
    %2151 = vmatprep.subr.bf16.mxu0 0
    %2152 = vmatpush2.bf16.msra.mxu0 0
    %2153 = vmatprep.subr.bf16.mxu0 0
    %2154 = vmatpush2.bf16.msra.mxu0 0
    %2155 = vmatprep.subr.bf16.mxu0 0
    %2156 = vmatpush2.bf16.msra.mxu0 0
    %2157 = vmatprep.mubr.bf16.mxu0 0
    %2158 = vmatmul.mubr.bf16.gmra.mxu0 %v2120
    %v2159 = vpop.f32.mrf.mxu0
    %v2160 = vadd.f32 0.0, %v2159
    %v2161 = vpop.f32.mrf.mxu0
    %v2162 = vpop.f32.mrf.mxu0
    %v2163 = vpop.f32.mrf.mxu0
    %2164 = vdwg.mxu0
    %v2166 = vsel %vm1727, %v1878, 0
    %v2169 = vsel %vm1891, %v787, 0
    %2171 = vmatprep.subr.bf16.mxu0 0
    %2172 = vmatpush1.bf16.msra.mxu0 0
    %2173 = vmatprep.subr.bf16.mxu0 0
    %2174 = vmatpush1.bf16.msra.mxu0 0
    %2175 = vmatprep.subr.bf16.mxu0 0
    %2176 = vmatpush1.bf16.msra.mxu0 0
    %2177 = vmatprep.subr.bf16.mxu0 0
    %2178 = vmatpush1.bf16.msra.mxu0 0
    %2179 = vmatprep.subr.bf16.mxu0 0
    %2180 = vmatpush1.bf16.msra.mxu0 0
    %2181 = vmatprep.subr.bf16.mxu0 0
    %2182 = vmatpush1.bf16.msra.mxu0 0
    %2183 = vmatprep.subr.bf16.mxu0 0
    %2184 = vmatpush1.bf16.msra.mxu0 0
    %2185 = vmatprep.subr.bf16.mxu0 0
    %2186 = vmatpush1.bf16.msra.mxu0 %v2169
    %2187 = vmatprep.subr.bf16.mxu0 0
    %2188 = vmatpush2.bf16.msra.mxu0 0
    %2189 = vmatprep.subr.bf16.mxu0 0
    %2190 = vmatpush2.bf16.msra.mxu0 0
    %2191 = vmatprep.subr.bf16.mxu0 0
    %2192 = vmatpush2.bf16.msra.mxu0 0
    %2193 = vmatprep.subr.bf16.mxu0 0
    %2194 = vmatpush2.bf16.msra.mxu0 0
    %2195 = vmatprep.subr.bf16.mxu0 0
    %2196 = vmatpush2.bf16.msra.mxu0 0
    %2197 = vmatprep.subr.bf16.mxu0 0
    %2198 = vmatpush2.bf16.msra.mxu0 0
    %2199 = vmatprep.subr.bf16.mxu0 0
    %2200 = vmatpush2.bf16.msra.mxu0 0
    %2201 = vmatprep.subr.bf16.mxu0 0
    %2202 = vmatpush2.bf16.msra.mxu0 0
    %2203 = vmatprep.mubr.bf16.mxu0 0
    %2204 = vmatmul.mubr.bf16.gmra.mxu0 %v2166
    %v2205 = vpop.f32.mrf.mxu0
    %v2206 = vadd.f32 0.0, %v2205
    %v2207 = vpop.f32.mrf.mxu0
    %v2208 = vpop.f32.mrf.mxu0
    %v2209 = vpop.f32.mrf.mxu0
    %2210 = vdwg.mxu0
    %v2212 = vsel %vm1727, %v1879, 0
    %v2215 = vsel %vm1891, %v788, 0
    %2217 = vmatprep.subr.bf16.mxu0 0
    %2218 = vmatpush1.bf16.msra.mxu0 0
    %2219 = vmatprep.subr.bf16.mxu0 0
    %2220 = vmatpush1.bf16.msra.mxu0 0
    %2221 = vmatprep.subr.bf16.mxu0 0
    %2222 = vmatpush1.bf16.msra.mxu0 0
    %2223 = vmatprep.subr.bf16.mxu0 0
    %2224 = vmatpush1.bf16.msra.mxu0 0
    %2225 = vmatprep.subr.bf16.mxu0 0
    %2226 = vmatpush1.bf16.msra.mxu0 0
    %2227 = vmatprep.subr.bf16.mxu0 0
    %2228 = vmatpush1.bf16.msra.mxu0 0
    %2229 = vmatprep.subr.bf16.mxu0 0
    %2230 = vmatpush1.bf16.msra.mxu0 0
    %2231 = vmatprep.subr.bf16.mxu0 0
    %2232 = vmatpush1.bf16.msra.mxu0 %v2215
    %2233 = vmatprep.subr.bf16.mxu0 0
    %2234 = vmatpush2.bf16.msra.mxu0 0
    %2235 = vmatprep.subr.bf16.mxu0 0
    %2236 = vmatpush2.bf16.msra.mxu0 0
    %2237 = vmatprep.subr.bf16.mxu0 0
    %2238 = vmatpush2.bf16.msra.mxu0 0
    %2239 = vmatprep.subr.bf16.mxu0 0
    %2240 = vmatpush2.bf16.msra.mxu0 0
    %2241 = vmatprep.subr.bf16.mxu0 0
    %2242 = vmatpush2.bf16.msra.mxu0 0
    %2243 = vmatprep.subr.bf16.mxu0 0
    %2244 = vmatpush2.bf16.msra.mxu0 0
    %2245 = vmatprep.subr.bf16.mxu0 0
    %2246 = vmatpush2.bf16.msra.mxu0 0
    %2247 = vmatprep.subr.bf16.mxu0 0
    %2248 = vmatpush2.bf16.msra.mxu0 0
    %2249 = vmatprep.mubr.bf16.mxu0 0
    %2250 = vmatmul.mubr.bf16.gmra.mxu0 %v2212
    %v2251 = vpop.f32.mrf.mxu0
    %v2252 = vadd.f32 0.0, %v2251
    %v2253 = vpop.f32.mrf.mxu0
    %v2254 = vpop.f32.mrf.mxu0
    %v2255 = vpop.f32.mrf.mxu0
    %2256 = vdwg.mxu0
    %v2258 = vsel %vm1727, %v1880, 0
    %v2261 = vsel %vm1891, %v789, 0
    %2263 = vmatprep.subr.bf16.mxu0 0
    %2264 = vmatpush1.bf16.msra.mxu0 0
    %2265 = vmatprep.subr.bf16.mxu0 0
    %2266 = vmatpush1.bf16.msra.mxu0 0
    %2267 = vmatprep.subr.bf16.mxu0 0
    %2268 = vmatpush1.bf16.msra.mxu0 0
    %2269 = vmatprep.subr.bf16.mxu0 0
    %2270 = vmatpush1.bf16.msra.mxu0 0
    %2271 = vmatprep.subr.bf16.mxu0 0
    %2272 = vmatpush1.bf16.msra.mxu0 0
    %2273 = vmatprep.subr.bf16.mxu0 0
    %2274 = vmatpush1.bf16.msra.mxu0 0
    %2275 = vmatprep.subr.bf16.mxu0 0
    %2276 = vmatpush1.bf16.msra.mxu0 0
    %2277 = vmatprep.subr.bf16.mxu0 0
    %2278 = vmatpush1.bf16.msra.mxu0 %v2261
    %2279 = vmatprep.subr.bf16.mxu0 0
    %2280 = vmatpush2.bf16.msra.mxu0 0
    %2281 = vmatprep.subr.bf16.mxu0 0
    %2282 = vmatpush2.bf16.msra.mxu0 0
    %2283 = vmatprep.subr.bf16.mxu0 0
    %2284 = vmatpush2.bf16.msra.mxu0 0
    %2285 = vmatprep.subr.bf16.mxu0 0
    %2286 = vmatpush2.bf16.msra.mxu0 0
    %2287 = vmatprep.subr.bf16.mxu0 0
    %2288 = vmatpush2.bf16.msra.mxu0 0
    %2289 = vmatprep.subr.bf16.mxu0 0
    %2290 = vmatpush2.bf16.msra.mxu0 0
    %2291 = vmatprep.subr.bf16.mxu0 0
    %2292 = vmatpush2.bf16.msra.mxu0 0
    %2293 = vmatprep.subr.bf16.mxu0 0
    %2294 = vmatpush2.bf16.msra.mxu0 0
    %2295 = vmatprep.mubr.bf16.mxu0 0
    %2296 = vmatmul.mubr.bf16.gmra.mxu0 %v2258
    %v2297 = vpop.f32.mrf.mxu0
    %v2298 = vadd.f32 0.0, %v2297
    %v2299 = vpop.f32.mrf.mxu0
    %v2300 = vpop.f32.mrf.mxu0
    %v2301 = vpop.f32.mrf.mxu0
    %2302 = vdwg.mxu0
    %v2304 = vsel %vm1727, %v1881, 0
    %v2307 = vsel %vm1891, %v790, 0
    %2309 = vmatprep.subr.bf16.mxu0 0
    %2310 = vmatpush1.bf16.msra.mxu0 0
    %2311 = vmatprep.subr.bf16.mxu0 0
    %2312 = vmatpush1.bf16.msra.mxu0 0
    %2313 = vmatprep.subr.bf16.mxu0 0
    %2314 = vmatpush1.bf16.msra.mxu0 0
    %2315 = vmatprep.subr.bf16.mxu0 0
    %2316 = vmatpush1.bf16.msra.mxu0 0
    %2317 = vmatprep.subr.bf16.mxu0 0
    %2318 = vmatpush1.bf16.msra.mxu0 0
    %2319 = vmatprep.subr.bf16.mxu0 0
    %2320 = vmatpush1.bf16.msra.mxu0 0
    %2321 = vmatprep.subr.bf16.mxu0 0
    %2322 = vmatpush1.bf16.msra.mxu0 0
    %2323 = vmatprep.subr.bf16.mxu0 0
    %2324 = vmatpush1.bf16.msra.mxu0 %v2307
    %2325 = vmatprep.subr.bf16.mxu0 0
    %2326 = vmatpush2.bf16.msra.mxu0 0
    %2327 = vmatprep.subr.bf16.mxu0 0
    %2328 = vmatpush2.bf16.msra.mxu0 0
    %2329 = vmatprep.subr.bf16.mxu0 0
    %2330 = vmatpush2.bf16.msra.mxu0 0
    %2331 = vmatprep.subr.bf16.mxu0 0
    %2332 = vmatpush2.bf16.msra.mxu0 0
    %2333 = vmatprep.subr.bf16.mxu0 0
    %2334 = vmatpush2.bf16.msra.mxu0 0
    %2335 = vmatprep.subr.bf16.mxu0 0
    %2336 = vmatpush2.bf16.msra.mxu0 0
    %2337 = vmatprep.subr.bf16.mxu0 0
    %2338 = vmatpush2.bf16.msra.mxu0 0
    %2339 = vmatprep.subr.bf16.mxu0 0
    %2340 = vmatpush2.bf16.msra.mxu0 0
    %2341 = vmatprep.mubr.bf16.mxu0 0
    %2342 = vmatmul.mubr.bf16.gmra.mxu0 %v2304
    %v2343 = vpop.f32.mrf.mxu0
    %v2344 = vadd.f32 0.0, %v2343
    %v2345 = vpop.f32.mrf.mxu0
    %v2346 = vpop.f32.mrf.mxu0
    %v2347 = vpop.f32.mrf.mxu0
    %2348 = vdwg.mxu0
    %v2350 = vsel %vm1727, %v1882, 0
    %v2353 = vsel %vm1891, %v791, 0
    %2355 = vmatprep.subr.bf16.mxu0 0
    %2356 = vmatpush1.bf16.msra.mxu0 0
    %2357 = vmatprep.subr.bf16.mxu0 0
    %2358 = vmatpush1.bf16.msra.mxu0 0
    %2359 = vmatprep.subr.bf16.mxu0 0
    %2360 = vmatpush1.bf16.msra.mxu0 0
    %2361 = vmatprep.subr.bf16.mxu0 0
    %2362 = vmatpush1.bf16.msra.mxu0 0
    %2363 = vmatprep.subr.bf16.mxu0 0
    %2364 = vmatpush1.bf16.msra.mxu0 0
    %2365 = vmatprep.subr.bf16.mxu0 0
    %2366 = vmatpush1.bf16.msra.mxu0 0
    %2367 = vmatprep.subr.bf16.mxu0 0
    %2368 = vmatpush1.bf16.msra.mxu0 0
    %2369 = vmatprep.subr.bf16.mxu0 0
    %2370 = vmatpush1.bf16.msra.mxu0 %v2353
    %2371 = vmatprep.subr.bf16.mxu0 0
    %2372 = vmatpush2.bf16.msra.mxu0 0
    %2373 = vmatprep.subr.bf16.mxu0 0
    %2374 = vmatpush2.bf16.msra.mxu0 0
    %2375 = vmatprep.subr.bf16.mxu0 0
    %2376 = vmatpush2.bf16.msra.mxu0 0
    %2377 = vmatprep.subr.bf16.mxu0 0
    %2378 = vmatpush2.bf16.msra.mxu0 0
    %2379 = vmatprep.subr.bf16.mxu0 0
    %2380 = vmatpush2.bf16.msra.mxu0 0
    %2381 = vmatprep.subr.bf16.mxu0 0
    %2382 = vmatpush2.bf16.msra.mxu0 0
    %2383 = vmatprep.subr.bf16.mxu0 0
    %2384 = vmatpush2.bf16.msra.mxu0 0
    %2385 = vmatprep.subr.bf16.mxu0 0
    %2386 = vmatpush2.bf16.msra.mxu0 0
    %2387 = vmatprep.mubr.bf16.mxu0 0
    %2388 = vmatmul.mubr.bf16.gmra.mxu0 %v2350
    %v2389 = vpop.f32.mrf.mxu0
    %v2390 = vadd.f32 0.0, %v2389
    %v2391 = vpop.f32.mrf.mxu0
    %v2392 = vpop.f32.mrf.mxu0
    %v2393 = vpop.f32.mrf.mxu0
    %2394 = vdwg.mxu0
    %v2396 = vsel %vm1727, %v1883, 0
    %v2399 = vsel %vm1891, %v792, 0
    %2401 = vmatprep.subr.bf16.mxu0 0
    %2402 = vmatpush1.bf16.msra.mxu0 0
    %2403 = vmatprep.subr.bf16.mxu0 0
    %2404 = vmatpush1.bf16.msra.mxu0 0
    %2405 = vmatprep.subr.bf16.mxu0 0
    %2406 = vmatpush1.bf16.msra.mxu0 0
    %2407 = vmatprep.subr.bf16.mxu0 0
    %2408 = vmatpush1.bf16.msra.mxu0 0
    %2409 = vmatprep.subr.bf16.mxu0 0
    %2410 = vmatpush1.bf16.msra.mxu0 0
    %2411 = vmatprep.subr.bf16.mxu0 0
    %2412 = vmatpush1.bf16.msra.mxu0 0
    %2413 = vmatprep.subr.bf16.mxu0 0
    %2414 = vmatpush1.bf16.msra.mxu0 0
    %2415 = vmatprep.subr.bf16.mxu0 0
    %2416 = vmatpush1.bf16.msra.mxu0 %v2399
    %2417 = vmatprep.subr.bf16.mxu0 0
    %2418 = vmatpush2.bf16.msra.mxu0 0
    %2419 = vmatprep.subr.bf16.mxu0 0
    %2420 = vmatpush2.bf16.msra.mxu0 0
    %2421 = vmatprep.subr.bf16.mxu0 0
    %2422 = vmatpush2.bf16.msra.mxu0 0
    %2423 = vmatprep.subr.bf16.mxu0 0
    %2424 = vmatpush2.bf16.msra.mxu0 0
    %2425 = vmatprep.subr.bf16.mxu0 0
    %2426 = vmatpush2.bf16.msra.mxu0 0
    %2427 = vmatprep.subr.bf16.mxu0 0
    %2428 = vmatpush2.bf16.msra.mxu0 0
    %2429 = vmatprep.subr.bf16.mxu0 0
    %2430 = vmatpush2.bf16.msra.mxu0 0
    %2431 = vmatprep.subr.bf16.mxu0 0
    %2432 = vmatpush2.bf16.msra.mxu0 0
    %2433 = vmatprep.mubr.bf16.mxu0 0
    %2434 = vmatmul.mubr.bf16.gmra.mxu0 %v2396
    %v2435 = vpop.f32.mrf.mxu0
    %v2436 = vadd.f32 0.0, %v2435
    %v2437 = vpop.f32.mrf.mxu0
    %v2438 = vpop.f32.mrf.mxu0
    %v2439 = vpop.f32.mrf.mxu0
    %2440 = vdwg.mxu0
    %v2442 = vsel %vm1727, %v1884, 0
    %v2445 = vsel %vm1891, %v793, 0
    %2447 = vmatprep.subr.bf16.mxu0 0
    %2448 = vmatpush1.bf16.msra.mxu0 0
    %2449 = vmatprep.subr.bf16.mxu0 0
    %2450 = vmatpush1.bf16.msra.mxu0 0
    %2451 = vmatprep.subr.bf16.mxu0 0
    %2452 = vmatpush1.bf16.msra.mxu0 0
    %2453 = vmatprep.subr.bf16.mxu0 0
    %2454 = vmatpush1.bf16.msra.mxu0 0
    %2455 = vmatprep.subr.bf16.mxu0 0
    %2456 = vmatpush1.bf16.msra.mxu0 0
    %2457 = vmatprep.subr.bf16.mxu0 0
    %2458 = vmatpush1.bf16.msra.mxu0 0
    %2459 = vmatprep.subr.bf16.mxu0 0
    %2460 = vmatpush1.bf16.msra.mxu0 0
    %2461 = vmatprep.subr.bf16.mxu0 0
    %2462 = vmatpush1.bf16.msra.mxu0 %v2445
    %2463 = vmatprep.subr.bf16.mxu0 0
    %2464 = vmatpush2.bf16.msra.mxu0 0
    %2465 = vmatprep.subr.bf16.mxu0 0
    %2466 = vmatpush2.bf16.msra.mxu0 0
    %2467 = vmatprep.subr.bf16.mxu0 0
    %2468 = vmatpush2.bf16.msra.mxu0 0
    %2469 = vmatprep.subr.bf16.mxu0 0
    %2470 = vmatpush2.bf16.msra.mxu0 0
    %2471 = vmatprep.subr.bf16.mxu0 0
    %2472 = vmatpush2.bf16.msra.mxu0 0
    %2473 = vmatprep.subr.bf16.mxu0 0
    %2474 = vmatpush2.bf16.msra.mxu0 0
    %2475 = vmatprep.subr.bf16.mxu0 0
    %2476 = vmatpush2.bf16.msra.mxu0 0
    %2477 = vmatprep.subr.bf16.mxu0 0
    %2478 = vmatpush2.bf16.msra.mxu0 0
    %2479 = vmatprep.mubr.bf16.mxu0 0
    %2480 = vmatmul.mubr.bf16.gmra.mxu0 %v2442
    %v2481 = vpop.f32.mrf.mxu0
    %v2482 = vadd.f32 0.0, %v2481
    %v2483 = vpop.f32.mrf.mxu0
    %v2484 = vpop.f32.mrf.mxu0
    %v2485 = vpop.f32.mrf.mxu0
    %2486 = vdwg.mxu0
    %v2488 = vsel %vm1727, %v1885, 0
    %v2491 = vsel %vm1891, %v794, 0
    %2493 = vmatprep.subr.bf16.mxu0 0
    %2494 = vmatpush1.bf16.msra.mxu0 0
    %2495 = vmatprep.subr.bf16.mxu0 0
    %2496 = vmatpush1.bf16.msra.mxu0 0
    %2497 = vmatprep.subr.bf16.mxu0 0
    %2498 = vmatpush1.bf16.msra.mxu0 0
    %2499 = vmatprep.subr.bf16.mxu0 0
    %2500 = vmatpush1.bf16.msra.mxu0 0
    %2501 = vmatprep.subr.bf16.mxu0 0
    %2502 = vmatpush1.bf16.msra.mxu0 0
    %2503 = vmatprep.subr.bf16.mxu0 0
    %2504 = vmatpush1.bf16.msra.mxu0 0
    %2505 = vmatprep.subr.bf16.mxu0 0
    %2506 = vmatpush1.bf16.msra.mxu0 0
    %2507 = vmatprep.subr.bf16.mxu0 0
    %2508 = vmatpush1.bf16.msra.mxu0 %v2491
    %2509 = vmatprep.subr.bf16.mxu0 0
    %2510 = vmatpush2.bf16.msra.mxu0 0
    %2511 = vmatprep.subr.bf16.mxu0 0
    %2512 = vmatpush2.bf16.msra.mxu0 0
    %2513 = vmatprep.subr.bf16.mxu0 0
    %2514 = vmatpush2.bf16.msra.mxu0 0
    %2515 = vmatprep.subr.bf16.mxu0 0
    %2516 = vmatpush2.bf16.msra.mxu0 0
    %2517 = vmatprep.subr.bf16.mxu0 0
    %2518 = vmatpush2.bf16.msra.mxu0 0
    %2519 = vmatprep.subr.bf16.mxu0 0
    %2520 = vmatpush2.bf16.msra.mxu0 0
    %2521 = vmatprep.subr.bf16.mxu0 0
    %2522 = vmatpush2.bf16.msra.mxu0 0
    %2523 = vmatprep.subr.bf16.mxu0 0
    %2524 = vmatpush2.bf16.msra.mxu0 0
    %2525 = vmatprep.mubr.bf16.mxu0 0
    %2526 = vmatmul.mubr.bf16.gmra.mxu0 %v2488
    %v2527 = vpop.f32.mrf.mxu0
    %v2528 = vadd.f32 0.0, %v2527
    %v2529 = vpop.f32.mrf.mxu0
    %v2530 = vpop.f32.mrf.mxu0
    %v2531 = vpop.f32.mrf.mxu0
    %2532 = vdwg.mxu0
    %v2534 = vsel %vm1727, %v1886, 0
    %v2537 = vsel %vm1891, %v795, 0
    %2539 = vmatprep.subr.bf16.mxu0 0
    %2540 = vmatpush1.bf16.msra.mxu0 0
    %2541 = vmatprep.subr.bf16.mxu0 0
    %2542 = vmatpush1.bf16.msra.mxu0 0
    %2543 = vmatprep.subr.bf16.mxu0 0
    %2544 = vmatpush1.bf16.msra.mxu0 0
    %2545 = vmatprep.subr.bf16.mxu0 0
    %2546 = vmatpush1.bf16.msra.mxu0 0
    %2547 = vmatprep.subr.bf16.mxu0 0
    %2548 = vmatpush1.bf16.msra.mxu0 0
    %2549 = vmatprep.subr.bf16.mxu0 0
    %2550 = vmatpush1.bf16.msra.mxu0 0
    %2551 = vmatprep.subr.bf16.mxu0 0
    %2552 = vmatpush1.bf16.msra.mxu0 0
    %2553 = vmatprep.subr.bf16.mxu0 0
    %2554 = vmatpush1.bf16.msra.mxu0 %v2537
    %2555 = vmatprep.subr.bf16.mxu0 0
    %2556 = vmatpush2.bf16.msra.mxu0 0
    %2557 = vmatprep.subr.bf16.mxu0 0
    %2558 = vmatpush2.bf16.msra.mxu0 0
    %2559 = vmatprep.subr.bf16.mxu0 0
    %2560 = vmatpush2.bf16.msra.mxu0 0
    %2561 = vmatprep.subr.bf16.mxu0 0
    %2562 = vmatpush2.bf16.msra.mxu0 0
    %2563 = vmatprep.subr.bf16.mxu0 0
    %2564 = vmatpush2.bf16.msra.mxu0 0
    %2565 = vmatprep.subr.bf16.mxu0 0
    %2566 = vmatpush2.bf16.msra.mxu0 0
    %2567 = vmatprep.subr.bf16.mxu0 0
    %2568 = vmatpush2.bf16.msra.mxu0 0
    %2569 = vmatprep.subr.bf16.mxu0 0
    %2570 = vmatpush2.bf16.msra.mxu0 0
    %2571 = vmatprep.mubr.bf16.mxu0 0
    %2572 = vmatmul.mubr.bf16.gmra.mxu0 %v2534
    %v2573 = vpop.f32.mrf.mxu0
    %v2574 = vadd.f32 0.0, %v2573
    %v2575 = vpop.f32.mrf.mxu0
    %v2576 = vpop.f32.mrf.mxu0
    %v2577 = vpop.f32.mrf.mxu0
    %2578 = vdwg.mxu0
    %v2580 = vsel %vm1727, %v1887, 0
    %v2583 = vsel %vm1891, %v796, 0
    %2585 = vmatprep.subr.bf16.mxu0 0
    %2586 = vmatpush1.bf16.msra.mxu0 0
    %2587 = vmatprep.subr.bf16.mxu0 0
    %2588 = vmatpush1.bf16.msra.mxu0 0
    %2589 = vmatprep.subr.bf16.mxu0 0
    %2590 = vmatpush1.bf16.msra.mxu0 0
    %2591 = vmatprep.subr.bf16.mxu0 0
    %2592 = vmatpush1.bf16.msra.mxu0 0
    %2593 = vmatprep.subr.bf16.mxu0 0
    %2594 = vmatpush1.bf16.msra.mxu0 0
    %2595 = vmatprep.subr.bf16.mxu0 0
    %2596 = vmatpush1.bf16.msra.mxu0 0
    %2597 = vmatprep.subr.bf16.mxu0 0
    %2598 = vmatpush1.bf16.msra.mxu0 0
    %2599 = vmatprep.subr.bf16.mxu0 0
    %2600 = vmatpush1.bf16.msra.mxu0 %v2583
    %2601 = vmatprep.subr.bf16.mxu0 0
    %2602 = vmatpush2.bf16.msra.mxu0 0
    %2603 = vmatprep.subr.bf16.mxu0 0
    %2604 = vmatpush2.bf16.msra.mxu0 0
    %2605 = vmatprep.subr.bf16.mxu0 0
    %2606 = vmatpush2.bf16.msra.mxu0 0
    %2607 = vmatprep.subr.bf16.mxu0 0
    %2608 = vmatpush2.bf16.msra.mxu0 0
    %2609 = vmatprep.subr.bf16.mxu0 0
    %2610 = vmatpush2.bf16.msra.mxu0 0
    %2611 = vmatprep.subr.bf16.mxu0 0
    %2612 = vmatpush2.bf16.msra.mxu0 0
    %2613 = vmatprep.subr.bf16.mxu0 0
    %2614 = vmatpush2.bf16.msra.mxu0 0
    %2615 = vmatprep.subr.bf16.mxu0 0
    %2616 = vmatpush2.bf16.msra.mxu0 0
    %2617 = vmatprep.mubr.bf16.mxu0 0
    %2618 = vmatmul.mubr.bf16.gmra.mxu0 %v2580
    %v2619 = vpop.f32.mrf.mxu0
    %v2620 = vadd.f32 0.0, %v2619
    %v2621 = vpop.f32.mrf.mxu0
    %v2622 = vpop.f32.mrf.mxu0
    %v2623 = vpop.f32.mrf.mxu0
    %2624 = vdwg.mxu0
    %v2625 = vrcp.pop %v1826
    %v2626 = vrcp.pop %v1829
    %v2627 = vrcp.pop %v1832
    %v2628 = vrcp.pop %v1835
    %v2629 = vrcp.pop %v1838
    %v2630 = vrcp.pop %v1841
    %v2631 = vrcp.pop %v1844
    %v2632 = vrcp.pop %v1847
    %v2633 = vrcp.pop %v1850
    %v2634 = vrcp.pop %v1853
    %v2635 = vrcp.pop %v1856
    %v2636 = vrcp.pop %v1859
    %v2637 = vrcp.pop %v1862
    %v2638 = vrcp.pop %v1865
    %v2639 = vrcp.pop %v1868
    %v2640 = vrcp.pop %v1871
    %v2641 = vmul.f32 %v1930, %v2625
    %v2642 = vmul.f32 %v1976, %v2626
    %v2643 = vmul.f32 %v2022, %v2627
    %v2644 = vmul.f32 %v2068, %v2628
    %v2645 = vmul.f32 %v2114, %v2629
    %v2646 = vmul.f32 %v2160, %v2630
    %v2647 = vmul.f32 %v2206, %v2631
    %v2648 = vmul.f32 %v2252, %v2632
    %v2649 = vmul.f32 %v2298, %v2633
    %v2650 = vmul.f32 %v2344, %v2634
    %v2651 = vmul.f32 %v2390, %v2635
    %v2652 = vmul.f32 %v2436, %v2636
    %v2653 = vmul.f32 %v2482, %v2637
    %v2654 = vmul.f32 %v2528, %v2638
    %v2655 = vmul.f32 %v2574, %v2639
    %v2656 = vmul.f32 %v2620, %v2640
    %v2657 = vpack.c.bf16 %v2642, %v2641
    %v2658 = vpack.c.bf16 %v2644, %v2643
    %v2659 = vpack.c.bf16 %v2646, %v2645
    %v2660 = vpack.c.bf16 %v2648, %v2647
    %v2661 = vpack.c.bf16 %v2650, %v2649
    %v2662 = vpack.c.bf16 %v2652, %v2651
    %v2663 = vpack.c.bf16 %v2654, %v2653
    %v2664 = vpack.c.bf16 %v2656, %v2655
    %v2665 = vld [vmem:[#allocation9] sm:$0xf]
    %v2666 = vld [vmem:[#allocation9 + $0x4] sm:$0xf]
    %v2667 = vld [vmem:[#allocation9 + $0x8] sm:$0xf]
    %v2668 = vld [vmem:[#allocation9 + $0xc] sm:$0xf]
    %v2669 = vld [vmem:[%s11] sm:$0x1]
    %v2671 = vlaneseq
    %v2672 = vshrl.u32 %v2671, 7
    %v2673 = vsub.s32 0, %v2672
    %v2674 = vrot.slane %v2669, %v2673
    %v2680 = vunpack.c.l.b16 %v2665
    %v2681 = vunpack.c.l.b16 %v2666
    %v2682 = vunpack.c.l.b16 %v2667
    %v2683 = vunpack.c.l.b16 %v2668
    %v2684 = vpack.c.b16 %v2681, %v2680
    %v2685 = vpack.c.b16 %v2683, %v2682
    %v2689 = vsel %vm387, %v2657, 0
    %v2692 = vsel %vm387, %v2658, 0
    %v2695 = vsel %vm387, %v2659, 0
    %v2698 = vsel %vm387, %v2660, 0
    %v2701 = vsel %vm387, %v2661, 0
    %v2704 = vsel %vm387, %v2662, 0
    %v2707 = vsel %vm387, %v2663, 0
    %v2710 = vsel %vm387, %v2664, 0
    %2712 = vmatprep.subr.bf16.mxu0 0
    %2713 = vmatpush1.bf16.msra.mxu0 0
    %2714 = vmatprep.subr.bf16.mxu0 0
    %2715 = vmatpush1.bf16.msra.mxu0 0
    %2716 = vmatprep.subr.bf16.mxu0 0
    %2717 = vmatpush1.bf16.msra.mxu0 0
    %2718 = vmatprep.subr.bf16.mxu0 0
    %2719 = vmatpush1.bf16.msra.mxu0 0
    %2720 = vmatprep.subr.bf16.mxu0 0
    %2721 = vmatpush1.bf16.msra.mxu0 0
    %2722 = vmatprep.subr.bf16.mxu0 0
    %2723 = vmatpush1.bf16.msra.mxu0 0
    %2724 = vmatprep.subr.bf16.mxu0 0
    %2725 = vmatpush1.bf16.msra.mxu0 %v2685
    %2726 = vmatprep.subr.bf16.mxu0 0
    %2727 = vmatpush1.bf16.msra.mxu0 %v2684
    %2728 = vmatprep.subr.bf16.mxu0 0
    %2729 = vmatpush2.bf16.msra.mxu0 0
    %2730 = vmatprep.subr.bf16.mxu0 0
    %2731 = vmatpush2.bf16.msra.mxu0 0
    %2732 = vmatprep.subr.bf16.mxu0 0
    %2733 = vmatpush2.bf16.msra.mxu0 0
    %2734 = vmatprep.subr.bf16.mxu0 0
    %2735 = vmatpush2.bf16.msra.mxu0 0
    %2736 = vmatprep.subr.bf16.mxu0 0
    %2737 = vmatpush2.bf16.msra.mxu0 0
    %2738 = vmatprep.subr.bf16.mxu0 0
    %2739 = vmatpush2.bf16.msra.mxu0 0
    %2740 = vmatprep.subr.bf16.mxu0 0
    %2741 = vmatpush2.bf16.msra.mxu0 0
    %2742 = vmatprep.subr.bf16.mxu0 0
    %2743 = vmatpush2.bf16.msra.mxu0 0
    %2744 = vmatprep.mubr.bf16.mxu0 0
    %2745 = vmatmul.mubr.bf16.gmra.mxu0 %v2689
    %v2746 = vpop.f32.mrf.mxu0
    %v2747 = vadd.f32 %v2674, %v2746
    %v2748 = vpop.f32.mrf.mxu0
    %v2749 = vpop.f32.mrf.mxu0
    %v2750 = vadd.f32 %v2674, %v2749
    %v2751 = vpop.f32.mrf.mxu0
    %2752 = vmatprep.mubr.bf16.mxu0 0
    %2753 = vmatmul.mubr.bf16.gmra.mxu0 %v2692
    %v2754 = vpop.f32.mrf.mxu0
    %v2755 = vadd.f32 %v2674, %v2754
    %v2756 = vpop.f32.mrf.mxu0
    %v2757 = vpop.f32.mrf.mxu0
    %v2758 = vadd.f32 %v2674, %v2757
    %v2759 = vpop.f32.mrf.mxu0
    %2760 = vmatprep.mubr.bf16.mxu0 0
    %2761 = vmatmul.mubr.bf16.gmra.mxu0 %v2695
    %v2762 = vpop.f32.mrf.mxu0
    %v2763 = vadd.f32 %v2674, %v2762
    %v2764 = vpop.f32.mrf.mxu0
    %v2765 = vpop.f32.mrf.mxu0
    %v2766 = vadd.f32 %v2674, %v2765
    %v2767 = vpop.f32.mrf.mxu0
    %2768 = vmatprep.mubr.bf16.mxu0 0
    %2769 = vmatmul.mubr.bf16.gmra.mxu0 %v2698
    %v2770 = vpop.f32.mrf.mxu0
    %v2771 = vadd.f32 %v2674, %v2770
    %v2772 = vpop.f32.mrf.mxu0
    %v2773 = vpop.f32.mrf.mxu0
    %v2774 = vadd.f32 %v2674, %v2773
    %v2775 = vpop.f32.mrf.mxu0
    %2776 = vmatprep.mubr.bf16.mxu0 0
    %2777 = vmatmul.mubr.bf16.gmra.mxu0 %v2701
    %v2778 = vpop.f32.mrf.mxu0
    %v2779 = vadd.f32 %v2674, %v2778
    %v2780 = vpop.f32.mrf.mxu0
    %v2781 = vpop.f32.mrf.mxu0
    %v2782 = vadd.f32 %v2674, %v2781
    %v2783 = vpop.f32.mrf.mxu0
    %2784 = vmatprep.mubr.bf16.mxu0 0
    %2785 = vmatmul.mubr.bf16.gmra.mxu0 %v2704
    %v2786 = vpop.f32.mrf.mxu0
    %v2787 = vadd.f32 %v2674, %v2786
    %v2788 = vpop.f32.mrf.mxu0
    %v2789 = vpop.f32.mrf.mxu0
    %v2790 = vadd.f32 %v2674, %v2789
    %v2791 = vpop.f32.mrf.mxu0
    %2792 = vmatprep.mubr.bf16.mxu0 0
    %2793 = vmatmul.mubr.bf16.gmra.mxu0 %v2707
    %v2794 = vpop.f32.mrf.mxu0
    %v2795 = vadd.f32 %v2674, %v2794
    %v2796 = vpop.f32.mrf.mxu0
    %v2797 = vpop.f32.mrf.mxu0
    %v2798 = vadd.f32 %v2674, %v2797
    %v2799 = vpop.f32.mrf.mxu0
    %2800 = vmatprep.mubr.bf16.mxu0 0
    %2801 = vmatmul.mubr.bf16.gmra.mxu0 %v2710
    %v2802 = vpop.f32.mrf.mxu0
    %v2803 = vadd.f32 %v2674, %v2802
    %v2804 = vpop.f32.mrf.mxu0
    %v2805 = vpop.f32.mrf.mxu0
    %v2806 = vadd.f32 %v2674, %v2805
    %v2807 = vpop.f32.mrf.mxu0
    %2808 = vdwg.mxu0
    %v2809 = vadd.f32 %v294, %v2747
    %v2810 = vadd.f32 %v297, %v2750
    %v2811 = vadd.f32 %v302, %v2755
    %v2812 = vadd.f32 %v305, %v2758
    %v2813 = vadd.f32 %v310, %v2763
    %v2814 = vadd.f32 %v313, %v2766
    %v2815 = vadd.f32 %v318, %v2771
    %v2816 = vadd.f32 %v321, %v2774
    %v2817 = vadd.f32 %v326, %v2779
    %v2818 = vadd.f32 %v329, %v2782
    %v2819 = vadd.f32 %v334, %v2787
    %v2820 = vadd.f32 %v337, %v2790
    %v2821 = vadd.f32 %v342, %v2795
    %v2822 = vadd.f32 %v345, %v2798
    %v2823 = vadd.f32 %v350, %v2803
    %v2824 = vadd.f32 %v353, %v2806
    %v2825 = vsel %vm387, %v2809, 0.0
    %2826 = vadd.xlane.f32.xlu0 %v2825
    %v2827 = vpop.xlane.xlu0 %2826
    %v2828 = vsel %vm387, %v2810, 0.0
    %2829 = vadd.xlane.f32.xlu0 %v2828
    %v2830 = vpop.xlane.xlu0 %2829
    %v2831 = vsel %vm387, %v2811, 0.0
    %2832 = vadd.xlane.f32.xlu0 %v2831
    %v2833 = vpop.xlane.xlu0 %2832
    %v2834 = vsel %vm387, %v2812, 0.0
    %2835 = vadd.xlane.f32.xlu0 %v2834
    %v2836 = vpop.xlane.xlu0 %2835
    %v2837 = vsel %vm387, %v2813, 0.0
    %2838 = vadd.xlane.f32.xlu0 %v2837
    %v2839 = vpop.xlane.xlu0 %2838
    %v2840 = vsel %vm387, %v2814, 0.0
    %2841 = vadd.xlane.f32.xlu0 %v2840
    %v2842 = vpop.xlane.xlu0 %2841
    %v2843 = vsel %vm387, %v2815, 0.0
    %2844 = vadd.xlane.f32.xlu0 %v2843
    %v2845 = vpop.xlane.xlu0 %2844
    %v2846 = vsel %vm387, %v2816, 0.0
    %2847 = vadd.xlane.f32.xlu0 %v2846
    %v2848 = vpop.xlane.xlu0 %2847
    %v2849 = vsel %vm387, %v2817, 0.0
    %2850 = vadd.xlane.f32.xlu0 %v2849
    %v2851 = vpop.xlane.xlu0 %2850
    %v2852 = vsel %vm387, %v2818, 0.0
    %2853 = vadd.xlane.f32.xlu0 %v2852
    %v2854 = vpop.xlane.xlu0 %2853
    %v2855 = vsel %vm387, %v2819, 0.0
    %2856 = vadd.xlane.f32.xlu0 %v2855
    %v2857 = vpop.xlane.xlu0 %2856
    %v2858 = vsel %vm387, %v2820, 0.0
    %2859 = vadd.xlane.f32.xlu0 %v2858
    %v2860 = vpop.xlane.xlu0 %2859
    %v2861 = vsel %vm387, %v2821, 0.0
    %2862 = vadd.xlane.f32.xlu0 %v2861
    %v2863 = vpop.xlane.xlu0 %2862
    %v2864 = vsel %vm387, %v2822, 0.0
    %2865 = vadd.xlane.f32.xlu0 %v2864
    %v2866 = vpop.xlane.xlu0 %2865
    %v2867 = vsel %vm387, %v2823, 0.0
    %2868 = vadd.xlane.f32.xlu0 %v2867
    %v2869 = vpop.xlane.xlu0 %2868
    %v2870 = vsel %vm387, %v2824, 0.0
    %2871 = vadd.xlane.f32.xlu0 %v2870
    %v2872 = vpop.xlane.xlu0 %2871
    %v2873 = vrcp.pop 32.0
    %v2874 = vmul.f32 %v2827, %v2873
    %v2875 = vmul.f32 %v2830, %v2873
    %v2876 = vmul.f32 %v2833, %v2873
    %v2877 = vmul.f32 %v2836, %v2873
    %v2878 = vmul.f32 %v2839, %v2873
    %v2879 = vmul.f32 %v2842, %v2873
    %v2880 = vmul.f32 %v2845, %v2873
    %v2881 = vmul.f32 %v2848, %v2873
    %v2882 = vmul.f32 %v2851, %v2873
    %v2883 = vmul.f32 %v2854, %v2873
    %v2884 = vmul.f32 %v2857, %v2873
    %v2885 = vmul.f32 %v2860, %v2873
    %v2886 = vmul.f32 %v2863, %v2873
    %v2887 = vmul.f32 %v2866, %v2873
    %v2888 = vmul.f32 %v2869, %v2873
    %v2889 = vmul.f32 %v2872, %v2873
    %v2890 = vmul.f32 %v2809, %v2809
    %v2891 = vmul.f32 %v2810, %v2810
    %v2892 = vmul.f32 %v2811, %v2811
    %v2893 = vmul.f32 %v2812, %v2812
    %v2894 = vmul.f32 %v2813, %v2813
    %v2895 = vmul.f32 %v2814, %v2814
    %v2896 = vmul.f32 %v2815, %v2815
    %v2897 = vmul.f32 %v2816, %v2816
    %v2898 = vmul.f32 %v2817, %v2817
    %v2899 = vmul.f32 %v2818, %v2818
    %v2900 = vmul.f32 %v2819, %v2819
    %v2901 = vmul.f32 %v2820, %v2820
    %v2902 = vmul.f32 %v2821, %v2821
    %v2903 = vmul.f32 %v2822, %v2822
    %v2904 = vmul.f32 %v2823, %v2823
    %v2905 = vmul.f32 %v2824, %v2824
    %v2906 = vsel %vm387, %v2890, 0.0
    %2907 = vadd.xlane.f32.xlu0 %v2906
    %v2908 = vpop.xlane.xlu0 %2907
    %v2909 = vsel %vm387, %v2891, 0.0
    %2910 = vadd.xlane.f32.xlu0 %v2909
    %v2911 = vpop.xlane.xlu0 %2910
    %v2912 = vsel %vm387, %v2892, 0.0
    %2913 = vadd.xlane.f32.xlu0 %v2912
    %v2914 = vpop.xlane.xlu0 %2913
    %v2915 = vsel %vm387, %v2893, 0.0
    %2916 = vadd.xlane.f32.xlu0 %v2915
    %v2917 = vpop.xlane.xlu0 %2916
    %v2918 = vsel %vm387, %v2894, 0.0
    %2919 = vadd.xlane.f32.xlu0 %v2918
    %v2920 = vpop.xlane.xlu0 %2919
    %v2921 = vsel %vm387, %v2895, 0.0
    %2922 = vadd.xlane.f32.xlu0 %v2921
    %v2923 = vpop.xlane.xlu0 %2922
    %v2924 = vsel %vm387, %v2896, 0.0
    %2925 = vadd.xlane.f32.xlu0 %v2924
    %v2926 = vpop.xlane.xlu0 %2925
    %v2927 = vsel %vm387, %v2897, 0.0
    %2928 = vadd.xlane.f32.xlu0 %v2927
    %v2929 = vpop.xlane.xlu0 %2928
    %v2930 = vsel %vm387, %v2898, 0.0
    %2931 = vadd.xlane.f32.xlu0 %v2930
    %v2932 = vpop.xlane.xlu0 %2931
    %v2933 = vsel %vm387, %v2899, 0.0
    %2934 = vadd.xlane.f32.xlu0 %v2933
    %v2935 = vpop.xlane.xlu0 %2934
    %v2936 = vsel %vm387, %v2900, 0.0
    %2937 = vadd.xlane.f32.xlu0 %v2936
    %v2938 = vpop.xlane.xlu0 %2937
    %v2939 = vsel %vm387, %v2901, 0.0
    %2940 = vadd.xlane.f32.xlu0 %v2939
    %v2941 = vpop.xlane.xlu0 %2940
    %v2942 = vsel %vm387, %v2902, 0.0
    %2943 = vadd.xlane.f32.xlu0 %v2942
    %v2944 = vpop.xlane.xlu0 %2943
    %v2945 = vsel %vm387, %v2903, 0.0
    %2946 = vadd.xlane.f32.xlu0 %v2945
    %v2947 = vpop.xlane.xlu0 %2946
    %v2948 = vsel %vm387, %v2904, 0.0
    %2949 = vadd.xlane.f32.xlu0 %v2948
    %v2950 = vpop.xlane.xlu0 %2949
    %v2951 = vsel %vm387, %v2905, 0.0
    %2952 = vadd.xlane.f32.xlu0 %v2951
    %v2953 = vpop.xlane.xlu0 %2952
    %v2954 = vmul.f32 %v2908, %v2873
    %v2955 = vmul.f32 %v2911, %v2873
    %v2956 = vmul.f32 %v2914, %v2873
    %v2957 = vmul.f32 %v2917, %v2873
    %v2958 = vmul.f32 %v2920, %v2873
    %v2959 = vmul.f32 %v2923, %v2873
    %v2960 = vmul.f32 %v2926, %v2873
    %v2961 = vmul.f32 %v2929, %v2873
    %v2962 = vmul.f32 %v2932, %v2873
    %v2963 = vmul.f32 %v2935, %v2873
    %v2964 = vmul.f32 %v2938, %v2873
    %v2965 = vmul.f32 %v2941, %v2873
    %v2966 = vmul.f32 %v2944, %v2873
    %v2967 = vmul.f32 %v2947, %v2873
    %v2968 = vmul.f32 %v2950, %v2873
    %v2969 = vmul.f32 %v2953, %v2873
    %v2970 = vsub.f32 %v2809, %v2874
    %v2971 = vsub.f32 %v2810, %v2875
    %v2972 = vsub.f32 %v2811, %v2876
    %v2973 = vsub.f32 %v2812, %v2877
    %v2974 = vsub.f32 %v2813, %v2878
    %v2975 = vsub.f32 %v2814, %v2879
    %v2976 = vsub.f32 %v2815, %v2880
    %v2977 = vsub.f32 %v2816, %v2881
    %v2978 = vsub.f32 %v2817, %v2882
    %v2979 = vsub.f32 %v2818, %v2883
    %v2980 = vsub.f32 %v2819, %v2884
    %v2981 = vsub.f32 %v2820, %v2885
    %v2982 = vsub.f32 %v2821, %v2886
    %v2983 = vsub.f32 %v2822, %v2887
    %v2984 = vsub.f32 %v2823, %v2888
    %v2985 = vsub.f32 %v2824, %v2889
    %v2986 = vmul.f32 %v2874, %v2874
    %v2987 = vmul.f32 %v2875, %v2875
    %v2988 = vmul.f32 %v2876, %v2876
    %v2989 = vmul.f32 %v2877, %v2877
    %v2990 = vmul.f32 %v2878, %v2878
    %v2991 = vmul.f32 %v2879, %v2879
    %v2992 = vmul.f32 %v2880, %v2880
    %v2993 = vmul.f32 %v2881, %v2881
    %v2994 = vmul.f32 %v2882, %v2882
    %v2995 = vmul.f32 %v2883, %v2883
    %v2996 = vmul.f32 %v2884, %v2884
    %v2997 = vmul.f32 %v2885, %v2885
    %v2998 = vmul.f32 %v2886, %v2886
    %v2999 = vmul.f32 %v2887, %v2887
    %v3000 = vmul.f32 %v2888, %v2888
    %v3001 = vmul.f32 %v2889, %v2889
    %v3002 = vsub.f32 %v2954, %v2986
    %v3003 = vsub.f32 %v2955, %v2987
    %v3004 = vsub.f32 %v2956, %v2988
    %v3005 = vsub.f32 %v2957, %v2989
    %v3006 = vsub.f32 %v2958, %v2990
    %v3007 = vsub.f32 %v2959, %v2991
    %v3008 = vsub.f32 %v2960, %v2992
    %v3009 = vsub.f32 %v2961, %v2993
    %v3010 = vsub.f32 %v2962, %v2994
    %v3011 = vsub.f32 %v2963, %v2995
    %v3012 = vsub.f32 %v2964, %v2996
    %v3013 = vsub.f32 %v2965, %v2997
    %v3014 = vsub.f32 %v2966, %v2998
    %v3015 = vsub.f32 %v2967, %v2999
    %v3016 = vsub.f32 %v2968, %v3000
    %v3017 = vsub.f32 %v2969, %v3001
    %v3018 = vadd.f32 %v3002, 1e-05
    %v3019 = vadd.f32 %v3003, 1e-05
    %v3020 = vadd.f32 %v3004, 1e-05
    %v3021 = vadd.f32 %v3005, 1e-05
    %v3022 = vadd.f32 %v3006, 1e-05
    %v3023 = vadd.f32 %v3007, 1e-05
    %v3024 = vadd.f32 %v3008, 1e-05
    %v3025 = vadd.f32 %v3009, 1e-05
    %v3026 = vadd.f32 %v3010, 1e-05
    %v3027 = vadd.f32 %v3011, 1e-05
    %v3028 = vadd.f32 %v3012, 1e-05
    %v3029 = vadd.f32 %v3013, 1e-05
    %v3030 = vadd.f32 %v3014, 1e-05
    %v3031 = vadd.f32 %v3015, 1e-05
    %v3032 = vadd.f32 %v3016, 1e-05
    %v3033 = vadd.f32 %v3017, 1e-05
    %v3034 = vrsqrt.pop %v3018
    %v3035 = vrsqrt.pop %v3019
    %v3036 = vrsqrt.pop %v3020
    %v3037 = vrsqrt.pop %v3021
    %v3038 = vrsqrt.pop %v3022
    %v3039 = vrsqrt.pop %v3023
    %v3040 = vrsqrt.pop %v3024
    %v3041 = vrsqrt.pop %v3025
    %v3042 = vrsqrt.pop %v3026
    %v3043 = vrsqrt.pop %v3027
    %v3044 = vrsqrt.pop %v3028
    %v3045 = vrsqrt.pop %v3029
    %v3046 = vrsqrt.pop %v3030
    %v3047 = vrsqrt.pop %v3031
    %v3048 = vrsqrt.pop %v3032
    %v3049 = vrsqrt.pop %v3033
    %v3050 = vmul.f32 %v2970, %v3034
    %v3051 = vmul.f32 %v2971, %v3035
    %v3052 = vmul.f32 %v2972, %v3036
    %v3053 = vmul.f32 %v2973, %v3037
    %v3054 = vmul.f32 %v2974, %v3038
    %v3055 = vmul.f32 %v2975, %v3039
    %v3056 = vmul.f32 %v2976, %v3040
    %v3057 = vmul.f32 %v2977, %v3041
    %v3058 = vmul.f32 %v2978, %v3042
    %v3059 = vmul.f32 %v2979, %v3043
    %v3060 = vmul.f32 %v2980, %v3044
    %v3061 = vmul.f32 %v2981, %v3045
    %v3062 = vmul.f32 %v2982, %v3046
    %v3063 = vmul.f32 %v2983, %v3047
    %v3064 = vmul.f32 %v2984, %v3048
    %v3065 = vmul.f32 %v2985, %v3049
    %v3066 = vld [vmem:[%s12] sm:$0x1]
    %v3068 = vlaneseq
    %v3069 = vshrl.u32 %v3068, 7
    %v3070 = vsub.s32 0, %v3069
    %v3071 = vrot.slane %v3066, %v3070
    %v3073 = vmul.f32 %v3050, %v3071
    %v3074 = vmul.f32 %v3051, %v3071
    %v3075 = vmul.f32 %v3052, %v3071
    %v3076 = vmul.f32 %v3053, %v3071
    %v3077 = vmul.f32 %v3054, %v3071
    %v3078 = vmul.f32 %v3055, %v3071
    %v3079 = vmul.f32 %v3056, %v3071
    %v3080 = vmul.f32 %v3057, %v3071
    %v3081 = vmul.f32 %v3058, %v3071
    %v3082 = vmul.f32 %v3059, %v3071
    %v3083 = vmul.f32 %v3060, %v3071
    %v3084 = vmul.f32 %v3061, %v3071
    %v3085 = vmul.f32 %v3062, %v3071
    %v3086 = vmul.f32 %v3063, %v3071
    %v3087 = vmul.f32 %v3064, %v3071
    %v3088 = vmul.f32 %v3065, %v3071
    %v3089 = vld [vmem:[%s13] sm:$0x1]
    %v3091 = vlaneseq
    %v3092 = vshrl.u32 %v3091, 7
    %v3093 = vsub.s32 0, %v3092
    %v3094 = vrot.slane %v3089, %v3093
    %v3096 = vadd.f32 %v3073, %v3094
    %v3097 = vadd.f32 %v3074, %v3094
    %v3098 = vadd.f32 %v3075, %v3094
    %v3099 = vadd.f32 %v3076, %v3094
    %v3100 = vadd.f32 %v3077, %v3094
    %v3101 = vadd.f32 %v3078, %v3094
    %v3102 = vadd.f32 %v3079, %v3094
    %v3103 = vadd.f32 %v3080, %v3094
    %v3104 = vadd.f32 %v3081, %v3094
    %v3105 = vadd.f32 %v3082, %v3094
    %v3106 = vadd.f32 %v3083, %v3094
    %v3107 = vadd.f32 %v3084, %v3094
    %v3108 = vadd.f32 %v3085, %v3094
    %v3109 = vadd.f32 %v3086, %v3094
    %v3110 = vadd.f32 %v3087, %v3094
    %v3111 = vadd.f32 %v3088, %v3094
    %v3112 = vpack.c.bf16 %v3097, %v3096
    %v3113 = vpack.c.bf16 %v3099, %v3098
    %v3114 = vpack.c.bf16 %v3101, %v3100
    %v3115 = vpack.c.bf16 %v3103, %v3102
    %v3116 = vpack.c.bf16 %v3105, %v3104
    %v3117 = vpack.c.bf16 %v3107, %v3106
    %v3118 = vpack.c.bf16 %v3109, %v3108
    %v3119 = vpack.c.bf16 %v3111, %v3110
    %v3120 = vld [vmem:[#allocation11] sm:$0xf]
    %v3121 = vld [vmem:[#allocation11 + $0x4] sm:$0xf]
    %v3122 = vld [vmem:[#allocation11 + $0x8] sm:$0xf]
    %v3123 = vld [vmem:[#allocation11 + $0xc] sm:$0xf]
    %v3124 = vld [vmem:[%s15] sm:$0x1]
    %v3126 = vlaneseq
    %v3127 = vshrl.u32 %v3126, 7
    %v3128 = vsub.s32 0, %v3127
    %v3129 = vrot.slane %v3124, %v3128
    %v3135 = vunpack.c.l.b16 %v3120
    %v3136 = vunpack.c.l.b16 %v3121
    %v3137 = vunpack.c.l.b16 %v3122
    %v3138 = vunpack.c.l.b16 %v3123
    %v3139 = vpack.c.b16 %v3136, %v3135
    %v3140 = vpack.c.b16 %v3138, %v3137
    %v3144 = vsel %vm387, %v3112, 0
    %v3147 = vsel %vm387, %v3113, 0
    %v3150 = vsel %vm387, %v3114, 0
    %v3153 = vsel %vm387, %v3115, 0
    %v3156 = vsel %vm387, %v3116, 0
    %v3159 = vsel %vm387, %v3117, 0
    %v3162 = vsel %vm387, %v3118, 0
    %v3165 = vsel %vm387, %v3119, 0
    %3167 = vmatprep.subr.bf16.mxu0 0
    %3168 = vmatpush1.bf16.msra.mxu0 0
    %3169 = vmatprep.subr.bf16.mxu0 0
    %3170 = vmatpush1.bf16.msra.mxu0 0
    %3171 = vmatprep.subr.bf16.mxu0 0
    %3172 = vmatpush1.bf16.msra.mxu0 0
    %3173 = vmatprep.subr.bf16.mxu0 0
    %3174 = vmatpush1.bf16.msra.mxu0 0
    %3175 = vmatprep.subr.bf16.mxu0 0
    %3176 = vmatpush1.bf16.msra.mxu0 0
    %3177 = vmatprep.subr.bf16.mxu0 0
    %3178 = vmatpush1.bf16.msra.mxu0 0
    %3179 = vmatprep.subr.bf16.mxu0 0
    %3180 = vmatpush1.bf16.msra.mxu0 %v3140
    %3181 = vmatprep.subr.bf16.mxu0 0
    %3182 = vmatpush1.bf16.msra.mxu0 %v3139
    %3183 = vmatprep.subr.bf16.mxu0 0
    %3184 = vmatpush2.bf16.msra.mxu0 0
    %3185 = vmatprep.subr.bf16.mxu0 0
    %3186 = vmatpush2.bf16.msra.mxu0 0
    %3187 = vmatprep.subr.bf16.mxu0 0
    %3188 = vmatpush2.bf16.msra.mxu0 0
    %3189 = vmatprep.subr.bf16.mxu0 0
    %3190 = vmatpush2.bf16.msra.mxu0 0
    %3191 = vmatprep.subr.bf16.mxu0 0
    %3192 = vmatpush2.bf16.msra.mxu0 0
    %3193 = vmatprep.subr.bf16.mxu0 0
    %3194 = vmatpush2.bf16.msra.mxu0 0
    %3195 = vmatprep.subr.bf16.mxu0 0
    %3196 = vmatpush2.bf16.msra.mxu0 0
    %3197 = vmatprep.subr.bf16.mxu0 0
    %3198 = vmatpush2.bf16.msra.mxu0 0
    %3199 = vmatprep.mubr.bf16.mxu0 0
    %3200 = vmatmul.mubr.bf16.gmra.mxu0 %v3144
    %v3201 = vpop.f32.mrf.mxu0
    %v3202 = vadd.f32 %v3129, %v3201
    %v3203 = vpop.f32.mrf.mxu0
    %v3204 = vpop.f32.mrf.mxu0
    %v3205 = vadd.f32 %v3129, %v3204
    %v3206 = vpop.f32.mrf.mxu0
    %3207 = vmatprep.mubr.bf16.mxu0 0
    %3208 = vmatmul.mubr.bf16.gmra.mxu0 %v3147
    %v3209 = vpop.f32.mrf.mxu0
    %v3210 = vadd.f32 %v3129, %v3209
    %v3211 = vpop.f32.mrf.mxu0
    %v3212 = vpop.f32.mrf.mxu0
    %v3213 = vadd.f32 %v3129, %v3212
    %v3214 = vpop.f32.mrf.mxu0
    %3215 = vmatprep.mubr.bf16.mxu0 0
    %3216 = vmatmul.mubr.bf16.gmra.mxu0 %v3150
    %v3217 = vpop.f32.mrf.mxu0
    %v3218 = vadd.f32 %v3129, %v3217
    %v3219 = vpop.f32.mrf.mxu0
    %v3220 = vpop.f32.mrf.mxu0
    %v3221 = vadd.f32 %v3129, %v3220
    %v3222 = vpop.f32.mrf.mxu0
    %3223 = vmatprep.mubr.bf16.mxu0 0
    %3224 = vmatmul.mubr.bf16.gmra.mxu0 %v3153
    %v3225 = vpop.f32.mrf.mxu0
    %v3226 = vadd.f32 %v3129, %v3225
    %v3227 = vpop.f32.mrf.mxu0
    %v3228 = vpop.f32.mrf.mxu0
    %v3229 = vadd.f32 %v3129, %v3228
    %v3230 = vpop.f32.mrf.mxu0
    %3231 = vmatprep.mubr.bf16.mxu0 0
    %3232 = vmatmul.mubr.bf16.gmra.mxu0 %v3156
    %v3233 = vpop.f32.mrf.mxu0
    %v3234 = vadd.f32 %v3129, %v3233
    %v3235 = vpop.f32.mrf.mxu0
    %v3236 = vpop.f32.mrf.mxu0
    %v3237 = vadd.f32 %v3129, %v3236
    %v3238 = vpop.f32.mrf.mxu0
    %3239 = vmatprep.mubr.bf16.mxu0 0
    %3240 = vmatmul.mubr.bf16.gmra.mxu0 %v3159
    %v3241 = vpop.f32.mrf.mxu0
    %v3242 = vadd.f32 %v3129, %v3241
    %v3243 = vpop.f32.mrf.mxu0
    %v3244 = vpop.f32.mrf.mxu0
    %v3245 = vadd.f32 %v3129, %v3244
    %v3246 = vpop.f32.mrf.mxu0
    %3247 = vmatprep.mubr.bf16.mxu0 0
    %3248 = vmatmul.mubr.bf16.gmra.mxu0 %v3162
    %v3249 = vpop.f32.mrf.mxu0
    %v3250 = vadd.f32 %v3129, %v3249
    %v3251 = vpop.f32.mrf.mxu0
    %v3252 = vpop.f32.mrf.mxu0
    %v3253 = vadd.f32 %v3129, %v3252
    %v3254 = vpop.f32.mrf.mxu0
    %3255 = vmatprep.mubr.bf16.mxu0 0
    %3256 = vmatmul.mubr.bf16.gmra.mxu0 %v3165
    %v3257 = vpop.f32.mrf.mxu0
    %v3258 = vadd.f32 %v3129, %v3257
    %v3259 = vpop.f32.mrf.mxu0
    %v3260 = vpop.f32.mrf.mxu0
    %v3261 = vadd.f32 %v3129, %v3260
    %v3262 = vpop.f32.mrf.mxu0
    %3263 = vdwg.mxu0
    %v3264 = vmax.f32 %v3202, 0.0
    %v3265 = vmax.f32 %v3205, 0.0
    %v3266 = vmax.f32 %v3210, 0.0
    %v3267 = vmax.f32 %v3213, 0.0
    %v3268 = vmax.f32 %v3218, 0.0
    %v3269 = vmax.f32 %v3221, 0.0
    %v3270 = vmax.f32 %v3226, 0.0
    %v3271 = vmax.f32 %v3229, 0.0
    %v3272 = vmax.f32 %v3234, 0.0
    %v3273 = vmax.f32 %v3237, 0.0
    %v3274 = vmax.f32 %v3242, 0.0
    %v3275 = vmax.f32 %v3245, 0.0
    %v3276 = vmax.f32 %v3250, 0.0
    %v3277 = vmax.f32 %v3253, 0.0
    %v3278 = vmax.f32 %v3258, 0.0
    %v3279 = vmax.f32 %v3261, 0.0
    %v3280 = vpack.c.bf16 %v3265, %v3264
    %v3281 = vpack.c.bf16 %v3267, %v3266
    %v3282 = vpack.c.bf16 %v3269, %v3268
    %v3283 = vpack.c.bf16 %v3271, %v3270
    %v3284 = vpack.c.bf16 %v3273, %v3272
    %v3285 = vpack.c.bf16 %v3275, %v3274
    %v3286 = vpack.c.bf16 %v3277, %v3276
    %v3287 = vpack.c.bf16 %v3279, %v3278
    %v3288 = vld [vmem:[%s16] sm:$0xf]
    %v3289 = vld [vmem:[%s16 + $0x4] sm:$0xf]
    %v3290 = vld [vmem:[%s16 + $0x8] sm:$0xf]
    %v3291 = vld [vmem:[%s16 + $0xc] sm:$0xf]
    %v3292 = vld [vmem:[%s16 + $0x10] sm:$0xf]
    %v3293 = vld [vmem:[%s16 + $0x14] sm:$0xf]
    %v3294 = vld [vmem:[%s16 + $0x18] sm:$0xf]
    %v3295 = vld [vmem:[%s16 + $0x1c] sm:$0xf]
    %v3296 = vld [vmem:[%s17] sm:$0x1]
    %v3298 = vlaneseq
    %v3299 = vshrl.u32 %v3298, 7
    %v3300 = vsub.s32 0, %v3299
    %v3301 = vrot.slane %v3296, %v3300
    %v3311 = vunpack.c.l.b16 %v3288
    %v3312 = vunpack.c.l.b16 %v3289
    %v3313 = vunpack.c.l.b16 %v3290
    %v3314 = vunpack.c.l.b16 %v3291
    %v3315 = vunpack.c.l.b16 %v3292
    %v3316 = vunpack.c.l.b16 %v3293
    %v3317 = vunpack.c.l.b16 %v3294
    %v3318 = vunpack.c.l.b16 %v3295
    %v3319 = vpack.c.b16 %v3312, %v3311
    %v3320 = vpack.c.b16 %v3314, %v3313
    %v3321 = vpack.c.b16 %v3316, %v3315
    %v3322 = vpack.c.b16 %v3318, %v3317
    %v3328 = vsel %vm234, %v3280, 0
    %v3331 = vsel %vm234, %v3281, 0
    %v3334 = vsel %vm234, %v3282, 0
    %v3337 = vsel %vm234, %v3283, 0
    %v3340 = vsel %vm234, %v3284, 0
    %v3343 = vsel %vm234, %v3285, 0
    %v3346 = vsel %vm234, %v3286, 0
    %v3349 = vsel %vm234, %v3287, 0
    %3351 = vmatprep.subr.bf16.mxu0 0
    %3352 = vmatpush1.bf16.msra.mxu0 0
    %3353 = vmatprep.subr.bf16.mxu0 0
    %3354 = vmatpush1.bf16.msra.mxu0 0
    %3355 = vmatprep.subr.bf16.mxu0 0
    %3356 = vmatpush1.bf16.msra.mxu0 0
    %3357 = vmatprep.subr.bf16.mxu0 0
    %3358 = vmatpush1.bf16.msra.mxu0 0
    %3359 = vmatprep.subr.bf16.mxu0 0
    %3360 = vmatpush1.bf16.msra.mxu0 %v3322
    %3361 = vmatprep.subr.bf16.mxu0 0
    %3362 = vmatpush1.bf16.msra.mxu0 %v3321
    %3363 = vmatprep.subr.bf16.mxu0 0
    %3364 = vmatpush1.bf16.msra.mxu0 %v3320
    %3365 = vmatprep.subr.bf16.mxu0 0
    %3366 = vmatpush1.bf16.msra.mxu0 %v3319
    %3367 = vmatprep.subr.bf16.mxu0 0
    %3368 = vmatpush2.bf16.msra.mxu0 0
    %3369 = vmatprep.subr.bf16.mxu0 0
    %3370 = vmatpush2.bf16.msra.mxu0 0
    %3371 = vmatprep.subr.bf16.mxu0 0
    %3372 = vmatpush2.bf16.msra.mxu0 0
    %3373 = vmatprep.subr.bf16.mxu0 0
    %3374 = vmatpush2.bf16.msra.mxu0 0
    %3375 = vmatprep.subr.bf16.mxu0 0
    %3376 = vmatpush2.bf16.msra.mxu0 0
    %3377 = vmatprep.subr.bf16.mxu0 0
    %3378 = vmatpush2.bf16.msra.mxu0 0
    %3379 = vmatprep.subr.bf16.mxu0 0
    %3380 = vmatpush2.bf16.msra.mxu0 0
    %3381 = vmatprep.subr.bf16.mxu0 0
    %3382 = vmatpush2.bf16.msra.mxu0 0
    %3383 = vmatprep.mubr.bf16.mxu0 0
    %3384 = vmatmul.mubr.bf16.gmra.mxu0 %v3328
    %v3385 = vpop.f32.mrf.mxu0
    %v3386 = vadd.f32 %v3301, %v3385
    %v3387 = vpop.f32.mrf.mxu0
    %v3388 = vpop.f32.mrf.mxu0
    %v3389 = vadd.f32 %v3301, %v3388
    %v3390 = vpop.f32.mrf.mxu0
    %3391 = vmatprep.mubr.bf16.mxu0 0
    %3392 = vmatmul.mubr.bf16.gmra.mxu0 %v3331
    %v3393 = vpop.f32.mrf.mxu0
    %v3394 = vadd.f32 %v3301, %v3393
    %v3395 = vpop.f32.mrf.mxu0
    %v3396 = vpop.f32.mrf.mxu0
    %v3397 = vadd.f32 %v3301, %v3396
    %v3398 = vpop.f32.mrf.mxu0
    %3399 = vmatprep.mubr.bf16.mxu0 0
    %3400 = vmatmul.mubr.bf16.gmra.mxu0 %v3334
    %v3401 = vpop.f32.mrf.mxu0
    %v3402 = vadd.f32 %v3301, %v3401
    %v3403 = vpop.f32.mrf.mxu0
    %v3404 = vpop.f32.mrf.mxu0
    %v3405 = vadd.f32 %v3301, %v3404
    %v3406 = vpop.f32.mrf.mxu0
    %3407 = vmatprep.mubr.bf16.mxu0 0
    %3408 = vmatmul.mubr.bf16.gmra.mxu0 %v3337
    %v3409 = vpop.f32.mrf.mxu0
    %v3410 = vadd.f32 %v3301, %v3409
    %v3411 = vpop.f32.mrf.mxu0
    %v3412 = vpop.f32.mrf.mxu0
    %v3413 = vadd.f32 %v3301, %v3412
    %v3414 = vpop.f32.mrf.mxu0
    %3415 = vmatprep.mubr.bf16.mxu0 0
    %3416 = vmatmul.mubr.bf16.gmra.mxu0 %v3340
    %v3417 = vpop.f32.mrf.mxu0
    %v3418 = vadd.f32 %v3301, %v3417
    %v3419 = vpop.f32.mrf.mxu0
    %v3420 = vpop.f32.mrf.mxu0
    %v3421 = vadd.f32 %v3301, %v3420
    %v3422 = vpop.f32.mrf.mxu0
    %3423 = vmatprep.mubr.bf16.mxu0 0
    %3424 = vmatmul.mubr.bf16.gmra.mxu0 %v3343
    %v3425 = vpop.f32.mrf.mxu0
    %v3426 = vadd.f32 %v3301, %v3425
    %v3427 = vpop.f32.mrf.mxu0
    %v3428 = vpop.f32.mrf.mxu0
    %v3429 = vadd.f32 %v3301, %v3428
    %v3430 = vpop.f32.mrf.mxu0
    %3431 = vmatprep.mubr.bf16.mxu0 0
    %3432 = vmatmul.mubr.bf16.gmra.mxu0 %v3346
    %v3433 = vpop.f32.mrf.mxu0
    %v3434 = vadd.f32 %v3301, %v3433
    %v3435 = vpop.f32.mrf.mxu0
    %v3436 = vpop.f32.mrf.mxu0
    %v3437 = vadd.f32 %v3301, %v3436
    %v3438 = vpop.f32.mrf.mxu0
    %3439 = vmatprep.mubr.bf16.mxu0 0
    %3440 = vmatmul.mubr.bf16.gmra.mxu0 %v3349
    %v3441 = vpop.f32.mrf.mxu0
    %v3442 = vadd.f32 %v3301, %v3441
    %v3443 = vpop.f32.mrf.mxu0
    %v3444 = vpop.f32.mrf.mxu0
    %v3445 = vadd.f32 %v3301, %v3444
    %v3446 = vpop.f32.mrf.mxu0
    %3447 = vdwg.mxu0
    %v3448 = vadd.f32 %v3096, %v3386
    %v3449 = vadd.f32 %v3097, %v3389
    %v3450 = vadd.f32 %v3098, %v3394
    %v3451 = vadd.f32 %v3099, %v3397
    %v3452 = vadd.f32 %v3100, %v3402
    %v3453 = vadd.f32 %v3101, %v3405
    %v3454 = vadd.f32 %v3102, %v3410
    %v3455 = vadd.f32 %v3103, %v3413
    %v3456 = vadd.f32 %v3104, %v3418
    %v3457 = vadd.f32 %v3105, %v3421
    %v3458 = vadd.f32 %v3106, %v3426
    %v3459 = vadd.f32 %v3107, %v3429
    %v3460 = vadd.f32 %v3108, %v3434
    %v3461 = vadd.f32 %v3109, %v3437
    %v3462 = vadd.f32 %v3110, %v3442
    %v3463 = vadd.f32 %v3111, %v3445
    %v3464 = vsel %vm387, %v3448, 0.0
    %3465 = vadd.xlane.f32.xlu0 %v3464
    %v3466 = vpop.xlane.xlu0 %3465
    %v3467 = vsel %vm387, %v3449, 0.0
    %3468 = vadd.xlane.f32.xlu0 %v3467
    %v3469 = vpop.xlane.xlu0 %3468
    %v3470 = vsel %vm387, %v3450, 0.0
    %3471 = vadd.xlane.f32.xlu0 %v3470
    %v3472 = vpop.xlane.xlu0 %3471
    %v3473 = vsel %vm387, %v3451, 0.0
    %3474 = vadd.xlane.f32.xlu0 %v3473
    %v3475 = vpop.xlane.xlu0 %3474
    %v3476 = vsel %vm387, %v3452, 0.0
    %3477 = vadd.xlane.f32.xlu0 %v3476
    %v3478 = vpop.xlane.xlu0 %3477
    %v3479 = vsel %vm387, %v3453, 0.0
    %3480 = vadd.xlane.f32.xlu0 %v3479
    %v3481 = vpop.xlane.xlu0 %3480
    %v3482 = vsel %vm387, %v3454, 0.0
    %3483 = vadd.xlane.f32.xlu0 %v3482
    %v3484 = vpop.xlane.xlu0 %3483
    %v3485 = vsel %vm387, %v3455, 0.0
    %3486 = vadd.xlane.f32.xlu0 %v3485
    %v3487 = vpop.xlane.xlu0 %3486
    %v3488 = vsel %vm387, %v3456, 0.0
    %3489 = vadd.xlane.f32.xlu0 %v3488
    %v3490 = vpop.xlane.xlu0 %3489
    %v3491 = vsel %vm387, %v3457, 0.0
    %3492 = vadd.xlane.f32.xlu0 %v3491
    %v3493 = vpop.xlane.xlu0 %3492
    %v3494 = vsel %vm387, %v3458, 0.0
    %3495 = vadd.xlane.f32.xlu0 %v3494
    %v3496 = vpop.xlane.xlu0 %3495
    %v3497 = vsel %vm387, %v3459, 0.0
    %3498 = vadd.xlane.f32.xlu0 %v3497
    %v3499 = vpop.xlane.xlu0 %3498
    %v3500 = vsel %vm387, %v3460, 0.0
    %3501 = vadd.xlane.f32.xlu0 %v3500
    %v3502 = vpop.xlane.xlu0 %3501
    %v3503 = vsel %vm387, %v3461, 0.0
    %3504 = vadd.xlane.f32.xlu0 %v3503
    %v3505 = vpop.xlane.xlu0 %3504
    %v3506 = vsel %vm387, %v3462, 0.0
    %3507 = vadd.xlane.f32.xlu0 %v3506
    %v3508 = vpop.xlane.xlu0 %3507
    %v3509 = vsel %vm387, %v3463, 0.0
    %3510 = vadd.xlane.f32.xlu0 %v3509
    %v3511 = vpop.xlane.xlu0 %3510
    %v3512 = vmul.f32 %v3466, %v2873
    %v3513 = vmul.f32 %v3469, %v2873
    %v3514 = vmul.f32 %v3472, %v2873
    %v3515 = vmul.f32 %v3475, %v2873
    %v3516 = vmul.f32 %v3478, %v2873
    %v3517 = vmul.f32 %v3481, %v2873
    %v3518 = vmul.f32 %v3484, %v2873
    %v3519 = vmul.f32 %v3487, %v2873
    %v3520 = vmul.f32 %v3490, %v2873
    %v3521 = vmul.f32 %v3493, %v2873
    %v3522 = vmul.f32 %v3496, %v2873
    %v3523 = vmul.f32 %v3499, %v2873
    %v3524 = vmul.f32 %v3502, %v2873
    %v3525 = vmul.f32 %v3505, %v2873
    %v3526 = vmul.f32 %v3508, %v2873
    %v3527 = vmul.f32 %v3511, %v2873
    %v3528 = vmul.f32 %v3448, %v3448
    %v3529 = vmul.f32 %v3449, %v3449
    %v3530 = vmul.f32 %v3450, %v3450
    %v3531 = vmul.f32 %v3451, %v3451
    %v3532 = vmul.f32 %v3452, %v3452
    %v3533 = vmul.f32 %v3453, %v3453
    %v3534 = vmul.f32 %v3454, %v3454
    %v3535 = vmul.f32 %v3455, %v3455
    %v3536 = vmul.f32 %v3456, %v3456
    %v3537 = vmul.f32 %v3457, %v3457
    %v3538 = vmul.f32 %v3458, %v3458
    %v3539 = vmul.f32 %v3459, %v3459
    %v3540 = vmul.f32 %v3460, %v3460
    %v3541 = vmul.f32 %v3461, %v3461
    %v3542 = vmul.f32 %v3462, %v3462
    %v3543 = vmul.f32 %v3463, %v3463
    %v3544 = vsel %vm387, %v3528, 0.0
    %3545 = vadd.xlane.f32.xlu0 %v3544
    %v3546 = vpop.xlane.xlu0 %3545
    %v3547 = vsel %vm387, %v3529, 0.0
    %3548 = vadd.xlane.f32.xlu0 %v3547
    %v3549 = vpop.xlane.xlu0 %3548
    %v3550 = vsel %vm387, %v3530, 0.0
    %3551 = vadd.xlane.f32.xlu0 %v3550
    %v3552 = vpop.xlane.xlu0 %3551
    %v3553 = vsel %vm387, %v3531, 0.0
    %3554 = vadd.xlane.f32.xlu0 %v3553
    %v3555 = vpop.xlane.xlu0 %3554
    %v3556 = vsel %vm387, %v3532, 0.0
    %3557 = vadd.xlane.f32.xlu0 %v3556
    %v3558 = vpop.xlane.xlu0 %3557
    %v3559 = vsel %vm387, %v3533, 0.0
    %3560 = vadd.xlane.f32.xlu0 %v3559
    %v3561 = vpop.xlane.xlu0 %3560
    %v3562 = vsel %vm387, %v3534, 0.0
    %3563 = vadd.xlane.f32.xlu0 %v3562
    %v3564 = vpop.xlane.xlu0 %3563
    %v3565 = vsel %vm387, %v3535, 0.0
    %3566 = vadd.xlane.f32.xlu0 %v3565
    %v3567 = vpop.xlane.xlu0 %3566
    %v3568 = vsel %vm387, %v3536, 0.0
    %3569 = vadd.xlane.f32.xlu0 %v3568
    %v3570 = vpop.xlane.xlu0 %3569
    %v3571 = vsel %vm387, %v3537, 0.0
    %3572 = vadd.xlane.f32.xlu0 %v3571
    %v3573 = vpop.xlane.xlu0 %3572
    %v3574 = vsel %vm387, %v3538, 0.0
    %3575 = vadd.xlane.f32.xlu0 %v3574
    %v3576 = vpop.xlane.xlu0 %3575
    %v3577 = vsel %vm387, %v3539, 0.0
    %3578 = vadd.xlane.f32.xlu0 %v3577
    %v3579 = vpop.xlane.xlu0 %3578
    %v3580 = vsel %vm387, %v3540, 0.0
    %3581 = vadd.xlane.f32.xlu0 %v3580
    %v3582 = vpop.xlane.xlu0 %3581
    %v3583 = vsel %vm387, %v3541, 0.0
    %3584 = vadd.xlane.f32.xlu0 %v3583
    %v3585 = vpop.xlane.xlu0 %3584
    %v3586 = vsel %vm387, %v3542, 0.0
    %3587 = vadd.xlane.f32.xlu0 %v3586
    %v3588 = vpop.xlane.xlu0 %3587
    %v3589 = vsel %vm387, %v3543, 0.0
    %3590 = vadd.xlane.f32.xlu0 %v3589
    %v3591 = vpop.xlane.xlu0 %3590
    %v3592 = vmul.f32 %v3546, %v2873
    %v3593 = vmul.f32 %v3549, %v2873
    %v3594 = vmul.f32 %v3552, %v2873
    %v3595 = vmul.f32 %v3555, %v2873
    %v3596 = vmul.f32 %v3558, %v2873
    %v3597 = vmul.f32 %v3561, %v2873
    %v3598 = vmul.f32 %v3564, %v2873
    %v3599 = vmul.f32 %v3567, %v2873
    %v3600 = vmul.f32 %v3570, %v2873
    %v3601 = vmul.f32 %v3573, %v2873
    %v3602 = vmul.f32 %v3576, %v2873
    %v3603 = vmul.f32 %v3579, %v2873
    %v3604 = vmul.f32 %v3582, %v2873
    %v3605 = vmul.f32 %v3585, %v2873
    %v3606 = vmul.f32 %v3588, %v2873
    %v3607 = vmul.f32 %v3591, %v2873
    %v3608 = vsub.f32 %v3448, %v3512
    %v3609 = vsub.f32 %v3449, %v3513
    %v3610 = vsub.f32 %v3450, %v3514
    %v3611 = vsub.f32 %v3451, %v3515
    %v3612 = vsub.f32 %v3452, %v3516
    %v3613 = vsub.f32 %v3453, %v3517
    %v3614 = vsub.f32 %v3454, %v3518
    %v3615 = vsub.f32 %v3455, %v3519
    %v3616 = vsub.f32 %v3456, %v3520
    %v3617 = vsub.f32 %v3457, %v3521
    %v3618 = vsub.f32 %v3458, %v3522
    %v3619 = vsub.f32 %v3459, %v3523
    %v3620 = vsub.f32 %v3460, %v3524
    %v3621 = vsub.f32 %v3461, %v3525
    %v3622 = vsub.f32 %v3462, %v3526
    %v3623 = vsub.f32 %v3463, %v3527
    %v3624 = vmul.f32 %v3512, %v3512
    %v3625 = vmul.f32 %v3513, %v3513
    %v3626 = vmul.f32 %v3514, %v3514
    %v3627 = vmul.f32 %v3515, %v3515
    %v3628 = vmul.f32 %v3516, %v3516
    %v3629 = vmul.f32 %v3517, %v3517
    %v3630 = vmul.f32 %v3518, %v3518
    %v3631 = vmul.f32 %v3519, %v3519
    %v3632 = vmul.f32 %v3520, %v3520
    %v3633 = vmul.f32 %v3521, %v3521
    %v3634 = vmul.f32 %v3522, %v3522
    %v3635 = vmul.f32 %v3523, %v3523
    %v3636 = vmul.f32 %v3524, %v3524
    %v3637 = vmul.f32 %v3525, %v3525
    %v3638 = vmul.f32 %v3526, %v3526
    %v3639 = vmul.f32 %v3527, %v3527
    %v3640 = vsub.f32 %v3592, %v3624
    %v3641 = vsub.f32 %v3593, %v3625
    %v3642 = vsub.f32 %v3594, %v3626
    %v3643 = vsub.f32 %v3595, %v3627
    %v3644 = vsub.f32 %v3596, %v3628
    %v3645 = vsub.f32 %v3597, %v3629
    %v3646 = vsub.f32 %v3598, %v3630
    %v3647 = vsub.f32 %v3599, %v3631
    %v3648 = vsub.f32 %v3600, %v3632
    %v3649 = vsub.f32 %v3601, %v3633
    %v3650 = vsub.f32 %v3602, %v3634
    %v3651 = vsub.f32 %v3603, %v3635
    %v3652 = vsub.f32 %v3604, %v3636
    %v3653 = vsub.f32 %v3605, %v3637
    %v3654 = vsub.f32 %v3606, %v3638
    %v3655 = vsub.f32 %v3607, %v3639
    %v3656 = vadd.f32 %v3640, 1e-05
    %v3657 = vadd.f32 %v3641, 1e-05
    %v3658 = vadd.f32 %v3642, 1e-05
    %v3659 = vadd.f32 %v3643, 1e-05
    %v3660 = vadd.f32 %v3644, 1e-05
    %v3661 = vadd.f32 %v3645, 1e-05
    %v3662 = vadd.f32 %v3646, 1e-05
    %v3663 = vadd.f32 %v3647, 1e-05
    %v3664 = vadd.f32 %v3648, 1e-05
    %v3665 = vadd.f32 %v3649, 1e-05
    %v3666 = vadd.f32 %v3650, 1e-05
    %v3667 = vadd.f32 %v3651, 1e-05
    %v3668 = vadd.f32 %v3652, 1e-05
    %v3669 = vadd.f32 %v3653, 1e-05
    %v3670 = vadd.f32 %v3654, 1e-05
    %v3671 = vadd.f32 %v3655, 1e-05
    %v3672 = vrsqrt.pop %v3656
    %v3673 = vrsqrt.pop %v3657
    %v3674 = vrsqrt.pop %v3658
    %v3675 = vrsqrt.pop %v3659
    %v3676 = vrsqrt.pop %v3660
    %v3677 = vrsqrt.pop %v3661
    %v3678 = vrsqrt.pop %v3662
    %v3679 = vrsqrt.pop %v3663
    %v3680 = vrsqrt.pop %v3664
    %v3681 = vrsqrt.pop %v3665
    %v3682 = vrsqrt.pop %v3666
    %v3683 = vrsqrt.pop %v3667
    %v3684 = vrsqrt.pop %v3668
    %v3685 = vrsqrt.pop %v3669
    %v3686 = vrsqrt.pop %v3670
    %v3687 = vrsqrt.pop %v3671
    %v3688 = vmul.f32 %v3608, %v3672
    %v3689 = vmul.f32 %v3609, %v3673
    %v3690 = vmul.f32 %v3610, %v3674
    %v3691 = vmul.f32 %v3611, %v3675
    %v3692 = vmul.f32 %v3612, %v3676
    %v3693 = vmul.f32 %v3613, %v3677
    %v3694 = vmul.f32 %v3614, %v3678
    %v3695 = vmul.f32 %v3615, %v3679
    %v3696 = vmul.f32 %v3616, %v3680
    %v3697 = vmul.f32 %v3617, %v3681
    %v3698 = vmul.f32 %v3618, %v3682
    %v3699 = vmul.f32 %v3619, %v3683
    %v3700 = vmul.f32 %v3620, %v3684
    %v3701 = vmul.f32 %v3621, %v3685
    %v3702 = vmul.f32 %v3622, %v3686
    %v3703 = vmul.f32 %v3623, %v3687
    %v3704 = vld [vmem:[%s18] sm:$0x1]
    %v3706 = vlaneseq
    %v3707 = vshrl.u32 %v3706, 7
    %v3708 = vsub.s32 0, %v3707
    %v3709 = vrot.slane %v3704, %v3708
    %v3711 = vmul.f32 %v3688, %v3709
    %v3712 = vmul.f32 %v3689, %v3709
    %v3713 = vmul.f32 %v3690, %v3709
    %v3714 = vmul.f32 %v3691, %v3709
    %v3715 = vmul.f32 %v3692, %v3709
    %v3716 = vmul.f32 %v3693, %v3709
    %v3717 = vmul.f32 %v3694, %v3709
    %v3718 = vmul.f32 %v3695, %v3709
    %v3719 = vmul.f32 %v3696, %v3709
    %v3720 = vmul.f32 %v3697, %v3709
    %v3721 = vmul.f32 %v3698, %v3709
    %v3722 = vmul.f32 %v3699, %v3709
    %v3723 = vmul.f32 %v3700, %v3709
    %v3724 = vmul.f32 %v3701, %v3709
    %v3725 = vmul.f32 %v3702, %v3709
    %v3726 = vmul.f32 %v3703, %v3709
    %v3727 = vld [vmem:[%s19] sm:$0x1]
    %v3729 = vlaneseq
    %v3730 = vshrl.u32 %v3729, 7
    %v3731 = vsub.s32 0, %v3730
    %v3732 = vrot.slane %v3727, %v3731
    %v3734 = vadd.f32 %v3711, %v3732
    %v3735 = vadd.f32 %v3712, %v3732
    %v3736 = vadd.f32 %v3713, %v3732
    %v3737 = vadd.f32 %v3714, %v3732
    %v3738 = vadd.f32 %v3715, %v3732
    %v3739 = vadd.f32 %v3716, %v3732
    %v3740 = vadd.f32 %v3717, %v3732
    %v3741 = vadd.f32 %v3718, %v3732
    %v3742 = vadd.f32 %v3719, %v3732
    %v3743 = vadd.f32 %v3720, %v3732
    %v3744 = vadd.f32 %v3721, %v3732
    %v3745 = vadd.f32 %v3722, %v3732
    %v3746 = vadd.f32 %v3723, %v3732
    %v3747 = vadd.f32 %v3724, %v3732
    %v3748 = vadd.f32 %v3725, %v3732
    %v3749 = vadd.f32 %v3726, %v3732
    %v3750 = vld [vmem:[%s20] sm:$0x1]
    %v3751 = vld [vmem:[#allocation2] sm:$0x1]
    %3753 = vset.pattern.permute.xlu0 0
    %3754 = vperm.xlu0 %3753, %v3751
    %v3755 = vpop.permute.xlu0 %3754
    %v3757 = vlaneseq
    %v3758 = vshrl.u32 %v3757, 7
    %v3759 = vsub.s32 0, %v3758
    %v3760 = vrot.slane %v3755, %v3759
    %v3762 = vsel %vm387, %v3750, 0
    %v3765 = vsel %vm387, %v3734, 0
    %v3768 = vsel %vm387, %v3735, 0
    %v3771 = vsel %vm387, %v3736, 0
    %v3774 = vsel %vm387, %v3737, 0
    %v3777 = vsel %vm387, %v3738, 0
    %v3780 = vsel %vm387, %v3739, 0
    %v3783 = vsel %vm387, %v3740, 0
    %v3786 = vsel %vm387, %v3741, 0
    %v3789 = vsel %vm387, %v3742, 0
    %v3792 = vsel %vm387, %v3743, 0
    %v3795 = vsel %vm387, %v3744, 0
    %v3798 = vsel %vm387, %v3745, 0
    %v3801 = vsel %vm387, %v3746, 0
    %v3804 = vsel %vm387, %v3747, 0
    %v3807 = vsel %vm387, %v3748, 0
    %v3810 = vsel %vm387, %v3749, 0
    %3812 = vmatprep.subr.mxu0 0.0
    %3813 = vmatpush1.xpose.msra.mxu0 %v3810
    %3814 = vmatprep.subr.mxu0 0.0
    %3815 = vmatpush1.xpose.msra.mxu0 %v3807
    %3816 = vmatprep.subr.mxu0 0.0
    %3817 = vmatpush1.xpose.msra.mxu0 %v3804
    %3818 = vmatprep.subr.mxu0 0.0
    %3819 = vmatpush1.xpose.msra.mxu0 %v3801
    %3820 = vmatprep.subr.mxu0 0.0
    %3821 = vmatpush1.xpose.msra.mxu0 %v3798
    %3822 = vmatprep.subr.mxu0 0.0
    %3823 = vmatpush1.xpose.msra.mxu0 %v3795
    %3824 = vmatprep.subr.mxu0 0.0
    %3825 = vmatpush1.xpose.msra.mxu0 %v3792
    %3826 = vmatprep.subr.mxu0 0.0
    %3827 = vmatpush1.xpose.msra.mxu0 %v3789
    %3828 = vmatprep.subr.mxu0 0.0
    %3829 = vmatpush1.xpose.msra.mxu0 %v3786
    %3830 = vmatprep.subr.mxu0 0.0
    %3831 = vmatpush1.xpose.msra.mxu0 %v3783
    %3832 = vmatprep.subr.mxu0 0.0
    %3833 = vmatpush1.xpose.msra.mxu0 %v3780
    %3834 = vmatprep.subr.mxu0 0.0
    %3835 = vmatpush1.xpose.msra.mxu0 %v3777
    %3836 = vmatprep.subr.mxu0 0.0
    %3837 = vmatpush1.xpose.msra.mxu0 %v3774
    %3838 = vmatprep.subr.mxu0 0.0
    %3839 = vmatpush1.xpose.msra.mxu0 %v3771
    %3840 = vmatprep.subr.mxu0 0.0
    %3841 = vmatpush1.xpose.msra.mxu0 %v3768
    %3842 = vmatprep.subr.mxu0 0.0
    %3843 = vmatpush1.xpose.msra.mxu0 %v3765
    %3844 = vmatprep.subr.mxu0 0.0
    %3845 = vmatpush2.xpose.msra.mxu0 0.0
    %3846 = vmatprep.subr.mxu0 0.0
    %3847 = vmatpush2.xpose.msra.mxu0 0.0
    %3848 = vmatprep.subr.mxu0 0.0
    %3849 = vmatpush2.xpose.msra.mxu0 0.0
    %3850 = vmatprep.subr.mxu0 0.0
    %3851 = vmatpush2.xpose.msra.mxu0 0.0
    %3852 = vmatprep.subr.mxu0 0.0
    %3853 = vmatpush2.xpose.msra.mxu0 0.0
    %3854 = vmatprep.subr.mxu0 0.0
    %3855 = vmatpush2.xpose.msra.mxu0 0.0
    %3856 = vmatprep.subr.mxu0 0.0
    %3857 = vmatpush2.xpose.msra.mxu0 0.0
    %3858 = vmatprep.subr.mxu0 0.0
    %3859 = vmatpush2.xpose.msra.mxu0 0.0
    %3860 = vmatprep.subr.mxu0 0.0
    %3861 = vmatpush2.xpose.msra.mxu0 0.0
    %3862 = vmatprep.subr.mxu0 0.0
    %3863 = vmatpush2.xpose.msra.mxu0 0.0
    %3864 = vmatprep.subr.mxu0 0.0
    %3865 = vmatpush2.xpose.msra.mxu0 0.0
    %3866 = vmatprep.subr.mxu0 0.0
    %3867 = vmatpush2.xpose.msra.mxu0 0.0
    %3868 = vmatprep.subr.mxu0 0.0
    %3869 = vmatpush2.xpose.msra.mxu0 0.0
    %3870 = vmatprep.subr.mxu0 0.0
    %3871 = vmatpush2.xpose.msra.mxu0 0.0
    %3872 = vmatprep.subr.mxu0 0.0
    %3873 = vmatpush2.xpose.msra.mxu0 0.0
    %3874 = vmatprep.subr.mxu0 0.0
    %3875 = vmatpush2.xpose.msra.mxu0 0.0
    %3876 = vmatprep.mubr.f32.mxu0 0.0
    %3877 = vmatmul.mubr.f32.gmra.mxu0 %v3762
    %v3878 = vpop.f32.mrf.mxu0
    %v3879 = vadd.f32 %v3760, %v3878
    %v3880 = vpop.f32.mrf.mxu0
    %3881 = vdwg.mxu0
    %v3882 = vxor.u32 %v3879, 2147483648
    %v3883 = vmul.f32 %v3882, 1.442695
    %v3884 = vpow.pop %v3883
    %v3885 = vadd.f32 %v3884, 1.0
    %v3886 = vrcp.pop %v3885
    %v3887 = vmul.f32 1.0, %v3886
    %3888 = vst [vmem:[#allocation12] sm:$0x1] %v3887
    // Predicated region
    $region110: #{tpu_custom_call.1} parent=1 // pred_check
      _
    $region111: #{tpu_custom_call.1} parent=1 // pred_check_branch
      %3890 = sbr.rel (0) target = $region113
    $region112: #{tpu_custom_call.1} parent=1 // pred_region
      %s3892 = ssub.s32 16, 16
      %3893 = vsyncadd [#allocation5], %s3892
      %s3895 = sshll.u32 [#allocation12], 4
      %s3896 = int_to_ptr.vmem [resolvable:$true] %s3895
      %3898 = dma.vmem_to_hbm [thread:$0]  %s3896, 16, %s22, [#allocation5]
    $region113: #{tpu_custom_call.1} parent=1 // pred_fallthru
      _
    // Predicated region
    $region114: #{tpu_custom_call.1} parent=1 // pred_check
      _
    $region115: #{tpu_custom_call.1} parent=1 // pred_check_branch
      %3900 = sbr.rel (0) target = $region117
    $region116: #{tpu_custom_call.1} parent=1 // pred_region
      %3901 = dma.done [#allocation5], 16
    $region117: #{tpu_custom_call.1} parent=1 // pred_fallthru
      _
    %3902 = vsyncpa [#allocation4], 1
    %3903 = vsyncpa [#allocation7], 1
    %3904 = vsyncpa [#allocation10], 1
    %3905 = vsyncpa [#allocation5], 1

</llo_original>
